<compile_context>
chip_gen: v6e
topology: v6e:2x2x1
jax: 0.10.0
libtpu: 0.0.40
codegen_flags: <defaults>
</compile_context>

<pallas_src>
import math
from functools import partial

import numpy as np
import jax
import jax.numpy as jnp
from jax.experimental import pallas as pl
from jax.experimental.pallas import tpu as pltpu  # noqa: F401  (TPU backend)

# ----------------------------- model config ---------------------------------
BATCH = 2          # batch size
N_CH = 4           # number of iEEG channels
SEQ_LEN = 8        # number of patches per channel
PATCH_LEN = 16     # samples per patch (tokenizer input width)
N_BANDS = 8        # power-spectrum bands
D_MODEL = 32
N_HEADS = 4
D_FF = 64
N_LAYERS_T = 2     # time-encoder layers
N_LAYERS_S = 2     # spatial-encoder layers
CLS_HIDDEN = 32
N_LABELS = 4
CLS_LOSS_SCALE = 1.0
LN_EPS = 1e-5

KIN_PAD = 32       # tokenizer input (patch_len + n_bands = 24) padded to 32 lanes
NEG_INF = -1e30


# ----------------------------- kernel helpers --------------------------------
def _gelu(x):
    # tanh approximation of GELU (EUP-friendly)
    return 0.5 * x * (1.0 + jnp.tanh(0.7978845608028654 * (x + 0.044715 * x * x * x)))


def _layer_norm(x, gamma, beta, eps=LN_EPS):
    mu = jnp.mean(x, axis=-1, keepdims=True)
    var = jnp.mean((x - mu) ** 2, axis=-1, keepdims=True)
    return (x - mu) * jax.lax.rsqrt(var + eps) * gamma + beta


# ----------------------------- fused kernel ----------------------------------
def fused_brant_kernel(xin_ref, wtok_ref, fbuf_ref,
                       wqkv_ref, wo_ref, wff1_ref, wff2_ref, lvec_ref,
                       wz_ref, mskcls_ref, selcls_ref, clsp_ref,
                       o_ref, *, n_heads, n_layers_t, n_layers_s, batch):
    f32 = jnp.float32
    bf16 = jnp.bfloat16
    D = wo_ref.shape[-1]
    dh = D // n_heads
    dff = wff1_ref.shape[-1]
    H = selcls_ref.shape[-1]
    rows = xin_ref.shape[0]
    n_labels = o_ref.shape[-1]
    scale = 1.0 / math.sqrt(dh)

    tok_add = fbuf_ref[0, :, :D]        # (rows, D)  pos-emb + tokenizer bias per row
    mask_t = fbuf_ref[1]                # (rows, rows) time-encoder attention mask
    mask_s = fbuf_ref[2]                # (rows, rows) spatial-encoder attention mask

    # ------------------------ tokenizer (one matmul) --------------------------
    x = jnp.dot(xin_ref[...], wtok_ref[...], preferred_element_type=f32) + tok_add

    # ---------------- shared post-norm transformer encoder layer -------------
    def enc_layer(x, li, mask):
        lv = lvec_ref[li]                                        # (8, 3D) f32 vectors
        # fused QKV projection: one (rows, D) @ (D, 3D) bf16 matmul
        qkv = jnp.dot(x.astype(bf16), wqkv_ref[li],
                      preferred_element_type=f32) + lv[0:1, :]
        qkv_b = qkv.astype(bf16)
        ctx = []
        for h in range(n_heads):                                 # static, unrolled
            qh = qkv_b[:, h * dh:(h + 1) * dh]
            kh = qkv_b[:, D + h * dh:D + (h + 1) * dh]
            vh = qkv_b[:, 2 * D + h * dh:2 * D + (h + 1) * dh]
            # full (rows, rows) masked scores; trans-B contraction (flash-attn style)
            sc = jax.lax.dot_general(qh, kh, (((1,), (1,)), ((), ())),
                                     preferred_element_type=f32) * scale + mask
            sc = sc - jnp.max(sc, axis=-1, keepdims=True)
            pr = jnp.exp(sc)
            pr = pr * pl.reciprocal(jnp.sum(pr, axis=-1, keepdims=True), approx=True)
            ctx.append(jnp.dot(pr.astype(bf16), vh, preferred_element_type=f32))
        ctx = jnp.concatenate(ctx, axis=-1)                      # (rows, D)
        # fused output projection: one (rows, D) @ (D, D) matmul
        attn = jnp.dot(ctx.astype(bf16), wo_ref[li],
                       preferred_element_type=f32) + lv[1:2, :D]
        h1 = _layer_norm(x + attn, lv[2:3, :D], lv[3:4, :D])
        ff = _gelu(jnp.dot(h1.astype(bf16), wff1_ref[li],
                           preferred_element_type=f32) + lv[4:5, :dff])
        ff = jnp.dot(ff.astype(bf16), wff2_ref[li],
                     preferred_element_type=f32) + lv[5:6, :D]
        return _layer_norm(h1 + ff, lv[6:7, :D], lv[7:8, :D])

    # time encoder: attention over the L patches of each (batch, channel)
    for li in range(n_layers_t):
        x = enc_layer(x, li, mask_t)
    # spatial encoder: attention over the C channels of each (batch, patch);
    # the mask is built on the original (b,c,l) row order -> no permutation needed.
    for li in range(n_layers_s):
        x = enc_layer(x, n_layers_t + li, mask_s)

    # ------------------------ cls head ---------------------------------------
    # Z[r, t*H + h] = sum_d x[r,d] * W1[t,d,h]  -- one wide lane-dense matmul
    z = jnp.dot(x.astype(bf16), wz_ref[...], preferred_element_type=f32)
    zm = z * mskcls_ref[...].astype(f32)          # keep only each row's own token block
    # strided lane reduction over token blocks via a 0/1 selection matmul (K = T*H)
    rowhid = jnp.dot(zm.astype(bf16), selcls_ref[...], preferred_element_type=f32)
    tpb = rows // batch
    parts = [jnp.sum(rowhid[b * tpb:(b + 1) * tpb, :], axis=0, keepdims=True)
             for b in range(batch)]
    hid = jnp.concatenate(parts, axis=0)          # (batch, H)
    hid = _gelu(hid + clsp_ref[0:1, :H])
    logits = jnp.dot(hid, clsp_ref[8:8 + H, :], preferred_element_type=f32) \
        + clsp_ref[1:2, :]
    o_ref[...] = logits[:, :n_labels].astype(o_ref.dtype)


# ----------------------------- host-side packing ------------------------------
def pack_params(p, batch=BATCH):
    """Pack the logical parameters into a handful of kernel-ready VMEM buffers."""
    NL = N_LAYERS_T + N_LAYERS_S
    D, DFF, H = D_MODEL, D_FF, CLS_HIDDEN
    T = N_CH * SEQ_LEN
    rows = batch * T
    bf16, f32 = jnp.bfloat16, jnp.float32

    # tokenizer weight [W_patch ; W_band], zero-padded to 32 contraction rows
    w_tok = jnp.zeros((KIN_PAD, D), f32)
    w_tok = w_tok.at[:PATCH_LEN].set(p["tok_wt"])
    w_tok = w_tok.at[PATCH_LEN:PATCH_LEN + N_BANDS].set(p["tok_wb"])
    w_tok = w_tok.astype(bf16)

    # fbuf[0] = per-row (pos-emb + tokenizer bias), fbuf[1/2] = attention masks
    r = np.arange(rows)
    l_of = r % SEQ_LEN
    b_of = r // T
    same_t = (r[:, None] // SEQ_LEN) == (r[None, :] // SEQ_LEN)          # same (b, c)
    same_s = (b_of[:, None] == b_of[None, :]) & (l_of[:, None] == l_of[None, :])
    mask_t = jnp.asarray(np.where(same_t, 0.0, NEG_INF).astype(np.float32))
    mask_s = jnp.asarray(np.where(same_s, 0.0, NEG_INF).astype(np.float32))
    tok_add = p["tok_bt"][None, :] + p["tok_pos"][l_of]                   # (rows, D)
    tok_add = jnp.pad(tok_add, ((0, 0), (0, rows - D)))
    fbuf = jnp.stack([tok_add, mask_t, mask_s], axis=0)                   # (3, rows, rows)

    # all per-layer bias / LayerNorm vectors in one (NL, 8, 3D) f32 buffer
    lvec = jnp.zeros((NL, 8, 3 * D), f32)
    lvec = lvec.at[:, 0, :3 * D].set(p["enc_bqkv"])
    lvec = lvec.at[:, 1, :D].set(p["enc_bo"])
    lvec = lvec.at[:, 2, :D].set(p["enc_ln1_g"])
    lvec = lvec.at[:, 3, :D].set(p["enc_ln1_b"])
    lvec = lvec.at[:, 4, :DFF].set(p["enc_b1"])
    lvec = lvec.at[:, 5, :D].set(p["enc_b2"])
    lvec = lvec.at[:, 6, :D].set(p["enc_ln2_g"])
    lvec = lvec.at[:, 7, :D].set(p["enc_ln2_b"])

    # cls head: W1 (T, D, H) repacked as (D, T*H); token-selection and lane-reduction
    # matrices precomputed as exact 0/1 bf16 constants.
    w_z = jnp.transpose(p["cls_w1"], (1, 0, 2)).reshape(D, T * H).astype(bf16)
    col_tok = np.arange(T * H) // H
    msk_cls = jnp.asarray(
        (col_tok[None, :] == (r % T)[:, None]).astype(np.float32)).astype(bf16)
    sel_cls = jnp.asarray(
        ((np.arange(T * H) % H)[:, None] == np.arange(H)[None, :])
        .astype(np.float32)).astype(bf16)

    clsp = jnp.zeros((8 + H, D), f32)
    clsp = clsp.at[0, :H].set(p["cls_b1"])
    clsp = clsp.at[1, :N_LABELS].set(p["cls_b2"])
    clsp = clsp.at[8:8 + H, :N_LABELS].set(p["cls_w2"])

    return {
        "w_tok": w_tok, "fbuf": fbuf,
        "w_qkv": p["enc_wqkv"].astype(bf16),
        "w_o": p["enc_wo"].astype(bf16),
        "w_ff1": p["enc_w1"].astype(bf16),
        "w_ff2": p["enc_w2"].astype(bf16),
        "lvec": lvec,
        "w_z": w_z, "msk_cls": msk_cls, "sel_cls": sel_cls, "clsp": clsp,
        "cls_loss_scale": p["cls_loss_scale"],
    }


# ----------------------------- full forward ----------------------------------
def brant_cls_forward(packed, X, y_true, S):
    B, C, L, P = X.shape
    NB = S.shape[-1]
    rows = B * C * L
    n_labels = y_true.shape[-1]
    assert rows % 8 == 0 and P + NB <= KIN_PAD

    # pack [X | S] into one bf16 input block (zero-padded to 32 contraction lanes)
    xin = jnp.zeros((rows, KIN_PAD), jnp.float32)
    xin = xin.at[:, :P].set(X.reshape(rows, P))
    xin = xin.at[:, P:P + NB].set(S.reshape(rows, NB))
    xin = xin.astype(jnp.bfloat16)

    kernel = partial(fused_brant_kernel,
                     n_heads=N_HEADS, n_layers_t=N_LAYERS_T, n_layers_s=N_LAYERS_S,
                     batch=B)

    # Single fused, gridless pallas_call: every operand is a whole-array VMEM block.
    y_pred = pl.pallas_call(
        kernel,
        out_shape=jax.ShapeDtypeStruct((B, n_labels), jnp.float32),
    )(
        xin, packed["w_tok"], packed["fbuf"],
        packed["w_qkv"], packed["w_o"], packed["w_ff1"], packed["w_ff2"],
        packed["lvec"],
        packed["w_z"], packed["msk_cls"], packed["sel_cls"], packed["clsp"],
    )

    # cross-entropy with soft (one-hot) targets, mean over batch (tiny JAX glue)
    logp = jax.nn.log_softmax(y_pred, axis=-1)
    loss_cls = jnp.mean(-jnp.sum(y_true * logp, axis=-1))
    loss_total = packed["cls_loss_scale"] * loss_cls
    return y_pred, {"total": loss_total, "cls": loss_cls}


# ----------------------------- parameter init --------------------------------
def init_params(key):
    # Parameters stored in kernel-friendly fused layout:
    #   QKV weights fused per layer (D, 3D), per-head out-proj stacked into (D, D),
    #   encoder weights stacked over layers [time_0, time_1, spatial_0, spatial_1],
    #   cls W1 stored as (C*L, D, hidden) blocks matching the (c, l, d) flatten order.
    NL = N_LAYERS_T + N_LAYERS_S
    T = N_CH * SEQ_LEN
    ks = iter(jax.random.split(key, 12))

    def dense(k, *shape, scale=0.02):
        return (scale * jax.random.normal(k, shape)).astype(jnp.float32)

    params = {
        "tok_wt": dense(next(ks), PATCH_LEN, D_MODEL),
        "tok_bt": jnp.zeros((D_MODEL,), jnp.float32),
        "tok_wb": dense(next(ks), N_BANDS, D_MODEL),
        "tok_pos": dense(next(ks), SEQ_LEN, D_MODEL),
        "enc_wqkv": dense(next(ks), NL, D_MODEL, 3 * D_MODEL),
        "enc_bqkv": jnp.zeros((NL, 3 * D_MODEL), jnp.float32),
        "enc_wo": dense(next(ks), NL, D_MODEL, D_MODEL),
        "enc_bo": jnp.zeros((NL, D_MODEL), jnp.float32),
        "enc_ln1_g": jnp.ones((NL, D_MODEL), jnp.float32),
        "enc_ln1_b": jnp.zeros((NL, D_MODEL), jnp.float32),
        "enc_w1": dense(next(ks), NL, D_MODEL, D_FF),
        "enc_b1": jnp.zeros((NL, D_FF), jnp.float32),
        "enc_w2": dense(next(ks), NL, D_FF, D_MODEL),
        "enc_b2": jnp.zeros((NL, D_MODEL), jnp.float32),
        "enc_ln2_g": jnp.ones((NL, D_MODEL), jnp.float32),
        "enc_ln2_b": jnp.zeros((NL, D_MODEL), jnp.float32),
        "cls_w1": dense(next(ks), T, D_MODEL, CLS_HIDDEN),
        "cls_b1": jnp.zeros((CLS_HIDDEN,), jnp.float32),
        "cls_w2": dense(next(ks), CLS_HIDDEN, N_LABELS),
        "cls_b2": jnp.zeros((N_LABELS,), jnp.float32),
        "cls_loss_scale": jnp.float32(CLS_LOSS_SCALE),
    }
    return params


# ----------------------------- main -------------------------------------------
if __name__ == "__main__":
    key = jax.random.PRNGKey(0)
    k_param, k_x, k_s, k_y = jax.random.split(key, 4)

    params = init_params(k_param)
    packed = jax.tree_util.tree_map(jax.block_until_ready, pack_params(params))

    X = jax.random.normal(k_x, (BATCH, N_CH, SEQ_LEN, PATCH_LEN), jnp.float32)
    S = jax.nn.softmax(
        jax.random.normal(k_s, (BATCH, N_CH, SEQ_LEN, N_BANDS), jnp.float32),
        axis=-1)  # band-power ratios
    y_idx = jax.random.randint(k_y, (BATCH,), 0, N_LABELS)
    y_true = jax.nn.one_hot(y_idx, N_LABELS, dtype=jnp.float32)

    fwd = jax.jit(brant_cls_forward)
    y_pred, loss = fwd(packed, X, y_true, S)
    jax.block_until_ready((y_pred, loss["total"], loss["cls"]))

    assert y_pred.shape == (BATCH, N_LABELS)
    assert loss["total"].shape == ()
    assert bool(jnp.all(jnp.isfinite(y_pred)))
    assert bool(jnp.isfinite(loss["total"]))
    print("KERNEL_OK")
</pallas_src>

<mosaic_0001>
module attributes {stable_mosaic.version = 11 : i64} {
  func.func @fused_brant_kernel(%arg0: memref<64x32xbf16, #tpu.memory_space<vmem>>, %arg1: memref<32x32xbf16, #tpu.memory_space<vmem>>, %arg2: memref<3x64x64xf32, #tpu.memory_space<vmem>>, %arg3: memref<4x32x96xbf16, #tpu.memory_space<vmem>>, %arg4: memref<4x32x32xbf16, #tpu.memory_space<vmem>>, %arg5: memref<4x32x64xbf16, #tpu.memory_space<vmem>>, %arg6: memref<4x64x32xbf16, #tpu.memory_space<vmem>>, %arg7: memref<4x8x96xf32, #tpu.memory_space<vmem>>, %arg8: memref<32x1024xbf16, #tpu.memory_space<vmem>>, %arg9: memref<64x1024xbf16, #tpu.memory_space<vmem>>, %arg10: memref<1024x32xbf16, #tpu.memory_space<vmem>>, %arg11: memref<40x32xf32, #tpu.memory_space<vmem>>, %arg12: memref<2x4xf32, #tpu.memory_space<vmem>>) attributes {dimension_semantics = [], scalar_prefetch = 0 : i64, scratch_operands = 0 : i64, tpu.core_type = #tpu.core_type<tc>} {
    %c0 = arith.constant 0 : index
    %c0_0 = arith.constant 0 : index
    %c0_1 = arith.constant 0 : index
    %0 = vector.load %arg2[%c0, %c0_0, %c0_1] : memref<3x64x64xf32, #tpu.memory_space<vmem>>, vector<1x64x32xf32>
    %1 = vector.shape_cast %0 : vector<1x64x32xf32> to vector<64x32xf32>
    %c1 = arith.constant 1 : index
    %c0_2 = arith.constant 0 : index
    %c0_3 = arith.constant 0 : index
    %2 = vector.load %arg2[%c1, %c0_2, %c0_3] : memref<3x64x64xf32, #tpu.memory_space<vmem>>, vector<1x64x64xf32>
    %3 = vector.shape_cast %2 : vector<1x64x64xf32> to vector<64x64xf32>
    %c2 = arith.constant 2 : index
    %c0_4 = arith.constant 0 : index
    %c0_5 = arith.constant 0 : index
    %4 = vector.load %arg2[%c2, %c0_4, %c0_5] : memref<3x64x64xf32, #tpu.memory_space<vmem>>, vector<1x64x64xf32>
    %5 = vector.shape_cast %4 : vector<1x64x64xf32> to vector<64x64xf32>
    %c0_6 = arith.constant 0 : index
    %c0_7 = arith.constant 0 : index
    %6 = vector.load %arg0[%c0_6, %c0_7] : memref<64x32xbf16, #tpu.memory_space<vmem>>, vector<64x32xbf16>
    %c0_8 = arith.constant 0 : index
    %c0_9 = arith.constant 0 : index
    %7 = vector.load %arg1[%c0_8, %c0_9] : memref<32x32xbf16, #tpu.memory_space<vmem>>, vector<32x32xbf16>
    %cst = arith.constant dense<0.000000e+00> : vector<64x32xf32>
    %8 = tpu.matmul %6, %7, %cst {dimension_numbers = #tpu.dot_dimension_numbers<[1], [0], [0], [1], [0, 0, 1, 1], [], []>} : vector<64x32xbf16>, vector<32x32xbf16>, vector<64x32xf32> -> vector<64x32xf32>
    %9 = arith.addf %8, %1 : vector<64x32xf32>
    %c0_10 = arith.constant 0 : index
    %c0_11 = arith.constant 0 : index
    %c0_12 = arith.constant 0 : index
    %10 = vector.load %arg7[%c0_10, %c0_11, %c0_12] : memref<4x8x96xf32, #tpu.memory_space<vmem>>, vector<1x8x96xf32>
    %11 = vector.shape_cast %10 : vector<1x8x96xf32> to vector<8x96xf32>
    %12 = arith.truncf %9 : vector<64x32xf32> to vector<64x32xbf16>
    %c0_13 = arith.constant 0 : index
    %c0_14 = arith.constant 0 : index
    %c0_15 = arith.constant 0 : index
    %13 = vector.load %arg3[%c0_13, %c0_14, %c0_15] : memref<4x32x96xbf16, #tpu.memory_space<vmem>>, vector<1x32x96xbf16>
    %14 = vector.shape_cast %13 : vector<1x32x96xbf16> to vector<32x96xbf16>
    %cst_16 = arith.constant dense<0.000000e+00> : vector<64x96xf32>
    %15 = tpu.matmul %12, %14, %cst_16 {dimension_numbers = #tpu.dot_dimension_numbers<[1], [0], [0], [1], [0, 0, 1, 1], [], []>} : vector<64x32xbf16>, vector<32x96xbf16>, vector<64x96xf32> -> vector<64x96xf32>
    %16 = vector.extract_strided_slice %11 {offsets = [0, 0], sizes = [1, 96], strides = [1, 1]} : vector<8x96xf32> to vector<1x96xf32>
    %17 = vector.broadcast %16 : vector<1x96xf32> to vector<64x96xf32>
    %18 = arith.addf %15, %17 : vector<64x96xf32>
    %19 = arith.truncf %18 : vector<64x96xf32> to vector<64x96xbf16>
    %20 = vector.extract_strided_slice %19 {offsets = [0, 0], sizes = [64, 8], strides = [1, 1]} : vector<64x96xbf16> to vector<64x8xbf16>
    %21 = vector.extract_strided_slice %19 {offsets = [0, 32], sizes = [64, 8], strides = [1, 1]} : vector<64x96xbf16> to vector<64x8xbf16>
    %22 = vector.extract_strided_slice %19 {offsets = [0, 64], sizes = [64, 8], strides = [1, 1]} : vector<64x96xbf16> to vector<64x8xbf16>
    %cst_17 = arith.constant dense<0.000000e+00> : vector<64x64xf32>
    %23 = tpu.matmul %20, %21, %cst_17 {dimension_numbers = #tpu.dot_dimension_numbers<[1], [1], [0], [0], [0, 0, 1, 0], [], []>} : vector<64x8xbf16>, vector<64x8xbf16>, vector<64x64xf32> -> vector<64x64xf32>
    %cst_18 = arith.constant 0.353553385 : f32
    %24 = vector.broadcast %cst_18 : f32 to vector<64x64xf32>
    %25 = arith.mulf %23, %24 : vector<64x64xf32>
    %26 = arith.addf %25, %3 : vector<64x64xf32>
    %cst_19 = arith.constant dense<0xFF800000> : vector<64xf32>
    %27 = vector.multi_reduction <maximumf>, %26, %cst_19 [1] : vector<64x64xf32> to vector<64xf32>
    %28 = vector.shape_cast %27 : vector<64xf32> to vector<64x1xf32>
    %29 = vector.broadcast %28 : vector<64x1xf32> to vector<64x64xf32>
    %30 = arith.subf %26, %29 : vector<64x64xf32>
    %31 = math.exp %30 : vector<64x64xf32>
    %cst_20 = arith.constant dense<0.000000e+00> : vector<64xf32>
    %32 = vector.multi_reduction <add>, %31, %cst_20 [1] : vector<64x64xf32> to vector<64xf32>
    %33 = vector.shape_cast %32 : vector<64xf32> to vector<64x1xf32>
    %34 = tpu.reciprocal %33 {approx = true} : vector<64x1xf32> -> vector<64x1xf32>
    %35 = vector.broadcast %34 : vector<64x1xf32> to vector<64x64xf32>
    %36 = arith.mulf %31, %35 : vector<64x64xf32>
    %37 = arith.truncf %36 : vector<64x64xf32> to vector<64x64xbf16>
    %cst_21 = arith.constant dense<0.000000e+00> : vector<64x8xf32>
    %38 = tpu.matmul %37, %22, %cst_21 {dimension_numbers = #tpu.dot_dimension_numbers<[1], [0], [0], [1], [0, 0, 1, 1], [], []>} : vector<64x64xbf16>, vector<64x8xbf16>, vector<64x8xf32> -> vector<64x8xf32>
    %39 = vector.extract_strided_slice %19 {offsets = [0, 8], sizes = [64, 8], strides = [1, 1]} : vector<64x96xbf16> to vector<64x8xbf16>
    %40 = vector.extract_strided_slice %19 {offsets = [0, 40], sizes = [64, 8], strides = [1, 1]} : vector<64x96xbf16> to vector<64x8xbf16>
    %41 = vector.extract_strided_slice %19 {offsets = [0, 72], sizes = [64, 8], strides = [1, 1]} : vector<64x96xbf16> to vector<64x8xbf16>
    %cst_22 = arith.constant dense<0.000000e+00> : vector<64x64xf32>
    %42 = tpu.matmul %39, %40, %cst_22 {dimension_numbers = #tpu.dot_dimension_numbers<[1], [1], [0], [0], [0, 0, 1, 0], [], []>} : vector<64x8xbf16>, vector<64x8xbf16>, vector<64x64xf32> -> vector<64x64xf32>
    %cst_23 = arith.constant 0.353553385 : f32
    %43 = vector.broadcast %cst_23 : f32 to vector<64x64xf32>
    %44 = arith.mulf %42, %43 : vector<64x64xf32>
    %45 = arith.addf %44, %3 : vector<64x64xf32>
    %cst_24 = arith.constant dense<0xFF800000> : vector<64xf32>
    %46 = vector.multi_reduction <maximumf>, %45, %cst_24 [1] : vector<64x64xf32> to vector<64xf32>
    %47 = vector.shape_cast %46 : vector<64xf32> to vector<64x1xf32>
    %48 = vector.broadcast %47 : vector<64x1xf32> to vector<64x64xf32>
    %49 = arith.subf %45, %48 : vector<64x64xf32>
    %50 = math.exp %49 : vector<64x64xf32>
    %cst_25 = arith.constant dense<0.000000e+00> : vector<64xf32>
    %51 = vector.multi_reduction <add>, %50, %cst_25 [1] : vector<64x64xf32> to vector<64xf32>
    %52 = vector.shape_cast %51 : vector<64xf32> to vector<64x1xf32>
    %53 = tpu.reciprocal %52 {approx = true} : vector<64x1xf32> -> vector<64x1xf32>
    %54 = vector.broadcast %53 : vector<64x1xf32> to vector<64x64xf32>
    %55 = arith.mulf %50, %54 : vector<64x64xf32>
    %56 = arith.truncf %55 : vector<64x64xf32> to vector<64x64xbf16>
    %cst_26 = arith.constant dense<0.000000e+00> : vector<64x8xf32>
    %57 = tpu.matmul %56, %41, %cst_26 {dimension_numbers = #tpu.dot_dimension_numbers<[1], [0], [0], [1], [0, 0, 1, 1], [], []>} : vector<64x64xbf16>, vector<64x8xbf16>, vector<64x8xf32> -> vector<64x8xf32>
    %58 = vector.extract_strided_slice %19 {offsets = [0, 16], sizes = [64, 8], strides = [1, 1]} : vector<64x96xbf16> to vector<64x8xbf16>
    %59 = vector.extract_strided_slice %19 {offsets = [0, 48], sizes = [64, 8], strides = [1, 1]} : vector<64x96xbf16> to vector<64x8xbf16>
    %60 = vector.extract_strided_slice %19 {offsets = [0, 80], sizes = [64, 8], strides = [1, 1]} : vector<64x96xbf16> to vector<64x8xbf16>
    %cst_27 = arith.constant dense<0.000000e+00> : vector<64x64xf32>
    %61 = tpu.matmul %58, %59, %cst_27 {dimension_numbers = #tpu.dot_dimension_numbers<[1], [1], [0], [0], [0, 0, 1, 0], [], []>} : vector<64x8xbf16>, vector<64x8xbf16>, vector<64x64xf32> -> vector<64x64xf32>
    %cst_28 = arith.constant 0.353553385 : f32
    %62 = vector.broadcast %cst_28 : f32 to vector<64x64xf32>
    %63 = arith.mulf %61, %62 : vector<64x64xf32>
    %64 = arith.addf %63, %3 : vector<64x64xf32>
    %cst_29 = arith.constant dense<0xFF800000> : vector<64xf32>
    %65 = vector.multi_reduction <maximumf>, %64, %cst_29 [1] : vector<64x64xf32> to vector<64xf32>
    %66 = vector.shape_cast %65 : vector<64xf32> to vector<64x1xf32>
    %67 = vector.broadcast %66 : vector<64x1xf32> to vector<64x64xf32>
    %68 = arith.subf %64, %67 : vector<64x64xf32>
    %69 = math.exp %68 : vector<64x64xf32>
    %cst_30 = arith.constant dense<0.000000e+00> : vector<64xf32>
    %70 = vector.multi_reduction <add>, %69, %cst_30 [1] : vector<64x64xf32> to vector<64xf32>
    %71 = vector.shape_cast %70 : vector<64xf32> to vector<64x1xf32>
    %72 = tpu.reciprocal %71 {approx = true} : vector<64x1xf32> -> vector<64x1xf32>
    %73 = vector.broadcast %72 : vector<64x1xf32> to vector<64x64xf32>
    %74 = arith.mulf %69, %73 : vector<64x64xf32>
    %75 = arith.truncf %74 : vector<64x64xf32> to vector<64x64xbf16>
    %cst_31 = arith.constant dense<0.000000e+00> : vector<64x8xf32>
    %76 = tpu.matmul %75, %60, %cst_31 {dimension_numbers = #tpu.dot_dimension_numbers<[1], [0], [0], [1], [0, 0, 1, 1], [], []>} : vector<64x64xbf16>, vector<64x8xbf16>, vector<64x8xf32> -> vector<64x8xf32>
    %77 = vector.extract_strided_slice %19 {offsets = [0, 24], sizes = [64, 8], strides = [1, 1]} : vector<64x96xbf16> to vector<64x8xbf16>
    %78 = vector.extract_strided_slice %19 {offsets = [0, 56], sizes = [64, 8], strides = [1, 1]} : vector<64x96xbf16> to vector<64x8xbf16>
    %79 = vector.extract_strided_slice %19 {offsets = [0, 88], sizes = [64, 8], strides = [1, 1]} : vector<64x96xbf16> to vector<64x8xbf16>
    %cst_32 = arith.constant dense<0.000000e+00> : vector<64x64xf32>
    %80 = tpu.matmul %77, %78, %cst_32 {dimension_numbers = #tpu.dot_dimension_numbers<[1], [1], [0], [0], [0, 0, 1, 0], [], []>} : vector<64x8xbf16>, vector<64x8xbf16>, vector<64x64xf32> -> vector<64x64xf32>
    %cst_33 = arith.constant 0.353553385 : f32
    %81 = vector.broadcast %cst_33 : f32 to vector<64x64xf32>
    %82 = arith.mulf %80, %81 : vector<64x64xf32>
    %83 = arith.addf %82, %3 : vector<64x64xf32>
    %cst_34 = arith.constant dense<0xFF800000> : vector<64xf32>
    %84 = vector.multi_reduction <maximumf>, %83, %cst_34 [1] : vector<64x64xf32> to vector<64xf32>
    %85 = vector.shape_cast %84 : vector<64xf32> to vector<64x1xf32>
    %86 = vector.broadcast %85 : vector<64x1xf32> to vector<64x64xf32>
    %87 = arith.subf %83, %86 : vector<64x64xf32>
    %88 = math.exp %87 : vector<64x64xf32>
    %cst_35 = arith.constant dense<0.000000e+00> : vector<64xf32>
    %89 = vector.multi_reduction <add>, %88, %cst_35 [1] : vector<64x64xf32> to vector<64xf32>
    %90 = vector.shape_cast %89 : vector<64xf32> to vector<64x1xf32>
    %91 = tpu.reciprocal %90 {approx = true} : vector<64x1xf32> -> vector<64x1xf32>
    %92 = vector.broadcast %91 : vector<64x1xf32> to vector<64x64xf32>
    %93 = arith.mulf %88, %92 : vector<64x64xf32>
    %94 = arith.truncf %93 : vector<64x64xf32> to vector<64x64xbf16>
    %cst_36 = arith.constant dense<0.000000e+00> : vector<64x8xf32>
    %95 = tpu.matmul %94, %79, %cst_36 {dimension_numbers = #tpu.dot_dimension_numbers<[1], [0], [0], [1], [0, 0, 1, 1], [], []>} : vector<64x64xbf16>, vector<64x8xbf16>, vector<64x8xf32> -> vector<64x8xf32>
    %96 = tpu.concatenate %38, %57, %76, %95 in 1 : vector<64x8xf32>, vector<64x8xf32>, vector<64x8xf32>, vector<64x8xf32> -> vector<64x32xf32>
    %97 = arith.truncf %96 : vector<64x32xf32> to vector<64x32xbf16>
    %c0_37 = arith.constant 0 : index
    %c0_38 = arith.constant 0 : index
    %c0_39 = arith.constant 0 : index
    %98 = vector.load %arg4[%c0_37, %c0_38, %c0_39] : memref<4x32x32xbf16, #tpu.memory_space<vmem>>, vector<1x32x32xbf16>
    %99 = vector.shape_cast %98 : vector<1x32x32xbf16> to vector<32x32xbf16>
    %cst_40 = arith.constant dense<0.000000e+00> : vector<64x32xf32>
    %100 = tpu.matmul %97, %99, %cst_40 {dimension_numbers = #tpu.dot_dimension_numbers<[1], [0], [0], [1], [0, 0, 1, 1], [], []>} : vector<64x32xbf16>, vector<32x32xbf16>, vector<64x32xf32> -> vector<64x32xf32>
    %101 = vector.extract_strided_slice %11 {offsets = [1, 0], sizes = [1, 32], strides = [1, 1]} : vector<8x96xf32> to vector<1x32xf32>
    %102 = vector.broadcast %101 : vector<1x32xf32> to vector<64x32xf32>
    %103 = arith.addf %100, %102 : vector<64x32xf32>
    %104 = arith.addf %9, %103 : vector<64x32xf32>
    %105 = vector.extract_strided_slice %11 {offsets = [2, 0], sizes = [1, 32], strides = [1, 1]} : vector<8x96xf32> to vector<1x32xf32>
    %106 = vector.extract_strided_slice %11 {offsets = [3, 0], sizes = [1, 32], strides = [1, 1]} : vector<8x96xf32> to vector<1x32xf32>
    %cst_41 = arith.constant dense<0.000000e+00> : vector<64xf32>
    %107 = vector.multi_reduction <add>, %104, %cst_41 [1] : vector<64x32xf32> to vector<64xf32>
    %108 = vector.shape_cast %107 : vector<64xf32> to vector<64x1xf32>
    %cst_42 = arith.constant 3.200000e+01 : f32
    %109 = vector.broadcast %cst_42 : f32 to vector<64x1xf32>
    %110 = arith.divf %108, %109 : vector<64x1xf32>
    %111 = vector.broadcast %110 : vector<64x1xf32> to vector<64x32xf32>
    %112 = arith.subf %104, %111 : vector<64x32xf32>
    %113 = arith.mulf %112, %112 : vector<64x32xf32>
    %cst_43 = arith.constant dense<0.000000e+00> : vector<64xf32>
    %114 = vector.multi_reduction <add>, %113, %cst_43 [1] : vector<64x32xf32> to vector<64xf32>
    %115 = vector.shape_cast %114 : vector<64xf32> to vector<64x1xf32>
    %cst_44 = arith.constant 3.200000e+01 : f32
    %116 = vector.broadcast %cst_44 : f32 to vector<64x1xf32>
    %117 = arith.divf %115, %116 : vector<64x1xf32>
    %118 = vector.broadcast %110 : vector<64x1xf32> to vector<64x32xf32>
    %119 = arith.subf %104, %118 : vector<64x32xf32>
    %cst_45 = arith.constant 9.99999974E-6 : f32
    %120 = vector.broadcast %cst_45 : f32 to vector<64x1xf32>
    %121 = arith.addf %117, %120 : vector<64x1xf32>
    %122 = math.rsqrt %121 : vector<64x1xf32>
    %123 = vector.broadcast %122 : vector<64x1xf32> to vector<64x32xf32>
    %124 = arith.mulf %119, %123 : vector<64x32xf32>
    %125 = vector.broadcast %105 : vector<1x32xf32> to vector<64x32xf32>
    %126 = arith.mulf %124, %125 : vector<64x32xf32>
    %127 = vector.broadcast %106 : vector<1x32xf32> to vector<64x32xf32>
    %128 = arith.addf %126, %127 : vector<64x32xf32>
    %129 = arith.truncf %128 : vector<64x32xf32> to vector<64x32xbf16>
    %c0_46 = arith.constant 0 : index
    %c0_47 = arith.constant 0 : index
    %c0_48 = arith.constant 0 : index
    %130 = vector.load %arg5[%c0_46, %c0_47, %c0_48] : memref<4x32x64xbf16, #tpu.memory_space<vmem>>, vector<1x32x64xbf16>
    %131 = vector.shape_cast %130 : vector<1x32x64xbf16> to vector<32x64xbf16>
    %cst_49 = arith.constant dense<0.000000e+00> : vector<64x64xf32>
    %132 = tpu.matmul %129, %131, %cst_49 {dimension_numbers = #tpu.dot_dimension_numbers<[1], [0], [0], [1], [0, 0, 1, 1], [], []>} : vector<64x32xbf16>, vector<32x64xbf16>, vector<64x64xf32> -> vector<64x64xf32>
    %133 = vector.extract_strided_slice %11 {offsets = [4, 0], sizes = [1, 64], strides = [1, 1]} : vector<8x96xf32> to vector<1x64xf32>
    %134 = vector.broadcast %133 : vector<1x64xf32> to vector<64x64xf32>
    %135 = arith.addf %132, %134 : vector<64x64xf32>
    %cst_50 = arith.constant 5.000000e-01 : f32
    %136 = vector.broadcast %cst_50 : f32 to vector<64x64xf32>
    %137 = arith.mulf %136, %135 : vector<64x64xf32>
    %cst_51 = arith.constant 4.471500e-02 : f32
    %138 = vector.broadcast %cst_51 : f32 to vector<64x64xf32>
    %139 = arith.mulf %138, %135 : vector<64x64xf32>
    %140 = arith.mulf %139, %135 : vector<64x64xf32>
    %141 = arith.mulf %140, %135 : vector<64x64xf32>
    %142 = arith.addf %135, %141 : vector<64x64xf32>
    %cst_52 = arith.constant 0.797884583 : f32
    %143 = vector.broadcast %cst_52 : f32 to vector<64x64xf32>
    %144 = arith.mulf %143, %142 : vector<64x64xf32>
    %145 = math.tanh %144 : vector<64x64xf32>
    %cst_53 = arith.constant 1.000000e+00 : f32
    %146 = vector.broadcast %cst_53 : f32 to vector<64x64xf32>
    %147 = arith.addf %146, %145 : vector<64x64xf32>
    %148 = arith.mulf %137, %147 : vector<64x64xf32>
    %149 = arith.truncf %148 : vector<64x64xf32> to vector<64x64xbf16>
    %c0_54 = arith.constant 0 : index
    %c0_55 = arith.constant 0 : index
    %c0_56 = arith.constant 0 : index
    %150 = vector.load %arg6[%c0_54, %c0_55, %c0_56] : memref<4x64x32xbf16, #tpu.memory_space<vmem>>, vector<1x64x32xbf16>
    %151 = vector.shape_cast %150 : vector<1x64x32xbf16> to vector<64x32xbf16>
    %cst_57 = arith.constant dense<0.000000e+00> : vector<64x32xf32>
    %152 = tpu.matmul %149, %151, %cst_57 {dimension_numbers = #tpu.dot_dimension_numbers<[1], [0], [0], [1], [0, 0, 1, 1], [], []>} : vector<64x64xbf16>, vector<64x32xbf16>, vector<64x32xf32> -> vector<64x32xf32>
    %153 = vector.extract_strided_slice %11 {offsets = [5, 0], sizes = [1, 32], strides = [1, 1]} : vector<8x96xf32> to vector<1x32xf32>
    %154 = vector.broadcast %153 : vector<1x32xf32> to vector<64x32xf32>
    %155 = arith.addf %152, %154 : vector<64x32xf32>
    %156 = arith.addf %128, %155 : vector<64x32xf32>
    %157 = vector.extract_strided_slice %11 {offsets = [6, 0], sizes = [1, 32], strides = [1, 1]} : vector<8x96xf32> to vector<1x32xf32>
    %158 = vector.extract_strided_slice %11 {offsets = [7, 0], sizes = [1, 32], strides = [1, 1]} : vector<8x96xf32> to vector<1x32xf32>
    %cst_58 = arith.constant dense<0.000000e+00> : vector<64xf32>
    %159 = vector.multi_reduction <add>, %156, %cst_58 [1] : vector<64x32xf32> to vector<64xf32>
    %160 = vector.shape_cast %159 : vector<64xf32> to vector<64x1xf32>
    %cst_59 = arith.constant 3.200000e+01 : f32
    %161 = vector.broadcast %cst_59 : f32 to vector<64x1xf32>
    %162 = arith.divf %160, %161 : vector<64x1xf32>
    %163 = vector.broadcast %162 : vector<64x1xf32> to vector<64x32xf32>
    %164 = arith.subf %156, %163 : vector<64x32xf32>
    %165 = arith.mulf %164, %164 : vector<64x32xf32>
    %cst_60 = arith.constant dense<0.000000e+00> : vector<64xf32>
    %166 = vector.multi_reduction <add>, %165, %cst_60 [1] : vector<64x32xf32> to vector<64xf32>
    %167 = vector.shape_cast %166 : vector<64xf32> to vector<64x1xf32>
    %cst_61 = arith.constant 3.200000e+01 : f32
    %168 = vector.broadcast %cst_61 : f32 to vector<64x1xf32>
    %169 = arith.divf %167, %168 : vector<64x1xf32>
    %170 = vector.broadcast %162 : vector<64x1xf32> to vector<64x32xf32>
    %171 = arith.subf %156, %170 : vector<64x32xf32>
    %cst_62 = arith.constant 9.99999974E-6 : f32
    %172 = vector.broadcast %cst_62 : f32 to vector<64x1xf32>
    %173 = arith.addf %169, %172 : vector<64x1xf32>
    %174 = math.rsqrt %173 : vector<64x1xf32>
    %175 = vector.broadcast %174 : vector<64x1xf32> to vector<64x32xf32>
    %176 = arith.mulf %171, %175 : vector<64x32xf32>
    %177 = vector.broadcast %157 : vector<1x32xf32> to vector<64x32xf32>
    %178 = arith.mulf %176, %177 : vector<64x32xf32>
    %179 = vector.broadcast %158 : vector<1x32xf32> to vector<64x32xf32>
    %180 = arith.addf %178, %179 : vector<64x32xf32>
    %c1_63 = arith.constant 1 : index
    %c0_64 = arith.constant 0 : index
    %c0_65 = arith.constant 0 : index
    %181 = vector.load %arg7[%c1_63, %c0_64, %c0_65] : memref<4x8x96xf32, #tpu.memory_space<vmem>>, vector<1x8x96xf32>
    %182 = vector.shape_cast %181 : vector<1x8x96xf32> to vector<8x96xf32>
    %183 = arith.truncf %180 : vector<64x32xf32> to vector<64x32xbf16>
    %c1_66 = arith.constant 1 : index
    %c0_67 = arith.constant 0 : index
    %c0_68 = arith.constant 0 : index
    %184 = vector.load %arg3[%c1_66, %c0_67, %c0_68] : memref<4x32x96xbf16, #tpu.memory_space<vmem>>, vector<1x32x96xbf16>
    %185 = vector.shape_cast %184 : vector<1x32x96xbf16> to vector<32x96xbf16>
    %cst_69 = arith.constant dense<0.000000e+00> : vector<64x96xf32>
    %186 = tpu.matmul %183, %185, %cst_69 {dimension_numbers = #tpu.dot_dimension_numbers<[1], [0], [0], [1], [0, 0, 1, 1], [], []>} : vector<64x32xbf16>, vector<32x96xbf16>, vector<64x96xf32> -> vector<64x96xf32>
    %187 = vector.extract_strided_slice %182 {offsets = [0, 0], sizes = [1, 96], strides = [1, 1]} : vector<8x96xf32> to vector<1x96xf32>
    %188 = vector.broadcast %187 : vector<1x96xf32> to vector<64x96xf32>
    %189 = arith.addf %186, %188 : vector<64x96xf32>
    %190 = arith.truncf %189 : vector<64x96xf32> to vector<64x96xbf16>
    %191 = vector.extract_strided_slice %190 {offsets = [0, 0], sizes = [64, 8], strides = [1, 1]} : vector<64x96xbf16> to vector<64x8xbf16>
    %192 = vector.extract_strided_slice %190 {offsets = [0, 32], sizes = [64, 8], strides = [1, 1]} : vector<64x96xbf16> to vector<64x8xbf16>
    %193 = vector.extract_strided_slice %190 {offsets = [0, 64], sizes = [64, 8], strides = [1, 1]} : vector<64x96xbf16> to vector<64x8xbf16>
    %cst_70 = arith.constant dense<0.000000e+00> : vector<64x64xf32>
    %194 = tpu.matmul %191, %192, %cst_70 {dimension_numbers = #tpu.dot_dimension_numbers<[1], [1], [0], [0], [0, 0, 1, 0], [], []>} : vector<64x8xbf16>, vector<64x8xbf16>, vector<64x64xf32> -> vector<64x64xf32>
    %cst_71 = arith.constant 0.353553385 : f32
    %195 = vector.broadcast %cst_71 : f32 to vector<64x64xf32>
    %196 = arith.mulf %194, %195 : vector<64x64xf32>
    %197 = arith.addf %196, %3 : vector<64x64xf32>
    %cst_72 = arith.constant dense<0xFF800000> : vector<64xf32>
    %198 = vector.multi_reduction <maximumf>, %197, %cst_72 [1] : vector<64x64xf32> to vector<64xf32>
    %199 = vector.shape_cast %198 : vector<64xf32> to vector<64x1xf32>
    %200 = vector.broadcast %199 : vector<64x1xf32> to vector<64x64xf32>
    %201 = arith.subf %197, %200 : vector<64x64xf32>
    %202 = math.exp %201 : vector<64x64xf32>
    %cst_73 = arith.constant dense<0.000000e+00> : vector<64xf32>
    %203 = vector.multi_reduction <add>, %202, %cst_73 [1] : vector<64x64xf32> to vector<64xf32>
    %204 = vector.shape_cast %203 : vector<64xf32> to vector<64x1xf32>
    %205 = tpu.reciprocal %204 {approx = true} : vector<64x1xf32> -> vector<64x1xf32>
    %206 = vector.broadcast %205 : vector<64x1xf32> to vector<64x64xf32>
    %207 = arith.mulf %202, %206 : vector<64x64xf32>
    %208 = arith.truncf %207 : vector<64x64xf32> to vector<64x64xbf16>
    %cst_74 = arith.constant dense<0.000000e+00> : vector<64x8xf32>
    %209 = tpu.matmul %208, %193, %cst_74 {dimension_numbers = #tpu.dot_dimension_numbers<[1], [0], [0], [1], [0, 0, 1, 1], [], []>} : vector<64x64xbf16>, vector<64x8xbf16>, vector<64x8xf32> -> vector<64x8xf32>
    %210 = vector.extract_strided_slice %190 {offsets = [0, 8], sizes = [64, 8], strides = [1, 1]} : vector<64x96xbf16> to vector<64x8xbf16>
    %211 = vector.extract_strided_slice %190 {offsets = [0, 40], sizes = [64, 8], strides = [1, 1]} : vector<64x96xbf16> to vector<64x8xbf16>
    %212 = vector.extract_strided_slice %190 {offsets = [0, 72], sizes = [64, 8], strides = [1, 1]} : vector<64x96xbf16> to vector<64x8xbf16>
    %cst_75 = arith.constant dense<0.000000e+00> : vector<64x64xf32>
    %213 = tpu.matmul %210, %211, %cst_75 {dimension_numbers = #tpu.dot_dimension_numbers<[1], [1], [0], [0], [0, 0, 1, 0], [], []>} : vector<64x8xbf16>, vector<64x8xbf16>, vector<64x64xf32> -> vector<64x64xf32>
    %cst_76 = arith.constant 0.353553385 : f32
    %214 = vector.broadcast %cst_76 : f32 to vector<64x64xf32>
    %215 = arith.mulf %213, %214 : vector<64x64xf32>
    %216 = arith.addf %215, %3 : vector<64x64xf32>
    %cst_77 = arith.constant dense<0xFF800000> : vector<64xf32>
    %217 = vector.multi_reduction <maximumf>, %216, %cst_77 [1] : vector<64x64xf32> to vector<64xf32>
    %218 = vector.shape_cast %217 : vector<64xf32> to vector<64x1xf32>
    %219 = vector.broadcast %218 : vector<64x1xf32> to vector<64x64xf32>
    %220 = arith.subf %216, %219 : vector<64x64xf32>
    %221 = math.exp %220 : vector<64x64xf32>
    %cst_78 = arith.constant dense<0.000000e+00> : vector<64xf32>
    %222 = vector.multi_reduction <add>, %221, %cst_78 [1] : vector<64x64xf32> to vector<64xf32>
    %223 = vector.shape_cast %222 : vector<64xf32> to vector<64x1xf32>
    %224 = tpu.reciprocal %223 {approx = true} : vector<64x1xf32> -> vector<64x1xf32>
    %225 = vector.broadcast %224 : vector<64x1xf32> to vector<64x64xf32>
    %226 = arith.mulf %221, %225 : vector<64x64xf32>
    %227 = arith.truncf %226 : vector<64x64xf32> to vector<64x64xbf16>
    %cst_79 = arith.constant dense<0.000000e+00> : vector<64x8xf32>
    %228 = tpu.matmul %227, %212, %cst_79 {dimension_numbers = #tpu.dot_dimension_numbers<[1], [0], [0], [1], [0, 0, 1, 1], [], []>} : vector<64x64xbf16>, vector<64x8xbf16>, vector<64x8xf32> -> vector<64x8xf32>
    %229 = vector.extract_strided_slice %190 {offsets = [0, 16], sizes = [64, 8], strides = [1, 1]} : vector<64x96xbf16> to vector<64x8xbf16>
    %230 = vector.extract_strided_slice %190 {offsets = [0, 48], sizes = [64, 8], strides = [1, 1]} : vector<64x96xbf16> to vector<64x8xbf16>
    %231 = vector.extract_strided_slice %190 {offsets = [0, 80], sizes = [64, 8], strides = [1, 1]} : vector<64x96xbf16> to vector<64x8xbf16>
    %cst_80 = arith.constant dense<0.000000e+00> : vector<64x64xf32>
    %232 = tpu.matmul %229, %230, %cst_80 {dimension_numbers = #tpu.dot_dimension_numbers<[1], [1], [0], [0], [0, 0, 1, 0], [], []>} : vector<64x8xbf16>, vector<64x8xbf16>, vector<64x64xf32> -> vector<64x64xf32>
    %cst_81 = arith.constant 0.353553385 : f32
    %233 = vector.broadcast %cst_81 : f32 to vector<64x64xf32>
    %234 = arith.mulf %232, %233 : vector<64x64xf32>
    %235 = arith.addf %234, %3 : vector<64x64xf32>
    %cst_82 = arith.constant dense<0xFF800000> : vector<64xf32>
    %236 = vector.multi_reduction <maximumf>, %235, %cst_82 [1] : vector<64x64xf32> to vector<64xf32>
    %237 = vector.shape_cast %236 : vector<64xf32> to vector<64x1xf32>
    %238 = vector.broadcast %237 : vector<64x1xf32> to vector<64x64xf32>
    %239 = arith.subf %235, %238 : vector<64x64xf32>
    %240 = math.exp %239 : vector<64x64xf32>
    %cst_83 = arith.constant dense<0.000000e+00> : vector<64xf32>
    %241 = vector.multi_reduction <add>, %240, %cst_83 [1] : vector<64x64xf32> to vector<64xf32>
    %242 = vector.shape_cast %241 : vector<64xf32> to vector<64x1xf32>
    %243 = tpu.reciprocal %242 {approx = true} : vector<64x1xf32> -> vector<64x1xf32>
    %244 = vector.broadcast %243 : vector<64x1xf32> to vector<64x64xf32>
    %245 = arith.mulf %240, %244 : vector<64x64xf32>
    %246 = arith.truncf %245 : vector<64x64xf32> to vector<64x64xbf16>
    %cst_84 = arith.constant dense<0.000000e+00> : vector<64x8xf32>
    %247 = tpu.matmul %246, %231, %cst_84 {dimension_numbers = #tpu.dot_dimension_numbers<[1], [0], [0], [1], [0, 0, 1, 1], [], []>} : vector<64x64xbf16>, vector<64x8xbf16>, vector<64x8xf32> -> vector<64x8xf32>
    %248 = vector.extract_strided_slice %190 {offsets = [0, 24], sizes = [64, 8], strides = [1, 1]} : vector<64x96xbf16> to vector<64x8xbf16>
    %249 = vector.extract_strided_slice %190 {offsets = [0, 56], sizes = [64, 8], strides = [1, 1]} : vector<64x96xbf16> to vector<64x8xbf16>
    %250 = vector.extract_strided_slice %190 {offsets = [0, 88], sizes = [64, 8], strides = [1, 1]} : vector<64x96xbf16> to vector<64x8xbf16>
    %cst_85 = arith.constant dense<0.000000e+00> : vector<64x64xf32>
    %251 = tpu.matmul %248, %249, %cst_85 {dimension_numbers = #tpu.dot_dimension_numbers<[1], [1], [0], [0], [0, 0, 1, 0], [], []>} : vector<64x8xbf16>, vector<64x8xbf16>, vector<64x64xf32> -> vector<64x64xf32>
    %cst_86 = arith.constant 0.353553385 : f32
    %252 = vector.broadcast %cst_86 : f32 to vector<64x64xf32>
    %253 = arith.mulf %251, %252 : vector<64x64xf32>
    %254 = arith.addf %253, %3 : vector<64x64xf32>
    %cst_87 = arith.constant dense<0xFF800000> : vector<64xf32>
    %255 = vector.multi_reduction <maximumf>, %254, %cst_87 [1] : vector<64x64xf32> to vector<64xf32>
    %256 = vector.shape_cast %255 : vector<64xf32> to vector<64x1xf32>
    %257 = vector.broadcast %256 : vector<64x1xf32> to vector<64x64xf32>
    %258 = arith.subf %254, %257 : vector<64x64xf32>
    %259 = math.exp %258 : vector<64x64xf32>
    %cst_88 = arith.constant dense<0.000000e+00> : vector<64xf32>
    %260 = vector.multi_reduction <add>, %259, %cst_88 [1] : vector<64x64xf32> to vector<64xf32>
    %261 = vector.shape_cast %260 : vector<64xf32> to vector<64x1xf32>
    %262 = tpu.reciprocal %261 {approx = true} : vector<64x1xf32> -> vector<64x1xf32>
    %263 = vector.broadcast %262 : vector<64x1xf32> to vector<64x64xf32>
    %264 = arith.mulf %259, %263 : vector<64x64xf32>
    %265 = arith.truncf %264 : vector<64x64xf32> to vector<64x64xbf16>
    %cst_89 = arith.constant dense<0.000000e+00> : vector<64x8xf32>
    %266 = tpu.matmul %265, %250, %cst_89 {dimension_numbers = #tpu.dot_dimension_numbers<[1], [0], [0], [1], [0, 0, 1, 1], [], []>} : vector<64x64xbf16>, vector<64x8xbf16>, vector<64x8xf32> -> vector<64x8xf32>
    %267 = tpu.concatenate %209, %228, %247, %266 in 1 : vector<64x8xf32>, vector<64x8xf32>, vector<64x8xf32>, vector<64x8xf32> -> vector<64x32xf32>
    %268 = arith.truncf %267 : vector<64x32xf32> to vector<64x32xbf16>
    %c1_90 = arith.constant 1 : index
    %c0_91 = arith.constant 0 : index
    %c0_92 = arith.constant 0 : index
    %269 = vector.load %arg4[%c1_90, %c0_91, %c0_92] : memref<4x32x32xbf16, #tpu.memory_space<vmem>>, vector<1x32x32xbf16>
    %270 = vector.shape_cast %269 : vector<1x32x32xbf16> to vector<32x32xbf16>
    %cst_93 = arith.constant dense<0.000000e+00> : vector<64x32xf32>
    %271 = tpu.matmul %268, %270, %cst_93 {dimension_numbers = #tpu.dot_dimension_numbers<[1], [0], [0], [1], [0, 0, 1, 1], [], []>} : vector<64x32xbf16>, vector<32x32xbf16>, vector<64x32xf32> -> vector<64x32xf32>
    %272 = vector.extract_strided_slice %182 {offsets = [1, 0], sizes = [1, 32], strides = [1, 1]} : vector<8x96xf32> to vector<1x32xf32>
    %273 = vector.broadcast %272 : vector<1x32xf32> to vector<64x32xf32>
    %274 = arith.addf %271, %273 : vector<64x32xf32>
    %275 = arith.addf %180, %274 : vector<64x32xf32>
    %276 = vector.extract_strided_slice %182 {offsets = [2, 0], sizes = [1, 32], strides = [1, 1]} : vector<8x96xf32> to vector<1x32xf32>
    %277 = vector.extract_strided_slice %182 {offsets = [3, 0], sizes = [1, 32], strides = [1, 1]} : vector<8x96xf32> to vector<1x32xf32>
    %cst_94 = arith.constant dense<0.000000e+00> : vector<64xf32>
    %278 = vector.multi_reduction <add>, %275, %cst_94 [1] : vector<64x32xf32> to vector<64xf32>
    %279 = vector.shape_cast %278 : vector<64xf32> to vector<64x1xf32>
    %cst_95 = arith.constant 3.200000e+01 : f32
    %280 = vector.broadcast %cst_95 : f32 to vector<64x1xf32>
    %281 = arith.divf %279, %280 : vector<64x1xf32>
    %282 = vector.broadcast %281 : vector<64x1xf32> to vector<64x32xf32>
    %283 = arith.subf %275, %282 : vector<64x32xf32>
    %284 = arith.mulf %283, %283 : vector<64x32xf32>
    %cst_96 = arith.constant dense<0.000000e+00> : vector<64xf32>
    %285 = vector.multi_reduction <add>, %284, %cst_96 [1] : vector<64x32xf32> to vector<64xf32>
    %286 = vector.shape_cast %285 : vector<64xf32> to vector<64x1xf32>
    %cst_97 = arith.constant 3.200000e+01 : f32
    %287 = vector.broadcast %cst_97 : f32 to vector<64x1xf32>
    %288 = arith.divf %286, %287 : vector<64x1xf32>
    %289 = vector.broadcast %281 : vector<64x1xf32> to vector<64x32xf32>
    %290 = arith.subf %275, %289 : vector<64x32xf32>
    %cst_98 = arith.constant 9.99999974E-6 : f32
    %291 = vector.broadcast %cst_98 : f32 to vector<64x1xf32>
    %292 = arith.addf %288, %291 : vector<64x1xf32>
    %293 = math.rsqrt %292 : vector<64x1xf32>
    %294 = vector.broadcast %293 : vector<64x1xf32> to vector<64x32xf32>
    %295 = arith.mulf %290, %294 : vector<64x32xf32>
    %296 = vector.broadcast %276 : vector<1x32xf32> to vector<64x32xf32>
    %297 = arith.mulf %295, %296 : vector<64x32xf32>
    %298 = vector.broadcast %277 : vector<1x32xf32> to vector<64x32xf32>
    %299 = arith.addf %297, %298 : vector<64x32xf32>
    %300 = arith.truncf %299 : vector<64x32xf32> to vector<64x32xbf16>
    %c1_99 = arith.constant 1 : index
    %c0_100 = arith.constant 0 : index
    %c0_101 = arith.constant 0 : index
    %301 = vector.load %arg5[%c1_99, %c0_100, %c0_101] : memref<4x32x64xbf16, #tpu.memory_space<vmem>>, vector<1x32x64xbf16>
    %302 = vector.shape_cast %301 : vector<1x32x64xbf16> to vector<32x64xbf16>
    %cst_102 = arith.constant dense<0.000000e+00> : vector<64x64xf32>
    %303 = tpu.matmul %300, %302, %cst_102 {dimension_numbers = #tpu.dot_dimension_numbers<[1], [0], [0], [1], [0, 0, 1, 1], [], []>} : vector<64x32xbf16>, vector<32x64xbf16>, vector<64x64xf32> -> vector<64x64xf32>
    %304 = vector.extract_strided_slice %182 {offsets = [4, 0], sizes = [1, 64], strides = [1, 1]} : vector<8x96xf32> to vector<1x64xf32>
    %305 = vector.broadcast %304 : vector<1x64xf32> to vector<64x64xf32>
    %306 = arith.addf %303, %305 : vector<64x64xf32>
    %cst_103 = arith.constant 5.000000e-01 : f32
    %307 = vector.broadcast %cst_103 : f32 to vector<64x64xf32>
    %308 = arith.mulf %307, %306 : vector<64x64xf32>
    %cst_104 = arith.constant 4.471500e-02 : f32
    %309 = vector.broadcast %cst_104 : f32 to vector<64x64xf32>
    %310 = arith.mulf %309, %306 : vector<64x64xf32>
    %311 = arith.mulf %310, %306 : vector<64x64xf32>
    %312 = arith.mulf %311, %306 : vector<64x64xf32>
    %313 = arith.addf %306, %312 : vector<64x64xf32>
    %cst_105 = arith.constant 0.797884583 : f32
    %314 = vector.broadcast %cst_105 : f32 to vector<64x64xf32>
    %315 = arith.mulf %314, %313 : vector<64x64xf32>
    %316 = math.tanh %315 : vector<64x64xf32>
    %cst_106 = arith.constant 1.000000e+00 : f32
    %317 = vector.broadcast %cst_106 : f32 to vector<64x64xf32>
    %318 = arith.addf %317, %316 : vector<64x64xf32>
    %319 = arith.mulf %308, %318 : vector<64x64xf32>
    %320 = arith.truncf %319 : vector<64x64xf32> to vector<64x64xbf16>
    %c1_107 = arith.constant 1 : index
    %c0_108 = arith.constant 0 : index
    %c0_109 = arith.constant 0 : index
    %321 = vector.load %arg6[%c1_107, %c0_108, %c0_109] : memref<4x64x32xbf16, #tpu.memory_space<vmem>>, vector<1x64x32xbf16>
    %322 = vector.shape_cast %321 : vector<1x64x32xbf16> to vector<64x32xbf16>
    %cst_110 = arith.constant dense<0.000000e+00> : vector<64x32xf32>
    %323 = tpu.matmul %320, %322, %cst_110 {dimension_numbers = #tpu.dot_dimension_numbers<[1], [0], [0], [1], [0, 0, 1, 1], [], []>} : vector<64x64xbf16>, vector<64x32xbf16>, vector<64x32xf32> -> vector<64x32xf32>
    %324 = vector.extract_strided_slice %182 {offsets = [5, 0], sizes = [1, 32], strides = [1, 1]} : vector<8x96xf32> to vector<1x32xf32>
    %325 = vector.broadcast %324 : vector<1x32xf32> to vector<64x32xf32>
    %326 = arith.addf %323, %325 : vector<64x32xf32>
    %327 = arith.addf %299, %326 : vector<64x32xf32>
    %328 = vector.extract_strided_slice %182 {offsets = [6, 0], sizes = [1, 32], strides = [1, 1]} : vector<8x96xf32> to vector<1x32xf32>
    %329 = vector.extract_strided_slice %182 {offsets = [7, 0], sizes = [1, 32], strides = [1, 1]} : vector<8x96xf32> to vector<1x32xf32>
    %cst_111 = arith.constant dense<0.000000e+00> : vector<64xf32>
    %330 = vector.multi_reduction <add>, %327, %cst_111 [1] : vector<64x32xf32> to vector<64xf32>
    %331 = vector.shape_cast %330 : vector<64xf32> to vector<64x1xf32>
    %cst_112 = arith.constant 3.200000e+01 : f32
    %332 = vector.broadcast %cst_112 : f32 to vector<64x1xf32>
    %333 = arith.divf %331, %332 : vector<64x1xf32>
    %334 = vector.broadcast %333 : vector<64x1xf32> to vector<64x32xf32>
    %335 = arith.subf %327, %334 : vector<64x32xf32>
    %336 = arith.mulf %335, %335 : vector<64x32xf32>
    %cst_113 = arith.constant dense<0.000000e+00> : vector<64xf32>
    %337 = vector.multi_reduction <add>, %336, %cst_113 [1] : vector<64x32xf32> to vector<64xf32>
    %338 = vector.shape_cast %337 : vector<64xf32> to vector<64x1xf32>
    %cst_114 = arith.constant 3.200000e+01 : f32
    %339 = vector.broadcast %cst_114 : f32 to vector<64x1xf32>
    %340 = arith.divf %338, %339 : vector<64x1xf32>
    %341 = vector.broadcast %333 : vector<64x1xf32> to vector<64x32xf32>
    %342 = arith.subf %327, %341 : vector<64x32xf32>
    %cst_115 = arith.constant 9.99999974E-6 : f32
    %343 = vector.broadcast %cst_115 : f32 to vector<64x1xf32>
    %344 = arith.addf %340, %343 : vector<64x1xf32>
    %345 = math.rsqrt %344 : vector<64x1xf32>
    %346 = vector.broadcast %345 : vector<64x1xf32> to vector<64x32xf32>
    %347 = arith.mulf %342, %346 : vector<64x32xf32>
    %348 = vector.broadcast %328 : vector<1x32xf32> to vector<64x32xf32>
    %349 = arith.mulf %347, %348 : vector<64x32xf32>
    %350 = vector.broadcast %329 : vector<1x32xf32> to vector<64x32xf32>
    %351 = arith.addf %349, %350 : vector<64x32xf32>
    %c2_116 = arith.constant 2 : index
    %c0_117 = arith.constant 0 : index
    %c0_118 = arith.constant 0 : index
    %352 = vector.load %arg7[%c2_116, %c0_117, %c0_118] : memref<4x8x96xf32, #tpu.memory_space<vmem>>, vector<1x8x96xf32>
    %353 = vector.shape_cast %352 : vector<1x8x96xf32> to vector<8x96xf32>
    %354 = arith.truncf %351 : vector<64x32xf32> to vector<64x32xbf16>
    %c2_119 = arith.constant 2 : index
    %c0_120 = arith.constant 0 : index
    %c0_121 = arith.constant 0 : index
    %355 = vector.load %arg3[%c2_119, %c0_120, %c0_121] : memref<4x32x96xbf16, #tpu.memory_space<vmem>>, vector<1x32x96xbf16>
    %356 = vector.shape_cast %355 : vector<1x32x96xbf16> to vector<32x96xbf16>
    %cst_122 = arith.constant dense<0.000000e+00> : vector<64x96xf32>
    %357 = tpu.matmul %354, %356, %cst_122 {dimension_numbers = #tpu.dot_dimension_numbers<[1], [0], [0], [1], [0, 0, 1, 1], [], []>} : vector<64x32xbf16>, vector<32x96xbf16>, vector<64x96xf32> -> vector<64x96xf32>
    %358 = vector.extract_strided_slice %353 {offsets = [0, 0], sizes = [1, 96], strides = [1, 1]} : vector<8x96xf32> to vector<1x96xf32>
    %359 = vector.broadcast %358 : vector<1x96xf32> to vector<64x96xf32>
    %360 = arith.addf %357, %359 : vector<64x96xf32>
    %361 = arith.truncf %360 : vector<64x96xf32> to vector<64x96xbf16>
    %362 = vector.extract_strided_slice %361 {offsets = [0, 0], sizes = [64, 8], strides = [1, 1]} : vector<64x96xbf16> to vector<64x8xbf16>
    %363 = vector.extract_strided_slice %361 {offsets = [0, 32], sizes = [64, 8], strides = [1, 1]} : vector<64x96xbf16> to vector<64x8xbf16>
    %364 = vector.extract_strided_slice %361 {offsets = [0, 64], sizes = [64, 8], strides = [1, 1]} : vector<64x96xbf16> to vector<64x8xbf16>
    %cst_123 = arith.constant dense<0.000000e+00> : vector<64x64xf32>
    %365 = tpu.matmul %362, %363, %cst_123 {dimension_numbers = #tpu.dot_dimension_numbers<[1], [1], [0], [0], [0, 0, 1, 0], [], []>} : vector<64x8xbf16>, vector<64x8xbf16>, vector<64x64xf32> -> vector<64x64xf32>
    %cst_124 = arith.constant 0.353553385 : f32
    %366 = vector.broadcast %cst_124 : f32 to vector<64x64xf32>
    %367 = arith.mulf %365, %366 : vector<64x64xf32>
    %368 = arith.addf %367, %5 : vector<64x64xf32>
    %cst_125 = arith.constant dense<0xFF800000> : vector<64xf32>
    %369 = vector.multi_reduction <maximumf>, %368, %cst_125 [1] : vector<64x64xf32> to vector<64xf32>
    %370 = vector.shape_cast %369 : vector<64xf32> to vector<64x1xf32>
    %371 = vector.broadcast %370 : vector<64x1xf32> to vector<64x64xf32>
    %372 = arith.subf %368, %371 : vector<64x64xf32>
    %373 = math.exp %372 : vector<64x64xf32>
    %cst_126 = arith.constant dense<0.000000e+00> : vector<64xf32>
    %374 = vector.multi_reduction <add>, %373, %cst_126 [1] : vector<64x64xf32> to vector<64xf32>
    %375 = vector.shape_cast %374 : vector<64xf32> to vector<64x1xf32>
    %376 = tpu.reciprocal %375 {approx = true} : vector<64x1xf32> -> vector<64x1xf32>
    %377 = vector.broadcast %376 : vector<64x1xf32> to vector<64x64xf32>
    %378 = arith.mulf %373, %377 : vector<64x64xf32>
    %379 = arith.truncf %378 : vector<64x64xf32> to vector<64x64xbf16>
    %cst_127 = arith.constant dense<0.000000e+00> : vector<64x8xf32>
    %380 = tpu.matmul %379, %364, %cst_127 {dimension_numbers = #tpu.dot_dimension_numbers<[1], [0], [0], [1], [0, 0, 1, 1], [], []>} : vector<64x64xbf16>, vector<64x8xbf16>, vector<64x8xf32> -> vector<64x8xf32>
    %381 = vector.extract_strided_slice %361 {offsets = [0, 8], sizes = [64, 8], strides = [1, 1]} : vector<64x96xbf16> to vector<64x8xbf16>
    %382 = vector.extract_strided_slice %361 {offsets = [0, 40], sizes = [64, 8], strides = [1, 1]} : vector<64x96xbf16> to vector<64x8xbf16>
    %383 = vector.extract_strided_slice %361 {offsets = [0, 72], sizes = [64, 8], strides = [1, 1]} : vector<64x96xbf16> to vector<64x8xbf16>
    %cst_128 = arith.constant dense<0.000000e+00> : vector<64x64xf32>
    %384 = tpu.matmul %381, %382, %cst_128 {dimension_numbers = #tpu.dot_dimension_numbers<[1], [1], [0], [0], [0, 0, 1, 0], [], []>} : vector<64x8xbf16>, vector<64x8xbf16>, vector<64x64xf32> -> vector<64x64xf32>
    %cst_129 = arith.constant 0.353553385 : f32
    %385 = vector.broadcast %cst_129 : f32 to vector<64x64xf32>
    %386 = arith.mulf %384, %385 : vector<64x64xf32>
    %387 = arith.addf %386, %5 : vector<64x64xf32>
    %cst_130 = arith.constant dense<0xFF800000> : vector<64xf32>
    %388 = vector.multi_reduction <maximumf>, %387, %cst_130 [1] : vector<64x64xf32> to vector<64xf32>
    %389 = vector.shape_cast %388 : vector<64xf32> to vector<64x1xf32>
    %390 = vector.broadcast %389 : vector<64x1xf32> to vector<64x64xf32>
    %391 = arith.subf %387, %390 : vector<64x64xf32>
    %392 = math.exp %391 : vector<64x64xf32>
    %cst_131 = arith.constant dense<0.000000e+00> : vector<64xf32>
    %393 = vector.multi_reduction <add>, %392, %cst_131 [1] : vector<64x64xf32> to vector<64xf32>
    %394 = vector.shape_cast %393 : vector<64xf32> to vector<64x1xf32>
    %395 = tpu.reciprocal %394 {approx = true} : vector<64x1xf32> -> vector<64x1xf32>
    %396 = vector.broadcast %395 : vector<64x1xf32> to vector<64x64xf32>
    %397 = arith.mulf %392, %396 : vector<64x64xf32>
    %398 = arith.truncf %397 : vector<64x64xf32> to vector<64x64xbf16>
    %cst_132 = arith.constant dense<0.000000e+00> : vector<64x8xf32>
    %399 = tpu.matmul %398, %383, %cst_132 {dimension_numbers = #tpu.dot_dimension_numbers<[1], [0], [0], [1], [0, 0, 1, 1], [], []>} : vector<64x64xbf16>, vector<64x8xbf16>, vector<64x8xf32> -> vector<64x8xf32>
    %400 = vector.extract_strided_slice %361 {offsets = [0, 16], sizes = [64, 8], strides = [1, 1]} : vector<64x96xbf16> to vector<64x8xbf16>
    %401 = vector.extract_strided_slice %361 {offsets = [0, 48], sizes = [64, 8], strides = [1, 1]} : vector<64x96xbf16> to vector<64x8xbf16>
    %402 = vector.extract_strided_slice %361 {offsets = [0, 80], sizes = [64, 8], strides = [1, 1]} : vector<64x96xbf16> to vector<64x8xbf16>
    %cst_133 = arith.constant dense<0.000000e+00> : vector<64x64xf32>
    %403 = tpu.matmul %400, %401, %cst_133 {dimension_numbers = #tpu.dot_dimension_numbers<[1], [1], [0], [0], [0, 0, 1, 0], [], []>} : vector<64x8xbf16>, vector<64x8xbf16>, vector<64x64xf32> -> vector<64x64xf32>
    %cst_134 = arith.constant 0.353553385 : f32
    %404 = vector.broadcast %cst_134 : f32 to vector<64x64xf32>
    %405 = arith.mulf %403, %404 : vector<64x64xf32>
    %406 = arith.addf %405, %5 : vector<64x64xf32>
    %cst_135 = arith.constant dense<0xFF800000> : vector<64xf32>
    %407 = vector.multi_reduction <maximumf>, %406, %cst_135 [1] : vector<64x64xf32> to vector<64xf32>
    %408 = vector.shape_cast %407 : vector<64xf32> to vector<64x1xf32>
    %409 = vector.broadcast %408 : vector<64x1xf32> to vector<64x64xf32>
    %410 = arith.subf %406, %409 : vector<64x64xf32>
    %411 = math.exp %410 : vector<64x64xf32>
    %cst_136 = arith.constant dense<0.000000e+00> : vector<64xf32>
    %412 = vector.multi_reduction <add>, %411, %cst_136 [1] : vector<64x64xf32> to vector<64xf32>
    %413 = vector.shape_cast %412 : vector<64xf32> to vector<64x1xf32>
    %414 = tpu.reciprocal %413 {approx = true} : vector<64x1xf32> -> vector<64x1xf32>
    %415 = vector.broadcast %414 : vector<64x1xf32> to vector<64x64xf32>
    %416 = arith.mulf %411, %415 : vector<64x64xf32>
    %417 = arith.truncf %416 : vector<64x64xf32> to vector<64x64xbf16>
    %cst_137 = arith.constant dense<0.000000e+00> : vector<64x8xf32>
    %418 = tpu.matmul %417, %402, %cst_137 {dimension_numbers = #tpu.dot_dimension_numbers<[1], [0], [0], [1], [0, 0, 1, 1], [], []>} : vector<64x64xbf16>, vector<64x8xbf16>, vector<64x8xf32> -> vector<64x8xf32>
    %419 = vector.extract_strided_slice %361 {offsets = [0, 24], sizes = [64, 8], strides = [1, 1]} : vector<64x96xbf16> to vector<64x8xbf16>
    %420 = vector.extract_strided_slice %361 {offsets = [0, 56], sizes = [64, 8], strides = [1, 1]} : vector<64x96xbf16> to vector<64x8xbf16>
    %421 = vector.extract_strided_slice %361 {offsets = [0, 88], sizes = [64, 8], strides = [1, 1]} : vector<64x96xbf16> to vector<64x8xbf16>
    %cst_138 = arith.constant dense<0.000000e+00> : vector<64x64xf32>
    %422 = tpu.matmul %419, %420, %cst_138 {dimension_numbers = #tpu.dot_dimension_numbers<[1], [1], [0], [0], [0, 0, 1, 0], [], []>} : vector<64x8xbf16>, vector<64x8xbf16>, vector<64x64xf32> -> vector<64x64xf32>
    %cst_139 = arith.constant 0.353553385 : f32
    %423 = vector.broadcast %cst_139 : f32 to vector<64x64xf32>
    %424 = arith.mulf %422, %423 : vector<64x64xf32>
    %425 = arith.addf %424, %5 : vector<64x64xf32>
    %cst_140 = arith.constant dense<0xFF800000> : vector<64xf32>
    %426 = vector.multi_reduction <maximumf>, %425, %cst_140 [1] : vector<64x64xf32> to vector<64xf32>
    %427 = vector.shape_cast %426 : vector<64xf32> to vector<64x1xf32>
    %428 = vector.broadcast %427 : vector<64x1xf32> to vector<64x64xf32>
    %429 = arith.subf %425, %428 : vector<64x64xf32>
    %430 = math.exp %429 : vector<64x64xf32>
    %cst_141 = arith.constant dense<0.000000e+00> : vector<64xf32>
    %431 = vector.multi_reduction <add>, %430, %cst_141 [1] : vector<64x64xf32> to vector<64xf32>
    %432 = vector.shape_cast %431 : vector<64xf32> to vector<64x1xf32>
    %433 = tpu.reciprocal %432 {approx = true} : vector<64x1xf32> -> vector<64x1xf32>
    %434 = vector.broadcast %433 : vector<64x1xf32> to vector<64x64xf32>
    %435 = arith.mulf %430, %434 : vector<64x64xf32>
    %436 = arith.truncf %435 : vector<64x64xf32> to vector<64x64xbf16>
    %cst_142 = arith.constant dense<0.000000e+00> : vector<64x8xf32>
    %437 = tpu.matmul %436, %421, %cst_142 {dimension_numbers = #tpu.dot_dimension_numbers<[1], [0], [0], [1], [0, 0, 1, 1], [], []>} : vector<64x64xbf16>, vector<64x8xbf16>, vector<64x8xf32> -> vector<64x8xf32>
    %438 = tpu.concatenate %380, %399, %418, %437 in 1 : vector<64x8xf32>, vector<64x8xf32>, vector<64x8xf32>, vector<64x8xf32> -> vector<64x32xf32>
    %439 = arith.truncf %438 : vector<64x32xf32> to vector<64x32xbf16>
    %c2_143 = arith.constant 2 : index
    %c0_144 = arith.constant 0 : index
    %c0_145 = arith.constant 0 : index
    %440 = vector.load %arg4[%c2_143, %c0_144, %c0_145] : memref<4x32x32xbf16, #tpu.memory_space<vmem>>, vector<1x32x32xbf16>
    %441 = vector.shape_cast %440 : vector<1x32x32xbf16> to vector<32x32xbf16>
    %cst_146 = arith.constant dense<0.000000e+00> : vector<64x32xf32>
    %442 = tpu.matmul %439, %441, %cst_146 {dimension_numbers = #tpu.dot_dimension_numbers<[1], [0], [0], [1], [0, 0, 1, 1], [], []>} : vector<64x32xbf16>, vector<32x32xbf16>, vector<64x32xf32> -> vector<64x32xf32>
    %443 = vector.extract_strided_slice %353 {offsets = [1, 0], sizes = [1, 32], strides = [1, 1]} : vector<8x96xf32> to vector<1x32xf32>
    %444 = vector.broadcast %443 : vector<1x32xf32> to vector<64x32xf32>
    %445 = arith.addf %442, %444 : vector<64x32xf32>
    %446 = arith.addf %351, %445 : vector<64x32xf32>
    %447 = vector.extract_strided_slice %353 {offsets = [2, 0], sizes = [1, 32], strides = [1, 1]} : vector<8x96xf32> to vector<1x32xf32>
    %448 = vector.extract_strided_slice %353 {offsets = [3, 0], sizes = [1, 32], strides = [1, 1]} : vector<8x96xf32> to vector<1x32xf32>
    %cst_147 = arith.constant dense<0.000000e+00> : vector<64xf32>
    %449 = vector.multi_reduction <add>, %446, %cst_147 [1] : vector<64x32xf32> to vector<64xf32>
    %450 = vector.shape_cast %449 : vector<64xf32> to vector<64x1xf32>
    %cst_148 = arith.constant 3.200000e+01 : f32
    %451 = vector.broadcast %cst_148 : f32 to vector<64x1xf32>
    %452 = arith.divf %450, %451 : vector<64x1xf32>
    %453 = vector.broadcast %452 : vector<64x1xf32> to vector<64x32xf32>
    %454 = arith.subf %446, %453 : vector<64x32xf32>
    %455 = arith.mulf %454, %454 : vector<64x32xf32>
    %cst_149 = arith.constant dense<0.000000e+00> : vector<64xf32>
    %456 = vector.multi_reduction <add>, %455, %cst_149 [1] : vector<64x32xf32> to vector<64xf32>
    %457 = vector.shape_cast %456 : vector<64xf32> to vector<64x1xf32>
    %cst_150 = arith.constant 3.200000e+01 : f32
    %458 = vector.broadcast %cst_150 : f32 to vector<64x1xf32>
    %459 = arith.divf %457, %458 : vector<64x1xf32>
    %460 = vector.broadcast %452 : vector<64x1xf32> to vector<64x32xf32>
    %461 = arith.subf %446, %460 : vector<64x32xf32>
    %cst_151 = arith.constant 9.99999974E-6 : f32
    %462 = vector.broadcast %cst_151 : f32 to vector<64x1xf32>
    %463 = arith.addf %459, %462 : vector<64x1xf32>
    %464 = math.rsqrt %463 : vector<64x1xf32>
    %465 = vector.broadcast %464 : vector<64x1xf32> to vector<64x32xf32>
    %466 = arith.mulf %461, %465 : vector<64x32xf32>
    %467 = vector.broadcast %447 : vector<1x32xf32> to vector<64x32xf32>
    %468 = arith.mulf %466, %467 : vector<64x32xf32>
    %469 = vector.broadcast %448 : vector<1x32xf32> to vector<64x32xf32>
    %470 = arith.addf %468, %469 : vector<64x32xf32>
    %471 = arith.truncf %470 : vector<64x32xf32> to vector<64x32xbf16>
    %c2_152 = arith.constant 2 : index
    %c0_153 = arith.constant 0 : index
    %c0_154 = arith.constant 0 : index
    %472 = vector.load %arg5[%c2_152, %c0_153, %c0_154] : memref<4x32x64xbf16, #tpu.memory_space<vmem>>, vector<1x32x64xbf16>
    %473 = vector.shape_cast %472 : vector<1x32x64xbf16> to vector<32x64xbf16>
    %cst_155 = arith.constant dense<0.000000e+00> : vector<64x64xf32>
    %474 = tpu.matmul %471, %473, %cst_155 {dimension_numbers = #tpu.dot_dimension_numbers<[1], [0], [0], [1], [0, 0, 1, 1], [], []>} : vector<64x32xbf16>, vector<32x64xbf16>, vector<64x64xf32> -> vector<64x64xf32>
    %475 = vector.extract_strided_slice %353 {offsets = [4, 0], sizes = [1, 64], strides = [1, 1]} : vector<8x96xf32> to vector<1x64xf32>
    %476 = vector.broadcast %475 : vector<1x64xf32> to vector<64x64xf32>
    %477 = arith.addf %474, %476 : vector<64x64xf32>
    %cst_156 = arith.constant 5.000000e-01 : f32
    %478 = vector.broadcast %cst_156 : f32 to vector<64x64xf32>
    %479 = arith.mulf %478, %477 : vector<64x64xf32>
    %cst_157 = arith.constant 4.471500e-02 : f32
    %480 = vector.broadcast %cst_157 : f32 to vector<64x64xf32>
    %481 = arith.mulf %480, %477 : vector<64x64xf32>
    %482 = arith.mulf %481, %477 : vector<64x64xf32>
    %483 = arith.mulf %482, %477 : vector<64x64xf32>
    %484 = arith.addf %477, %483 : vector<64x64xf32>
    %cst_158 = arith.constant 0.797884583 : f32
    %485 = vector.broadcast %cst_158 : f32 to vector<64x64xf32>
    %486 = arith.mulf %485, %484 : vector<64x64xf32>
    %487 = math.tanh %486 : vector<64x64xf32>
    %cst_159 = arith.constant 1.000000e+00 : f32
    %488 = vector.broadcast %cst_159 : f32 to vector<64x64xf32>
    %489 = arith.addf %488, %487 : vector<64x64xf32>
    %490 = arith.mulf %479, %489 : vector<64x64xf32>
    %491 = arith.truncf %490 : vector<64x64xf32> to vector<64x64xbf16>
    %c2_160 = arith.constant 2 : index
    %c0_161 = arith.constant 0 : index
    %c0_162 = arith.constant 0 : index
    %492 = vector.load %arg6[%c2_160, %c0_161, %c0_162] : memref<4x64x32xbf16, #tpu.memory_space<vmem>>, vector<1x64x32xbf16>
    %493 = vector.shape_cast %492 : vector<1x64x32xbf16> to vector<64x32xbf16>
    %cst_163 = arith.constant dense<0.000000e+00> : vector<64x32xf32>
    %494 = tpu.matmul %491, %493, %cst_163 {dimension_numbers = #tpu.dot_dimension_numbers<[1], [0], [0], [1], [0, 0, 1, 1], [], []>} : vector<64x64xbf16>, vector<64x32xbf16>, vector<64x32xf32> -> vector<64x32xf32>
    %495 = vector.extract_strided_slice %353 {offsets = [5, 0], sizes = [1, 32], strides = [1, 1]} : vector<8x96xf32> to vector<1x32xf32>
    %496 = vector.broadcast %495 : vector<1x32xf32> to vector<64x32xf32>
    %497 = arith.addf %494, %496 : vector<64x32xf32>
    %498 = arith.addf %470, %497 : vector<64x32xf32>
    %499 = vector.extract_strided_slice %353 {offsets = [6, 0], sizes = [1, 32], strides = [1, 1]} : vector<8x96xf32> to vector<1x32xf32>
    %500 = vector.extract_strided_slice %353 {offsets = [7, 0], sizes = [1, 32], strides = [1, 1]} : vector<8x96xf32> to vector<1x32xf32>
    %cst_164 = arith.constant dense<0.000000e+00> : vector<64xf32>
    %501 = vector.multi_reduction <add>, %498, %cst_164 [1] : vector<64x32xf32> to vector<64xf32>
    %502 = vector.shape_cast %501 : vector<64xf32> to vector<64x1xf32>
    %cst_165 = arith.constant 3.200000e+01 : f32
    %503 = vector.broadcast %cst_165 : f32 to vector<64x1xf32>
    %504 = arith.divf %502, %503 : vector<64x1xf32>
    %505 = vector.broadcast %504 : vector<64x1xf32> to vector<64x32xf32>
    %506 = arith.subf %498, %505 : vector<64x32xf32>
    %507 = arith.mulf %506, %506 : vector<64x32xf32>
    %cst_166 = arith.constant dense<0.000000e+00> : vector<64xf32>
    %508 = vector.multi_reduction <add>, %507, %cst_166 [1] : vector<64x32xf32> to vector<64xf32>
    %509 = vector.shape_cast %508 : vector<64xf32> to vector<64x1xf32>
    %cst_167 = arith.constant 3.200000e+01 : f32
    %510 = vector.broadcast %cst_167 : f32 to vector<64x1xf32>
    %511 = arith.divf %509, %510 : vector<64x1xf32>
    %512 = vector.broadcast %504 : vector<64x1xf32> to vector<64x32xf32>
    %513 = arith.subf %498, %512 : vector<64x32xf32>
    %cst_168 = arith.constant 9.99999974E-6 : f32
    %514 = vector.broadcast %cst_168 : f32 to vector<64x1xf32>
    %515 = arith.addf %511, %514 : vector<64x1xf32>
    %516 = math.rsqrt %515 : vector<64x1xf32>
    %517 = vector.broadcast %516 : vector<64x1xf32> to vector<64x32xf32>
    %518 = arith.mulf %513, %517 : vector<64x32xf32>
    %519 = vector.broadcast %499 : vector<1x32xf32> to vector<64x32xf32>
    %520 = arith.mulf %518, %519 : vector<64x32xf32>
    %521 = vector.broadcast %500 : vector<1x32xf32> to vector<64x32xf32>
    %522 = arith.addf %520, %521 : vector<64x32xf32>
    %c3 = arith.constant 3 : index
    %c0_169 = arith.constant 0 : index
    %c0_170 = arith.constant 0 : index
    %523 = vector.load %arg7[%c3, %c0_169, %c0_170] : memref<4x8x96xf32, #tpu.memory_space<vmem>>, vector<1x8x96xf32>
    %524 = vector.shape_cast %523 : vector<1x8x96xf32> to vector<8x96xf32>
    %525 = arith.truncf %522 : vector<64x32xf32> to vector<64x32xbf16>
    %c3_171 = arith.constant 3 : index
    %c0_172 = arith.constant 0 : index
    %c0_173 = arith.constant 0 : index
    %526 = vector.load %arg3[%c3_171, %c0_172, %c0_173] : memref<4x32x96xbf16, #tpu.memory_space<vmem>>, vector<1x32x96xbf16>
    %527 = vector.shape_cast %526 : vector<1x32x96xbf16> to vector<32x96xbf16>
    %cst_174 = arith.constant dense<0.000000e+00> : vector<64x96xf32>
    %528 = tpu.matmul %525, %527, %cst_174 {dimension_numbers = #tpu.dot_dimension_numbers<[1], [0], [0], [1], [0, 0, 1, 1], [], []>} : vector<64x32xbf16>, vector<32x96xbf16>, vector<64x96xf32> -> vector<64x96xf32>
    %529 = vector.extract_strided_slice %524 {offsets = [0, 0], sizes = [1, 96], strides = [1, 1]} : vector<8x96xf32> to vector<1x96xf32>
    %530 = vector.broadcast %529 : vector<1x96xf32> to vector<64x96xf32>
    %531 = arith.addf %528, %530 : vector<64x96xf32>
    %532 = arith.truncf %531 : vector<64x96xf32> to vector<64x96xbf16>
    %533 = vector.extract_strided_slice %532 {offsets = [0, 0], sizes = [64, 8], strides = [1, 1]} : vector<64x96xbf16> to vector<64x8xbf16>
    %534 = vector.extract_strided_slice %532 {offsets = [0, 32], sizes = [64, 8], strides = [1, 1]} : vector<64x96xbf16> to vector<64x8xbf16>
    %535 = vector.extract_strided_slice %532 {offsets = [0, 64], sizes = [64, 8], strides = [1, 1]} : vector<64x96xbf16> to vector<64x8xbf16>
    %cst_175 = arith.constant dense<0.000000e+00> : vector<64x64xf32>
    %536 = tpu.matmul %533, %534, %cst_175 {dimension_numbers = #tpu.dot_dimension_numbers<[1], [1], [0], [0], [0, 0, 1, 0], [], []>} : vector<64x8xbf16>, vector<64x8xbf16>, vector<64x64xf32> -> vector<64x64xf32>
    %cst_176 = arith.constant 0.353553385 : f32
    %537 = vector.broadcast %cst_176 : f32 to vector<64x64xf32>
    %538 = arith.mulf %536, %537 : vector<64x64xf32>
    %539 = arith.addf %538, %5 : vector<64x64xf32>
    %cst_177 = arith.constant dense<0xFF800000> : vector<64xf32>
    %540 = vector.multi_reduction <maximumf>, %539, %cst_177 [1] : vector<64x64xf32> to vector<64xf32>
    %541 = vector.shape_cast %540 : vector<64xf32> to vector<64x1xf32>
    %542 = vector.broadcast %541 : vector<64x1xf32> to vector<64x64xf32>
    %543 = arith.subf %539, %542 : vector<64x64xf32>
    %544 = math.exp %543 : vector<64x64xf32>
    %cst_178 = arith.constant dense<0.000000e+00> : vector<64xf32>
    %545 = vector.multi_reduction <add>, %544, %cst_178 [1] : vector<64x64xf32> to vector<64xf32>
    %546 = vector.shape_cast %545 : vector<64xf32> to vector<64x1xf32>
    %547 = tpu.reciprocal %546 {approx = true} : vector<64x1xf32> -> vector<64x1xf32>
    %548 = vector.broadcast %547 : vector<64x1xf32> to vector<64x64xf32>
    %549 = arith.mulf %544, %548 : vector<64x64xf32>
    %550 = arith.truncf %549 : vector<64x64xf32> to vector<64x64xbf16>
    %cst_179 = arith.constant dense<0.000000e+00> : vector<64x8xf32>
    %551 = tpu.matmul %550, %535, %cst_179 {dimension_numbers = #tpu.dot_dimension_numbers<[1], [0], [0], [1], [0, 0, 1, 1], [], []>} : vector<64x64xbf16>, vector<64x8xbf16>, vector<64x8xf32> -> vector<64x8xf32>
    %552 = vector.extract_strided_slice %532 {offsets = [0, 8], sizes = [64, 8], strides = [1, 1]} : vector<64x96xbf16> to vector<64x8xbf16>
    %553 = vector.extract_strided_slice %532 {offsets = [0, 40], sizes = [64, 8], strides = [1, 1]} : vector<64x96xbf16> to vector<64x8xbf16>
    %554 = vector.extract_strided_slice %532 {offsets = [0, 72], sizes = [64, 8], strides = [1, 1]} : vector<64x96xbf16> to vector<64x8xbf16>
    %cst_180 = arith.constant dense<0.000000e+00> : vector<64x64xf32>
    %555 = tpu.matmul %552, %553, %cst_180 {dimension_numbers = #tpu.dot_dimension_numbers<[1], [1], [0], [0], [0, 0, 1, 0], [], []>} : vector<64x8xbf16>, vector<64x8xbf16>, vector<64x64xf32> -> vector<64x64xf32>
    %cst_181 = arith.constant 0.353553385 : f32
    %556 = vector.broadcast %cst_181 : f32 to vector<64x64xf32>
    %557 = arith.mulf %555, %556 : vector<64x64xf32>
    %558 = arith.addf %557, %5 : vector<64x64xf32>
    %cst_182 = arith.constant dense<0xFF800000> : vector<64xf32>
    %559 = vector.multi_reduction <maximumf>, %558, %cst_182 [1] : vector<64x64xf32> to vector<64xf32>
    %560 = vector.shape_cast %559 : vector<64xf32> to vector<64x1xf32>
    %561 = vector.broadcast %560 : vector<64x1xf32> to vector<64x64xf32>
    %562 = arith.subf %558, %561 : vector<64x64xf32>
    %563 = math.exp %562 : vector<64x64xf32>
    %cst_183 = arith.constant dense<0.000000e+00> : vector<64xf32>
    %564 = vector.multi_reduction <add>, %563, %cst_183 [1] : vector<64x64xf32> to vector<64xf32>
    %565 = vector.shape_cast %564 : vector<64xf32> to vector<64x1xf32>
    %566 = tpu.reciprocal %565 {approx = true} : vector<64x1xf32> -> vector<64x1xf32>
    %567 = vector.broadcast %566 : vector<64x1xf32> to vector<64x64xf32>
    %568 = arith.mulf %563, %567 : vector<64x64xf32>
    %569 = arith.truncf %568 : vector<64x64xf32> to vector<64x64xbf16>
    %cst_184 = arith.constant dense<0.000000e+00> : vector<64x8xf32>
    %570 = tpu.matmul %569, %554, %cst_184 {dimension_numbers = #tpu.dot_dimension_numbers<[1], [0], [0], [1], [0, 0, 1, 1], [], []>} : vector<64x64xbf16>, vector<64x8xbf16>, vector<64x8xf32> -> vector<64x8xf32>
    %571 = vector.extract_strided_slice %532 {offsets = [0, 16], sizes = [64, 8], strides = [1, 1]} : vector<64x96xbf16> to vector<64x8xbf16>
    %572 = vector.extract_strided_slice %532 {offsets = [0, 48], sizes = [64, 8], strides = [1, 1]} : vector<64x96xbf16> to vector<64x8xbf16>
    %573 = vector.extract_strided_slice %532 {offsets = [0, 80], sizes = [64, 8], strides = [1, 1]} : vector<64x96xbf16> to vector<64x8xbf16>
    %cst_185 = arith.constant dense<0.000000e+00> : vector<64x64xf32>
    %574 = tpu.matmul %571, %572, %cst_185 {dimension_numbers = #tpu.dot_dimension_numbers<[1], [1], [0], [0], [0, 0, 1, 0], [], []>} : vector<64x8xbf16>, vector<64x8xbf16>, vector<64x64xf32> -> vector<64x64xf32>
    %cst_186 = arith.constant 0.353553385 : f32
    %575 = vector.broadcast %cst_186 : f32 to vector<64x64xf32>
    %576 = arith.mulf %574, %575 : vector<64x64xf32>
    %577 = arith.addf %576, %5 : vector<64x64xf32>
    %cst_187 = arith.constant dense<0xFF800000> : vector<64xf32>
    %578 = vector.multi_reduction <maximumf>, %577, %cst_187 [1] : vector<64x64xf32> to vector<64xf32>
    %579 = vector.shape_cast %578 : vector<64xf32> to vector<64x1xf32>
    %580 = vector.broadcast %579 : vector<64x1xf32> to vector<64x64xf32>
    %581 = arith.subf %577, %580 : vector<64x64xf32>
    %582 = math.exp %581 : vector<64x64xf32>
    %cst_188 = arith.constant dense<0.000000e+00> : vector<64xf32>
    %583 = vector.multi_reduction <add>, %582, %cst_188 [1] : vector<64x64xf32> to vector<64xf32>
    %584 = vector.shape_cast %583 : vector<64xf32> to vector<64x1xf32>
    %585 = tpu.reciprocal %584 {approx = true} : vector<64x1xf32> -> vector<64x1xf32>
    %586 = vector.broadcast %585 : vector<64x1xf32> to vector<64x64xf32>
    %587 = arith.mulf %582, %586 : vector<64x64xf32>
    %588 = arith.truncf %587 : vector<64x64xf32> to vector<64x64xbf16>
    %cst_189 = arith.constant dense<0.000000e+00> : vector<64x8xf32>
    %589 = tpu.matmul %588, %573, %cst_189 {dimension_numbers = #tpu.dot_dimension_numbers<[1], [0], [0], [1], [0, 0, 1, 1], [], []>} : vector<64x64xbf16>, vector<64x8xbf16>, vector<64x8xf32> -> vector<64x8xf32>
    %590 = vector.extract_strided_slice %532 {offsets = [0, 24], sizes = [64, 8], strides = [1, 1]} : vector<64x96xbf16> to vector<64x8xbf16>
    %591 = vector.extract_strided_slice %532 {offsets = [0, 56], sizes = [64, 8], strides = [1, 1]} : vector<64x96xbf16> to vector<64x8xbf16>
    %592 = vector.extract_strided_slice %532 {offsets = [0, 88], sizes = [64, 8], strides = [1, 1]} : vector<64x96xbf16> to vector<64x8xbf16>
    %cst_190 = arith.constant dense<0.000000e+00> : vector<64x64xf32>
    %593 = tpu.matmul %590, %591, %cst_190 {dimension_numbers = #tpu.dot_dimension_numbers<[1], [1], [0], [0], [0, 0, 1, 0], [], []>} : vector<64x8xbf16>, vector<64x8xbf16>, vector<64x64xf32> -> vector<64x64xf32>
    %cst_191 = arith.constant 0.353553385 : f32
    %594 = vector.broadcast %cst_191 : f32 to vector<64x64xf32>
    %595 = arith.mulf %593, %594 : vector<64x64xf32>
    %596 = arith.addf %595, %5 : vector<64x64xf32>
    %cst_192 = arith.constant dense<0xFF800000> : vector<64xf32>
    %597 = vector.multi_reduction <maximumf>, %596, %cst_192 [1] : vector<64x64xf32> to vector<64xf32>
    %598 = vector.shape_cast %597 : vector<64xf32> to vector<64x1xf32>
    %599 = vector.broadcast %598 : vector<64x1xf32> to vector<64x64xf32>
    %600 = arith.subf %596, %599 : vector<64x64xf32>
    %601 = math.exp %600 : vector<64x64xf32>
    %cst_193 = arith.constant dense<0.000000e+00> : vector<64xf32>
    %602 = vector.multi_reduction <add>, %601, %cst_193 [1] : vector<64x64xf32> to vector<64xf32>
    %603 = vector.shape_cast %602 : vector<64xf32> to vector<64x1xf32>
    %604 = tpu.reciprocal %603 {approx = true} : vector<64x1xf32> -> vector<64x1xf32>
    %605 = vector.broadcast %604 : vector<64x1xf32> to vector<64x64xf32>
    %606 = arith.mulf %601, %605 : vector<64x64xf32>
    %607 = arith.truncf %606 : vector<64x64xf32> to vector<64x64xbf16>
    %cst_194 = arith.constant dense<0.000000e+00> : vector<64x8xf32>
    %608 = tpu.matmul %607, %592, %cst_194 {dimension_numbers = #tpu.dot_dimension_numbers<[1], [0], [0], [1], [0, 0, 1, 1], [], []>} : vector<64x64xbf16>, vector<64x8xbf16>, vector<64x8xf32> -> vector<64x8xf32>
    %609 = tpu.concatenate %551, %570, %589, %608 in 1 : vector<64x8xf32>, vector<64x8xf32>, vector<64x8xf32>, vector<64x8xf32> -> vector<64x32xf32>
    %610 = arith.truncf %609 : vector<64x32xf32> to vector<64x32xbf16>
    %c3_195 = arith.constant 3 : index
    %c0_196 = arith.constant 0 : index
    %c0_197 = arith.constant 0 : index
    %611 = vector.load %arg4[%c3_195, %c0_196, %c0_197] : memref<4x32x32xbf16, #tpu.memory_space<vmem>>, vector<1x32x32xbf16>
    %612 = vector.shape_cast %611 : vector<1x32x32xbf16> to vector<32x32xbf16>
    %cst_198 = arith.constant dense<0.000000e+00> : vector<64x32xf32>
    %613 = tpu.matmul %610, %612, %cst_198 {dimension_numbers = #tpu.dot_dimension_numbers<[1], [0], [0], [1], [0, 0, 1, 1], [], []>} : vector<64x32xbf16>, vector<32x32xbf16>, vector<64x32xf32> -> vector<64x32xf32>
    %614 = vector.extract_strided_slice %524 {offsets = [1, 0], sizes = [1, 32], strides = [1, 1]} : vector<8x96xf32> to vector<1x32xf32>
    %615 = vector.broadcast %614 : vector<1x32xf32> to vector<64x32xf32>
    %616 = arith.addf %613, %615 : vector<64x32xf32>
    %617 = arith.addf %522, %616 : vector<64x32xf32>
    %618 = vector.extract_strided_slice %524 {offsets = [2, 0], sizes = [1, 32], strides = [1, 1]} : vector<8x96xf32> to vector<1x32xf32>
    %619 = vector.extract_strided_slice %524 {offsets = [3, 0], sizes = [1, 32], strides = [1, 1]} : vector<8x96xf32> to vector<1x32xf32>
    %cst_199 = arith.constant dense<0.000000e+00> : vector<64xf32>
    %620 = vector.multi_reduction <add>, %617, %cst_199 [1] : vector<64x32xf32> to vector<64xf32>
    %621 = vector.shape_cast %620 : vector<64xf32> to vector<64x1xf32>
    %cst_200 = arith.constant 3.200000e+01 : f32
    %622 = vector.broadcast %cst_200 : f32 to vector<64x1xf32>
    %623 = arith.divf %621, %622 : vector<64x1xf32>
    %624 = vector.broadcast %623 : vector<64x1xf32> to vector<64x32xf32>
    %625 = arith.subf %617, %624 : vector<64x32xf32>
    %626 = arith.mulf %625, %625 : vector<64x32xf32>
    %cst_201 = arith.constant dense<0.000000e+00> : vector<64xf32>
    %627 = vector.multi_reduction <add>, %626, %cst_201 [1] : vector<64x32xf32> to vector<64xf32>
    %628 = vector.shape_cast %627 : vector<64xf32> to vector<64x1xf32>
    %cst_202 = arith.constant 3.200000e+01 : f32
    %629 = vector.broadcast %cst_202 : f32 to vector<64x1xf32>
    %630 = arith.divf %628, %629 : vector<64x1xf32>
    %631 = vector.broadcast %623 : vector<64x1xf32> to vector<64x32xf32>
    %632 = arith.subf %617, %631 : vector<64x32xf32>
    %cst_203 = arith.constant 9.99999974E-6 : f32
    %633 = vector.broadcast %cst_203 : f32 to vector<64x1xf32>
    %634 = arith.addf %630, %633 : vector<64x1xf32>
    %635 = math.rsqrt %634 : vector<64x1xf32>
    %636 = vector.broadcast %635 : vector<64x1xf32> to vector<64x32xf32>
    %637 = arith.mulf %632, %636 : vector<64x32xf32>
    %638 = vector.broadcast %618 : vector<1x32xf32> to vector<64x32xf32>
    %639 = arith.mulf %637, %638 : vector<64x32xf32>
    %640 = vector.broadcast %619 : vector<1x32xf32> to vector<64x32xf32>
    %641 = arith.addf %639, %640 : vector<64x32xf32>
    %642 = arith.truncf %641 : vector<64x32xf32> to vector<64x32xbf16>
    %c3_204 = arith.constant 3 : index
    %c0_205 = arith.constant 0 : index
    %c0_206 = arith.constant 0 : index
    %643 = vector.load %arg5[%c3_204, %c0_205, %c0_206] : memref<4x32x64xbf16, #tpu.memory_space<vmem>>, vector<1x32x64xbf16>
    %644 = vector.shape_cast %643 : vector<1x32x64xbf16> to vector<32x64xbf16>
    %cst_207 = arith.constant dense<0.000000e+00> : vector<64x64xf32>
    %645 = tpu.matmul %642, %644, %cst_207 {dimension_numbers = #tpu.dot_dimension_numbers<[1], [0], [0], [1], [0, 0, 1, 1], [], []>} : vector<64x32xbf16>, vector<32x64xbf16>, vector<64x64xf32> -> vector<64x64xf32>
    %646 = vector.extract_strided_slice %524 {offsets = [4, 0], sizes = [1, 64], strides = [1, 1]} : vector<8x96xf32> to vector<1x64xf32>
    %647 = vector.broadcast %646 : vector<1x64xf32> to vector<64x64xf32>
    %648 = arith.addf %645, %647 : vector<64x64xf32>
    %cst_208 = arith.constant 5.000000e-01 : f32
    %649 = vector.broadcast %cst_208 : f32 to vector<64x64xf32>
    %650 = arith.mulf %649, %648 : vector<64x64xf32>
    %cst_209 = arith.constant 4.471500e-02 : f32
    %651 = vector.broadcast %cst_209 : f32 to vector<64x64xf32>
    %652 = arith.mulf %651, %648 : vector<64x64xf32>
    %653 = arith.mulf %652, %648 : vector<64x64xf32>
    %654 = arith.mulf %653, %648 : vector<64x64xf32>
    %655 = arith.addf %648, %654 : vector<64x64xf32>
    %cst_210 = arith.constant 0.797884583 : f32
    %656 = vector.broadcast %cst_210 : f32 to vector<64x64xf32>
    %657 = arith.mulf %656, %655 : vector<64x64xf32>
    %658 = math.tanh %657 : vector<64x64xf32>
    %cst_211 = arith.constant 1.000000e+00 : f32
    %659 = vector.broadcast %cst_211 : f32 to vector<64x64xf32>
    %660 = arith.addf %659, %658 : vector<64x64xf32>
    %661 = arith.mulf %650, %660 : vector<64x64xf32>
    %662 = arith.truncf %661 : vector<64x64xf32> to vector<64x64xbf16>
    %c3_212 = arith.constant 3 : index
    %c0_213 = arith.constant 0 : index
    %c0_214 = arith.constant 0 : index
    %663 = vector.load %arg6[%c3_212, %c0_213, %c0_214] : memref<4x64x32xbf16, #tpu.memory_space<vmem>>, vector<1x64x32xbf16>
    %664 = vector.shape_cast %663 : vector<1x64x32xbf16> to vector<64x32xbf16>
    %cst_215 = arith.constant dense<0.000000e+00> : vector<64x32xf32>
    %665 = tpu.matmul %662, %664, %cst_215 {dimension_numbers = #tpu.dot_dimension_numbers<[1], [0], [0], [1], [0, 0, 1, 1], [], []>} : vector<64x64xbf16>, vector<64x32xbf16>, vector<64x32xf32> -> vector<64x32xf32>
    %666 = vector.extract_strided_slice %524 {offsets = [5, 0], sizes = [1, 32], strides = [1, 1]} : vector<8x96xf32> to vector<1x32xf32>
    %667 = vector.broadcast %666 : vector<1x32xf32> to vector<64x32xf32>
    %668 = arith.addf %665, %667 : vector<64x32xf32>
    %669 = arith.addf %641, %668 : vector<64x32xf32>
    %670 = vector.extract_strided_slice %524 {offsets = [6, 0], sizes = [1, 32], strides = [1, 1]} : vector<8x96xf32> to vector<1x32xf32>
    %671 = vector.extract_strided_slice %524 {offsets = [7, 0], sizes = [1, 32], strides = [1, 1]} : vector<8x96xf32> to vector<1x32xf32>
    %cst_216 = arith.constant dense<0.000000e+00> : vector<64xf32>
    %672 = vector.multi_reduction <add>, %669, %cst_216 [1] : vector<64x32xf32> to vector<64xf32>
    %673 = vector.shape_cast %672 : vector<64xf32> to vector<64x1xf32>
    %cst_217 = arith.constant 3.200000e+01 : f32
    %674 = vector.broadcast %cst_217 : f32 to vector<64x1xf32>
    %675 = arith.divf %673, %674 : vector<64x1xf32>
    %676 = vector.broadcast %675 : vector<64x1xf32> to vector<64x32xf32>
    %677 = arith.subf %669, %676 : vector<64x32xf32>
    %678 = arith.mulf %677, %677 : vector<64x32xf32>
    %cst_218 = arith.constant dense<0.000000e+00> : vector<64xf32>
    %679 = vector.multi_reduction <add>, %678, %cst_218 [1] : vector<64x32xf32> to vector<64xf32>
    %680 = vector.shape_cast %679 : vector<64xf32> to vector<64x1xf32>
    %cst_219 = arith.constant 3.200000e+01 : f32
    %681 = vector.broadcast %cst_219 : f32 to vector<64x1xf32>
    %682 = arith.divf %680, %681 : vector<64x1xf32>
    %683 = vector.broadcast %675 : vector<64x1xf32> to vector<64x32xf32>
    %684 = arith.subf %669, %683 : vector<64x32xf32>
    %cst_220 = arith.constant 9.99999974E-6 : f32
    %685 = vector.broadcast %cst_220 : f32 to vector<64x1xf32>
    %686 = arith.addf %682, %685 : vector<64x1xf32>
    %687 = math.rsqrt %686 : vector<64x1xf32>
    %688 = vector.broadcast %687 : vector<64x1xf32> to vector<64x32xf32>
    %689 = arith.mulf %684, %688 : vector<64x32xf32>
    %690 = vector.broadcast %670 : vector<1x32xf32> to vector<64x32xf32>
    %691 = arith.mulf %689, %690 : vector<64x32xf32>
    %692 = vector.broadcast %671 : vector<1x32xf32> to vector<64x32xf32>
    %693 = arith.addf %691, %692 : vector<64x32xf32>
    %694 = arith.truncf %693 : vector<64x32xf32> to vector<64x32xbf16>
    %c0_221 = arith.constant 0 : index
    %c0_222 = arith.constant 0 : index
    %695 = vector.load %arg8[%c0_221, %c0_222] : memref<32x1024xbf16, #tpu.memory_space<vmem>>, vector<32x1024xbf16>
    %cst_223 = arith.constant dense<0.000000e+00> : vector<64x1024xf32>
    %696 = tpu.matmul %694, %695, %cst_223 {dimension_numbers = #tpu.dot_dimension_numbers<[1], [0], [0], [1], [0, 0, 1, 1], [], []>} : vector<64x32xbf16>, vector<32x1024xbf16>, vector<64x1024xf32> -> vector<64x1024xf32>
    %c0_224 = arith.constant 0 : index
    %c0_225 = arith.constant 0 : index
    %697 = vector.load %arg9[%c0_224, %c0_225] : memref<64x1024xbf16, #tpu.memory_space<vmem>>, vector<64x1024xbf16>
    %698 = arith.extf %697 : vector<64x1024xbf16> to vector<64x1024xf32>
    %699 = arith.mulf %696, %698 : vector<64x1024xf32>
    %700 = arith.truncf %699 : vector<64x1024xf32> to vector<64x1024xbf16>
    %c0_226 = arith.constant 0 : index
    %c0_227 = arith.constant 0 : index
    %701 = vector.load %arg10[%c0_226, %c0_227] : memref<1024x32xbf16, #tpu.memory_space<vmem>>, vector<1024x32xbf16>
    %cst_228 = arith.constant dense<0.000000e+00> : vector<64x32xf32>
    %702 = tpu.matmul %700, %701, %cst_228 {dimension_numbers = #tpu.dot_dimension_numbers<[1], [0], [0], [1], [0, 0, 1, 1], [], []>} : vector<64x1024xbf16>, vector<1024x32xbf16>, vector<64x32xf32> -> vector<64x32xf32>
    %703 = vector.extract_strided_slice %702 {offsets = [0, 0], sizes = [32, 32], strides = [1, 1]} : vector<64x32xf32> to vector<32x32xf32>
    %cst_229 = arith.constant dense<0.000000e+00> : vector<32xf32>
    %704 = vector.multi_reduction <add>, %703, %cst_229 [0] : vector<32x32xf32> to vector<32xf32>
    %705 = vector.shape_cast %704 : vector<32xf32> to vector<1x32xf32>
    %706 = vector.extract_strided_slice %702 {offsets = [32, 0], sizes = [32, 32], strides = [1, 1]} : vector<64x32xf32> to vector<32x32xf32>
    %cst_230 = arith.constant dense<0.000000e+00> : vector<32xf32>
    %707 = vector.multi_reduction <add>, %706, %cst_230 [0] : vector<32x32xf32> to vector<32xf32>
    %708 = vector.shape_cast %707 : vector<32xf32> to vector<1x32xf32>
    %709 = tpu.concatenate %705, %708 in 0 : vector<1x32xf32>, vector<1x32xf32> -> vector<2x32xf32>
    %c0_231 = arith.constant 0 : index
    %c0_232 = arith.constant 0 : index
    %710 = vector.load %arg11[%c0_231, %c0_232] : memref<40x32xf32, #tpu.memory_space<vmem>>, vector<1x32xf32>
    %711 = vector.broadcast %710 : vector<1x32xf32> to vector<2x32xf32>
    %712 = arith.addf %709, %711 : vector<2x32xf32>
    %cst_233 = arith.constant 5.000000e-01 : f32
    %713 = vector.broadcast %cst_233 : f32 to vector<2x32xf32>
    %714 = arith.mulf %713, %712 : vector<2x32xf32>
    %cst_234 = arith.constant 4.471500e-02 : f32
    %715 = vector.broadcast %cst_234 : f32 to vector<2x32xf32>
    %716 = arith.mulf %715, %712 : vector<2x32xf32>
    %717 = arith.mulf %716, %712 : vector<2x32xf32>
    %718 = arith.mulf %717, %712 : vector<2x32xf32>
    %719 = arith.addf %712, %718 : vector<2x32xf32>
    %cst_235 = arith.constant 0.797884583 : f32
    %720 = vector.broadcast %cst_235 : f32 to vector<2x32xf32>
    %721 = arith.mulf %720, %719 : vector<2x32xf32>
    %722 = math.tanh %721 : vector<2x32xf32>
    %cst_236 = arith.constant 1.000000e+00 : f32
    %723 = vector.broadcast %cst_236 : f32 to vector<2x32xf32>
    %724 = arith.addf %723, %722 : vector<2x32xf32>
    %725 = arith.mulf %714, %724 : vector<2x32xf32>
    %c8 = arith.constant 8 : index
    %c0_237 = arith.constant 0 : index
    %726 = vector.load %arg11[%c8, %c0_237] : memref<40x32xf32, #tpu.memory_space<vmem>>, vector<32x32xf32>
    %cst_238 = arith.constant dense<0.000000e+00> : vector<2x32xf32>
    %727 = tpu.matmul %725, %726, %cst_238 {dimension_numbers = #tpu.dot_dimension_numbers<[1], [0], [0], [1], [0, 0, 1, 1], [], []>} : vector<2x32xf32>, vector<32x32xf32>, vector<2x32xf32> -> vector<2x32xf32>
    %c1_239 = arith.constant 1 : index
    %c0_240 = arith.constant 0 : index
    %728 = vector.load %arg11[%c1_239, %c0_240] : memref<40x32xf32, #tpu.memory_space<vmem>>, vector<1x32xf32>
    %729 = vector.broadcast %728 : vector<1x32xf32> to vector<2x32xf32>
    %730 = arith.addf %727, %729 : vector<2x32xf32>
    %731 = vector.extract_strided_slice %730 {offsets = [0, 0], sizes = [2, 4], strides = [1, 1]} : vector<2x32xf32> to vector<2x4xf32>
    %c0_241 = arith.constant 0 : index
    %c0_242 = arith.constant 0 : index
    %732 = vector.load %arg12[%c0_241, %c0_242] : memref<2x4xf32, #tpu.memory_space<vmem>>, vector<2x4xf32>
    tpu.vector_store %arg12[%c0_241, %c0_242], %731 {strides = array<i32>} : memref<2x4xf32, #tpu.memory_space<vmem>>, vector<2x4xf32>,
    return
  }
}

</mosaic_0001>

<llo_original>
// kernel: brant_cls_forward.1
$region0: #{brant_cls_forward.1}
  #allocation0 [shape = 'u32[]', space=smem, size = 0x4, offset = 0x4, fixed_abs, tag = 'smem constant byte address 0x4 - core index']
  #allocation1 [shape = 'u32[144,128]{1,0:T(1,128)}', space=vmem, size = 0x12000, scoped, tag = 'internal scratch']
  %s0 = inlined_call_operand.vmem [shape: bf16[64,32], index: 0, kind: input, shape index: {}]
  %s1 = inlined_call_operand.vmem [shape: bf16[32,32], index: 1, kind: input, shape index: {}]
  %s2 = inlined_call_operand.vmem [shape: f32[3,64,64], index: 2, kind: input, shape index: {}]
  %s3 = inlined_call_operand.vmem [shape: bf16[4,32,96], index: 3, kind: input, shape index: {}]
  %s4 = inlined_call_operand.vmem [shape: bf16[4,32,32], index: 4, kind: input, shape index: {}]
  %s5 = inlined_call_operand.vmem [shape: bf16[4,32,64], index: 5, kind: input, shape index: {}]
  %s6 = inlined_call_operand.vmem [shape: bf16[4,64,32], index: 6, kind: input, shape index: {}]
  %s7 = inlined_call_operand.vmem [shape: f32[4,8,96], index: 7, kind: input, shape index: {}]
  %s8 = inlined_call_operand.vmem [shape: bf16[32,1024], index: 8, kind: input, shape index: {}]
  %s9 = inlined_call_operand.vmem [shape: bf16[64,1024], index: 9, kind: input, shape index: {}]
  %s10 = inlined_call_operand.vmem [shape: bf16[1024,32], index: 10, kind: input, shape index: {}]
  %s11 = inlined_call_operand.vmem [shape: f32[40,32], index: 11, kind: input, shape index: {}]
  %s12 = inlined_call_operand.vmem [shape: f32[2,4], index: 12, kind: output, shape index: {}]
  %s13 = sld [smem:[#allocation0]]
  $region58: #{brant_cls_forward.1} parent=0
    _
  %s15 = ssub.s32 1, %s13
  %s16 = scalar_select 0, %s15, %s13
  // Predicated region
  $region2: #{brant_cls_forward.1} parent=0 // pred_check
    _
  $region3: #{brant_cls_forward.1} parent=0 // pred_check_branch
    %18 = sbr.rel (0) target = $region5
  $region4: #{brant_cls_forward.1} parent=0 // pred_region
    _
  $region5: #{brant_cls_forward.1} parent=0 // pred_fallthru
    _
  // Predicated region
  $region6: #{brant_cls_forward.1} parent=0 // pred_check
    _
  $region7: #{brant_cls_forward.1} parent=0 // pred_check_branch
    %20 = sbr.rel (0) target = $region9
  $region8: #{brant_cls_forward.1} parent=0 // pred_region
    _
  $region9: #{brant_cls_forward.1} parent=0 // pred_fallthru
    _
  // Predicated region
  $region10: #{brant_cls_forward.1} parent=0 // pred_check
    _
  $region11: #{brant_cls_forward.1} parent=0 // pred_check_branch
    %22 = sbr.rel (0) target = $region13
  $region12: #{brant_cls_forward.1} parent=0 // pred_region
    _
  $region13: #{brant_cls_forward.1} parent=0 // pred_fallthru
    _
  // Predicated region
  $region14: #{brant_cls_forward.1} parent=0 // pred_check
    _
  $region15: #{brant_cls_forward.1} parent=0 // pred_check_branch
    %24 = sbr.rel (0) target = $region17
  $region16: #{brant_cls_forward.1} parent=0 // pred_region
    _
  $region17: #{brant_cls_forward.1} parent=0 // pred_fallthru
    _
  // Predicated region
  $region18: #{brant_cls_forward.1} parent=0 // pred_check
    _
  $region19: #{brant_cls_forward.1} parent=0 // pred_check_branch
    %26 = sbr.rel (0) target = $region21
  $region20: #{brant_cls_forward.1} parent=0 // pred_region
    _
  $region21: #{brant_cls_forward.1} parent=0 // pred_fallthru
    _
  // Predicated region
  $region22: #{brant_cls_forward.1} parent=0 // pred_check
    _
  $region23: #{brant_cls_forward.1} parent=0 // pred_check_branch
    %28 = sbr.rel (0) target = $region25
  $region24: #{brant_cls_forward.1} parent=0 // pred_region
    _
  $region25: #{brant_cls_forward.1} parent=0 // pred_fallthru
    _
  // Predicated region
  $region26: #{brant_cls_forward.1} parent=0 // pred_check
    _
  $region27: #{brant_cls_forward.1} parent=0 // pred_check_branch
    %30 = sbr.rel (0) target = $region29
  $region28: #{brant_cls_forward.1} parent=0 // pred_region
    _
  $region29: #{brant_cls_forward.1} parent=0 // pred_fallthru
    _
  // Predicated region
  $region30: #{brant_cls_forward.1} parent=0 // pred_check
    _
  $region31: #{brant_cls_forward.1} parent=0 // pred_check_branch
    %32 = sbr.rel (0) target = $region33
  $region32: #{brant_cls_forward.1} parent=0 // pred_region
    _
  $region33: #{brant_cls_forward.1} parent=0 // pred_fallthru
    _
  // Predicated region
  $region34: #{brant_cls_forward.1} parent=0 // pred_check
    _
  $region35: #{brant_cls_forward.1} parent=0 // pred_check_branch
    %34 = sbr.rel (0) target = $region37
  $region36: #{brant_cls_forward.1} parent=0 // pred_region
    _
  $region37: #{brant_cls_forward.1} parent=0 // pred_fallthru
    _
  // Predicated region
  $region38: #{brant_cls_forward.1} parent=0 // pred_check
    _
  $region39: #{brant_cls_forward.1} parent=0 // pred_check_branch
    %36 = sbr.rel (0) target = $region41
  $region40: #{brant_cls_forward.1} parent=0 // pred_region
    _
  $region41: #{brant_cls_forward.1} parent=0 // pred_fallthru
    _
  // Predicated region
  $region42: #{brant_cls_forward.1} parent=0 // pred_check
    _
  $region43: #{brant_cls_forward.1} parent=0 // pred_check_branch
    %38 = sbr.rel (0) target = $region45
  $region44: #{brant_cls_forward.1} parent=0 // pred_region
    _
  $region45: #{brant_cls_forward.1} parent=0 // pred_fallthru
    _
  // Predicated region
  $region46: #{brant_cls_forward.1} parent=0 // pred_check
    _
  $region47: #{brant_cls_forward.1} parent=0 // pred_check_branch
    %40 = sbr.rel (0) target = $region49
  $region48: #{brant_cls_forward.1} parent=0 // pred_region
    _
  $region49: #{brant_cls_forward.1} parent=0 // pred_fallthru
    _
  %v42 = vld [vmem:[%s2] sm:$0xff]
  %v43 = vld [vmem:[%s2 + $0x8] sm:$0xff]
  %v44 = vld [vmem:[%s2 + $0x10] sm:$0xff]
  %v45 = vld [vmem:[%s2 + $0x18] sm:$0xff]
  %v46 = vld [vmem:[%s2 + $0x20] sm:$0xff]
  %v47 = vld [vmem:[%s2 + $0x28] sm:$0xff]
  %v48 = vld [vmem:[%s2 + $0x30] sm:$0xff]
  %v49 = vld [vmem:[%s2 + $0x38] sm:$0xff]
  %s50 = scalar_lea.vmem %s2, 64
  %v51 = vld [vmem:[%s50] sm:$0xff]
  %v52 = vld [vmem:[%s50 + $0x8] sm:$0xff]
  %v53 = vld [vmem:[%s50 + $0x10] sm:$0xff]
  %v54 = vld [vmem:[%s50 + $0x18] sm:$0xff]
  %v55 = vld [vmem:[%s50 + $0x20] sm:$0xff]
  %v56 = vld [vmem:[%s50 + $0x28] sm:$0xff]
  %v57 = vld [vmem:[%s50 + $0x30] sm:$0xff]
  %v58 = vld [vmem:[%s50 + $0x38] sm:$0xff]
  %s59 = scalar_lea.vmem %s2, 128
  %v60 = vld [vmem:[%s59] sm:$0xff]
  %v61 = vld [vmem:[%s59 + $0x8] sm:$0xff]
  %v62 = vld [vmem:[%s59 + $0x10] sm:$0xff]
  %v63 = vld [vmem:[%s59 + $0x18] sm:$0xff]
  %v64 = vld [vmem:[%s59 + $0x20] sm:$0xff]
  %v65 = vld [vmem:[%s59 + $0x28] sm:$0xff]
  %v66 = vld [vmem:[%s59 + $0x30] sm:$0xff]
  %v67 = vld [vmem:[%s59 + $0x38] sm:$0xff]
  %v68 = vld [vmem:[%s0] sm:$0xf]
  %v69 = vld [vmem:[%s0 + $0x4] sm:$0xf]
  %v70 = vld [vmem:[%s0 + $0x8] sm:$0xf]
  %v71 = vld [vmem:[%s0 + $0xc] sm:$0xf]
  %v72 = vld [vmem:[%s0 + $0x10] sm:$0xf]
  %v73 = vld [vmem:[%s0 + $0x14] sm:$0xf]
  %v74 = vld [vmem:[%s0 + $0x18] sm:$0xf]
  %v75 = vld [vmem:[%s0 + $0x1c] sm:$0xf]
  %v76 = vld [vmem:[%s1] sm:$0xf]
  %v77 = vld [vmem:[%s1 + $0x4] sm:$0xf]
  %v78 = vld [vmem:[%s1 + $0x8] sm:$0xf]
  %v79 = vld [vmem:[%s1 + $0xc] sm:$0xf]
  %v88 = vunpack.c.l.b16 %v68
  %v89 = vunpack.c.l.b16 %v69
  %v90 = vunpack.c.l.b16 %v70
  %v91 = vunpack.c.l.b16 %v71
  %v92 = vunpack.c.l.b16 %v72
  %v93 = vunpack.c.l.b16 %v73
  %v94 = vunpack.c.l.b16 %v74
  %v95 = vunpack.c.l.b16 %v75
  %v96 = vpack.c.b16 %v89, %v88
  %v97 = vpack.c.b16 %v91, %v90
  %v98 = vpack.c.b16 %v93, %v92
  %v99 = vpack.c.b16 %v95, %v94
  %v104 = vunpack.c.l.b16 %v76
  %v105 = vunpack.c.l.b16 %v77
  %v106 = vunpack.c.l.b16 %v78
  %v107 = vunpack.c.l.b16 %v79
  %v108 = vpack.c.b16 %v105, %v104
  %v109 = vpack.c.b16 %v107, %v106
  %vm112 = vcmask 261120
  %v114 = vsel %vm112, %v96, 0
  %v117 = vsel %vm112, %v97, 0
  %v120 = vsel %vm112, %v98, 0
  %v123 = vsel %vm112, %v99, 0
  %125 = vmatprep.subr.bf16.mxu0 0
  %126 = vmatpush1.bf16.msra.mxu0 0
  %127 = vmatprep.subr.bf16.mxu0 0
  %128 = vmatpush1.bf16.msra.mxu0 0
  %129 = vmatprep.subr.bf16.mxu0 0
  %130 = vmatpush1.bf16.msra.mxu0 0
  %131 = vmatprep.subr.bf16.mxu0 0
  %132 = vmatpush1.bf16.msra.mxu0 0
  %133 = vmatprep.subr.bf16.mxu0 0
  %134 = vmatpush1.bf16.msra.mxu0 0
  %135 = vmatprep.subr.bf16.mxu0 0
  %136 = vmatpush1.bf16.msra.mxu0 0
  %137 = vmatprep.subr.bf16.mxu0 0
  %138 = vmatpush1.bf16.msra.mxu0 %v109
  %139 = vmatprep.subr.bf16.mxu0 0
  %140 = vmatpush1.bf16.msra.mxu0 %v108
  %141 = vmatprep.subr.bf16.mxu0 0
  %142 = vmatpush2.bf16.msra.mxu0 0
  %143 = vmatprep.subr.bf16.mxu0 0
  %144 = vmatpush2.bf16.msra.mxu0 0
  %145 = vmatprep.subr.bf16.mxu0 0
  %146 = vmatpush2.bf16.msra.mxu0 0
  %147 = vmatprep.subr.bf16.mxu0 0
  %148 = vmatpush2.bf16.msra.mxu0 0
  %149 = vmatprep.subr.bf16.mxu0 0
  %150 = vmatpush2.bf16.msra.mxu0 0
  %151 = vmatprep.subr.bf16.mxu0 0
  %152 = vmatpush2.bf16.msra.mxu0 0
  %153 = vmatprep.subr.bf16.mxu0 0
  %154 = vmatpush2.bf16.msra.mxu0 0
  %155 = vmatprep.subr.bf16.mxu0 0
  %156 = vmatpush2.bf16.msra.mxu0 0
  %157 = vmatprep.mubr.bf16.mxu0 0
  %158 = vmatmul.mubr.bf16.gmra.mxu0 %v114
  %v159 = vpop.f32.mrf.mxu0
  %v160 = vadd.f32 %v42, %v159
  %v161 = vpop.f32.mrf.mxu0
  %v162 = vpop.f32.mrf.mxu0
  %v163 = vadd.f32 %v43, %v162
  %v164 = vpop.f32.mrf.mxu0
  %165 = vmatprep.mubr.bf16.mxu0 0
  %166 = vmatmul.mubr.bf16.gmra.mxu0 %v117
  %v167 = vpop.f32.mrf.mxu0
  %v168 = vadd.f32 %v44, %v167
  %v169 = vpop.f32.mrf.mxu0
  %v170 = vpop.f32.mrf.mxu0
  %v171 = vadd.f32 %v45, %v170
  %v172 = vpop.f32.mrf.mxu0
  %173 = vmatprep.mubr.bf16.mxu0 0
  %174 = vmatmul.mubr.bf16.gmra.mxu0 %v120
  %v175 = vpop.f32.mrf.mxu0
  %v176 = vadd.f32 %v46, %v175
  %v177 = vpop.f32.mrf.mxu0
  %v178 = vpop.f32.mrf.mxu0
  %v179 = vadd.f32 %v47, %v178
  %v180 = vpop.f32.mrf.mxu0
  %181 = vmatprep.mubr.bf16.mxu0 0
  %182 = vmatmul.mubr.bf16.gmra.mxu0 %v123
  %v183 = vpop.f32.mrf.mxu0
  %v184 = vadd.f32 %v48, %v183
  %v185 = vpop.f32.mrf.mxu0
  %v186 = vpop.f32.mrf.mxu0
  %v187 = vadd.f32 %v49, %v186
  %v188 = vpop.f32.mrf.mxu0
  %189 = vdwg.mxu0
  %v190 = vld [vmem:[%s7] sm:$0xff]
  %v191 = vpack.c.bf16 %v163, %v160
  %v192 = vpack.c.bf16 %v171, %v168
  %v193 = vpack.c.bf16 %v179, %v176
  %v194 = vpack.c.bf16 %v187, %v184
  %v195 = vld [vmem:[%s3] sm:$0xf]
  %v196 = vld [vmem:[%s3 + $0x4] sm:$0xf]
  %v197 = vld [vmem:[%s3 + $0x8] sm:$0xf]
  %v198 = vld [vmem:[%s3 + $0xc] sm:$0xf]
  %v199 = vlaneseq
  %v200 = vshrl.u32 %v199, 7
  %v201 = vsub.s32 0, %v200
  %v202 = vrot.slane %v190, %v201
  %v207 = vunpack.c.l.b16 %v195
  %v208 = vunpack.c.l.b16 %v196
  %v209 = vunpack.c.l.b16 %v197
  %v210 = vunpack.c.l.b16 %v198
  %v211 = vpack.c.b16 %v208, %v207
  %v212 = vpack.c.b16 %v210, %v209
  %v216 = vsel %vm112, %v191, 0
  %v219 = vsel %vm112, %v192, 0
  %v222 = vsel %vm112, %v193, 0
  %v225 = vsel %vm112, %v194, 0
  %227 = vmatprep.subr.bf16.mxu0 0
  %228 = vmatpush1.bf16.msra.mxu0 0
  %229 = vmatprep.subr.bf16.mxu0 0
  %230 = vmatpush1.bf16.msra.mxu0 0
  %231 = vmatprep.subr.bf16.mxu0 0
  %232 = vmatpush1.bf16.msra.mxu0 0
  %233 = vmatprep.subr.bf16.mxu0 0
  %234 = vmatpush1.bf16.msra.mxu0 0
  %235 = vmatprep.subr.bf16.mxu0 0
  %236 = vmatpush1.bf16.msra.mxu0 0
  %237 = vmatprep.subr.bf16.mxu0 0
  %238 = vmatpush1.bf16.msra.mxu0 0
  %239 = vmatprep.subr.bf16.mxu0 0
  %240 = vmatpush1.bf16.msra.mxu0 %v212
  %241 = vmatprep.subr.bf16.mxu0 0
  %242 = vmatpush1.bf16.msra.mxu0 %v211
  %243 = vmatprep.subr.bf16.mxu0 0
  %244 = vmatpush2.bf16.msra.mxu0 0
  %245 = vmatprep.subr.bf16.mxu0 0
  %246 = vmatpush2.bf16.msra.mxu0 0
  %247 = vmatprep.subr.bf16.mxu0 0
  %248 = vmatpush2.bf16.msra.mxu0 0
  %249 = vmatprep.subr.bf16.mxu0 0
  %250 = vmatpush2.bf16.msra.mxu0 0
  %251 = vmatprep.subr.bf16.mxu0 0
  %252 = vmatpush2.bf16.msra.mxu0 0
  %253 = vmatprep.subr.bf16.mxu0 0
  %254 = vmatpush2.bf16.msra.mxu0 0
  %255 = vmatprep.subr.bf16.mxu0 0
  %256 = vmatpush2.bf16.msra.mxu0 0
  %257 = vmatprep.subr.bf16.mxu0 0
  %258 = vmatpush2.bf16.msra.mxu0 0
  %259 = vmatprep.mubr.bf16.mxu0 0
  %260 = vmatmul.mubr.bf16.gmra.mxu0 %v216
  %v261 = vpop.f32.mrf.mxu0
  %v262 = vadd.f32 %v202, %v261
  %v263 = vpop.f32.mrf.mxu0
  %v264 = vpop.f32.mrf.mxu0
  %v265 = vadd.f32 %v202, %v264
  %v266 = vpop.f32.mrf.mxu0
  %267 = vmatprep.mubr.bf16.mxu0 0
  %268 = vmatmul.mubr.bf16.gmra.mxu0 %v219
  %v269 = vpop.f32.mrf.mxu0
  %v270 = vadd.f32 %v202, %v269
  %v271 = vpop.f32.mrf.mxu0
  %v272 = vpop.f32.mrf.mxu0
  %v273 = vadd.f32 %v202, %v272
  %v274 = vpop.f32.mrf.mxu0
  %275 = vmatprep.mubr.bf16.mxu0 0
  %276 = vmatmul.mubr.bf16.gmra.mxu0 %v222
  %v277 = vpop.f32.mrf.mxu0
  %v278 = vadd.f32 %v202, %v277
  %v279 = vpop.f32.mrf.mxu0
  %v280 = vpop.f32.mrf.mxu0
  %v281 = vadd.f32 %v202, %v280
  %v282 = vpop.f32.mrf.mxu0
  %283 = vmatprep.mubr.bf16.mxu0 0
  %284 = vmatmul.mubr.bf16.gmra.mxu0 %v225
  %v285 = vpop.f32.mrf.mxu0
  %v286 = vadd.f32 %v202, %v285
  %v287 = vpop.f32.mrf.mxu0
  %v288 = vpop.f32.mrf.mxu0
  %v289 = vadd.f32 %v202, %v288
  %v290 = vpop.f32.mrf.mxu0
  %291 = vdwg.mxu0
  %v292 = vpack.c.bf16 %v265, %v262
  %v293 = vpack.c.bf16 %v273, %v270
  %v294 = vpack.c.bf16 %v281, %v278
  %v295 = vpack.c.bf16 %v289, %v286
  %300 = vrot.lane.b32.xlu0 %v292, 96
  %v301 = vpop.permute.xlu0 %300
  %302 = vrot.lane.b32.xlu0 %v293, 96
  %v303 = vpop.permute.xlu0 %302
  %304 = vrot.lane.b32.xlu0 %v294, 96
  %v305 = vpop.permute.xlu0 %304
  %306 = vrot.lane.b32.xlu0 %v295, 96
  %v307 = vpop.permute.xlu0 %306
  %vm308 = vcmask 64512
  %v310 = vsel %vm308, %v292, 0
  %v313 = vsel %vm308, %v293, 0
  %v316 = vsel %vm308, %v294, 0
  %v319 = vsel %vm308, %v295, 0
  %v322 = vsel %vm308, %v301, 0
  %v325 = vsel %vm308, %v303, 0
  %v328 = vsel %vm308, %v305, 0
  %v331 = vsel %vm308, %v307, 0
  %333 = vmatprep.subr.bf16.mxu0 0
  %334 = vmatpush1.bf16.xpose.msra.mxu0 0
  %335 = vmatprep.subr.bf16.mxu0 0
  %336 = vmatpush1.bf16.xpose.msra.mxu0 0
  %337 = vmatprep.subr.bf16.mxu0 0
  %338 = vmatpush1.bf16.xpose.msra.mxu0 0
  %339 = vmatprep.subr.bf16.mxu0 0
  %340 = vmatpush1.bf16.xpose.msra.mxu0 0
  %341 = vmatprep.subr.bf16.mxu0 0
  %342 = vmatpush1.bf16.xpose.msra.mxu0 %v331
  %343 = vmatprep.subr.bf16.mxu0 0
  %344 = vmatpush1.bf16.xpose.msra.mxu0 %v328
  %345 = vmatprep.subr.bf16.mxu0 0
  %346 = vmatpush1.bf16.xpose.msra.mxu0 %v325
  %347 = vmatprep.subr.bf16.mxu0 0
  %348 = vmatpush1.bf16.xpose.msra.mxu0 %v322
  %349 = vmatprep.subr.bf16.mxu0 0
  %350 = vmatpush2.bf16.xpose.msra.mxu0 0
  %351 = vmatprep.subr.bf16.mxu0 0
  %352 = vmatpush2.bf16.xpose.msra.mxu0 0
  %353 = vmatprep.subr.bf16.mxu0 0
  %354 = vmatpush2.bf16.xpose.msra.mxu0 0
  %355 = vmatprep.subr.bf16.mxu0 0
  %356 = vmatpush2.bf16.xpose.msra.mxu0 0
  %357 = vmatprep.subr.bf16.mxu0 0
  %358 = vmatpush2.bf16.xpose.msra.mxu0 0
  %359 = vmatprep.subr.bf16.mxu0 0
  %360 = vmatpush2.bf16.xpose.msra.mxu0 0
  %361 = vmatprep.subr.bf16.mxu0 0
  %362 = vmatpush2.bf16.xpose.msra.mxu0 0
  %363 = vmatprep.subr.bf16.mxu0 0
  %364 = vmatpush2.bf16.xpose.msra.mxu0 0
  %365 = vmatprep.mubr.bf16.mxu0 0
  %366 = vmatmul.mubr.bf16.gmra.mxu0 %v310
  %v367 = vpop.f32.mrf.mxu0
  %v368 = vadd.f32 0.0, %v367
  %v369 = vpop.f32.mrf.mxu0
  %v370 = vpop.f32.mrf.mxu0
  %v371 = vadd.f32 0.0, %v370
  %v372 = vpop.f32.mrf.mxu0
  %373 = vmatprep.mubr.bf16.mxu0 0
  %374 = vmatmul.mubr.bf16.gmra.mxu0 %v313
  %v375 = vpop.f32.mrf.mxu0
  %v376 = vadd.f32 0.0, %v375
  %v377 = vpop.f32.mrf.mxu0
  %v378 = vpop.f32.mrf.mxu0
  %v379 = vadd.f32 0.0, %v378
  %v380 = vpop.f32.mrf.mxu0
  %381 = vmatprep.mubr.bf16.mxu0 0
  %382 = vmatmul.mubr.bf16.gmra.mxu0 %v316
  %v383 = vpop.f32.mrf.mxu0
  %v384 = vadd.f32 0.0, %v383
  %v385 = vpop.f32.mrf.mxu0
  %v386 = vpop.f32.mrf.mxu0
  %v387 = vadd.f32 0.0, %v386
  %v388 = vpop.f32.mrf.mxu0
  %389 = vmatprep.mubr.bf16.mxu0 0
  %390 = vmatmul.mubr.bf16.gmra.mxu0 %v319
  %v391 = vpop.f32.mrf.mxu0
  %v392 = vadd.f32 0.0, %v391
  %v393 = vpop.f32.mrf.mxu0
  %v394 = vpop.f32.mrf.mxu0
  %v395 = vadd.f32 0.0, %v394
  %v396 = vpop.f32.mrf.mxu0
  %397 = vdwg.mxu0
  %v398 = vmul.f32 %v368, 0.35355338
  %v399 = vmul.f32 %v371, 0.35355338
  %v400 = vmul.f32 %v376, 0.35355338
  %v401 = vmul.f32 %v379, 0.35355338
  %v402 = vmul.f32 %v384, 0.35355338
  %v403 = vmul.f32 %v387, 0.35355338
  %v404 = vmul.f32 %v392, 0.35355338
  %v405 = vmul.f32 %v395, 0.35355338
  %v406 = vadd.f32 %v398, %v51
  %v407 = vadd.f32 %v399, %v52
  %v408 = vadd.f32 %v400, %v53
  %v409 = vadd.f32 %v401, %v54
  %v410 = vadd.f32 %v402, %v55
  %v411 = vadd.f32 %v403, %v56
  %v412 = vadd.f32 %v404, %v57
  %v413 = vadd.f32 %v405, %v58
  %vm414 = vcmask 523264
  %v415 = vsel %vm414, %v406, -inf
  %416 = vmax.xlane.f32.xlu0 %v415
  %v417 = vpop.xlane.xlu0 %416
  %v418 = vsel %vm414, %v407, -inf
  %419 = vmax.xlane.f32.xlu0 %v418
  %v420 = vpop.xlane.xlu0 %419
  %v421 = vsel %vm414, %v408, -inf
  %422 = vmax.xlane.f32.xlu0 %v421
  %v423 = vpop.xlane.xlu0 %422
  %v424 = vsel %vm414, %v409, -inf
  %425 = vmax.xlane.f32.xlu0 %v424
  %v426 = vpop.xlane.xlu0 %425
  %v427 = vsel %vm414, %v410, -inf
  %428 = vmax.xlane.f32.xlu0 %v427
  %v429 = vpop.xlane.xlu0 %428
  %v430 = vsel %vm414, %v411, -inf
  %431 = vmax.xlane.f32.xlu0 %v430
  %v432 = vpop.xlane.xlu0 %431
  %v433 = vsel %vm414, %v412, -inf
  %434 = vmax.xlane.f32.xlu0 %v433
  %v435 = vpop.xlane.xlu0 %434
  %v436 = vsel %vm414, %v413, -inf
  %437 = vmax.xlane.f32.xlu0 %v436
  %v438 = vpop.xlane.xlu0 %437
  %v439 = vsub.f32 %v406, %v417
  %v440 = vsub.f32 %v407, %v420
  %v441 = vsub.f32 %v408, %v423
  %v442 = vsub.f32 %v409, %v426
  %v443 = vsub.f32 %v410, %v429
  %v444 = vsub.f32 %v411, %v432
  %v445 = vsub.f32 %v412, %v435
  %v446 = vsub.f32 %v413, %v438
  %v447 = vmul.f32 %v439, 1.442695
  %v448 = vpow.pop %v447
  %v449 = vmul.f32 %v440, 1.442695
  %v450 = vpow.pop %v449
  %v451 = vmul.f32 %v441, 1.442695
  %v452 = vpow.pop %v451
  %v453 = vmul.f32 %v442, 1.442695
  %v454 = vpow.pop %v453
  %v455 = vmul.f32 %v443, 1.442695
  %v456 = vpow.pop %v455
  %v457 = vmul.f32 %v444, 1.442695
  %v458 = vpow.pop %v457
  %v459 = vmul.f32 %v445, 1.442695
  %v460 = vpow.pop %v459
  %v461 = vmul.f32 %v446, 1.442695
  %v462 = vpow.pop %v461
  %v463 = vsel %vm414, %v448, 0.0
  %464 = vadd.xlane.f32.xlu0 %v463
  %v465 = vpop.xlane.xlu0 %464
  %v466 = vsel %vm414, %v450, 0.0
  %467 = vadd.xlane.f32.xlu0 %v466
  %v468 = vpop.xlane.xlu0 %467
  %v469 = vsel %vm414, %v452, 0.0
  %470 = vadd.xlane.f32.xlu0 %v469
  %v471 = vpop.xlane.xlu0 %470
  %v472 = vsel %vm414, %v454, 0.0
  %473 = vadd.xlane.f32.xlu0 %v472
  %v474 = vpop.xlane.xlu0 %473
  %v475 = vsel %vm414, %v456, 0.0
  %476 = vadd.xlane.f32.xlu0 %v475
  %v477 = vpop.xlane.xlu0 %476
  %v478 = vsel %vm414, %v458, 0.0
  %479 = vadd.xlane.f32.xlu0 %v478
  %v480 = vpop.xlane.xlu0 %479
  %v481 = vsel %vm414, %v460, 0.0
  %482 = vadd.xlane.f32.xlu0 %v481
  %v483 = vpop.xlane.xlu0 %482
  %v484 = vsel %vm414, %v462, 0.0
  %485 = vadd.xlane.f32.xlu0 %v484
  %v486 = vpop.xlane.xlu0 %485
  %v487 = vrcp.pop %v465
  %v488 = vrcp.pop %v468
  %v489 = vrcp.pop %v471
  %v490 = vrcp.pop %v474
  %v491 = vrcp.pop %v477
  %v492 = vrcp.pop %v480
  %v493 = vrcp.pop %v483
  %v494 = vrcp.pop %v486
  %v495 = vmul.f32 %v448, %v487
  %v496 = vmul.f32 %v450, %v488
  %v497 = vmul.f32 %v452, %v489
  %v498 = vmul.f32 %v454, %v490
  %v499 = vmul.f32 %v456, %v491
  %v500 = vmul.f32 %v458, %v492
  %v501 = vmul.f32 %v460, %v493
  %v502 = vmul.f32 %v462, %v494
  %v503 = vpack.c.bf16 %v496, %v495
  %v504 = vpack.c.bf16 %v498, %v497
  %v505 = vpack.c.bf16 %v500, %v499
  %v506 = vpack.c.bf16 %v502, %v501
  %507 = vrot.lane.b32.xlu0 %v292, 64
  %v508 = vpop.permute.xlu0 %507
  %509 = vrot.lane.b32.xlu0 %v293, 64
  %v510 = vpop.permute.xlu0 %509
  %511 = vrot.lane.b32.xlu0 %v294, 64
  %v512 = vpop.permute.xlu0 %511
  %513 = vrot.lane.b32.xlu0 %v295, 64
  %v514 = vpop.permute.xlu0 %513
  %v520 = vsel %vm414, %v503, 0
  %v523 = vsel %vm414, %v504, 0
  %v526 = vsel %vm414, %v505, 0
  %v529 = vsel %vm414, %v506, 0
  %531 = vmatprep.subr.bf16.mxu0 0
  %532 = vmatpush1.bf16.msra.mxu0 0
  %533 = vmatprep.subr.bf16.mxu0 0
  %534 = vmatpush1.bf16.msra.mxu0 0
  %535 = vmatprep.subr.bf16.mxu0 0
  %536 = vmatpush1.bf16.msra.mxu0 0
  %537 = vmatprep.subr.bf16.mxu0 0
  %538 = vmatpush1.bf16.msra.mxu0 0
  %539 = vmatprep.subr.bf16.mxu0 0
  %540 = vmatpush1.bf16.msra.mxu0 %v514
  %541 = vmatprep.subr.bf16.mxu0 0
  %542 = vmatpush1.bf16.msra.mxu0 %v512
  %543 = vmatprep.subr.bf16.mxu0 0
  %544 = vmatpush1.bf16.msra.mxu0 %v510
  %545 = vmatprep.subr.bf16.mxu0 0
  %546 = vmatpush1.bf16.msra.mxu0 %v508
  %547 = vmatprep.subr.bf16.mxu0 0
  %548 = vmatpush2.bf16.msra.mxu0 0
  %549 = vmatprep.subr.bf16.mxu0 0
  %550 = vmatpush2.bf16.msra.mxu0 0
  %551 = vmatprep.subr.bf16.mxu0 0
  %552 = vmatpush2.bf16.msra.mxu0 0
  %553 = vmatprep.subr.bf16.mxu0 0
  %554 = vmatpush2.bf16.msra.mxu0 0
  %555 = vmatprep.subr.bf16.mxu0 0
  %556 = vmatpush2.bf16.msra.mxu0 0
  %557 = vmatprep.subr.bf16.mxu0 0
  %558 = vmatpush2.bf16.msra.mxu0 0
  %559 = vmatprep.subr.bf16.mxu0 0
  %560 = vmatpush2.bf16.msra.mxu0 0
  %561 = vmatprep.subr.bf16.mxu0 0
  %562 = vmatpush2.bf16.msra.mxu0 0
  %563 = vmatprep.mubr.bf16.mxu0 0
  %564 = vmatmul.mubr.bf16.gmra.mxu0 %v520
  %v565 = vpop.f32.mrf.mxu0
  %v566 = vadd.f32 0.0, %v565
  %v567 = vpop.f32.mrf.mxu0
  %v568 = vpop.f32.mrf.mxu0
  %v569 = vadd.f32 0.0, %v568
  %v570 = vpop.f32.mrf.mxu0
  %571 = vmatprep.mubr.bf16.mxu0 0
  %572 = vmatmul.mubr.bf16.gmra.mxu0 %v523
  %v573 = vpop.f32.mrf.mxu0
  %v574 = vadd.f32 0.0, %v573
  %v575 = vpop.f32.mrf.mxu0
  %v576 = vpop.f32.mrf.mxu0
  %v577 = vadd.f32 0.0, %v576
  %v578 = vpop.f32.mrf.mxu0
  %579 = vmatprep.mubr.bf16.mxu0 0
  %580 = vmatmul.mubr.bf16.gmra.mxu0 %v526
  %v581 = vpop.f32.mrf.mxu0
  %v582 = vadd.f32 0.0, %v581
  %v583 = vpop.f32.mrf.mxu0
  %v584 = vpop.f32.mrf.mxu0
  %v585 = vadd.f32 0.0, %v584
  %v586 = vpop.f32.mrf.mxu0
  %587 = vmatprep.mubr.bf16.mxu0 0
  %588 = vmatmul.mubr.bf16.gmra.mxu0 %v529
  %v589 = vpop.f32.mrf.mxu0
  %v590 = vadd.f32 0.0, %v589
  %v591 = vpop.f32.mrf.mxu0
  %v592 = vpop.f32.mrf.mxu0
  %v593 = vadd.f32 0.0, %v592
  %v594 = vpop.f32.mrf.mxu0
  %595 = vdwg.mxu0
  %596 = vrot.lane.b32.xlu0 %v292, 120
  %v597 = vpop.permute.xlu0 %596
  %598 = vrot.lane.b32.xlu0 %v293, 120
  %v599 = vpop.permute.xlu0 %598
  %600 = vrot.lane.b32.xlu0 %v294, 120
  %v601 = vpop.permute.xlu0 %600
  %602 = vrot.lane.b32.xlu0 %v295, 120
  %v603 = vpop.permute.xlu0 %602
  %604 = vrot.lane.b32.xlu0 %v292, 88
  %v605 = vpop.permute.xlu0 %604
  %606 = vrot.lane.b32.xlu0 %v293, 88
  %v607 = vpop.permute.xlu0 %606
  %608 = vrot.lane.b32.xlu0 %v294, 88
  %v609 = vpop.permute.xlu0 %608
  %610 = vrot.lane.b32.xlu0 %v295, 88
  %v611 = vpop.permute.xlu0 %610
  %v613 = vsel %vm308, %v597, 0
  %v616 = vsel %vm308, %v599, 0
  %v619 = vsel %vm308, %v601, 0
  %v622 = vsel %vm308, %v603, 0
  %v625 = vsel %vm308, %v605, 0
  %v628 = vsel %vm308, %v607, 0
  %v631 = vsel %vm308, %v609, 0
  %v634 = vsel %vm308, %v611, 0
  %636 = vmatprep.subr.bf16.mxu0 0
  %637 = vmatpush1.bf16.xpose.msra.mxu0 0
  %638 = vmatprep.subr.bf16.mxu0 0
  %639 = vmatpush1.bf16.xpose.msra.mxu0 0
  %640 = vmatprep.subr.bf16.mxu0 0
  %641 = vmatpush1.bf16.xpose.msra.mxu0 0
  %642 = vmatprep.subr.bf16.mxu0 0
  %643 = vmatpush1.bf16.xpose.msra.mxu0 0
  %644 = vmatprep.subr.bf16.mxu0 0
  %645 = vmatpush1.bf16.xpose.msra.mxu0 %v634
  %646 = vmatprep.subr.bf16.mxu0 0
  %647 = vmatpush1.bf16.xpose.msra.mxu0 %v631
  %648 = vmatprep.subr.bf16.mxu0 0
  %649 = vmatpush1.bf16.xpose.msra.mxu0 %v628
  %650 = vmatprep.subr.bf16.mxu0 0
  %651 = vmatpush1.bf16.xpose.msra.mxu0 %v625
  %652 = vmatprep.subr.bf16.mxu0 0
  %653 = vmatpush2.bf16.xpose.msra.mxu0 0
  %654 = vmatprep.subr.bf16.mxu0 0
  %655 = vmatpush2.bf16.xpose.msra.mxu0 0
  %656 = vmatprep.subr.bf16.mxu0 0
  %657 = vmatpush2.bf16.xpose.msra.mxu0 0
  %658 = vmatprep.subr.bf16.mxu0 0
  %659 = vmatpush2.bf16.xpose.msra.mxu0 0
  %660 = vmatprep.subr.bf16.mxu0 0
  %661 = vmatpush2.bf16.xpose.msra.mxu0 0
  %662 = vmatprep.subr.bf16.mxu0 0
  %663 = vmatpush2.bf16.xpose.msra.mxu0 0
  %664 = vmatprep.subr.bf16.mxu0 0
  %665 = vmatpush2.bf16.xpose.msra.mxu0 0
  %666 = vmatprep.subr.bf16.mxu0 0
  %667 = vmatpush2.bf16.xpose.msra.mxu0 0
  %668 = vmatprep.mubr.bf16.mxu0 0
  %669 = vmatmul.mubr.bf16.gmra.mxu0 %v613
  %v670 = vpop.f32.mrf.mxu0
  %v671 = vadd.f32 0.0, %v670
  %v672 = vpop.f32.mrf.mxu0
  %v673 = vpop.f32.mrf.mxu0
  %v674 = vadd.f32 0.0, %v673
  %v675 = vpop.f32.mrf.mxu0
  %676 = vmatprep.mubr.bf16.mxu0 0
  %677 = vmatmul.mubr.bf16.gmra.mxu0 %v616
  %v678 = vpop.f32.mrf.mxu0
  %v679 = vadd.f32 0.0, %v678
  %v680 = vpop.f32.mrf.mxu0
  %v681 = vpop.f32.mrf.mxu0
  %v682 = vadd.f32 0.0, %v681
  %v683 = vpop.f32.mrf.mxu0
  %684 = vmatprep.mubr.bf16.mxu0 0
  %685 = vmatmul.mubr.bf16.gmra.mxu0 %v619
  %v686 = vpop.f32.mrf.mxu0
  %v687 = vadd.f32 0.0, %v686
  %v688 = vpop.f32.mrf.mxu0
  %v689 = vpop.f32.mrf.mxu0
  %v690 = vadd.f32 0.0, %v689
  %v691 = vpop.f32.mrf.mxu0
  %692 = vmatprep.mubr.bf16.mxu0 0
  %693 = vmatmul.mubr.bf16.gmra.mxu0 %v622
  %v694 = vpop.f32.mrf.mxu0
  %v695 = vadd.f32 0.0, %v694
  %v696 = vpop.f32.mrf.mxu0
  %v697 = vpop.f32.mrf.mxu0
  %v698 = vadd.f32 0.0, %v697
  %v699 = vpop.f32.mrf.mxu0
  %700 = vdwg.mxu0
  %v701 = vmul.f32 %v671, 0.35355338
  %v702 = vmul.f32 %v674, 0.35355338
  %v703 = vmul.f32 %v679, 0.35355338
  %v704 = vmul.f32 %v682, 0.35355338
  %v705 = vmul.f32 %v687, 0.35355338
  %v706 = vmul.f32 %v690, 0.35355338
  %v707 = vmul.f32 %v695, 0.35355338
  %v708 = vmul.f32 %v698, 0.35355338
  %v709 = vadd.f32 %v701, %v51
  %v710 = vadd.f32 %v702, %v52
  %v711 = vadd.f32 %v703, %v53
  %v712 = vadd.f32 %v704, %v54
  %v713 = vadd.f32 %v705, %v55
  %v714 = vadd.f32 %v706, %v56
  %v715 = vadd.f32 %v707, %v57
  %v716 = vadd.f32 %v708, %v58
  %v717 = vsel %vm414, %v709, -inf
  %718 = vmax.xlane.f32.xlu0 %v717
  %v719 = vpop.xlane.xlu0 %718
  %v720 = vsel %vm414, %v710, -inf
  %721 = vmax.xlane.f32.xlu0 %v720
  %v722 = vpop.xlane.xlu0 %721
  %v723 = vsel %vm414, %v711, -inf
  %724 = vmax.xlane.f32.xlu0 %v723
  %v725 = vpop.xlane.xlu0 %724
  %v726 = vsel %vm414, %v712, -inf
  %727 = vmax.xlane.f32.xlu0 %v726
  %v728 = vpop.xlane.xlu0 %727
  %v729 = vsel %vm414, %v713, -inf
  %730 = vmax.xlane.f32.xlu0 %v729
  %v731 = vpop.xlane.xlu0 %730
  %v732 = vsel %vm414, %v714, -inf
  %733 = vmax.xlane.f32.xlu0 %v732
  %v734 = vpop.xlane.xlu0 %733
  %v735 = vsel %vm414, %v715, -inf
  %736 = vmax.xlane.f32.xlu0 %v735
  %v737 = vpop.xlane.xlu0 %736
  %v738 = vsel %vm414, %v716, -inf
  %739 = vmax.xlane.f32.xlu0 %v738
  %v740 = vpop.xlane.xlu0 %739
  %v741 = vsub.f32 %v709, %v719
  %v742 = vsub.f32 %v710, %v722
  %v743 = vsub.f32 %v711, %v725
  %v744 = vsub.f32 %v712, %v728
  %v745 = vsub.f32 %v713, %v731
  %v746 = vsub.f32 %v714, %v734
  %v747 = vsub.f32 %v715, %v737
  %v748 = vsub.f32 %v716, %v740
  %v749 = vmul.f32 %v741, 1.442695
  %v750 = vpow.pop %v749
  %v751 = vmul.f32 %v742, 1.442695
  %v752 = vpow.pop %v751
  %v753 = vmul.f32 %v743, 1.442695
  %v754 = vpow.pop %v753
  %v755 = vmul.f32 %v744, 1.442695
  %v756 = vpow.pop %v755
  %v757 = vmul.f32 %v745, 1.442695
  %v758 = vpow.pop %v757
  %v759 = vmul.f32 %v746, 1.442695
  %v760 = vpow.pop %v759
  %v761 = vmul.f32 %v747, 1.442695
  %v762 = vpow.pop %v761
  %v763 = vmul.f32 %v748, 1.442695
  %v764 = vpow.pop %v763
  %v765 = vsel %vm414, %v750, 0.0
  %766 = vadd.xlane.f32.xlu0 %v765
  %v767 = vpop.xlane.xlu0 %766
  %v768 = vsel %vm414, %v752, 0.0
  %769 = vadd.xlane.f32.xlu0 %v768
  %v770 = vpop.xlane.xlu0 %769
  %v771 = vsel %vm414, %v754, 0.0
  %772 = vadd.xlane.f32.xlu0 %v771
  %v773 = vpop.xlane.xlu0 %772
  %v774 = vsel %vm414, %v756, 0.0
  %775 = vadd.xlane.f32.xlu0 %v774
  %v776 = vpop.xlane.xlu0 %775
  %v777 = vsel %vm414, %v758, 0.0
  %778 = vadd.xlane.f32.xlu0 %v777
  %v779 = vpop.xlane.xlu0 %778
  %v780 = vsel %vm414, %v760, 0.0
  %781 = vadd.xlane.f32.xlu0 %v780
  %v782 = vpop.xlane.xlu0 %781
  %v783 = vsel %vm414, %v762, 0.0
  %784 = vadd.xlane.f32.xlu0 %v783
  %v785 = vpop.xlane.xlu0 %784
  %v786 = vsel %vm414, %v764, 0.0
  %787 = vadd.xlane.f32.xlu0 %v786
  %v788 = vpop.xlane.xlu0 %787
  %v789 = vrcp.pop %v767
  %v790 = vrcp.pop %v770
  %v791 = vrcp.pop %v773
  %v792 = vrcp.pop %v776
  %v793 = vrcp.pop %v779
  %v794 = vrcp.pop %v782
  %v795 = vrcp.pop %v785
  %v796 = vrcp.pop %v788
  %v797 = vmul.f32 %v750, %v789
  %v798 = vmul.f32 %v752, %v790
  %v799 = vmul.f32 %v754, %v791
  %v800 = vmul.f32 %v756, %v792
  %v801 = vmul.f32 %v758, %v793
  %v802 = vmul.f32 %v760, %v794
  %v803 = vmul.f32 %v762, %v795
  %v804 = vmul.f32 %v764, %v796
  %v805 = vpack.c.bf16 %v798, %v797
  %v806 = vpack.c.bf16 %v800, %v799
  %v807 = vpack.c.bf16 %v802, %v801
  %v808 = vpack.c.bf16 %v804, %v803
  %809 = vrot.lane.b32.xlu0 %v292, 56
  %v810 = vpop.permute.xlu0 %809
  %811 = vrot.lane.b32.xlu0 %v293, 56
  %v812 = vpop.permute.xlu0 %811
  %813 = vrot.lane.b32.xlu0 %v294, 56
  %v814 = vpop.permute.xlu0 %813
  %815 = vrot.lane.b32.xlu0 %v295, 56
  %v816 = vpop.permute.xlu0 %815
  %v822 = vsel %vm414, %v805, 0
  %v825 = vsel %vm414, %v806, 0
  %v828 = vsel %vm414, %v807, 0
  %v831 = vsel %vm414, %v808, 0
  %833 = vmatprep.subr.bf16.mxu0 0
  %834 = vmatpush1.bf16.msra.mxu0 0
  %835 = vmatprep.subr.bf16.mxu0 0
  %836 = vmatpush1.bf16.msra.mxu0 0
  %837 = vmatprep.subr.bf16.mxu0 0
  %838 = vmatpush1.bf16.msra.mxu0 0
  %839 = vmatprep.subr.bf16.mxu0 0
  %840 = vmatpush1.bf16.msra.mxu0 0
  %841 = vmatprep.subr.bf16.mxu0 0
  %842 = vmatpush1.bf16.msra.mxu0 %v816
  %843 = vmatprep.subr.bf16.mxu0 0
  %844 = vmatpush1.bf16.msra.mxu0 %v814
  %845 = vmatprep.subr.bf16.mxu0 0
  %846 = vmatpush1.bf16.msra.mxu0 %v812
  %847 = vmatprep.subr.bf16.mxu0 0
  %848 = vmatpush1.bf16.msra.mxu0 %v810
  %849 = vmatprep.subr.bf16.mxu0 0
  %850 = vmatpush2.bf16.msra.mxu0 0
  %851 = vmatprep.subr.bf16.mxu0 0
  %852 = vmatpush2.bf16.msra.mxu0 0
  %853 = vmatprep.subr.bf16.mxu0 0
  %854 = vmatpush2.bf16.msra.mxu0 0
  %855 = vmatprep.subr.bf16.mxu0 0
  %856 = vmatpush2.bf16.msra.mxu0 0
  %857 = vmatprep.subr.bf16.mxu0 0
  %858 = vmatpush2.bf16.msra.mxu0 0
  %859 = vmatprep.subr.bf16.mxu0 0
  %860 = vmatpush2.bf16.msra.mxu0 0
  %861 = vmatprep.subr.bf16.mxu0 0
  %862 = vmatpush2.bf16.msra.mxu0 0
  %863 = vmatprep.subr.bf16.mxu0 0
  %864 = vmatpush2.bf16.msra.mxu0 0
  %865 = vmatprep.mubr.bf16.mxu0 0
  %866 = vmatmul.mubr.bf16.gmra.mxu0 %v822
  %v867 = vpop.f32.mrf.mxu0
  %v868 = vadd.f32 0.0, %v867
  %v869 = vpop.f32.mrf.mxu0
  %v870 = vpop.f32.mrf.mxu0
  %v871 = vadd.f32 0.0, %v870
  %v872 = vpop.f32.mrf.mxu0
  %873 = vmatprep.mubr.bf16.mxu0 0
  %874 = vmatmul.mubr.bf16.gmra.mxu0 %v825
  %v875 = vpop.f32.mrf.mxu0
  %v876 = vadd.f32 0.0, %v875
  %v877 = vpop.f32.mrf.mxu0
  %v878 = vpop.f32.mrf.mxu0
  %v879 = vadd.f32 0.0, %v878
  %v880 = vpop.f32.mrf.mxu0
  %881 = vmatprep.mubr.bf16.mxu0 0
  %882 = vmatmul.mubr.bf16.gmra.mxu0 %v828
  %v883 = vpop.f32.mrf.mxu0
  %v884 = vadd.f32 0.0, %v883
  %v885 = vpop.f32.mrf.mxu0
  %v886 = vpop.f32.mrf.mxu0
  %v887 = vadd.f32 0.0, %v886
  %v888 = vpop.f32.mrf.mxu0
  %889 = vmatprep.mubr.bf16.mxu0 0
  %890 = vmatmul.mubr.bf16.gmra.mxu0 %v831
  %v891 = vpop.f32.mrf.mxu0
  %v892 = vadd.f32 0.0, %v891
  %v893 = vpop.f32.mrf.mxu0
  %v894 = vpop.f32.mrf.mxu0
  %v895 = vadd.f32 0.0, %v894
  %v896 = vpop.f32.mrf.mxu0
  %897 = vdwg.mxu0
  %898 = vrot.lane.b32.xlu0 %v292, 112
  %v899 = vpop.permute.xlu0 %898
  %900 = vrot.lane.b32.xlu0 %v293, 112
  %v901 = vpop.permute.xlu0 %900
  %902 = vrot.lane.b32.xlu0 %v294, 112
  %v903 = vpop.permute.xlu0 %902
  %904 = vrot.lane.b32.xlu0 %v295, 112
  %v905 = vpop.permute.xlu0 %904
  %906 = vrot.lane.b32.xlu0 %v292, 80
  %v907 = vpop.permute.xlu0 %906
  %908 = vrot.lane.b32.xlu0 %v293, 80
  %v909 = vpop.permute.xlu0 %908
  %910 = vrot.lane.b32.xlu0 %v294, 80
  %v911 = vpop.permute.xlu0 %910
  %912 = vrot.lane.b32.xlu0 %v295, 80
  %v913 = vpop.permute.xlu0 %912
  %v915 = vsel %vm308, %v899, 0
  %v918 = vsel %vm308, %v901, 0
  %v921 = vsel %vm308, %v903, 0
  %v924 = vsel %vm308, %v905, 0
  %v927 = vsel %vm308, %v907, 0
  %v930 = vsel %vm308, %v909, 0
  %v933 = vsel %vm308, %v911, 0
  %v936 = vsel %vm308, %v913, 0
  %938 = vmatprep.subr.bf16.mxu0 0
  %939 = vmatpush1.bf16.xpose.msra.mxu0 0
  %940 = vmatprep.subr.bf16.mxu0 0
  %941 = vmatpush1.bf16.xpose.msra.mxu0 0
  %942 = vmatprep.subr.bf16.mxu0 0
  %943 = vmatpush1.bf16.xpose.msra.mxu0 0
  %944 = vmatprep.subr.bf16.mxu0 0
  %945 = vmatpush1.bf16.xpose.msra.mxu0 0
  %946 = vmatprep.subr.bf16.mxu0 0
  %947 = vmatpush1.bf16.xpose.msra.mxu0 %v936
  %948 = vmatprep.subr.bf16.mxu0 0
  %949 = vmatpush1.bf16.xpose.msra.mxu0 %v933
  %950 = vmatprep.subr.bf16.mxu0 0
  %951 = vmatpush1.bf16.xpose.msra.mxu0 %v930
  %952 = vmatprep.subr.bf16.mxu0 0
  %953 = vmatpush1.bf16.xpose.msra.mxu0 %v927
  %954 = vmatprep.subr.bf16.mxu0 0
  %955 = vmatpush2.bf16.xpose.msra.mxu0 0
  %956 = vmatprep.subr.bf16.mxu0 0
  %957 = vmatpush2.bf16.xpose.msra.mxu0 0
  %958 = vmatprep.subr.bf16.mxu0 0
  %959 = vmatpush2.bf16.xpose.msra.mxu0 0
  %960 = vmatprep.subr.bf16.mxu0 0
  %961 = vmatpush2.bf16.xpose.msra.mxu0 0
  %962 = vmatprep.subr.bf16.mxu0 0
  %963 = vmatpush2.bf16.xpose.msra.mxu0 0
  %964 = vmatprep.subr.bf16.mxu0 0
  %965 = vmatpush2.bf16.xpose.msra.mxu0 0
  %966 = vmatprep.subr.bf16.mxu0 0
  %967 = vmatpush2.bf16.xpose.msra.mxu0 0
  %968 = vmatprep.subr.bf16.mxu0 0
  %969 = vmatpush2.bf16.xpose.msra.mxu0 0
  %970 = vmatprep.mubr.bf16.mxu0 0
  %971 = vmatmul.mubr.bf16.gmra.mxu0 %v915
  %v972 = vpop.f32.mrf.mxu0
  %v973 = vadd.f32 0.0, %v972
  %v974 = vpop.f32.mrf.mxu0
  %v975 = vpop.f32.mrf.mxu0
  %v976 = vadd.f32 0.0, %v975
  %v977 = vpop.f32.mrf.mxu0
  %978 = vmatprep.mubr.bf16.mxu0 0
  %979 = vmatmul.mubr.bf16.gmra.mxu0 %v918
  %v980 = vpop.f32.mrf.mxu0
  %v981 = vadd.f32 0.0, %v980
  %v982 = vpop.f32.mrf.mxu0
  %v983 = vpop.f32.mrf.mxu0
  %v984 = vadd.f32 0.0, %v983
  %v985 = vpop.f32.mrf.mxu0
  %986 = vmatprep.mubr.bf16.mxu0 0
  %987 = vmatmul.mubr.bf16.gmra.mxu0 %v921
  %v988 = vpop.f32.mrf.mxu0
  %v989 = vadd.f32 0.0, %v988
  %v990 = vpop.f32.mrf.mxu0
  %v991 = vpop.f32.mrf.mxu0
  %v992 = vadd.f32 0.0, %v991
  %v993 = vpop.f32.mrf.mxu0
  %994 = vmatprep.mubr.bf16.mxu0 0
  %995 = vmatmul.mubr.bf16.gmra.mxu0 %v924
  %v996 = vpop.f32.mrf.mxu0
  %v997 = vadd.f32 0.0, %v996
  %v998 = vpop.f32.mrf.mxu0
  %v999 = vpop.f32.mrf.mxu0
  %v1000 = vadd.f32 0.0, %v999
  %v1001 = vpop.f32.mrf.mxu0
  %1002 = vdwg.mxu0
  %v1003 = vmul.f32 %v973, 0.35355338
  %v1004 = vmul.f32 %v976, 0.35355338
  %v1005 = vmul.f32 %v981, 0.35355338
  %v1006 = vmul.f32 %v984, 0.35355338
  %v1007 = vmul.f32 %v989, 0.35355338
  %v1008 = vmul.f32 %v992, 0.35355338
  %v1009 = vmul.f32 %v997, 0.35355338
  %v1010 = vmul.f32 %v1000, 0.35355338
  %v1011 = vadd.f32 %v1003, %v51
  %v1012 = vadd.f32 %v1004, %v52
  %v1013 = vadd.f32 %v1005, %v53
  %v1014 = vadd.f32 %v1006, %v54
  %v1015 = vadd.f32 %v1007, %v55
  %v1016 = vadd.f32 %v1008, %v56
  %v1017 = vadd.f32 %v1009, %v57
  %v1018 = vadd.f32 %v1010, %v58
  %v1019 = vsel %vm414, %v1011, -inf
  %1020 = vmax.xlane.f32.xlu0 %v1019
  %v1021 = vpop.xlane.xlu0 %1020
  %v1022 = vsel %vm414, %v1012, -inf
  %1023 = vmax.xlane.f32.xlu0 %v1022
  %v1024 = vpop.xlane.xlu0 %1023
  %v1025 = vsel %vm414, %v1013, -inf
  %1026 = vmax.xlane.f32.xlu0 %v1025
  %v1027 = vpop.xlane.xlu0 %1026
  %v1028 = vsel %vm414, %v1014, -inf
  %1029 = vmax.xlane.f32.xlu0 %v1028
  %v1030 = vpop.xlane.xlu0 %1029
  %v1031 = vsel %vm414, %v1015, -inf
  %1032 = vmax.xlane.f32.xlu0 %v1031
  %v1033 = vpop.xlane.xlu0 %1032
  %v1034 = vsel %vm414, %v1016, -inf
  %1035 = vmax.xlane.f32.xlu0 %v1034
  %v1036 = vpop.xlane.xlu0 %1035
  %v1037 = vsel %vm414, %v1017, -inf
  %1038 = vmax.xlane.f32.xlu0 %v1037
  %v1039 = vpop.xlane.xlu0 %1038
  %v1040 = vsel %vm414, %v1018, -inf
  %1041 = vmax.xlane.f32.xlu0 %v1040
  %v1042 = vpop.xlane.xlu0 %1041
  %v1043 = vsub.f32 %v1011, %v1021
  %v1044 = vsub.f32 %v1012, %v1024
  %v1045 = vsub.f32 %v1013, %v1027
  %v1046 = vsub.f32 %v1014, %v1030
  %v1047 = vsub.f32 %v1015, %v1033
  %v1048 = vsub.f32 %v1016, %v1036
  %v1049 = vsub.f32 %v1017, %v1039
  %v1050 = vsub.f32 %v1018, %v1042
  %v1051 = vmul.f32 %v1043, 1.442695
  %v1052 = vpow.pop %v1051
  %v1053 = vmul.f32 %v1044, 1.442695
  %v1054 = vpow.pop %v1053
  %v1055 = vmul.f32 %v1045, 1.442695
  %v1056 = vpow.pop %v1055
  %v1057 = vmul.f32 %v1046, 1.442695
  %v1058 = vpow.pop %v1057
  %v1059 = vmul.f32 %v1047, 1.442695
  %v1060 = vpow.pop %v1059
  %v1061 = vmul.f32 %v1048, 1.442695
  %v1062 = vpow.pop %v1061
  %v1063 = vmul.f32 %v1049, 1.442695
  %v1064 = vpow.pop %v1063
  %v1065 = vmul.f32 %v1050, 1.442695
  %v1066 = vpow.pop %v1065
  %v1067 = vsel %vm414, %v1052, 0.0
  %1068 = vadd.xlane.f32.xlu0 %v1067
  %v1069 = vpop.xlane.xlu0 %1068
  %v1070 = vsel %vm414, %v1054, 0.0
  %1071 = vadd.xlane.f32.xlu0 %v1070
  %v1072 = vpop.xlane.xlu0 %1071
  %v1073 = vsel %vm414, %v1056, 0.0
  %1074 = vadd.xlane.f32.xlu0 %v1073
  %v1075 = vpop.xlane.xlu0 %1074
  %v1076 = vsel %vm414, %v1058, 0.0
  %1077 = vadd.xlane.f32.xlu0 %v1076
  %v1078 = vpop.xlane.xlu0 %1077
  %v1079 = vsel %vm414, %v1060, 0.0
  %1080 = vadd.xlane.f32.xlu0 %v1079
  %v1081 = vpop.xlane.xlu0 %1080
  %v1082 = vsel %vm414, %v1062, 0.0
  %1083 = vadd.xlane.f32.xlu0 %v1082
  %v1084 = vpop.xlane.xlu0 %1083
  %v1085 = vsel %vm414, %v1064, 0.0
  %1086 = vadd.xlane.f32.xlu0 %v1085
  %v1087 = vpop.xlane.xlu0 %1086
  %v1088 = vsel %vm414, %v1066, 0.0
  %1089 = vadd.xlane.f32.xlu0 %v1088
  %v1090 = vpop.xlane.xlu0 %1089
  %v1091 = vrcp.pop %v1069
  %v1092 = vrcp.pop %v1072
  %v1093 = vrcp.pop %v1075
  %v1094 = vrcp.pop %v1078
  %v1095 = vrcp.pop %v1081
  %v1096 = vrcp.pop %v1084
  %v1097 = vrcp.pop %v1087
  %v1098 = vrcp.pop %v1090
  %v1099 = vmul.f32 %v1052, %v1091
  %v1100 = vmul.f32 %v1054, %v1092
  %v1101 = vmul.f32 %v1056, %v1093
  %v1102 = vmul.f32 %v1058, %v1094
  %v1103 = vmul.f32 %v1060, %v1095
  %v1104 = vmul.f32 %v1062, %v1096
  %v1105 = vmul.f32 %v1064, %v1097
  %v1106 = vmul.f32 %v1066, %v1098
  %v1107 = vpack.c.bf16 %v1100, %v1099
  %v1108 = vpack.c.bf16 %v1102, %v1101
  %v1109 = vpack.c.bf16 %v1104, %v1103
  %v1110 = vpack.c.bf16 %v1106, %v1105
  %1111 = vrot.lane.b32.xlu0 %v292, 48
  %v1112 = vpop.permute.xlu0 %1111
  %1113 = vrot.lane.b32.xlu0 %v293, 48
  %v1114 = vpop.permute.xlu0 %1113
  %1115 = vrot.lane.b32.xlu0 %v294, 48
  %v1116 = vpop.permute.xlu0 %1115
  %1117 = vrot.lane.b32.xlu0 %v295, 48
  %v1118 = vpop.permute.xlu0 %1117
  %v1124 = vsel %vm414, %v1107, 0
  %v1127 = vsel %vm414, %v1108, 0
  %v1130 = vsel %vm414, %v1109, 0
  %v1133 = vsel %vm414, %v1110, 0
  %1135 = vmatprep.subr.bf16.mxu0 0
  %1136 = vmatpush1.bf16.msra.mxu0 0
  %1137 = vmatprep.subr.bf16.mxu0 0
  %1138 = vmatpush1.bf16.msra.mxu0 0
  %1139 = vmatprep.subr.bf16.mxu0 0
  %1140 = vmatpush1.bf16.msra.mxu0 0
  %1141 = vmatprep.subr.bf16.mxu0 0
  %1142 = vmatpush1.bf16.msra.mxu0 0
  %1143 = vmatprep.subr.bf16.mxu0 0
  %1144 = vmatpush1.bf16.msra.mxu0 %v1118
  %1145 = vmatprep.subr.bf16.mxu0 0
  %1146 = vmatpush1.bf16.msra.mxu0 %v1116
  %1147 = vmatprep.subr.bf16.mxu0 0
  %1148 = vmatpush1.bf16.msra.mxu0 %v1114
  %1149 = vmatprep.subr.bf16.mxu0 0
  %1150 = vmatpush1.bf16.msra.mxu0 %v1112
  %1151 = vmatprep.subr.bf16.mxu0 0
  %1152 = vmatpush2.bf16.msra.mxu0 0
  %1153 = vmatprep.subr.bf16.mxu0 0
  %1154 = vmatpush2.bf16.msra.mxu0 0
  %1155 = vmatprep.subr.bf16.mxu0 0
  %1156 = vmatpush2.bf16.msra.mxu0 0
  %1157 = vmatprep.subr.bf16.mxu0 0
  %1158 = vmatpush2.bf16.msra.mxu0 0
  %1159 = vmatprep.subr.bf16.mxu0 0
  %1160 = vmatpush2.bf16.msra.mxu0 0
  %1161 = vmatprep.subr.bf16.mxu0 0
  %1162 = vmatpush2.bf16.msra.mxu0 0
  %1163 = vmatprep.subr.bf16.mxu0 0
  %1164 = vmatpush2.bf16.msra.mxu0 0
  %1165 = vmatprep.subr.bf16.mxu0 0
  %1166 = vmatpush2.bf16.msra.mxu0 0
  %1167 = vmatprep.mubr.bf16.mxu0 0
  %1168 = vmatmul.mubr.bf16.gmra.mxu0 %v1124
  %v1169 = vpop.f32.mrf.mxu0
  %v1170 = vadd.f32 0.0, %v1169
  %v1171 = vpop.f32.mrf.mxu0
  %v1172 = vpop.f32.mrf.mxu0
  %v1173 = vadd.f32 0.0, %v1172
  %v1174 = vpop.f32.mrf.mxu0
  %1175 = vmatprep.mubr.bf16.mxu0 0
  %1176 = vmatmul.mubr.bf16.gmra.mxu0 %v1127
  %v1177 = vpop.f32.mrf.mxu0
  %v1178 = vadd.f32 0.0, %v1177
  %v1179 = vpop.f32.mrf.mxu0
  %v1180 = vpop.f32.mrf.mxu0
  %v1181 = vadd.f32 0.0, %v1180
  %v1182 = vpop.f32.mrf.mxu0
  %1183 = vmatprep.mubr.bf16.mxu0 0
  %1184 = vmatmul.mubr.bf16.gmra.mxu0 %v1130
  %v1185 = vpop.f32.mrf.mxu0
  %v1186 = vadd.f32 0.0, %v1185
  %v1187 = vpop.f32.mrf.mxu0
  %v1188 = vpop.f32.mrf.mxu0
  %v1189 = vadd.f32 0.0, %v1188
  %v1190 = vpop.f32.mrf.mxu0
  %1191 = vmatprep.mubr.bf16.mxu0 0
  %1192 = vmatmul.mubr.bf16.gmra.mxu0 %v1133
  %v1193 = vpop.f32.mrf.mxu0
  %v1194 = vadd.f32 0.0, %v1193
  %v1195 = vpop.f32.mrf.mxu0
  %v1196 = vpop.f32.mrf.mxu0
  %v1197 = vadd.f32 0.0, %v1196
  %v1198 = vpop.f32.mrf.mxu0
  %1199 = vdwg.mxu0
  %1200 = vrot.lane.b32.xlu0 %v292, 104
  %v1201 = vpop.permute.xlu0 %1200
  %1202 = vrot.lane.b32.xlu0 %v293, 104
  %v1203 = vpop.permute.xlu0 %1202
  %1204 = vrot.lane.b32.xlu0 %v294, 104
  %v1205 = vpop.permute.xlu0 %1204
  %1206 = vrot.lane.b32.xlu0 %v295, 104
  %v1207 = vpop.permute.xlu0 %1206
  %1208 = vrot.lane.b32.xlu0 %v292, 72
  %v1209 = vpop.permute.xlu0 %1208
  %1210 = vrot.lane.b32.xlu0 %v293, 72
  %v1211 = vpop.permute.xlu0 %1210
  %1212 = vrot.lane.b32.xlu0 %v294, 72
  %v1213 = vpop.permute.xlu0 %1212
  %1214 = vrot.lane.b32.xlu0 %v295, 72
  %v1215 = vpop.permute.xlu0 %1214
  %v1217 = vsel %vm308, %v1201, 0
  %v1220 = vsel %vm308, %v1203, 0
  %v1223 = vsel %vm308, %v1205, 0
  %v1226 = vsel %vm308, %v1207, 0
  %v1229 = vsel %vm308, %v1209, 0
  %v1232 = vsel %vm308, %v1211, 0
  %v1235 = vsel %vm308, %v1213, 0
  %v1238 = vsel %vm308, %v1215, 0
  %1240 = vmatprep.subr.bf16.mxu0 0
  %1241 = vmatpush1.bf16.xpose.msra.mxu0 0
  %1242 = vmatprep.subr.bf16.mxu0 0
  %1243 = vmatpush1.bf16.xpose.msra.mxu0 0
  %1244 = vmatprep.subr.bf16.mxu0 0
  %1245 = vmatpush1.bf16.xpose.msra.mxu0 0
  %1246 = vmatprep.subr.bf16.mxu0 0
  %1247 = vmatpush1.bf16.xpose.msra.mxu0 0
  %1248 = vmatprep.subr.bf16.mxu0 0
  %1249 = vmatpush1.bf16.xpose.msra.mxu0 %v1238
  %1250 = vmatprep.subr.bf16.mxu0 0
  %1251 = vmatpush1.bf16.xpose.msra.mxu0 %v1235
  %1252 = vmatprep.subr.bf16.mxu0 0
  %1253 = vmatpush1.bf16.xpose.msra.mxu0 %v1232
  %1254 = vmatprep.subr.bf16.mxu0 0
  %1255 = vmatpush1.bf16.xpose.msra.mxu0 %v1229
  %1256 = vmatprep.subr.bf16.mxu0 0
  %1257 = vmatpush2.bf16.xpose.msra.mxu0 0
  %1258 = vmatprep.subr.bf16.mxu0 0
  %1259 = vmatpush2.bf16.xpose.msra.mxu0 0
  %1260 = vmatprep.subr.bf16.mxu0 0
  %1261 = vmatpush2.bf16.xpose.msra.mxu0 0
  %1262 = vmatprep.subr.bf16.mxu0 0
  %1263 = vmatpush2.bf16.xpose.msra.mxu0 0
  %1264 = vmatprep.subr.bf16.mxu0 0
  %1265 = vmatpush2.bf16.xpose.msra.mxu0 0
  %1266 = vmatprep.subr.bf16.mxu0 0
  %1267 = vmatpush2.bf16.xpose.msra.mxu0 0
  %1268 = vmatprep.subr.bf16.mxu0 0
  %1269 = vmatpush2.bf16.xpose.msra.mxu0 0
  %1270 = vmatprep.subr.bf16.mxu0 0
  %1271 = vmatpush2.bf16.xpose.msra.mxu0 0
  %1272 = vmatprep.mubr.bf16.mxu0 0
  %1273 = vmatmul.mubr.bf16.gmra.mxu0 %v1217
  %v1274 = vpop.f32.mrf.mxu0
  %v1275 = vadd.f32 0.0, %v1274
  %v1276 = vpop.f32.mrf.mxu0
  %v1277 = vpop.f32.mrf.mxu0
  %v1278 = vadd.f32 0.0, %v1277
  %v1279 = vpop.f32.mrf.mxu0
  %1280 = vmatprep.mubr.bf16.mxu0 0
  %1281 = vmatmul.mubr.bf16.gmra.mxu0 %v1220
  %v1282 = vpop.f32.mrf.mxu0
  %v1283 = vadd.f32 0.0, %v1282
  %v1284 = vpop.f32.mrf.mxu0
  %v1285 = vpop.f32.mrf.mxu0
  %v1286 = vadd.f32 0.0, %v1285
  %v1287 = vpop.f32.mrf.mxu0
  %1288 = vmatprep.mubr.bf16.mxu0 0
  %1289 = vmatmul.mubr.bf16.gmra.mxu0 %v1223
  %v1290 = vpop.f32.mrf.mxu0
  %v1291 = vadd.f32 0.0, %v1290
  %v1292 = vpop.f32.mrf.mxu0
  %v1293 = vpop.f32.mrf.mxu0
  %v1294 = vadd.f32 0.0, %v1293
  %v1295 = vpop.f32.mrf.mxu0
  %1296 = vmatprep.mubr.bf16.mxu0 0
  %1297 = vmatmul.mubr.bf16.gmra.mxu0 %v1226
  %v1298 = vpop.f32.mrf.mxu0
  %v1299 = vadd.f32 0.0, %v1298
  %v1300 = vpop.f32.mrf.mxu0
  %v1301 = vpop.f32.mrf.mxu0
  %v1302 = vadd.f32 0.0, %v1301
  %v1303 = vpop.f32.mrf.mxu0
  %1304 = vdwg.mxu0
  %v1305 = vmul.f32 %v1275, 0.35355338
  %v1306 = vmul.f32 %v1278, 0.35355338
  %v1307 = vmul.f32 %v1283, 0.35355338
  %v1308 = vmul.f32 %v1286, 0.35355338
  %v1309 = vmul.f32 %v1291, 0.35355338
  %v1310 = vmul.f32 %v1294, 0.35355338
  %v1311 = vmul.f32 %v1299, 0.35355338
  %v1312 = vmul.f32 %v1302, 0.35355338
  %v1313 = vadd.f32 %v1305, %v51
  %v1314 = vadd.f32 %v1306, %v52
  %v1315 = vadd.f32 %v1307, %v53
  %v1316 = vadd.f32 %v1308, %v54
  %v1317 = vadd.f32 %v1309, %v55
  %v1318 = vadd.f32 %v1310, %v56
  %v1319 = vadd.f32 %v1311, %v57
  %v1320 = vadd.f32 %v1312, %v58
  %v1321 = vsel %vm414, %v1313, -inf
  %1322 = vmax.xlane.f32.xlu0 %v1321
  %v1323 = vpop.xlane.xlu0 %1322
  %v1324 = vsel %vm414, %v1314, -inf
  %1325 = vmax.xlane.f32.xlu0 %v1324
  %v1326 = vpop.xlane.xlu0 %1325
  %v1327 = vsel %vm414, %v1315, -inf
  %1328 = vmax.xlane.f32.xlu0 %v1327
  %v1329 = vpop.xlane.xlu0 %1328
  %v1330 = vsel %vm414, %v1316, -inf
  %1331 = vmax.xlane.f32.xlu0 %v1330
  %v1332 = vpop.xlane.xlu0 %1331
  %v1333 = vsel %vm414, %v1317, -inf
  %1334 = vmax.xlane.f32.xlu0 %v1333
  %v1335 = vpop.xlane.xlu0 %1334
  %v1336 = vsel %vm414, %v1318, -inf
  %1337 = vmax.xlane.f32.xlu0 %v1336
  %v1338 = vpop.xlane.xlu0 %1337
  %v1339 = vsel %vm414, %v1319, -inf
  %1340 = vmax.xlane.f32.xlu0 %v1339
  %v1341 = vpop.xlane.xlu0 %1340
  %v1342 = vsel %vm414, %v1320, -inf
  %1343 = vmax.xlane.f32.xlu0 %v1342
  %v1344 = vpop.xlane.xlu0 %1343
  %v1345 = vsub.f32 %v1313, %v1323
  %v1346 = vsub.f32 %v1314, %v1326
  %v1347 = vsub.f32 %v1315, %v1329
  %v1348 = vsub.f32 %v1316, %v1332
  %v1349 = vsub.f32 %v1317, %v1335
  %v1350 = vsub.f32 %v1318, %v1338
  %v1351 = vsub.f32 %v1319, %v1341
  %v1352 = vsub.f32 %v1320, %v1344
  %v1353 = vmul.f32 %v1345, 1.442695
  %v1354 = vpow.pop %v1353
  %v1355 = vmul.f32 %v1346, 1.442695
  %v1356 = vpow.pop %v1355
  %v1357 = vmul.f32 %v1347, 1.442695
  %v1358 = vpow.pop %v1357
  %v1359 = vmul.f32 %v1348, 1.442695
  %v1360 = vpow.pop %v1359
  %v1361 = vmul.f32 %v1349, 1.442695
  %v1362 = vpow.pop %v1361
  %v1363 = vmul.f32 %v1350, 1.442695
  %v1364 = vpow.pop %v1363
  %v1365 = vmul.f32 %v1351, 1.442695
  %v1366 = vpow.pop %v1365
  %v1367 = vmul.f32 %v1352, 1.442695
  %v1368 = vpow.pop %v1367
  %v1369 = vsel %vm414, %v1354, 0.0
  %1370 = vadd.xlane.f32.xlu0 %v1369
  %v1371 = vpop.xlane.xlu0 %1370
  %v1372 = vsel %vm414, %v1356, 0.0
  %1373 = vadd.xlane.f32.xlu0 %v1372
  %v1374 = vpop.xlane.xlu0 %1373
  %v1375 = vsel %vm414, %v1358, 0.0
  %1376 = vadd.xlane.f32.xlu0 %v1375
  %v1377 = vpop.xlane.xlu0 %1376
  %v1378 = vsel %vm414, %v1360, 0.0
  %1379 = vadd.xlane.f32.xlu0 %v1378
  %v1380 = vpop.xlane.xlu0 %1379
  %v1381 = vsel %vm414, %v1362, 0.0
  %1382 = vadd.xlane.f32.xlu0 %v1381
  %v1383 = vpop.xlane.xlu0 %1382
  %v1384 = vsel %vm414, %v1364, 0.0
  %1385 = vadd.xlane.f32.xlu0 %v1384
  %v1386 = vpop.xlane.xlu0 %1385
  %v1387 = vsel %vm414, %v1366, 0.0
  %1388 = vadd.xlane.f32.xlu0 %v1387
  %v1389 = vpop.xlane.xlu0 %1388
  %v1390 = vsel %vm414, %v1368, 0.0
  %1391 = vadd.xlane.f32.xlu0 %v1390
  %v1392 = vpop.xlane.xlu0 %1391
  %v1393 = vrcp.pop %v1371
  %v1394 = vrcp.pop %v1374
  %v1395 = vrcp.pop %v1377
  %v1396 = vrcp.pop %v1380
  %v1397 = vrcp.pop %v1383
  %v1398 = vrcp.pop %v1386
  %v1399 = vrcp.pop %v1389
  %v1400 = vrcp.pop %v1392
  %v1401 = vmul.f32 %v1354, %v1393
  %v1402 = vmul.f32 %v1356, %v1394
  %v1403 = vmul.f32 %v1358, %v1395
  %v1404 = vmul.f32 %v1360, %v1396
  %v1405 = vmul.f32 %v1362, %v1397
  %v1406 = vmul.f32 %v1364, %v1398
  %v1407 = vmul.f32 %v1366, %v1399
  %v1408 = vmul.f32 %v1368, %v1400
  %v1409 = vpack.c.bf16 %v1402, %v1401
  %v1410 = vpack.c.bf16 %v1404, %v1403
  %v1411 = vpack.c.bf16 %v1406, %v1405
  %v1412 = vpack.c.bf16 %v1408, %v1407
  %1413 = vrot.lane.b32.xlu0 %v292, 40
  %v1414 = vpop.permute.xlu0 %1413
  %1415 = vrot.lane.b32.xlu0 %v293, 40
  %v1416 = vpop.permute.xlu0 %1415
  %1417 = vrot.lane.b32.xlu0 %v294, 40
  %v1418 = vpop.permute.xlu0 %1417
  %1419 = vrot.lane.b32.xlu0 %v295, 40
  %v1420 = vpop.permute.xlu0 %1419
  %v1426 = vsel %vm414, %v1409, 0
  %v1429 = vsel %vm414, %v1410, 0
  %v1432 = vsel %vm414, %v1411, 0
  %v1435 = vsel %vm414, %v1412, 0
  %1437 = vmatprep.subr.bf16.mxu0 0
  %1438 = vmatpush1.bf16.msra.mxu0 0
  %1439 = vmatprep.subr.bf16.mxu0 0
  %1440 = vmatpush1.bf16.msra.mxu0 0
  %1441 = vmatprep.subr.bf16.mxu0 0
  %1442 = vmatpush1.bf16.msra.mxu0 0
  %1443 = vmatprep.subr.bf16.mxu0 0
  %1444 = vmatpush1.bf16.msra.mxu0 0
  %1445 = vmatprep.subr.bf16.mxu0 0
  %1446 = vmatpush1.bf16.msra.mxu0 %v1420
  %1447 = vmatprep.subr.bf16.mxu0 0
  %1448 = vmatpush1.bf16.msra.mxu0 %v1418
  %1449 = vmatprep.subr.bf16.mxu0 0
  %1450 = vmatpush1.bf16.msra.mxu0 %v1416
  %1451 = vmatprep.subr.bf16.mxu0 0
  %1452 = vmatpush1.bf16.msra.mxu0 %v1414
  %1453 = vmatprep.subr.bf16.mxu0 0
  %1454 = vmatpush2.bf16.msra.mxu0 0
  %1455 = vmatprep.subr.bf16.mxu0 0
  %1456 = vmatpush2.bf16.msra.mxu0 0
  %1457 = vmatprep.subr.bf16.mxu0 0
  %1458 = vmatpush2.bf16.msra.mxu0 0
  %1459 = vmatprep.subr.bf16.mxu0 0
  %1460 = vmatpush2.bf16.msra.mxu0 0
  %1461 = vmatprep.subr.bf16.mxu0 0
  %1462 = vmatpush2.bf16.msra.mxu0 0
  %1463 = vmatprep.subr.bf16.mxu0 0
  %1464 = vmatpush2.bf16.msra.mxu0 0
  %1465 = vmatprep.subr.bf16.mxu0 0
  %1466 = vmatpush2.bf16.msra.mxu0 0
  %1467 = vmatprep.subr.bf16.mxu0 0
  %1468 = vmatpush2.bf16.msra.mxu0 0
  %1469 = vmatprep.mubr.bf16.mxu0 0
  %1470 = vmatmul.mubr.bf16.gmra.mxu0 %v1426
  %v1471 = vpop.f32.mrf.mxu0
  %v1472 = vadd.f32 0.0, %v1471
  %v1473 = vpop.f32.mrf.mxu0
  %v1474 = vpop.f32.mrf.mxu0
  %v1475 = vadd.f32 0.0, %v1474
  %v1476 = vpop.f32.mrf.mxu0
  %1477 = vmatprep.mubr.bf16.mxu0 0
  %1478 = vmatmul.mubr.bf16.gmra.mxu0 %v1429
  %v1479 = vpop.f32.mrf.mxu0
  %v1480 = vadd.f32 0.0, %v1479
  %v1481 = vpop.f32.mrf.mxu0
  %v1482 = vpop.f32.mrf.mxu0
  %v1483 = vadd.f32 0.0, %v1482
  %v1484 = vpop.f32.mrf.mxu0
  %1485 = vmatprep.mubr.bf16.mxu0 0
  %1486 = vmatmul.mubr.bf16.gmra.mxu0 %v1432
  %v1487 = vpop.f32.mrf.mxu0
  %v1488 = vadd.f32 0.0, %v1487
  %v1489 = vpop.f32.mrf.mxu0
  %v1490 = vpop.f32.mrf.mxu0
  %v1491 = vadd.f32 0.0, %v1490
  %v1492 = vpop.f32.mrf.mxu0
  %1493 = vmatprep.mubr.bf16.mxu0 0
  %1494 = vmatmul.mubr.bf16.gmra.mxu0 %v1435
  %v1495 = vpop.f32.mrf.mxu0
  %v1496 = vadd.f32 0.0, %v1495
  %v1497 = vpop.f32.mrf.mxu0
  %v1498 = vpop.f32.mrf.mxu0
  %v1499 = vadd.f32 0.0, %v1498
  %v1500 = vpop.f32.mrf.mxu0
  %1501 = vdwg.mxu0
  %1510 = vrot.lane.b32.xlu0 %v868, 8
  %v1511 = vpop.permute.xlu0 %1510
  %1512 = vrot.lane.b32.xlu0 %v871, 8
  %v1513 = vpop.permute.xlu0 %1512
  %1514 = vrot.lane.b32.xlu0 %v876, 8
  %v1515 = vpop.permute.xlu0 %1514
  %1516 = vrot.lane.b32.xlu0 %v879, 8
  %v1517 = vpop.permute.xlu0 %1516
  %1518 = vrot.lane.b32.xlu0 %v884, 8
  %v1519 = vpop.permute.xlu0 %1518
  %1520 = vrot.lane.b32.xlu0 %v887, 8
  %v1521 = vpop.permute.xlu0 %1520
  %1522 = vrot.lane.b32.xlu0 %v892, 8
  %v1523 = vpop.permute.xlu0 %1522
  %1524 = vrot.lane.b32.xlu0 %v895, 8
  %v1525 = vpop.permute.xlu0 %1524
  %1542 = vrot.lane.b32.xlu0 %v1170, 16
  %v1543 = vpop.permute.xlu0 %1542
  %1544 = vrot.lane.b32.xlu0 %v1173, 16
  %v1545 = vpop.permute.xlu0 %1544
  %1546 = vrot.lane.b32.xlu0 %v1178, 16
  %v1547 = vpop.permute.xlu0 %1546
  %1548 = vrot.lane.b32.xlu0 %v1181, 16
  %v1549 = vpop.permute.xlu0 %1548
  %1550 = vrot.lane.b32.xlu0 %v1186, 16
  %v1551 = vpop.permute.xlu0 %1550
  %1552 = vrot.lane.b32.xlu0 %v1189, 16
  %v1553 = vpop.permute.xlu0 %1552
  %1554 = vrot.lane.b32.xlu0 %v1194, 16
  %v1555 = vpop.permute.xlu0 %1554
  %1556 = vrot.lane.b32.xlu0 %v1197, 16
  %v1557 = vpop.permute.xlu0 %1556
  %1574 = vrot.lane.b32.xlu0 %v1472, 24
  %v1575 = vpop.permute.xlu0 %1574
  %1576 = vrot.lane.b32.xlu0 %v1475, 24
  %v1577 = vpop.permute.xlu0 %1576
  %1578 = vrot.lane.b32.xlu0 %v1480, 24
  %v1579 = vpop.permute.xlu0 %1578
  %1580 = vrot.lane.b32.xlu0 %v1483, 24
  %v1581 = vpop.permute.xlu0 %1580
  %1582 = vrot.lane.b32.xlu0 %v1488, 24
  %v1583 = vpop.permute.xlu0 %1582
  %1584 = vrot.lane.b32.xlu0 %v1491, 24
  %v1585 = vpop.permute.xlu0 %1584
  %1586 = vrot.lane.b32.xlu0 %v1496, 24
  %v1587 = vpop.permute.xlu0 %1586
  %1588 = vrot.lane.b32.xlu0 %v1499, 24
  %v1589 = vpop.permute.xlu0 %1588
  %v1598 = vsel %vm308, %v566, %v1511
  %v1599 = vsel %vm308, %v569, %v1513
  %v1600 = vsel %vm308, %v574, %v1515
  %v1601 = vsel %vm308, %v577, %v1517
  %v1602 = vsel %vm308, %v582, %v1519
  %v1603 = vsel %vm308, %v585, %v1521
  %v1604 = vsel %vm308, %v590, %v1523
  %v1605 = vsel %vm308, %v593, %v1525
  %vm1606 = vcmask 130048
  %v1607 = vsel %vm1606, %v1598, %v1543
  %v1608 = vsel %vm1606, %v1599, %v1545
  %v1609 = vsel %vm1606, %v1600, %v1547
  %v1610 = vsel %vm1606, %v1601, %v1549
  %v1611 = vsel %vm1606, %v1602, %v1551
  %v1612 = vsel %vm1606, %v1603, %v1553
  %v1613 = vsel %vm1606, %v1604, %v1555
  %v1614 = vsel %vm1606, %v1605, %v1557
  %vm1615 = vcmask 195584
  %v1616 = vsel %vm1615, %v1607, %v1575
  %v1617 = vsel %vm1615, %v1608, %v1577
  %v1618 = vsel %vm1615, %v1609, %v1579
  %v1619 = vsel %vm1615, %v1610, %v1581
  %v1620 = vsel %vm1615, %v1611, %v1583
  %v1621 = vsel %vm1615, %v1612, %v1585
  %v1622 = vsel %vm1615, %v1613, %v1587
  %v1623 = vsel %vm1615, %v1614, %v1589
  %v1624 = vpack.c.bf16 %v1617, %v1616
  %v1625 = vpack.c.bf16 %v1619, %v1618
  %v1626 = vpack.c.bf16 %v1621, %v1620
  %v1627 = vpack.c.bf16 %v1623, %v1622
  %v1628 = vld [vmem:[%s4] sm:$0xf]
  %v1629 = vld [vmem:[%s4 + $0x4] sm:$0xf]
  %v1630 = vld [vmem:[%s4 + $0x8] sm:$0xf]
  %v1631 = vld [vmem:[%s4 + $0xc] sm:$0xf]
  %v1632 = vlaneseq
  %v1633 = vshrl.u32 %v1632, 7
  %v1634 = vsub.s32 1, %v1633
  %v1635 = vrot.slane %v190, %v1634
  %v1640 = vunpack.c.l.b16 %v1628
  %v1641 = vunpack.c.l.b16 %v1629
  %v1642 = vunpack.c.l.b16 %v1630
  %v1643 = vunpack.c.l.b16 %v1631
  %v1644 = vpack.c.b16 %v1641, %v1640
  %v1645 = vpack.c.b16 %v1643, %v1642
  %v1649 = vsel %vm112, %v1624, 0
  %v1652 = vsel %vm112, %v1625, 0
  %v1655 = vsel %vm112, %v1626, 0
  %v1658 = vsel %vm112, %v1627, 0
  %1660 = vmatprep.subr.bf16.mxu0 0
  %1661 = vmatpush1.bf16.msra.mxu0 0
  %1662 = vmatprep.subr.bf16.mxu0 0
  %1663 = vmatpush1.bf16.msra.mxu0 0
  %1664 = vmatprep.subr.bf16.mxu0 0
  %1665 = vmatpush1.bf16.msra.mxu0 0
  %1666 = vmatprep.subr.bf16.mxu0 0
  %1667 = vmatpush1.bf16.msra.mxu0 0
  %1668 = vmatprep.subr.bf16.mxu0 0
  %1669 = vmatpush1.bf16.msra.mxu0 0
  %1670 = vmatprep.subr.bf16.mxu0 0
  %1671 = vmatpush1.bf16.msra.mxu0 0
  %1672 = vmatprep.subr.bf16.mxu0 0
  %1673 = vmatpush1.bf16.msra.mxu0 %v1645
  %1674 = vmatprep.subr.bf16.mxu0 0
  %1675 = vmatpush1.bf16.msra.mxu0 %v1644
  %1676 = vmatprep.subr.bf16.mxu0 0
  %1677 = vmatpush2.bf16.msra.mxu0 0
  %1678 = vmatprep.subr.bf16.mxu0 0
  %1679 = vmatpush2.bf16.msra.mxu0 0
  %1680 = vmatprep.subr.bf16.mxu0 0
  %1681 = vmatpush2.bf16.msra.mxu0 0
  %1682 = vmatprep.subr.bf16.mxu0 0
  %1683 = vmatpush2.bf16.msra.mxu0 0
  %1684 = vmatprep.subr.bf16.mxu0 0
  %1685 = vmatpush2.bf16.msra.mxu0 0
  %1686 = vmatprep.subr.bf16.mxu0 0
  %1687 = vmatpush2.bf16.msra.mxu0 0
  %1688 = vmatprep.subr.bf16.mxu0 0
  %1689 = vmatpush2.bf16.msra.mxu0 0
  %1690 = vmatprep.subr.bf16.mxu0 0
  %1691 = vmatpush2.bf16.msra.mxu0 0
  %1692 = vmatprep.mubr.bf16.mxu0 0
  %1693 = vmatmul.mubr.bf16.gmra.mxu0 %v1649
  %v1694 = vpop.f32.mrf.mxu0
  %v1695 = vadd.f32 %v1635, %v1694
  %v1696 = vpop.f32.mrf.mxu0
  %v1697 = vpop.f32.mrf.mxu0
  %v1698 = vadd.f32 %v1635, %v1697
  %v1699 = vpop.f32.mrf.mxu0
  %1700 = vmatprep.mubr.bf16.mxu0 0
  %1701 = vmatmul.mubr.bf16.gmra.mxu0 %v1652
  %v1702 = vpop.f32.mrf.mxu0
  %v1703 = vadd.f32 %v1635, %v1702
  %v1704 = vpop.f32.mrf.mxu0
  %v1705 = vpop.f32.mrf.mxu0
  %v1706 = vadd.f32 %v1635, %v1705
  %v1707 = vpop.f32.mrf.mxu0
  %1708 = vmatprep.mubr.bf16.mxu0 0
  %1709 = vmatmul.mubr.bf16.gmra.mxu0 %v1655
  %v1710 = vpop.f32.mrf.mxu0
  %v1711 = vadd.f32 %v1635, %v1710
  %v1712 = vpop.f32.mrf.mxu0
  %v1713 = vpop.f32.mrf.mxu0
  %v1714 = vadd.f32 %v1635, %v1713
  %v1715 = vpop.f32.mrf.mxu0
  %1716 = vmatprep.mubr.bf16.mxu0 0
  %1717 = vmatmul.mubr.bf16.gmra.mxu0 %v1658
  %v1718 = vpop.f32.mrf.mxu0
  %v1719 = vadd.f32 %v1635, %v1718
  %v1720 = vpop.f32.mrf.mxu0
  %v1721 = vpop.f32.mrf.mxu0
  %v1722 = vadd.f32 %v1635, %v1721
  %v1723 = vpop.f32.mrf.mxu0
  %1724 = vdwg.mxu0
  %v1725 = vadd.f32 %v160, %v1695
  %v1726 = vadd.f32 %v163, %v1698
  %v1727 = vadd.f32 %v168, %v1703
  %v1728 = vadd.f32 %v171, %v1706
  %v1729 = vadd.f32 %v176, %v1711
  %v1730 = vadd.f32 %v179, %v1714
  %v1731 = vadd.f32 %v184, %v1719
  %v1732 = vadd.f32 %v187, %v1722
  %v1733 = vsel %vm112, %v1725, 0.0
  %1734 = vadd.xlane.f32.xlu0 %v1733
  %v1735 = vpop.xlane.xlu0 %1734
  %v1736 = vsel %vm112, %v1726, 0.0
  %1737 = vadd.xlane.f32.xlu0 %v1736
  %v1738 = vpop.xlane.xlu0 %1737
  %v1739 = vsel %vm112, %v1727, 0.0
  %1740 = vadd.xlane.f32.xlu0 %v1739
  %v1741 = vpop.xlane.xlu0 %1740
  %v1742 = vsel %vm112, %v1728, 0.0
  %1743 = vadd.xlane.f32.xlu0 %v1742
  %v1744 = vpop.xlane.xlu0 %1743
  %v1745 = vsel %vm112, %v1729, 0.0
  %1746 = vadd.xlane.f32.xlu0 %v1745
  %v1747 = vpop.xlane.xlu0 %1746
  %v1748 = vsel %vm112, %v1730, 0.0
  %1749 = vadd.xlane.f32.xlu0 %v1748
  %v1750 = vpop.xlane.xlu0 %1749
  %v1751 = vsel %vm112, %v1731, 0.0
  %1752 = vadd.xlane.f32.xlu0 %v1751
  %v1753 = vpop.xlane.xlu0 %1752
  %v1754 = vsel %vm112, %v1732, 0.0
  %1755 = vadd.xlane.f32.xlu0 %v1754
  %v1756 = vpop.xlane.xlu0 %1755
  %v1757 = vrcp.pop 32.0
  %v1758 = vmul.f32 %v1735, %v1757
  %v1759 = vmul.f32 %v1738, %v1757
  %v1760 = vmul.f32 %v1741, %v1757
  %v1761 = vmul.f32 %v1744, %v1757
  %v1762 = vmul.f32 %v1747, %v1757
  %v1763 = vmul.f32 %v1750, %v1757
  %v1764 = vmul.f32 %v1753, %v1757
  %v1765 = vmul.f32 %v1756, %v1757
  %v1766 = vsub.f32 %v1725, %v1758
  %v1767 = vsub.f32 %v1726, %v1759
  %v1768 = vsub.f32 %v1727, %v1760
  %v1769 = vsub.f32 %v1728, %v1761
  %v1770 = vsub.f32 %v1729, %v1762
  %v1771 = vsub.f32 %v1730, %v1763
  %v1772 = vsub.f32 %v1731, %v1764
  %v1773 = vsub.f32 %v1732, %v1765
  %v1774 = vmul.f32 %v1766, %v1766
  %v1775 = vmul.f32 %v1767, %v1767
  %v1776 = vmul.f32 %v1768, %v1768
  %v1777 = vmul.f32 %v1769, %v1769
  %v1778 = vmul.f32 %v1770, %v1770
  %v1779 = vmul.f32 %v1771, %v1771
  %v1780 = vmul.f32 %v1772, %v1772
  %v1781 = vmul.f32 %v1773, %v1773
  %v1782 = vsel %vm112, %v1774, 0.0
  %1783 = vadd.xlane.f32.xlu0 %v1782
  %v1784 = vpop.xlane.xlu0 %1783
  %v1785 = vsel %vm112, %v1775, 0.0
  %1786 = vadd.xlane.f32.xlu0 %v1785
  %v1787 = vpop.xlane.xlu0 %1786
  %v1788 = vsel %vm112, %v1776, 0.0
  %1789 = vadd.xlane.f32.xlu0 %v1788
  %v1790 = vpop.xlane.xlu0 %1789
  %v1791 = vsel %vm112, %v1777, 0.0
  %1792 = vadd.xlane.f32.xlu0 %v1791
  %v1793 = vpop.xlane.xlu0 %1792
  %v1794 = vsel %vm112, %v1778, 0.0
  %1795 = vadd.xlane.f32.xlu0 %v1794
  %v1796 = vpop.xlane.xlu0 %1795
  %v1797 = vsel %vm112, %v1779, 0.0
  %1798 = vadd.xlane.f32.xlu0 %v1797
  %v1799 = vpop.xlane.xlu0 %1798
  %v1800 = vsel %vm112, %v1780, 0.0
  %1801 = vadd.xlane.f32.xlu0 %v1800
  %v1802 = vpop.xlane.xlu0 %1801
  %v1803 = vsel %vm112, %v1781, 0.0
  %1804 = vadd.xlane.f32.xlu0 %v1803
  %v1805 = vpop.xlane.xlu0 %1804
  %v1806 = vmul.f32 %v1784, %v1757
  %v1807 = vmul.f32 %v1787, %v1757
  %v1808 = vmul.f32 %v1790, %v1757
  %v1809 = vmul.f32 %v1793, %v1757
  %v1810 = vmul.f32 %v1796, %v1757
  %v1811 = vmul.f32 %v1799, %v1757
  %v1812 = vmul.f32 %v1802, %v1757
  %v1813 = vmul.f32 %v1805, %v1757
  %v1814 = vadd.f32 %v1806, 1e-05
  %v1815 = vadd.f32 %v1807, 1e-05
  %v1816 = vadd.f32 %v1808, 1e-05
  %v1817 = vadd.f32 %v1809, 1e-05
  %v1818 = vadd.f32 %v1810, 1e-05
  %v1819 = vadd.f32 %v1811, 1e-05
  %v1820 = vadd.f32 %v1812, 1e-05
  %v1821 = vadd.f32 %v1813, 1e-05
  %v1822 = vrsqrt.pop %v1814
  %v1823 = vrsqrt.pop %v1815
  %v1824 = vrsqrt.pop %v1816
  %v1825 = vrsqrt.pop %v1817
  %v1826 = vrsqrt.pop %v1818
  %v1827 = vrsqrt.pop %v1819
  %v1828 = vrsqrt.pop %v1820
  %v1829 = vrsqrt.pop %v1821
  %v1830 = vmul.f32 %v1766, %v1822
  %v1831 = vmul.f32 %v1767, %v1823
  %v1832 = vmul.f32 %v1768, %v1824
  %v1833 = vmul.f32 %v1769, %v1825
  %v1834 = vmul.f32 %v1770, %v1826
  %v1835 = vmul.f32 %v1771, %v1827
  %v1836 = vmul.f32 %v1772, %v1828
  %v1837 = vmul.f32 %v1773, %v1829
  %v1838 = vlaneseq
  %v1839 = vshrl.u32 %v1838, 7
  %v1840 = vsub.s32 2, %v1839
  %v1841 = vrot.slane %v190, %v1840
  %v1842 = vmul.f32 %v1830, %v1841
  %v1843 = vmul.f32 %v1831, %v1841
  %v1844 = vmul.f32 %v1832, %v1841
  %v1845 = vmul.f32 %v1833, %v1841
  %v1846 = vmul.f32 %v1834, %v1841
  %v1847 = vmul.f32 %v1835, %v1841
  %v1848 = vmul.f32 %v1836, %v1841
  %v1849 = vmul.f32 %v1837, %v1841
  %v1850 = vlaneseq
  %v1851 = vshrl.u32 %v1850, 7
  %v1852 = vsub.s32 3, %v1851
  %v1853 = vrot.slane %v190, %v1852
  %v1854 = vadd.f32 %v1842, %v1853
  %v1855 = vadd.f32 %v1843, %v1853
  %v1856 = vadd.f32 %v1844, %v1853
  %v1857 = vadd.f32 %v1845, %v1853
  %v1858 = vadd.f32 %v1846, %v1853
  %v1859 = vadd.f32 %v1847, %v1853
  %v1860 = vadd.f32 %v1848, %v1853
  %v1861 = vadd.f32 %v1849, %v1853
  %v1862 = vpack.c.bf16 %v1855, %v1854
  %v1863 = vpack.c.bf16 %v1857, %v1856
  %v1864 = vpack.c.bf16 %v1859, %v1858
  %v1865 = vpack.c.bf16 %v1861, %v1860
  %v1866 = vld [vmem:[%s5] sm:$0xf]
  %v1867 = vld [vmem:[%s5 + $0x4] sm:$0xf]
  %v1868 = vld [vmem:[%s5 + $0x8] sm:$0xf]
  %v1869 = vld [vmem:[%s5 + $0xc] sm:$0xf]
  %v1870 = vlaneseq
  %v1871 = vshrl.u32 %v1870, 7
  %v1872 = vsub.s32 4, %v1871
  %v1873 = vrot.slane %v190, %v1872
  %v1878 = vunpack.c.l.b16 %v1866
  %v1879 = vunpack.c.l.b16 %v1867
  %v1880 = vunpack.c.l.b16 %v1868
  %v1881 = vunpack.c.l.b16 %v1869
  %v1882 = vpack.c.b16 %v1879, %v1878
  %v1883 = vpack.c.b16 %v1881, %v1880
  %v1887 = vsel %vm112, %v1862, 0
  %v1890 = vsel %vm112, %v1863, 0
  %v1893 = vsel %vm112, %v1864, 0
  %v1896 = vsel %vm112, %v1865, 0
  %1898 = vmatprep.subr.bf16.mxu0 0
  %1899 = vmatpush1.bf16.msra.mxu0 0
  %1900 = vmatprep.subr.bf16.mxu0 0
  %1901 = vmatpush1.bf16.msra.mxu0 0
  %1902 = vmatprep.subr.bf16.mxu0 0
  %1903 = vmatpush1.bf16.msra.mxu0 0
  %1904 = vmatprep.subr.bf16.mxu0 0
  %1905 = vmatpush1.bf16.msra.mxu0 0
  %1906 = vmatprep.subr.bf16.mxu0 0
  %1907 = vmatpush1.bf16.msra.mxu0 0
  %1908 = vmatprep.subr.bf16.mxu0 0
  %1909 = vmatpush1.bf16.msra.mxu0 0
  %1910 = vmatprep.subr.bf16.mxu0 0
  %1911 = vmatpush1.bf16.msra.mxu0 %v1883
  %1912 = vmatprep.subr.bf16.mxu0 0
  %1913 = vmatpush1.bf16.msra.mxu0 %v1882
  %1914 = vmatprep.subr.bf16.mxu0 0
  %1915 = vmatpush2.bf16.msra.mxu0 0
  %1916 = vmatprep.subr.bf16.mxu0 0
  %1917 = vmatpush2.bf16.msra.mxu0 0
  %1918 = vmatprep.subr.bf16.mxu0 0
  %1919 = vmatpush2.bf16.msra.mxu0 0
  %1920 = vmatprep.subr.bf16.mxu0 0
  %1921 = vmatpush2.bf16.msra.mxu0 0
  %1922 = vmatprep.subr.bf16.mxu0 0
  %1923 = vmatpush2.bf16.msra.mxu0 0
  %1924 = vmatprep.subr.bf16.mxu0 0
  %1925 = vmatpush2.bf16.msra.mxu0 0
  %1926 = vmatprep.subr.bf16.mxu0 0
  %1927 = vmatpush2.bf16.msra.mxu0 0
  %1928 = vmatprep.subr.bf16.mxu0 0
  %1929 = vmatpush2.bf16.msra.mxu0 0
  %1930 = vmatprep.mubr.bf16.mxu0 0
  %1931 = vmatmul.mubr.bf16.gmra.mxu0 %v1887
  %v1932 = vpop.f32.mrf.mxu0
  %v1933 = vadd.f32 %v1873, %v1932
  %v1934 = vpop.f32.mrf.mxu0
  %v1935 = vpop.f32.mrf.mxu0
  %v1936 = vadd.f32 %v1873, %v1935
  %v1937 = vpop.f32.mrf.mxu0
  %1938 = vmatprep.mubr.bf16.mxu0 0
  %1939 = vmatmul.mubr.bf16.gmra.mxu0 %v1890
  %v1940 = vpop.f32.mrf.mxu0
  %v1941 = vadd.f32 %v1873, %v1940
  %v1942 = vpop.f32.mrf.mxu0
  %v1943 = vpop.f32.mrf.mxu0
  %v1944 = vadd.f32 %v1873, %v1943
  %v1945 = vpop.f32.mrf.mxu0
  %1946 = vmatprep.mubr.bf16.mxu0 0
  %1947 = vmatmul.mubr.bf16.gmra.mxu0 %v1893
  %v1948 = vpop.f32.mrf.mxu0
  %v1949 = vadd.f32 %v1873, %v1948
  %v1950 = vpop.f32.mrf.mxu0
  %v1951 = vpop.f32.mrf.mxu0
  %v1952 = vadd.f32 %v1873, %v1951
  %v1953 = vpop.f32.mrf.mxu0
  %1954 = vmatprep.mubr.bf16.mxu0 0
  %1955 = vmatmul.mubr.bf16.gmra.mxu0 %v1896
  %v1956 = vpop.f32.mrf.mxu0
  %v1957 = vadd.f32 %v1873, %v1956
  %v1958 = vpop.f32.mrf.mxu0
  %v1959 = vpop.f32.mrf.mxu0
  %v1960 = vadd.f32 %v1873, %v1959
  %v1961 = vpop.f32.mrf.mxu0
  %1962 = vdwg.mxu0
  %v1963 = vmul.f32 %v1933, 0.5
  %v1964 = vmul.f32 %v1936, 0.5
  %v1965 = vmul.f32 %v1941, 0.5
  %v1966 = vmul.f32 %v1944, 0.5
  %v1967 = vmul.f32 %v1949, 0.5
  %v1968 = vmul.f32 %v1952, 0.5
  %v1969 = vmul.f32 %v1957, 0.5
  %v1970 = vmul.f32 %v1960, 0.5
  %v1971 = vmul.f32 %v1933, 0.044715
  %v1972 = vmul.f32 %v1936, 0.044715
  %v1973 = vmul.f32 %v1941, 0.044715
  %v1974 = vmul.f32 %v1944, 0.044715
  %v1975 = vmul.f32 %v1949, 0.044715
  %v1976 = vmul.f32 %v1952, 0.044715
  %v1977 = vmul.f32 %v1957, 0.044715
  %v1978 = vmul.f32 %v1960, 0.044715
  %v1979 = vmul.f32 %v1971, %v1933
  %v1980 = vmul.f32 %v1972, %v1936
  %v1981 = vmul.f32 %v1973, %v1941
  %v1982 = vmul.f32 %v1974, %v1944
  %v1983 = vmul.f32 %v1975, %v1949
  %v1984 = vmul.f32 %v1976, %v1952
  %v1985 = vmul.f32 %v1977, %v1957
  %v1986 = vmul.f32 %v1978, %v1960
  %v1987 = vmul.f32 %v1979, %v1933
  %v1988 = vmul.f32 %v1980, %v1936
  %v1989 = vmul.f32 %v1981, %v1941
  %v1990 = vmul.f32 %v1982, %v1944
  %v1991 = vmul.f32 %v1983, %v1949
  %v1992 = vmul.f32 %v1984, %v1952
  %v1993 = vmul.f32 %v1985, %v1957
  %v1994 = vmul.f32 %v1986, %v1960
  %v1995 = vadd.f32 %v1933, %v1987
  %v1996 = vadd.f32 %v1936, %v1988
  %v1997 = vadd.f32 %v1941, %v1989
  %v1998 = vadd.f32 %v1944, %v1990
  %v1999 = vadd.f32 %v1949, %v1991
  %v2000 = vadd.f32 %v1952, %v1992
  %v2001 = vadd.f32 %v1957, %v1993
  %v2002 = vadd.f32 %v1960, %v1994
  %v2003 = vmul.f32 %v1995, 0.7978846
  %v2004 = vmul.f32 %v1996, 0.7978846
  %v2005 = vmul.f32 %v1997, 0.7978846
  %v2006 = vmul.f32 %v1998, 0.7978846
  %v2007 = vmul.f32 %v1999, 0.7978846
  %v2008 = vmul.f32 %v2000, 0.7978846
  %v2009 = vmul.f32 %v2001, 0.7978846
  %v2010 = vmul.f32 %v2002, 0.7978846
  %v2011 = vtanh.pop %v2003
  %v2012 = vtanh.pop %v2004
  %v2013 = vtanh.pop %v2005
  %v2014 = vtanh.pop %v2006
  %v2015 = vtanh.pop %v2007
  %v2016 = vtanh.pop %v2008
  %v2017 = vtanh.pop %v2009
  %v2018 = vtanh.pop %v2010
  %v2019 = vadd.f32 %v2011, 1.0
  %v2020 = vadd.f32 %v2012, 1.0
  %v2021 = vadd.f32 %v2013, 1.0
  %v2022 = vadd.f32 %v2014, 1.0
  %v2023 = vadd.f32 %v2015, 1.0
  %v2024 = vadd.f32 %v2016, 1.0
  %v2025 = vadd.f32 %v2017, 1.0
  %v2026 = vadd.f32 %v2018, 1.0
  %v2027 = vmul.f32 %v1963, %v2019
  %v2028 = vmul.f32 %v1964, %v2020
  %v2029 = vmul.f32 %v1965, %v2021
  %v2030 = vmul.f32 %v1966, %v2022
  %v2031 = vmul.f32 %v1967, %v2023
  %v2032 = vmul.f32 %v1968, %v2024
  %v2033 = vmul.f32 %v1969, %v2025
  %v2034 = vmul.f32 %v1970, %v2026
  %v2035 = vpack.c.bf16 %v2028, %v2027
  %v2036 = vpack.c.bf16 %v2030, %v2029
  %v2037 = vpack.c.bf16 %v2032, %v2031
  %v2038 = vpack.c.bf16 %v2034, %v2033
  %v2039 = vld [vmem:[%s6] sm:$0xf]
  %v2040 = vld [vmem:[%s6 + $0x4] sm:$0xf]
  %v2041 = vld [vmem:[%s6 + $0x8] sm:$0xf]
  %v2042 = vld [vmem:[%s6 + $0xc] sm:$0xf]
  %v2043 = vld [vmem:[%s6 + $0x10] sm:$0xf]
  %v2044 = vld [vmem:[%s6 + $0x14] sm:$0xf]
  %v2045 = vld [vmem:[%s6 + $0x18] sm:$0xf]
  %v2046 = vld [vmem:[%s6 + $0x1c] sm:$0xf]
  %v2047 = vlaneseq
  %v2048 = vshrl.u32 %v2047, 7
  %v2049 = vsub.s32 5, %v2048
  %v2050 = vrot.slane %v190, %v2049
  %v2059 = vunpack.c.l.b16 %v2039
  %v2060 = vunpack.c.l.b16 %v2040
  %v2061 = vunpack.c.l.b16 %v2041
  %v2062 = vunpack.c.l.b16 %v2042
  %v2063 = vunpack.c.l.b16 %v2043
  %v2064 = vunpack.c.l.b16 %v2044
  %v2065 = vunpack.c.l.b16 %v2045
  %v2066 = vunpack.c.l.b16 %v2046
  %v2067 = vpack.c.b16 %v2060, %v2059
  %v2068 = vpack.c.b16 %v2062, %v2061
  %v2069 = vpack.c.b16 %v2064, %v2063
  %v2070 = vpack.c.b16 %v2066, %v2065
  %v2076 = vsel %vm414, %v2035, 0
  %v2079 = vsel %vm414, %v2036, 0
  %v2082 = vsel %vm414, %v2037, 0
  %v2085 = vsel %vm414, %v2038, 0
  %2087 = vmatprep.subr.bf16.mxu0 0
  %2088 = vmatpush1.bf16.msra.mxu0 0
  %2089 = vmatprep.subr.bf16.mxu0 0
  %2090 = vmatpush1.bf16.msra.mxu0 0
  %2091 = vmatprep.subr.bf16.mxu0 0
  %2092 = vmatpush1.bf16.msra.mxu0 0
  %2093 = vmatprep.subr.bf16.mxu0 0
  %2094 = vmatpush1.bf16.msra.mxu0 0
  %2095 = vmatprep.subr.bf16.mxu0 0
  %2096 = vmatpush1.bf16.msra.mxu0 %v2070
  %2097 = vmatprep.subr.bf16.mxu0 0
  %2098 = vmatpush1.bf16.msra.mxu0 %v2069
  %2099 = vmatprep.subr.bf16.mxu0 0
  %2100 = vmatpush1.bf16.msra.mxu0 %v2068
  %2101 = vmatprep.subr.bf16.mxu0 0
  %2102 = vmatpush1.bf16.msra.mxu0 %v2067
  %2103 = vmatprep.subr.bf16.mxu0 0
  %2104 = vmatpush2.bf16.msra.mxu0 0
  %2105 = vmatprep.subr.bf16.mxu0 0
  %2106 = vmatpush2.bf16.msra.mxu0 0
  %2107 = vmatprep.subr.bf16.mxu0 0
  %2108 = vmatpush2.bf16.msra.mxu0 0
  %2109 = vmatprep.subr.bf16.mxu0 0
  %2110 = vmatpush2.bf16.msra.mxu0 0
  %2111 = vmatprep.subr.bf16.mxu0 0
  %2112 = vmatpush2.bf16.msra.mxu0 0
  %2113 = vmatprep.subr.bf16.mxu0 0
  %2114 = vmatpush2.bf16.msra.mxu0 0
  %2115 = vmatprep.subr.bf16.mxu0 0
  %2116 = vmatpush2.bf16.msra.mxu0 0
  %2117 = vmatprep.subr.bf16.mxu0 0
  %2118 = vmatpush2.bf16.msra.mxu0 0
  %2119 = vmatprep.mubr.bf16.mxu0 0
  %2120 = vmatmul.mubr.bf16.gmra.mxu0 %v2076
  %v2121 = vpop.f32.mrf.mxu0
  %v2122 = vadd.f32 %v2050, %v2121
  %v2123 = vpop.f32.mrf.mxu0
  %v2124 = vpop.f32.mrf.mxu0
  %v2125 = vadd.f32 %v2050, %v2124
  %v2126 = vpop.f32.mrf.mxu0
  %2127 = vmatprep.mubr.bf16.mxu0 0
  %2128 = vmatmul.mubr.bf16.gmra.mxu0 %v2079
  %v2129 = vpop.f32.mrf.mxu0
  %v2130 = vadd.f32 %v2050, %v2129
  %v2131 = vpop.f32.mrf.mxu0
  %v2132 = vpop.f32.mrf.mxu0
  %v2133 = vadd.f32 %v2050, %v2132
  %v2134 = vpop.f32.mrf.mxu0
  %2135 = vmatprep.mubr.bf16.mxu0 0
  %2136 = vmatmul.mubr.bf16.gmra.mxu0 %v2082
  %v2137 = vpop.f32.mrf.mxu0
  %v2138 = vadd.f32 %v2050, %v2137
  %v2139 = vpop.f32.mrf.mxu0
  %v2140 = vpop.f32.mrf.mxu0
  %v2141 = vadd.f32 %v2050, %v2140
  %v2142 = vpop.f32.mrf.mxu0
  %2143 = vmatprep.mubr.bf16.mxu0 0
  %2144 = vmatmul.mubr.bf16.gmra.mxu0 %v2085
  %v2145 = vpop.f32.mrf.mxu0
  %v2146 = vadd.f32 %v2050, %v2145
  %v2147 = vpop.f32.mrf.mxu0
  %v2148 = vpop.f32.mrf.mxu0
  %v2149 = vadd.f32 %v2050, %v2148
  %v2150 = vpop.f32.mrf.mxu0
  %2151 = vdwg.mxu0
  %v2152 = vadd.f32 %v1854, %v2122
  %v2153 = vadd.f32 %v1855, %v2125
  %v2154 = vadd.f32 %v1856, %v2130
  %v2155 = vadd.f32 %v1857, %v2133
  %v2156 = vadd.f32 %v1858, %v2138
  %v2157 = vadd.f32 %v1859, %v2141
  %v2158 = vadd.f32 %v1860, %v2146
  %v2159 = vadd.f32 %v1861, %v2149
  %v2160 = vsel %vm112, %v2152, 0.0
  %2161 = vadd.xlane.f32.xlu0 %v2160
  %v2162 = vpop.xlane.xlu0 %2161
  %v2163 = vsel %vm112, %v2153, 0.0
  %2164 = vadd.xlane.f32.xlu0 %v2163
  %v2165 = vpop.xlane.xlu0 %2164
  %v2166 = vsel %vm112, %v2154, 0.0
  %2167 = vadd.xlane.f32.xlu0 %v2166
  %v2168 = vpop.xlane.xlu0 %2167
  %v2169 = vsel %vm112, %v2155, 0.0
  %2170 = vadd.xlane.f32.xlu0 %v2169
  %v2171 = vpop.xlane.xlu0 %2170
  %v2172 = vsel %vm112, %v2156, 0.0
  %2173 = vadd.xlane.f32.xlu0 %v2172
  %v2174 = vpop.xlane.xlu0 %2173
  %v2175 = vsel %vm112, %v2157, 0.0
  %2176 = vadd.xlane.f32.xlu0 %v2175
  %v2177 = vpop.xlane.xlu0 %2176
  %v2178 = vsel %vm112, %v2158, 0.0
  %2179 = vadd.xlane.f32.xlu0 %v2178
  %v2180 = vpop.xlane.xlu0 %2179
  %v2181 = vsel %vm112, %v2159, 0.0
  %2182 = vadd.xlane.f32.xlu0 %v2181
  %v2183 = vpop.xlane.xlu0 %2182
  %v2184 = vmul.f32 %v2162, %v1757
  %v2185 = vmul.f32 %v2165, %v1757
  %v2186 = vmul.f32 %v2168, %v1757
  %v2187 = vmul.f32 %v2171, %v1757
  %v2188 = vmul.f32 %v2174, %v1757
  %v2189 = vmul.f32 %v2177, %v1757
  %v2190 = vmul.f32 %v2180, %v1757
  %v2191 = vmul.f32 %v2183, %v1757
  %v2192 = vsub.f32 %v2152, %v2184
  %v2193 = vsub.f32 %v2153, %v2185
  %v2194 = vsub.f32 %v2154, %v2186
  %v2195 = vsub.f32 %v2155, %v2187
  %v2196 = vsub.f32 %v2156, %v2188
  %v2197 = vsub.f32 %v2157, %v2189
  %v2198 = vsub.f32 %v2158, %v2190
  %v2199 = vsub.f32 %v2159, %v2191
  %v2200 = vmul.f32 %v2192, %v2192
  %v2201 = vmul.f32 %v2193, %v2193
  %v2202 = vmul.f32 %v2194, %v2194
  %v2203 = vmul.f32 %v2195, %v2195
  %v2204 = vmul.f32 %v2196, %v2196
  %v2205 = vmul.f32 %v2197, %v2197
  %v2206 = vmul.f32 %v2198, %v2198
  %v2207 = vmul.f32 %v2199, %v2199
  %v2208 = vsel %vm112, %v2200, 0.0
  %2209 = vadd.xlane.f32.xlu0 %v2208
  %v2210 = vpop.xlane.xlu0 %2209
  %v2211 = vsel %vm112, %v2201, 0.0
  %2212 = vadd.xlane.f32.xlu0 %v2211
  %v2213 = vpop.xlane.xlu0 %2212
  %v2214 = vsel %vm112, %v2202, 0.0
  %2215 = vadd.xlane.f32.xlu0 %v2214
  %v2216 = vpop.xlane.xlu0 %2215
  %v2217 = vsel %vm112, %v2203, 0.0
  %2218 = vadd.xlane.f32.xlu0 %v2217
  %v2219 = vpop.xlane.xlu0 %2218
  %v2220 = vsel %vm112, %v2204, 0.0
  %2221 = vadd.xlane.f32.xlu0 %v2220
  %v2222 = vpop.xlane.xlu0 %2221
  %v2223 = vsel %vm112, %v2205, 0.0
  %2224 = vadd.xlane.f32.xlu0 %v2223
  %v2225 = vpop.xlane.xlu0 %2224
  %v2226 = vsel %vm112, %v2206, 0.0
  %2227 = vadd.xlane.f32.xlu0 %v2226
  %v2228 = vpop.xlane.xlu0 %2227
  %v2229 = vsel %vm112, %v2207, 0.0
  %2230 = vadd.xlane.f32.xlu0 %v2229
  %v2231 = vpop.xlane.xlu0 %2230
  %v2232 = vmul.f32 %v2210, %v1757
  %v2233 = vmul.f32 %v2213, %v1757
  %v2234 = vmul.f32 %v2216, %v1757
  %v2235 = vmul.f32 %v2219, %v1757
  %v2236 = vmul.f32 %v2222, %v1757
  %v2237 = vmul.f32 %v2225, %v1757
  %v2238 = vmul.f32 %v2228, %v1757
  %v2239 = vmul.f32 %v2231, %v1757
  %v2240 = vadd.f32 %v2232, 1e-05
  %v2241 = vadd.f32 %v2233, 1e-05
  %v2242 = vadd.f32 %v2234, 1e-05
  %v2243 = vadd.f32 %v2235, 1e-05
  %v2244 = vadd.f32 %v2236, 1e-05
  %v2245 = vadd.f32 %v2237, 1e-05
  %v2246 = vadd.f32 %v2238, 1e-05
  %v2247 = vadd.f32 %v2239, 1e-05
  %v2248 = vrsqrt.pop %v2240
  %v2249 = vrsqrt.pop %v2241
  %v2250 = vrsqrt.pop %v2242
  %v2251 = vrsqrt.pop %v2243
  %v2252 = vrsqrt.pop %v2244
  %v2253 = vrsqrt.pop %v2245
  %v2254 = vrsqrt.pop %v2246
  %v2255 = vrsqrt.pop %v2247
  %v2256 = vmul.f32 %v2192, %v2248
  %v2257 = vmul.f32 %v2193, %v2249
  %v2258 = vmul.f32 %v2194, %v2250
  %v2259 = vmul.f32 %v2195, %v2251
  %v2260 = vmul.f32 %v2196, %v2252
  %v2261 = vmul.f32 %v2197, %v2253
  %v2262 = vmul.f32 %v2198, %v2254
  %v2263 = vmul.f32 %v2199, %v2255
  %v2264 = vlaneseq
  %v2265 = vshrl.u32 %v2264, 7
  %v2266 = vsub.s32 6, %v2265
  %v2267 = vrot.slane %v190, %v2266
  %v2268 = vmul.f32 %v2256, %v2267
  %v2269 = vmul.f32 %v2257, %v2267
  %v2270 = vmul.f32 %v2258, %v2267
  %v2271 = vmul.f32 %v2259, %v2267
  %v2272 = vmul.f32 %v2260, %v2267
  %v2273 = vmul.f32 %v2261, %v2267
  %v2274 = vmul.f32 %v2262, %v2267
  %v2275 = vmul.f32 %v2263, %v2267
  %v2276 = vlaneseq
  %v2277 = vshrl.u32 %v2276, 7
  %v2278 = vsub.s32 7, %v2277
  %v2279 = vrot.slane %v190, %v2278
  %v2280 = vadd.f32 %v2268, %v2279
  %v2281 = vadd.f32 %v2269, %v2279
  %v2282 = vadd.f32 %v2270, %v2279
  %v2283 = vadd.f32 %v2271, %v2279
  %v2284 = vadd.f32 %v2272, %v2279
  %v2285 = vadd.f32 %v2273, %v2279
  %v2286 = vadd.f32 %v2274, %v2279
  %v2287 = vadd.f32 %v2275, %v2279
  %s2288 = scalar_lea.vmem %s7, 8
  %v2289 = vld [vmem:[%s2288] sm:$0xff]
  %v2290 = vpack.c.bf16 %v2281, %v2280
  %v2291 = vpack.c.bf16 %v2283, %v2282
  %v2292 = vpack.c.bf16 %v2285, %v2284
  %v2293 = vpack.c.bf16 %v2287, %v2286
  %s2294 = scalar_lea.vmem %s3, 16
  %v2295 = vld [vmem:[%s2294] sm:$0xf]
  %v2296 = vld [vmem:[%s2294 + $0x4] sm:$0xf]
  %v2297 = vld [vmem:[%s2294 + $0x8] sm:$0xf]
  %v2298 = vld [vmem:[%s2294 + $0xc] sm:$0xf]
  %v2299 = vlaneseq
  %v2300 = vshrl.u32 %v2299, 7
  %v2301 = vsub.s32 0, %v2300
  %v2302 = vrot.slane %v2289, %v2301
  %v2307 = vunpack.c.l.b16 %v2295
  %v2308 = vunpack.c.l.b16 %v2296
  %v2309 = vunpack.c.l.b16 %v2297
  %v2310 = vunpack.c.l.b16 %v2298
  %v2311 = vpack.c.b16 %v2308, %v2307
  %v2312 = vpack.c.b16 %v2310, %v2309
  %v2316 = vsel %vm112, %v2290, 0
  %v2319 = vsel %vm112, %v2291, 0
  %v2322 = vsel %vm112, %v2292, 0
  %v2325 = vsel %vm112, %v2293, 0
  %2327 = vmatprep.subr.bf16.mxu0 0
  %2328 = vmatpush1.bf16.msra.mxu0 0
  %2329 = vmatprep.subr.bf16.mxu0 0
  %2330 = vmatpush1.bf16.msra.mxu0 0
  %2331 = vmatprep.subr.bf16.mxu0 0
  %2332 = vmatpush1.bf16.msra.mxu0 0
  %2333 = vmatprep.subr.bf16.mxu0 0
  %2334 = vmatpush1.bf16.msra.mxu0 0
  %2335 = vmatprep.subr.bf16.mxu0 0
  %2336 = vmatpush1.bf16.msra.mxu0 0
  %2337 = vmatprep.subr.bf16.mxu0 0
  %2338 = vmatpush1.bf16.msra.mxu0 0
  %2339 = vmatprep.subr.bf16.mxu0 0
  %2340 = vmatpush1.bf16.msra.mxu0 %v2312
  %2341 = vmatprep.subr.bf16.mxu0 0
  %2342 = vmatpush1.bf16.msra.mxu0 %v2311
  %2343 = vmatprep.subr.bf16.mxu0 0
  %2344 = vmatpush2.bf16.msra.mxu0 0
  %2345 = vmatprep.subr.bf16.mxu0 0
  %2346 = vmatpush2.bf16.msra.mxu0 0
  %2347 = vmatprep.subr.bf16.mxu0 0
  %2348 = vmatpush2.bf16.msra.mxu0 0
  %2349 = vmatprep.subr.bf16.mxu0 0
  %2350 = vmatpush2.bf16.msra.mxu0 0
  %2351 = vmatprep.subr.bf16.mxu0 0
  %2352 = vmatpush2.bf16.msra.mxu0 0
  %2353 = vmatprep.subr.bf16.mxu0 0
  %2354 = vmatpush2.bf16.msra.mxu0 0
  %2355 = vmatprep.subr.bf16.mxu0 0
  %2356 = vmatpush2.bf16.msra.mxu0 0
  %2357 = vmatprep.subr.bf16.mxu0 0
  %2358 = vmatpush2.bf16.msra.mxu0 0
  %2359 = vmatprep.mubr.bf16.mxu0 0
  %2360 = vmatmul.mubr.bf16.gmra.mxu0 %v2316
  %v2361 = vpop.f32.mrf.mxu0
  %v2362 = vadd.f32 %v2302, %v2361
  %v2363 = vpop.f32.mrf.mxu0
  %v2364 = vpop.f32.mrf.mxu0
  %v2365 = vadd.f32 %v2302, %v2364
  %v2366 = vpop.f32.mrf.mxu0
  %2367 = vmatprep.mubr.bf16.mxu0 0
  %2368 = vmatmul.mubr.bf16.gmra.mxu0 %v2319
  %v2369 = vpop.f32.mrf.mxu0
  %v2370 = vadd.f32 %v2302, %v2369
  %v2371 = vpop.f32.mrf.mxu0
  %v2372 = vpop.f32.mrf.mxu0
  %v2373 = vadd.f32 %v2302, %v2372
  %v2374 = vpop.f32.mrf.mxu0
  %2375 = vmatprep.mubr.bf16.mxu0 0
  %2376 = vmatmul.mubr.bf16.gmra.mxu0 %v2322
  %v2377 = vpop.f32.mrf.mxu0
  %v2378 = vadd.f32 %v2302, %v2377
  %v2379 = vpop.f32.mrf.mxu0
  %v2380 = vpop.f32.mrf.mxu0
  %v2381 = vadd.f32 %v2302, %v2380
  %v2382 = vpop.f32.mrf.mxu0
  %2383 = vmatprep.mubr.bf16.mxu0 0
  %2384 = vmatmul.mubr.bf16.gmra.mxu0 %v2325
  %v2385 = vpop.f32.mrf.mxu0
  %v2386 = vadd.f32 %v2302, %v2385
  %v2387 = vpop.f32.mrf.mxu0
  %v2388 = vpop.f32.mrf.mxu0
  %v2389 = vadd.f32 %v2302, %v2388
  %v2390 = vpop.f32.mrf.mxu0
  %2391 = vdwg.mxu0
  %v2392 = vpack.c.bf16 %v2365, %v2362
  %v2393 = vpack.c.bf16 %v2373, %v2370
  %v2394 = vpack.c.bf16 %v2381, %v2378
  %v2395 = vpack.c.bf16 %v2389, %v2386
  %2400 = vrot.lane.b32.xlu0 %v2392, 96
  %v2401 = vpop.permute.xlu0 %2400
  %2402 = vrot.lane.b32.xlu0 %v2393, 96
  %v2403 = vpop.permute.xlu0 %2402
  %2404 = vrot.lane.b32.xlu0 %v2394, 96
  %v2405 = vpop.permute.xlu0 %2404
  %2406 = vrot.lane.b32.xlu0 %v2395, 96
  %v2407 = vpop.permute.xlu0 %2406
  %v2409 = vsel %vm308, %v2392, 0
  %v2412 = vsel %vm308, %v2393, 0
  %v2415 = vsel %vm308, %v2394, 0
  %v2418 = vsel %vm308, %v2395, 0
  %v2421 = vsel %vm308, %v2401, 0
  %v2424 = vsel %vm308, %v2403, 0
  %v2427 = vsel %vm308, %v2405, 0
  %v2430 = vsel %vm308, %v2407, 0
  %2432 = vmatprep.subr.bf16.mxu0 0
  %2433 = vmatpush1.bf16.xpose.msra.mxu0 0
  %2434 = vmatprep.subr.bf16.mxu0 0
  %2435 = vmatpush1.bf16.xpose.msra.mxu0 0
  %2436 = vmatprep.subr.bf16.mxu0 0
  %2437 = vmatpush1.bf16.xpose.msra.mxu0 0
  %2438 = vmatprep.subr.bf16.mxu0 0
  %2439 = vmatpush1.bf16.xpose.msra.mxu0 0
  %2440 = vmatprep.subr.bf16.mxu0 0
  %2441 = vmatpush1.bf16.xpose.msra.mxu0 %v2430
  %2442 = vmatprep.subr.bf16.mxu0 0
  %2443 = vmatpush1.bf16.xpose.msra.mxu0 %v2427
  %2444 = vmatprep.subr.bf16.mxu0 0
  %2445 = vmatpush1.bf16.xpose.msra.mxu0 %v2424
  %2446 = vmatprep.subr.bf16.mxu0 0
  %2447 = vmatpush1.bf16.xpose.msra.mxu0 %v2421
  %2448 = vmatprep.subr.bf16.mxu0 0
  %2449 = vmatpush2.bf16.xpose.msra.mxu0 0
  %2450 = vmatprep.subr.bf16.mxu0 0
  %2451 = vmatpush2.bf16.xpose.msra.mxu0 0
  %2452 = vmatprep.subr.bf16.mxu0 0
  %2453 = vmatpush2.bf16.xpose.msra.mxu0 0
  %2454 = vmatprep.subr.bf16.mxu0 0
  %2455 = vmatpush2.bf16.xpose.msra.mxu0 0
  %2456 = vmatprep.subr.bf16.mxu0 0
  %2457 = vmatpush2.bf16.xpose.msra.mxu0 0
  %2458 = vmatprep.subr.bf16.mxu0 0
  %2459 = vmatpush2.bf16.xpose.msra.mxu0 0
  %2460 = vmatprep.subr.bf16.mxu0 0
  %2461 = vmatpush2.bf16.xpose.msra.mxu0 0
  %2462 = vmatprep.subr.bf16.mxu0 0
  %2463 = vmatpush2.bf16.xpose.msra.mxu0 0
  %2464 = vmatprep.mubr.bf16.mxu0 0
  %2465 = vmatmul.mubr.bf16.gmra.mxu0 %v2409
  %v2466 = vpop.f32.mrf.mxu0
  %v2467 = vadd.f32 0.0, %v2466
  %v2468 = vpop.f32.mrf.mxu0
  %v2469 = vpop.f32.mrf.mxu0
  %v2470 = vadd.f32 0.0, %v2469
  %v2471 = vpop.f32.mrf.mxu0
  %2472 = vmatprep.mubr.bf16.mxu0 0
  %2473 = vmatmul.mubr.bf16.gmra.mxu0 %v2412
  %v2474 = vpop.f32.mrf.mxu0
  %v2475 = vadd.f32 0.0, %v2474
  %v2476 = vpop.f32.mrf.mxu0
  %v2477 = vpop.f32.mrf.mxu0
  %v2478 = vadd.f32 0.0, %v2477
  %v2479 = vpop.f32.mrf.mxu0
  %2480 = vmatprep.mubr.bf16.mxu0 0
  %2481 = vmatmul.mubr.bf16.gmra.mxu0 %v2415
  %v2482 = vpop.f32.mrf.mxu0
  %v2483 = vadd.f32 0.0, %v2482
  %v2484 = vpop.f32.mrf.mxu0
  %v2485 = vpop.f32.mrf.mxu0
  %v2486 = vadd.f32 0.0, %v2485
  %v2487 = vpop.f32.mrf.mxu0
  %2488 = vmatprep.mubr.bf16.mxu0 0
  %2489 = vmatmul.mubr.bf16.gmra.mxu0 %v2418
  %v2490 = vpop.f32.mrf.mxu0
  %v2491 = vadd.f32 0.0, %v2490
  %v2492 = vpop.f32.mrf.mxu0
  %v2493 = vpop.f32.mrf.mxu0
  %v2494 = vadd.f32 0.0, %v2493
  %v2495 = vpop.f32.mrf.mxu0
  %2496 = vdwg.mxu0
  %v2497 = vmul.f32 %v2467, 0.35355338
  %v2498 = vmul.f32 %v2470, 0.35355338
  %v2499 = vmul.f32 %v2475, 0.35355338
  %v2500 = vmul.f32 %v2478, 0.35355338
  %v2501 = vmul.f32 %v2483, 0.35355338
  %v2502 = vmul.f32 %v2486, 0.35355338
  %v2503 = vmul.f32 %v2491, 0.35355338
  %v2504 = vmul.f32 %v2494, 0.35355338
  %v2505 = vadd.f32 %v2497, %v51
  %v2506 = vadd.f32 %v2498, %v52
  %v2507 = vadd.f32 %v2499, %v53
  %v2508 = vadd.f32 %v2500, %v54
  %v2509 = vadd.f32 %v2501, %v55
  %v2510 = vadd.f32 %v2502, %v56
  %v2511 = vadd.f32 %v2503, %v57
  %v2512 = vadd.f32 %v2504, %v58
  %v2513 = vsel %vm414, %v2505, -inf
  %2514 = vmax.xlane.f32.xlu0 %v2513
  %v2515 = vpop.xlane.xlu0 %2514
  %v2516 = vsel %vm414, %v2506, -inf
  %2517 = vmax.xlane.f32.xlu0 %v2516
  %v2518 = vpop.xlane.xlu0 %2517
  %v2519 = vsel %vm414, %v2507, -inf
  %2520 = vmax.xlane.f32.xlu0 %v2519
  %v2521 = vpop.xlane.xlu0 %2520
  %v2522 = vsel %vm414, %v2508, -inf
  %2523 = vmax.xlane.f32.xlu0 %v2522
  %v2524 = vpop.xlane.xlu0 %2523
  %v2525 = vsel %vm414, %v2509, -inf
  %2526 = vmax.xlane.f32.xlu0 %v2525
  %v2527 = vpop.xlane.xlu0 %2526
  %v2528 = vsel %vm414, %v2510, -inf
  %2529 = vmax.xlane.f32.xlu0 %v2528
  %v2530 = vpop.xlane.xlu0 %2529
  %v2531 = vsel %vm414, %v2511, -inf
  %2532 = vmax.xlane.f32.xlu0 %v2531
  %v2533 = vpop.xlane.xlu0 %2532
  %v2534 = vsel %vm414, %v2512, -inf
  %2535 = vmax.xlane.f32.xlu0 %v2534
  %v2536 = vpop.xlane.xlu0 %2535
  %v2537 = vsub.f32 %v2505, %v2515
  %v2538 = vsub.f32 %v2506, %v2518
  %v2539 = vsub.f32 %v2507, %v2521
  %v2540 = vsub.f32 %v2508, %v2524
  %v2541 = vsub.f32 %v2509, %v2527
  %v2542 = vsub.f32 %v2510, %v2530
  %v2543 = vsub.f32 %v2511, %v2533
  %v2544 = vsub.f32 %v2512, %v2536
  %v2545 = vmul.f32 %v2537, 1.442695
  %v2546 = vpow.pop %v2545
  %v2547 = vmul.f32 %v2538, 1.442695
  %v2548 = vpow.pop %v2547
  %v2549 = vmul.f32 %v2539, 1.442695
  %v2550 = vpow.pop %v2549
  %v2551 = vmul.f32 %v2540, 1.442695
  %v2552 = vpow.pop %v2551
  %v2553 = vmul.f32 %v2541, 1.442695
  %v2554 = vpow.pop %v2553
  %v2555 = vmul.f32 %v2542, 1.442695
  %v2556 = vpow.pop %v2555
  %v2557 = vmul.f32 %v2543, 1.442695
  %v2558 = vpow.pop %v2557
  %v2559 = vmul.f32 %v2544, 1.442695
  %v2560 = vpow.pop %v2559
  %v2561 = vsel %vm414, %v2546, 0.0
  %2562 = vadd.xlane.f32.xlu0 %v2561
  %v2563 = vpop.xlane.xlu0 %2562
  %v2564 = vsel %vm414, %v2548, 0.0
  %2565 = vadd.xlane.f32.xlu0 %v2564
  %v2566 = vpop.xlane.xlu0 %2565
  %v2567 = vsel %vm414, %v2550, 0.0
  %2568 = vadd.xlane.f32.xlu0 %v2567
  %v2569 = vpop.xlane.xlu0 %2568
  %v2570 = vsel %vm414, %v2552, 0.0
  %2571 = vadd.xlane.f32.xlu0 %v2570
  %v2572 = vpop.xlane.xlu0 %2571
  %v2573 = vsel %vm414, %v2554, 0.0
  %2574 = vadd.xlane.f32.xlu0 %v2573
  %v2575 = vpop.xlane.xlu0 %2574
  %v2576 = vsel %vm414, %v2556, 0.0
  %2577 = vadd.xlane.f32.xlu0 %v2576
  %v2578 = vpop.xlane.xlu0 %2577
  %v2579 = vsel %vm414, %v2558, 0.0
  %2580 = vadd.xlane.f32.xlu0 %v2579
  %v2581 = vpop.xlane.xlu0 %2580
  %v2582 = vsel %vm414, %v2560, 0.0
  %2583 = vadd.xlane.f32.xlu0 %v2582
  %v2584 = vpop.xlane.xlu0 %2583
  %v2585 = vrcp.pop %v2563
  %v2586 = vrcp.pop %v2566
  %v2587 = vrcp.pop %v2569
  %v2588 = vrcp.pop %v2572
  %v2589 = vrcp.pop %v2575
  %v2590 = vrcp.pop %v2578
  %v2591 = vrcp.pop %v2581
  %v2592 = vrcp.pop %v2584
  %v2593 = vmul.f32 %v2546, %v2585
  %v2594 = vmul.f32 %v2548, %v2586
  %v2595 = vmul.f32 %v2550, %v2587
  %v2596 = vmul.f32 %v2552, %v2588
  %v2597 = vmul.f32 %v2554, %v2589
  %v2598 = vmul.f32 %v2556, %v2590
  %v2599 = vmul.f32 %v2558, %v2591
  %v2600 = vmul.f32 %v2560, %v2592
  %v2601 = vpack.c.bf16 %v2594, %v2593
  %v2602 = vpack.c.bf16 %v2596, %v2595
  %v2603 = vpack.c.bf16 %v2598, %v2597
  %v2604 = vpack.c.bf16 %v2600, %v2599
  %2605 = vrot.lane.b32.xlu0 %v2392, 64
  %v2606 = vpop.permute.xlu0 %2605
  %2607 = vrot.lane.b32.xlu0 %v2393, 64
  %v2608 = vpop.permute.xlu0 %2607
  %2609 = vrot.lane.b32.xlu0 %v2394, 64
  %v2610 = vpop.permute.xlu0 %2609
  %2611 = vrot.lane.b32.xlu0 %v2395, 64
  %v2612 = vpop.permute.xlu0 %2611
  %v2618 = vsel %vm414, %v2601, 0
  %v2621 = vsel %vm414, %v2602, 0
  %v2624 = vsel %vm414, %v2603, 0
  %v2627 = vsel %vm414, %v2604, 0
  %2629 = vmatprep.subr.bf16.mxu0 0
  %2630 = vmatpush1.bf16.msra.mxu0 0
  %2631 = vmatprep.subr.bf16.mxu0 0
  %2632 = vmatpush1.bf16.msra.mxu0 0
  %2633 = vmatprep.subr.bf16.mxu0 0
  %2634 = vmatpush1.bf16.msra.mxu0 0
  %2635 = vmatprep.subr.bf16.mxu0 0
  %2636 = vmatpush1.bf16.msra.mxu0 0
  %2637 = vmatprep.subr.bf16.mxu0 0
  %2638 = vmatpush1.bf16.msra.mxu0 %v2612
  %2639 = vmatprep.subr.bf16.mxu0 0
  %2640 = vmatpush1.bf16.msra.mxu0 %v2610
  %2641 = vmatprep.subr.bf16.mxu0 0
  %2642 = vmatpush1.bf16.msra.mxu0 %v2608
  %2643 = vmatprep.subr.bf16.mxu0 0
  %2644 = vmatpush1.bf16.msra.mxu0 %v2606
  %2645 = vmatprep.subr.bf16.mxu0 0
  %2646 = vmatpush2.bf16.msra.mxu0 0
  %2647 = vmatprep.subr.bf16.mxu0 0
  %2648 = vmatpush2.bf16.msra.mxu0 0
  %2649 = vmatprep.subr.bf16.mxu0 0
  %2650 = vmatpush2.bf16.msra.mxu0 0
  %2651 = vmatprep.subr.bf16.mxu0 0
  %2652 = vmatpush2.bf16.msra.mxu0 0
  %2653 = vmatprep.subr.bf16.mxu0 0
  %2654 = vmatpush2.bf16.msra.mxu0 0
  %2655 = vmatprep.subr.bf16.mxu0 0
  %2656 = vmatpush2.bf16.msra.mxu0 0
  %2657 = vmatprep.subr.bf16.mxu0 0
  %2658 = vmatpush2.bf16.msra.mxu0 0
  %2659 = vmatprep.subr.bf16.mxu0 0
  %2660 = vmatpush2.bf16.msra.mxu0 0
  %2661 = vmatprep.mubr.bf16.mxu0 0
  %2662 = vmatmul.mubr.bf16.gmra.mxu0 %v2618
  %v2663 = vpop.f32.mrf.mxu0
  %v2664 = vadd.f32 0.0, %v2663
  %v2665 = vpop.f32.mrf.mxu0
  %v2666 = vpop.f32.mrf.mxu0
  %v2667 = vadd.f32 0.0, %v2666
  %v2668 = vpop.f32.mrf.mxu0
  %2669 = vmatprep.mubr.bf16.mxu0 0
  %2670 = vmatmul.mubr.bf16.gmra.mxu0 %v2621
  %v2671 = vpop.f32.mrf.mxu0
  %v2672 = vadd.f32 0.0, %v2671
  %v2673 = vpop.f32.mrf.mxu0
  %v2674 = vpop.f32.mrf.mxu0
  %v2675 = vadd.f32 0.0, %v2674
  %v2676 = vpop.f32.mrf.mxu0
  %2677 = vmatprep.mubr.bf16.mxu0 0
  %2678 = vmatmul.mubr.bf16.gmra.mxu0 %v2624
  %v2679 = vpop.f32.mrf.mxu0
  %v2680 = vadd.f32 0.0, %v2679
  %v2681 = vpop.f32.mrf.mxu0
  %v2682 = vpop.f32.mrf.mxu0
  %v2683 = vadd.f32 0.0, %v2682
  %v2684 = vpop.f32.mrf.mxu0
  %2685 = vmatprep.mubr.bf16.mxu0 0
  %2686 = vmatmul.mubr.bf16.gmra.mxu0 %v2627
  %v2687 = vpop.f32.mrf.mxu0
  %v2688 = vadd.f32 0.0, %v2687
  %v2689 = vpop.f32.mrf.mxu0
  %v2690 = vpop.f32.mrf.mxu0
  %v2691 = vadd.f32 0.0, %v2690
  %v2692 = vpop.f32.mrf.mxu0
  %2693 = vdwg.mxu0
  %2694 = vrot.lane.b32.xlu0 %v2392, 120
  %v2695 = vpop.permute.xlu0 %2694
  %2696 = vrot.lane.b32.xlu0 %v2393, 120
  %v2697 = vpop.permute.xlu0 %2696
  %2698 = vrot.lane.b32.xlu0 %v2394, 120
  %v2699 = vpop.permute.xlu0 %2698
  %2700 = vrot.lane.b32.xlu0 %v2395, 120
  %v2701 = vpop.permute.xlu0 %2700
  %2702 = vrot.lane.b32.xlu0 %v2392, 88
  %v2703 = vpop.permute.xlu0 %2702
  %2704 = vrot.lane.b32.xlu0 %v2393, 88
  %v2705 = vpop.permute.xlu0 %2704
  %2706 = vrot.lane.b32.xlu0 %v2394, 88
  %v2707 = vpop.permute.xlu0 %2706
  %2708 = vrot.lane.b32.xlu0 %v2395, 88
  %v2709 = vpop.permute.xlu0 %2708
  %v2711 = vsel %vm308, %v2695, 0
  %v2714 = vsel %vm308, %v2697, 0
  %v2717 = vsel %vm308, %v2699, 0
  %v2720 = vsel %vm308, %v2701, 0
  %v2723 = vsel %vm308, %v2703, 0
  %v2726 = vsel %vm308, %v2705, 0
  %v2729 = vsel %vm308, %v2707, 0
  %v2732 = vsel %vm308, %v2709, 0
  %2734 = vmatprep.subr.bf16.mxu0 0
  %2735 = vmatpush1.bf16.xpose.msra.mxu0 0
  %2736 = vmatprep.subr.bf16.mxu0 0
  %2737 = vmatpush1.bf16.xpose.msra.mxu0 0
  %2738 = vmatprep.subr.bf16.mxu0 0
  %2739 = vmatpush1.bf16.xpose.msra.mxu0 0
  %2740 = vmatprep.subr.bf16.mxu0 0
  %2741 = vmatpush1.bf16.xpose.msra.mxu0 0
  %2742 = vmatprep.subr.bf16.mxu0 0
  %2743 = vmatpush1.bf16.xpose.msra.mxu0 %v2732
  %2744 = vmatprep.subr.bf16.mxu0 0
  %2745 = vmatpush1.bf16.xpose.msra.mxu0 %v2729
  %2746 = vmatprep.subr.bf16.mxu0 0
  %2747 = vmatpush1.bf16.xpose.msra.mxu0 %v2726
  %2748 = vmatprep.subr.bf16.mxu0 0
  %2749 = vmatpush1.bf16.xpose.msra.mxu0 %v2723
  %2750 = vmatprep.subr.bf16.mxu0 0
  %2751 = vmatpush2.bf16.xpose.msra.mxu0 0
  %2752 = vmatprep.subr.bf16.mxu0 0
  %2753 = vmatpush2.bf16.xpose.msra.mxu0 0
  %2754 = vmatprep.subr.bf16.mxu0 0
  %2755 = vmatpush2.bf16.xpose.msra.mxu0 0
  %2756 = vmatprep.subr.bf16.mxu0 0
  %2757 = vmatpush2.bf16.xpose.msra.mxu0 0
  %2758 = vmatprep.subr.bf16.mxu0 0
  %2759 = vmatpush2.bf16.xpose.msra.mxu0 0
  %2760 = vmatprep.subr.bf16.mxu0 0
  %2761 = vmatpush2.bf16.xpose.msra.mxu0 0
  %2762 = vmatprep.subr.bf16.mxu0 0
  %2763 = vmatpush2.bf16.xpose.msra.mxu0 0
  %2764 = vmatprep.subr.bf16.mxu0 0
  %2765 = vmatpush2.bf16.xpose.msra.mxu0 0
  %2766 = vmatprep.mubr.bf16.mxu0 0
  %2767 = vmatmul.mubr.bf16.gmra.mxu0 %v2711
  %v2768 = vpop.f32.mrf.mxu0
  %v2769 = vadd.f32 0.0, %v2768
  %v2770 = vpop.f32.mrf.mxu0
  %v2771 = vpop.f32.mrf.mxu0
  %v2772 = vadd.f32 0.0, %v2771
  %v2773 = vpop.f32.mrf.mxu0
  %2774 = vmatprep.mubr.bf16.mxu0 0
  %2775 = vmatmul.mubr.bf16.gmra.mxu0 %v2714
  %v2776 = vpop.f32.mrf.mxu0
  %v2777 = vadd.f32 0.0, %v2776
  %v2778 = vpop.f32.mrf.mxu0
  %v2779 = vpop.f32.mrf.mxu0
  %v2780 = vadd.f32 0.0, %v2779
  %v2781 = vpop.f32.mrf.mxu0
  %2782 = vmatprep.mubr.bf16.mxu0 0
  %2783 = vmatmul.mubr.bf16.gmra.mxu0 %v2717
  %v2784 = vpop.f32.mrf.mxu0
  %v2785 = vadd.f32 0.0, %v2784
  %v2786 = vpop.f32.mrf.mxu0
  %v2787 = vpop.f32.mrf.mxu0
  %v2788 = vadd.f32 0.0, %v2787
  %v2789 = vpop.f32.mrf.mxu0
  %2790 = vmatprep.mubr.bf16.mxu0 0
  %2791 = vmatmul.mubr.bf16.gmra.mxu0 %v2720
  %v2792 = vpop.f32.mrf.mxu0
  %v2793 = vadd.f32 0.0, %v2792
  %v2794 = vpop.f32.mrf.mxu0
  %v2795 = vpop.f32.mrf.mxu0
  %v2796 = vadd.f32 0.0, %v2795
  %v2797 = vpop.f32.mrf.mxu0
  %2798 = vdwg.mxu0
  %v2799 = vmul.f32 %v2769, 0.35355338
  %v2800 = vmul.f32 %v2772, 0.35355338
  %v2801 = vmul.f32 %v2777, 0.35355338
  %v2802 = vmul.f32 %v2780, 0.35355338
  %v2803 = vmul.f32 %v2785, 0.35355338
  %v2804 = vmul.f32 %v2788, 0.35355338
  %v2805 = vmul.f32 %v2793, 0.35355338
  %v2806 = vmul.f32 %v2796, 0.35355338
  %v2807 = vadd.f32 %v2799, %v51
  %v2808 = vadd.f32 %v2800, %v52
  %v2809 = vadd.f32 %v2801, %v53
  %v2810 = vadd.f32 %v2802, %v54
  %v2811 = vadd.f32 %v2803, %v55
  %v2812 = vadd.f32 %v2804, %v56
  %v2813 = vadd.f32 %v2805, %v57
  %v2814 = vadd.f32 %v2806, %v58
  %v2815 = vsel %vm414, %v2807, -inf
  %2816 = vmax.xlane.f32.xlu0 %v2815
  %v2817 = vpop.xlane.xlu0 %2816
  %v2818 = vsel %vm414, %v2808, -inf
  %2819 = vmax.xlane.f32.xlu0 %v2818
  %v2820 = vpop.xlane.xlu0 %2819
  %v2821 = vsel %vm414, %v2809, -inf
  %2822 = vmax.xlane.f32.xlu0 %v2821
  %v2823 = vpop.xlane.xlu0 %2822
  %v2824 = vsel %vm414, %v2810, -inf
  %2825 = vmax.xlane.f32.xlu0 %v2824
  %v2826 = vpop.xlane.xlu0 %2825
  %v2827 = vsel %vm414, %v2811, -inf
  %2828 = vmax.xlane.f32.xlu0 %v2827
  %v2829 = vpop.xlane.xlu0 %2828
  %v2830 = vsel %vm414, %v2812, -inf
  %2831 = vmax.xlane.f32.xlu0 %v2830
  %v2832 = vpop.xlane.xlu0 %2831
  %v2833 = vsel %vm414, %v2813, -inf
  %2834 = vmax.xlane.f32.xlu0 %v2833
  %v2835 = vpop.xlane.xlu0 %2834
  %v2836 = vsel %vm414, %v2814, -inf
  %2837 = vmax.xlane.f32.xlu0 %v2836
  %v2838 = vpop.xlane.xlu0 %2837
  %v2839 = vsub.f32 %v2807, %v2817
  %v2840 = vsub.f32 %v2808, %v2820
  %v2841 = vsub.f32 %v2809, %v2823
  %v2842 = vsub.f32 %v2810, %v2826
  %v2843 = vsub.f32 %v2811, %v2829
  %v2844 = vsub.f32 %v2812, %v2832
  %v2845 = vsub.f32 %v2813, %v2835
  %v2846 = vsub.f32 %v2814, %v2838
  %v2847 = vmul.f32 %v2839, 1.442695
  %v2848 = vpow.pop %v2847
  %v2849 = vmul.f32 %v2840, 1.442695
  %v2850 = vpow.pop %v2849
  %v2851 = vmul.f32 %v2841, 1.442695
  %v2852 = vpow.pop %v2851
  %v2853 = vmul.f32 %v2842, 1.442695
  %v2854 = vpow.pop %v2853
  %v2855 = vmul.f32 %v2843, 1.442695
  %v2856 = vpow.pop %v2855
  %v2857 = vmul.f32 %v2844, 1.442695
  %v2858 = vpow.pop %v2857
  %v2859 = vmul.f32 %v2845, 1.442695
  %v2860 = vpow.pop %v2859
  %v2861 = vmul.f32 %v2846, 1.442695
  %v2862 = vpow.pop %v2861
  %v2863 = vsel %vm414, %v2848, 0.0
  %2864 = vadd.xlane.f32.xlu0 %v2863
  %v2865 = vpop.xlane.xlu0 %2864
  %v2866 = vsel %vm414, %v2850, 0.0
  %2867 = vadd.xlane.f32.xlu0 %v2866
  %v2868 = vpop.xlane.xlu0 %2867
  %v2869 = vsel %vm414, %v2852, 0.0
  %2870 = vadd.xlane.f32.xlu0 %v2869
  %v2871 = vpop.xlane.xlu0 %2870
  %v2872 = vsel %vm414, %v2854, 0.0
  %2873 = vadd.xlane.f32.xlu0 %v2872
  %v2874 = vpop.xlane.xlu0 %2873
  %v2875 = vsel %vm414, %v2856, 0.0
  %2876 = vadd.xlane.f32.xlu0 %v2875
  %v2877 = vpop.xlane.xlu0 %2876
  %v2878 = vsel %vm414, %v2858, 0.0
  %2879 = vadd.xlane.f32.xlu0 %v2878
  %v2880 = vpop.xlane.xlu0 %2879
  %v2881 = vsel %vm414, %v2860, 0.0
  %2882 = vadd.xlane.f32.xlu0 %v2881
  %v2883 = vpop.xlane.xlu0 %2882
  %v2884 = vsel %vm414, %v2862, 0.0
  %2885 = vadd.xlane.f32.xlu0 %v2884
  %v2886 = vpop.xlane.xlu0 %2885
  %v2887 = vrcp.pop %v2865
  %v2888 = vrcp.pop %v2868
  %v2889 = vrcp.pop %v2871
  %v2890 = vrcp.pop %v2874
  %v2891 = vrcp.pop %v2877
  %v2892 = vrcp.pop %v2880
  %v2893 = vrcp.pop %v2883
  %v2894 = vrcp.pop %v2886
  %v2895 = vmul.f32 %v2848, %v2887
  %v2896 = vmul.f32 %v2850, %v2888
  %v2897 = vmul.f32 %v2852, %v2889
  %v2898 = vmul.f32 %v2854, %v2890
  %v2899 = vmul.f32 %v2856, %v2891
  %v2900 = vmul.f32 %v2858, %v2892
  %v2901 = vmul.f32 %v2860, %v2893
  %v2902 = vmul.f32 %v2862, %v2894
  %v2903 = vpack.c.bf16 %v2896, %v2895
  %v2904 = vpack.c.bf16 %v2898, %v2897
  %v2905 = vpack.c.bf16 %v2900, %v2899
  %v2906 = vpack.c.bf16 %v2902, %v2901
  %2907 = vrot.lane.b32.xlu0 %v2392, 56
  %v2908 = vpop.permute.xlu0 %2907
  %2909 = vrot.lane.b32.xlu0 %v2393, 56
  %v2910 = vpop.permute.xlu0 %2909
  %2911 = vrot.lane.b32.xlu0 %v2394, 56
  %v2912 = vpop.permute.xlu0 %2911
  %2913 = vrot.lane.b32.xlu0 %v2395, 56
  %v2914 = vpop.permute.xlu0 %2913
  %v2920 = vsel %vm414, %v2903, 0
  %v2923 = vsel %vm414, %v2904, 0
  %v2926 = vsel %vm414, %v2905, 0
  %v2929 = vsel %vm414, %v2906, 0
  %2931 = vmatprep.subr.bf16.mxu0 0
  %2932 = vmatpush1.bf16.msra.mxu0 0
  %2933 = vmatprep.subr.bf16.mxu0 0
  %2934 = vmatpush1.bf16.msra.mxu0 0
  %2935 = vmatprep.subr.bf16.mxu0 0
  %2936 = vmatpush1.bf16.msra.mxu0 0
  %2937 = vmatprep.subr.bf16.mxu0 0
  %2938 = vmatpush1.bf16.msra.mxu0 0
  %2939 = vmatprep.subr.bf16.mxu0 0
  %2940 = vmatpush1.bf16.msra.mxu0 %v2914
  %2941 = vmatprep.subr.bf16.mxu0 0
  %2942 = vmatpush1.bf16.msra.mxu0 %v2912
  %2943 = vmatprep.subr.bf16.mxu0 0
  %2944 = vmatpush1.bf16.msra.mxu0 %v2910
  %2945 = vmatprep.subr.bf16.mxu0 0
  %2946 = vmatpush1.bf16.msra.mxu0 %v2908
  %2947 = vmatprep.subr.bf16.mxu0 0
  %2948 = vmatpush2.bf16.msra.mxu0 0
  %2949 = vmatprep.subr.bf16.mxu0 0
  %2950 = vmatpush2.bf16.msra.mxu0 0
  %2951 = vmatprep.subr.bf16.mxu0 0
  %2952 = vmatpush2.bf16.msra.mxu0 0
  %2953 = vmatprep.subr.bf16.mxu0 0
  %2954 = vmatpush2.bf16.msra.mxu0 0
  %2955 = vmatprep.subr.bf16.mxu0 0
  %2956 = vmatpush2.bf16.msra.mxu0 0
  %2957 = vmatprep.subr.bf16.mxu0 0
  %2958 = vmatpush2.bf16.msra.mxu0 0
  %2959 = vmatprep.subr.bf16.mxu0 0
  %2960 = vmatpush2.bf16.msra.mxu0 0
  %2961 = vmatprep.subr.bf16.mxu0 0
  %2962 = vmatpush2.bf16.msra.mxu0 0
  %2963 = vmatprep.mubr.bf16.mxu0 0
  %2964 = vmatmul.mubr.bf16.gmra.mxu0 %v2920
  %v2965 = vpop.f32.mrf.mxu0
  %v2966 = vadd.f32 0.0, %v2965
  %v2967 = vpop.f32.mrf.mxu0
  %v2968 = vpop.f32.mrf.mxu0
  %v2969 = vadd.f32 0.0, %v2968
  %v2970 = vpop.f32.mrf.mxu0
  %2971 = vmatprep.mubr.bf16.mxu0 0
  %2972 = vmatmul.mubr.bf16.gmra.mxu0 %v2923
  %v2973 = vpop.f32.mrf.mxu0
  %v2974 = vadd.f32 0.0, %v2973
  %v2975 = vpop.f32.mrf.mxu0
  %v2976 = vpop.f32.mrf.mxu0
  %v2977 = vadd.f32 0.0, %v2976
  %v2978 = vpop.f32.mrf.mxu0
  %2979 = vmatprep.mubr.bf16.mxu0 0
  %2980 = vmatmul.mubr.bf16.gmra.mxu0 %v2926
  %v2981 = vpop.f32.mrf.mxu0
  %v2982 = vadd.f32 0.0, %v2981
  %v2983 = vpop.f32.mrf.mxu0
  %v2984 = vpop.f32.mrf.mxu0
  %v2985 = vadd.f32 0.0, %v2984
  %v2986 = vpop.f32.mrf.mxu0
  %2987 = vmatprep.mubr.bf16.mxu0 0
  %2988 = vmatmul.mubr.bf16.gmra.mxu0 %v2929
  %v2989 = vpop.f32.mrf.mxu0
  %v2990 = vadd.f32 0.0, %v2989
  %v2991 = vpop.f32.mrf.mxu0
  %v2992 = vpop.f32.mrf.mxu0
  %v2993 = vadd.f32 0.0, %v2992
  %v2994 = vpop.f32.mrf.mxu0
  %2995 = vdwg.mxu0
  %2996 = vrot.lane.b32.xlu0 %v2392, 112
  %v2997 = vpop.permute.xlu0 %2996
  %2998 = vrot.lane.b32.xlu0 %v2393, 112
  %v2999 = vpop.permute.xlu0 %2998
  %3000 = vrot.lane.b32.xlu0 %v2394, 112
  %v3001 = vpop.permute.xlu0 %3000
  %3002 = vrot.lane.b32.xlu0 %v2395, 112
  %v3003 = vpop.permute.xlu0 %3002
  %3004 = vrot.lane.b32.xlu0 %v2392, 80
  %v3005 = vpop.permute.xlu0 %3004
  %3006 = vrot.lane.b32.xlu0 %v2393, 80
  %v3007 = vpop.permute.xlu0 %3006
  %3008 = vrot.lane.b32.xlu0 %v2394, 80
  %v3009 = vpop.permute.xlu0 %3008
  %3010 = vrot.lane.b32.xlu0 %v2395, 80
  %v3011 = vpop.permute.xlu0 %3010
  %v3013 = vsel %vm308, %v2997, 0
  %v3016 = vsel %vm308, %v2999, 0
  %v3019 = vsel %vm308, %v3001, 0
  %v3022 = vsel %vm308, %v3003, 0
  %v3025 = vsel %vm308, %v3005, 0
  %v3028 = vsel %vm308, %v3007, 0
  %v3031 = vsel %vm308, %v3009, 0
  %v3034 = vsel %vm308, %v3011, 0
  %3036 = vmatprep.subr.bf16.mxu0 0
  %3037 = vmatpush1.bf16.xpose.msra.mxu0 0
  %3038 = vmatprep.subr.bf16.mxu0 0
  %3039 = vmatpush1.bf16.xpose.msra.mxu0 0
  %3040 = vmatprep.subr.bf16.mxu0 0
  %3041 = vmatpush1.bf16.xpose.msra.mxu0 0
  %3042 = vmatprep.subr.bf16.mxu0 0
  %3043 = vmatpush1.bf16.xpose.msra.mxu0 0
  %3044 = vmatprep.subr.bf16.mxu0 0
  %3045 = vmatpush1.bf16.xpose.msra.mxu0 %v3034
  %3046 = vmatprep.subr.bf16.mxu0 0
  %3047 = vmatpush1.bf16.xpose.msra.mxu0 %v3031
  %3048 = vmatprep.subr.bf16.mxu0 0
  %3049 = vmatpush1.bf16.xpose.msra.mxu0 %v3028
  %3050 = vmatprep.subr.bf16.mxu0 0
  %3051 = vmatpush1.bf16.xpose.msra.mxu0 %v3025
  %3052 = vmatprep.subr.bf16.mxu0 0
  %3053 = vmatpush2.bf16.xpose.msra.mxu0 0
  %3054 = vmatprep.subr.bf16.mxu0 0
  %3055 = vmatpush2.bf16.xpose.msra.mxu0 0
  %3056 = vmatprep.subr.bf16.mxu0 0
  %3057 = vmatpush2.bf16.xpose.msra.mxu0 0
  %3058 = vmatprep.subr.bf16.mxu0 0
  %3059 = vmatpush2.bf16.xpose.msra.mxu0 0
  %3060 = vmatprep.subr.bf16.mxu0 0
  %3061 = vmatpush2.bf16.xpose.msra.mxu0 0
  %3062 = vmatprep.subr.bf16.mxu0 0
  %3063 = vmatpush2.bf16.xpose.msra.mxu0 0
  %3064 = vmatprep.subr.bf16.mxu0 0
  %3065 = vmatpush2.bf16.xpose.msra.mxu0 0
  %3066 = vmatprep.subr.bf16.mxu0 0
  %3067 = vmatpush2.bf16.xpose.msra.mxu0 0
  %3068 = vmatprep.mubr.bf16.mxu0 0
  %3069 = vmatmul.mubr.bf16.gmra.mxu0 %v3013
  %v3070 = vpop.f32.mrf.mxu0
  %v3071 = vadd.f32 0.0, %v3070
  %v3072 = vpop.f32.mrf.mxu0
  %v3073 = vpop.f32.mrf.mxu0
  %v3074 = vadd.f32 0.0, %v3073
  %v3075 = vpop.f32.mrf.mxu0
  %3076 = vmatprep.mubr.bf16.mxu0 0
  %3077 = vmatmul.mubr.bf16.gmra.mxu0 %v3016
  %v3078 = vpop.f32.mrf.mxu0
  %v3079 = vadd.f32 0.0, %v3078
  %v3080 = vpop.f32.mrf.mxu0
  %v3081 = vpop.f32.mrf.mxu0
  %v3082 = vadd.f32 0.0, %v3081
  %v3083 = vpop.f32.mrf.mxu0
  %3084 = vmatprep.mubr.bf16.mxu0 0
  %3085 = vmatmul.mubr.bf16.gmra.mxu0 %v3019
  %v3086 = vpop.f32.mrf.mxu0
  %v3087 = vadd.f32 0.0, %v3086
  %v3088 = vpop.f32.mrf.mxu0
  %v3089 = vpop.f32.mrf.mxu0
  %v3090 = vadd.f32 0.0, %v3089
  %v3091 = vpop.f32.mrf.mxu0
  %3092 = vmatprep.mubr.bf16.mxu0 0
  %3093 = vmatmul.mubr.bf16.gmra.mxu0 %v3022
  %v3094 = vpop.f32.mrf.mxu0
  %v3095 = vadd.f32 0.0, %v3094
  %v3096 = vpop.f32.mrf.mxu0
  %v3097 = vpop.f32.mrf.mxu0
  %v3098 = vadd.f32 0.0, %v3097
  %v3099 = vpop.f32.mrf.mxu0
  %3100 = vdwg.mxu0
  %v3101 = vmul.f32 %v3071, 0.35355338
  %v3102 = vmul.f32 %v3074, 0.35355338
  %v3103 = vmul.f32 %v3079, 0.35355338
  %v3104 = vmul.f32 %v3082, 0.35355338
  %v3105 = vmul.f32 %v3087, 0.35355338
  %v3106 = vmul.f32 %v3090, 0.35355338
  %v3107 = vmul.f32 %v3095, 0.35355338
  %v3108 = vmul.f32 %v3098, 0.35355338
  %v3109 = vadd.f32 %v3101, %v51
  %v3110 = vadd.f32 %v3102, %v52
  %v3111 = vadd.f32 %v3103, %v53
  %v3112 = vadd.f32 %v3104, %v54
  %v3113 = vadd.f32 %v3105, %v55
  %v3114 = vadd.f32 %v3106, %v56
  %v3115 = vadd.f32 %v3107, %v57
  %v3116 = vadd.f32 %v3108, %v58
  %v3117 = vsel %vm414, %v3109, -inf
  %3118 = vmax.xlane.f32.xlu0 %v3117
  %v3119 = vpop.xlane.xlu0 %3118
  %v3120 = vsel %vm414, %v3110, -inf
  %3121 = vmax.xlane.f32.xlu0 %v3120
  %v3122 = vpop.xlane.xlu0 %3121
  %v3123 = vsel %vm414, %v3111, -inf
  %3124 = vmax.xlane.f32.xlu0 %v3123
  %v3125 = vpop.xlane.xlu0 %3124
  %v3126 = vsel %vm414, %v3112, -inf
  %3127 = vmax.xlane.f32.xlu0 %v3126
  %v3128 = vpop.xlane.xlu0 %3127
  %v3129 = vsel %vm414, %v3113, -inf
  %3130 = vmax.xlane.f32.xlu0 %v3129
  %v3131 = vpop.xlane.xlu0 %3130
  %v3132 = vsel %vm414, %v3114, -inf
  %3133 = vmax.xlane.f32.xlu0 %v3132
  %v3134 = vpop.xlane.xlu0 %3133
  %v3135 = vsel %vm414, %v3115, -inf
  %3136 = vmax.xlane.f32.xlu0 %v3135
  %v3137 = vpop.xlane.xlu0 %3136
  %v3138 = vsel %vm414, %v3116, -inf
  %3139 = vmax.xlane.f32.xlu0 %v3138
  %v3140 = vpop.xlane.xlu0 %3139
  %v3141 = vsub.f32 %v3109, %v3119
  %v3142 = vsub.f32 %v3110, %v3122
  %v3143 = vsub.f32 %v3111, %v3125
  %v3144 = vsub.f32 %v3112, %v3128
  %v3145 = vsub.f32 %v3113, %v3131
  %v3146 = vsub.f32 %v3114, %v3134
  %v3147 = vsub.f32 %v3115, %v3137
  %v3148 = vsub.f32 %v3116, %v3140
  %v3149 = vmul.f32 %v3141, 1.442695
  %v3150 = vpow.pop %v3149
  %v3151 = vmul.f32 %v3142, 1.442695
  %v3152 = vpow.pop %v3151
  %v3153 = vmul.f32 %v3143, 1.442695
  %v3154 = vpow.pop %v3153
  %v3155 = vmul.f32 %v3144, 1.442695
  %v3156 = vpow.pop %v3155
  %v3157 = vmul.f32 %v3145, 1.442695
  %v3158 = vpow.pop %v3157
  %v3159 = vmul.f32 %v3146, 1.442695
  %v3160 = vpow.pop %v3159
  %v3161 = vmul.f32 %v3147, 1.442695
  %v3162 = vpow.pop %v3161
  %v3163 = vmul.f32 %v3148, 1.442695
  %v3164 = vpow.pop %v3163
  %v3165 = vsel %vm414, %v3150, 0.0
  %3166 = vadd.xlane.f32.xlu0 %v3165
  %v3167 = vpop.xlane.xlu0 %3166
  %v3168 = vsel %vm414, %v3152, 0.0
  %3169 = vadd.xlane.f32.xlu0 %v3168
  %v3170 = vpop.xlane.xlu0 %3169
  %v3171 = vsel %vm414, %v3154, 0.0
  %3172 = vadd.xlane.f32.xlu0 %v3171
  %v3173 = vpop.xlane.xlu0 %3172
  %v3174 = vsel %vm414, %v3156, 0.0
  %3175 = vadd.xlane.f32.xlu0 %v3174
  %v3176 = vpop.xlane.xlu0 %3175
  %v3177 = vsel %vm414, %v3158, 0.0
  %3178 = vadd.xlane.f32.xlu0 %v3177
  %v3179 = vpop.xlane.xlu0 %3178
  %v3180 = vsel %vm414, %v3160, 0.0
  %3181 = vadd.xlane.f32.xlu0 %v3180
  %v3182 = vpop.xlane.xlu0 %3181
  %v3183 = vsel %vm414, %v3162, 0.0
  %3184 = vadd.xlane.f32.xlu0 %v3183
  %v3185 = vpop.xlane.xlu0 %3184
  %v3186 = vsel %vm414, %v3164, 0.0
  %3187 = vadd.xlane.f32.xlu0 %v3186
  %v3188 = vpop.xlane.xlu0 %3187
  %v3189 = vrcp.pop %v3167
  %v3190 = vrcp.pop %v3170
  %v3191 = vrcp.pop %v3173
  %v3192 = vrcp.pop %v3176
  %v3193 = vrcp.pop %v3179
  %v3194 = vrcp.pop %v3182
  %v3195 = vrcp.pop %v3185
  %v3196 = vrcp.pop %v3188
  %v3197 = vmul.f32 %v3150, %v3189
  %v3198 = vmul.f32 %v3152, %v3190
  %v3199 = vmul.f32 %v3154, %v3191
  %v3200 = vmul.f32 %v3156, %v3192
  %v3201 = vmul.f32 %v3158, %v3193
  %v3202 = vmul.f32 %v3160, %v3194
  %v3203 = vmul.f32 %v3162, %v3195
  %v3204 = vmul.f32 %v3164, %v3196
  %v3205 = vpack.c.bf16 %v3198, %v3197
  %v3206 = vpack.c.bf16 %v3200, %v3199
  %v3207 = vpack.c.bf16 %v3202, %v3201
  %v3208 = vpack.c.bf16 %v3204, %v3203
  %3209 = vrot.lane.b32.xlu0 %v2392, 48
  %v3210 = vpop.permute.xlu0 %3209
  %3211 = vrot.lane.b32.xlu0 %v2393, 48
  %v3212 = vpop.permute.xlu0 %3211
  %3213 = vrot.lane.b32.xlu0 %v2394, 48
  %v3214 = vpop.permute.xlu0 %3213
  %3215 = vrot.lane.b32.xlu0 %v2395, 48
  %v3216 = vpop.permute.xlu0 %3215
  %v3222 = vsel %vm414, %v3205, 0
  %v3225 = vsel %vm414, %v3206, 0
  %v3228 = vsel %vm414, %v3207, 0
  %v3231 = vsel %vm414, %v3208, 0
  %3233 = vmatprep.subr.bf16.mxu0 0
  %3234 = vmatpush1.bf16.msra.mxu0 0
  %3235 = vmatprep.subr.bf16.mxu0 0
  %3236 = vmatpush1.bf16.msra.mxu0 0
  %3237 = vmatprep.subr.bf16.mxu0 0
  %3238 = vmatpush1.bf16.msra.mxu0 0
  %3239 = vmatprep.subr.bf16.mxu0 0
  %3240 = vmatpush1.bf16.msra.mxu0 0
  %3241 = vmatprep.subr.bf16.mxu0 0
  %3242 = vmatpush1.bf16.msra.mxu0 %v3216
  %3243 = vmatprep.subr.bf16.mxu0 0
  %3244 = vmatpush1.bf16.msra.mxu0 %v3214
  %3245 = vmatprep.subr.bf16.mxu0 0
  %3246 = vmatpush1.bf16.msra.mxu0 %v3212
  %3247 = vmatprep.subr.bf16.mxu0 0
  %3248 = vmatpush1.bf16.msra.mxu0 %v3210
  %3249 = vmatprep.subr.bf16.mxu0 0
  %3250 = vmatpush2.bf16.msra.mxu0 0
  %3251 = vmatprep.subr.bf16.mxu0 0
  %3252 = vmatpush2.bf16.msra.mxu0 0
  %3253 = vmatprep.subr.bf16.mxu0 0
  %3254 = vmatpush2.bf16.msra.mxu0 0
  %3255 = vmatprep.subr.bf16.mxu0 0
  %3256 = vmatpush2.bf16.msra.mxu0 0
  %3257 = vmatprep.subr.bf16.mxu0 0
  %3258 = vmatpush2.bf16.msra.mxu0 0
  %3259 = vmatprep.subr.bf16.mxu0 0
  %3260 = vmatpush2.bf16.msra.mxu0 0
  %3261 = vmatprep.subr.bf16.mxu0 0
  %3262 = vmatpush2.bf16.msra.mxu0 0
  %3263 = vmatprep.subr.bf16.mxu0 0
  %3264 = vmatpush2.bf16.msra.mxu0 0
  %3265 = vmatprep.mubr.bf16.mxu0 0
  %3266 = vmatmul.mubr.bf16.gmra.mxu0 %v3222
  %v3267 = vpop.f32.mrf.mxu0
  %v3268 = vadd.f32 0.0, %v3267
  %v3269 = vpop.f32.mrf.mxu0
  %v3270 = vpop.f32.mrf.mxu0
  %v3271 = vadd.f32 0.0, %v3270
  %v3272 = vpop.f32.mrf.mxu0
  %3273 = vmatprep.mubr.bf16.mxu0 0
  %3274 = vmatmul.mubr.bf16.gmra.mxu0 %v3225
  %v3275 = vpop.f32.mrf.mxu0
  %v3276 = vadd.f32 0.0, %v3275
  %v3277 = vpop.f32.mrf.mxu0
  %v3278 = vpop.f32.mrf.mxu0
  %v3279 = vadd.f32 0.0, %v3278
  %v3280 = vpop.f32.mrf.mxu0
  %3281 = vmatprep.mubr.bf16.mxu0 0
  %3282 = vmatmul.mubr.bf16.gmra.mxu0 %v3228
  %v3283 = vpop.f32.mrf.mxu0
  %v3284 = vadd.f32 0.0, %v3283
  %v3285 = vpop.f32.mrf.mxu0
  %v3286 = vpop.f32.mrf.mxu0
  %v3287 = vadd.f32 0.0, %v3286
  %v3288 = vpop.f32.mrf.mxu0
  %3289 = vmatprep.mubr.bf16.mxu0 0
  %3290 = vmatmul.mubr.bf16.gmra.mxu0 %v3231
  %v3291 = vpop.f32.mrf.mxu0
  %v3292 = vadd.f32 0.0, %v3291
  %v3293 = vpop.f32.mrf.mxu0
  %v3294 = vpop.f32.mrf.mxu0
  %v3295 = vadd.f32 0.0, %v3294
  %v3296 = vpop.f32.mrf.mxu0
  %3297 = vdwg.mxu0
  %3298 = vrot.lane.b32.xlu0 %v2392, 104
  %v3299 = vpop.permute.xlu0 %3298
  %3300 = vrot.lane.b32.xlu0 %v2393, 104
  %v3301 = vpop.permute.xlu0 %3300
  %3302 = vrot.lane.b32.xlu0 %v2394, 104
  %v3303 = vpop.permute.xlu0 %3302
  %3304 = vrot.lane.b32.xlu0 %v2395, 104
  %v3305 = vpop.permute.xlu0 %3304
  %3306 = vrot.lane.b32.xlu0 %v2392, 72
  %v3307 = vpop.permute.xlu0 %3306
  %3308 = vrot.lane.b32.xlu0 %v2393, 72
  %v3309 = vpop.permute.xlu0 %3308
  %3310 = vrot.lane.b32.xlu0 %v2394, 72
  %v3311 = vpop.permute.xlu0 %3310
  %3312 = vrot.lane.b32.xlu0 %v2395, 72
  %v3313 = vpop.permute.xlu0 %3312
  %v3315 = vsel %vm308, %v3299, 0
  %v3318 = vsel %vm308, %v3301, 0
  %v3321 = vsel %vm308, %v3303, 0
  %v3324 = vsel %vm308, %v3305, 0
  %v3327 = vsel %vm308, %v3307, 0
  %v3330 = vsel %vm308, %v3309, 0
  %v3333 = vsel %vm308, %v3311, 0
  %v3336 = vsel %vm308, %v3313, 0
  %3338 = vmatprep.subr.bf16.mxu0 0
  %3339 = vmatpush1.bf16.xpose.msra.mxu0 0
  %3340 = vmatprep.subr.bf16.mxu0 0
  %3341 = vmatpush1.bf16.xpose.msra.mxu0 0
  %3342 = vmatprep.subr.bf16.mxu0 0
  %3343 = vmatpush1.bf16.xpose.msra.mxu0 0
  %3344 = vmatprep.subr.bf16.mxu0 0
  %3345 = vmatpush1.bf16.xpose.msra.mxu0 0
  %3346 = vmatprep.subr.bf16.mxu0 0
  %3347 = vmatpush1.bf16.xpose.msra.mxu0 %v3336
  %3348 = vmatprep.subr.bf16.mxu0 0
  %3349 = vmatpush1.bf16.xpose.msra.mxu0 %v3333
  %3350 = vmatprep.subr.bf16.mxu0 0
  %3351 = vmatpush1.bf16.xpose.msra.mxu0 %v3330
  %3352 = vmatprep.subr.bf16.mxu0 0
  %3353 = vmatpush1.bf16.xpose.msra.mxu0 %v3327
  %3354 = vmatprep.subr.bf16.mxu0 0
  %3355 = vmatpush2.bf16.xpose.msra.mxu0 0
  %3356 = vmatprep.subr.bf16.mxu0 0
  %3357 = vmatpush2.bf16.xpose.msra.mxu0 0
  %3358 = vmatprep.subr.bf16.mxu0 0
  %3359 = vmatpush2.bf16.xpose.msra.mxu0 0
  %3360 = vmatprep.subr.bf16.mxu0 0
  %3361 = vmatpush2.bf16.xpose.msra.mxu0 0
  %3362 = vmatprep.subr.bf16.mxu0 0
  %3363 = vmatpush2.bf16.xpose.msra.mxu0 0
  %3364 = vmatprep.subr.bf16.mxu0 0
  %3365 = vmatpush2.bf16.xpose.msra.mxu0 0
  %3366 = vmatprep.subr.bf16.mxu0 0
  %3367 = vmatpush2.bf16.xpose.msra.mxu0 0
  %3368 = vmatprep.subr.bf16.mxu0 0
  %3369 = vmatpush2.bf16.xpose.msra.mxu0 0
  %3370 = vmatprep.mubr.bf16.mxu0 0
  %3371 = vmatmul.mubr.bf16.gmra.mxu0 %v3315
  %v3372 = vpop.f32.mrf.mxu0
  %v3373 = vadd.f32 0.0, %v3372
  %v3374 = vpop.f32.mrf.mxu0
  %v3375 = vpop.f32.mrf.mxu0
  %v3376 = vadd.f32 0.0, %v3375
  %v3377 = vpop.f32.mrf.mxu0
  %3378 = vmatprep.mubr.bf16.mxu0 0
  %3379 = vmatmul.mubr.bf16.gmra.mxu0 %v3318
  %v3380 = vpop.f32.mrf.mxu0
  %v3381 = vadd.f32 0.0, %v3380
  %v3382 = vpop.f32.mrf.mxu0
  %v3383 = vpop.f32.mrf.mxu0
  %v3384 = vadd.f32 0.0, %v3383
  %v3385 = vpop.f32.mrf.mxu0
  %3386 = vmatprep.mubr.bf16.mxu0 0
  %3387 = vmatmul.mubr.bf16.gmra.mxu0 %v3321
  %v3388 = vpop.f32.mrf.mxu0
  %v3389 = vadd.f32 0.0, %v3388
  %v3390 = vpop.f32.mrf.mxu0
  %v3391 = vpop.f32.mrf.mxu0
  %v3392 = vadd.f32 0.0, %v3391
  %v3393 = vpop.f32.mrf.mxu0
  %3394 = vmatprep.mubr.bf16.mxu0 0
  %3395 = vmatmul.mubr.bf16.gmra.mxu0 %v3324
  %v3396 = vpop.f32.mrf.mxu0
  %v3397 = vadd.f32 0.0, %v3396
  %v3398 = vpop.f32.mrf.mxu0
  %v3399 = vpop.f32.mrf.mxu0
  %v3400 = vadd.f32 0.0, %v3399
  %v3401 = vpop.f32.mrf.mxu0
  %3402 = vdwg.mxu0
  %v3403 = vmul.f32 %v3373, 0.35355338
  %v3404 = vmul.f32 %v3376, 0.35355338
  %v3405 = vmul.f32 %v3381, 0.35355338
  %v3406 = vmul.f32 %v3384, 0.35355338
  %v3407 = vmul.f32 %v3389, 0.35355338
  %v3408 = vmul.f32 %v3392, 0.35355338
  %v3409 = vmul.f32 %v3397, 0.35355338
  %v3410 = vmul.f32 %v3400, 0.35355338
  %v3411 = vadd.f32 %v3403, %v51
  %v3412 = vadd.f32 %v3404, %v52
  %v3413 = vadd.f32 %v3405, %v53
  %v3414 = vadd.f32 %v3406, %v54
  %v3415 = vadd.f32 %v3407, %v55
  %v3416 = vadd.f32 %v3408, %v56
  %v3417 = vadd.f32 %v3409, %v57
  %v3418 = vadd.f32 %v3410, %v58
  %v3419 = vsel %vm414, %v3411, -inf
  %3420 = vmax.xlane.f32.xlu0 %v3419
  %v3421 = vpop.xlane.xlu0 %3420
  %v3422 = vsel %vm414, %v3412, -inf
  %3423 = vmax.xlane.f32.xlu0 %v3422
  %v3424 = vpop.xlane.xlu0 %3423
  %v3425 = vsel %vm414, %v3413, -inf
  %3426 = vmax.xlane.f32.xlu0 %v3425
  %v3427 = vpop.xlane.xlu0 %3426
  %v3428 = vsel %vm414, %v3414, -inf
  %3429 = vmax.xlane.f32.xlu0 %v3428
  %v3430 = vpop.xlane.xlu0 %3429
  %v3431 = vsel %vm414, %v3415, -inf
  %3432 = vmax.xlane.f32.xlu0 %v3431
  %v3433 = vpop.xlane.xlu0 %3432
  %v3434 = vsel %vm414, %v3416, -inf
  %3435 = vmax.xlane.f32.xlu0 %v3434
  %v3436 = vpop.xlane.xlu0 %3435
  %v3437 = vsel %vm414, %v3417, -inf
  %3438 = vmax.xlane.f32.xlu0 %v3437
  %v3439 = vpop.xlane.xlu0 %3438
  %v3440 = vsel %vm414, %v3418, -inf
  %3441 = vmax.xlane.f32.xlu0 %v3440
  %v3442 = vpop.xlane.xlu0 %3441
  %v3443 = vsub.f32 %v3411, %v3421
  %v3444 = vsub.f32 %v3412, %v3424
  %v3445 = vsub.f32 %v3413, %v3427
  %v3446 = vsub.f32 %v3414, %v3430
  %v3447 = vsub.f32 %v3415, %v3433
  %v3448 = vsub.f32 %v3416, %v3436
  %v3449 = vsub.f32 %v3417, %v3439
  %v3450 = vsub.f32 %v3418, %v3442
  %v3451 = vmul.f32 %v3443, 1.442695
  %v3452 = vpow.pop %v3451
  %v3453 = vmul.f32 %v3444, 1.442695
  %v3454 = vpow.pop %v3453
  %v3455 = vmul.f32 %v3445, 1.442695
  %v3456 = vpow.pop %v3455
  %v3457 = vmul.f32 %v3446, 1.442695
  %v3458 = vpow.pop %v3457
  %v3459 = vmul.f32 %v3447, 1.442695
  %v3460 = vpow.pop %v3459
  %v3461 = vmul.f32 %v3448, 1.442695
  %v3462 = vpow.pop %v3461
  %v3463 = vmul.f32 %v3449, 1.442695
  %v3464 = vpow.pop %v3463
  %v3465 = vmul.f32 %v3450, 1.442695
  %v3466 = vpow.pop %v3465
  %v3467 = vsel %vm414, %v3452, 0.0
  %3468 = vadd.xlane.f32.xlu0 %v3467
  %v3469 = vpop.xlane.xlu0 %3468
  %v3470 = vsel %vm414, %v3454, 0.0
  %3471 = vadd.xlane.f32.xlu0 %v3470
  %v3472 = vpop.xlane.xlu0 %3471
  %v3473 = vsel %vm414, %v3456, 0.0
  %3474 = vadd.xlane.f32.xlu0 %v3473
  %v3475 = vpop.xlane.xlu0 %3474
  %v3476 = vsel %vm414, %v3458, 0.0
  %3477 = vadd.xlane.f32.xlu0 %v3476
  %v3478 = vpop.xlane.xlu0 %3477
  %v3479 = vsel %vm414, %v3460, 0.0
  %3480 = vadd.xlane.f32.xlu0 %v3479
  %v3481 = vpop.xlane.xlu0 %3480
  %v3482 = vsel %vm414, %v3462, 0.0
  %3483 = vadd.xlane.f32.xlu0 %v3482
  %v3484 = vpop.xlane.xlu0 %3483
  %v3485 = vsel %vm414, %v3464, 0.0
  %3486 = vadd.xlane.f32.xlu0 %v3485
  %v3487 = vpop.xlane.xlu0 %3486
  %v3488 = vsel %vm414, %v3466, 0.0
  %3489 = vadd.xlane.f32.xlu0 %v3488
  %v3490 = vpop.xlane.xlu0 %3489
  %v3491 = vrcp.pop %v3469
  %v3492 = vrcp.pop %v3472
  %v3493 = vrcp.pop %v3475
  %v3494 = vrcp.pop %v3478
  %v3495 = vrcp.pop %v3481
  %v3496 = vrcp.pop %v3484
  %v3497 = vrcp.pop %v3487
  %v3498 = vrcp.pop %v3490
  %v3499 = vmul.f32 %v3452, %v3491
  %v3500 = vmul.f32 %v3454, %v3492
  %v3501 = vmul.f32 %v3456, %v3493
  %v3502 = vmul.f32 %v3458, %v3494
  %v3503 = vmul.f32 %v3460, %v3495
  %v3504 = vmul.f32 %v3462, %v3496
  %v3505 = vmul.f32 %v3464, %v3497
  %v3506 = vmul.f32 %v3466, %v3498
  %v3507 = vpack.c.bf16 %v3500, %v3499
  %v3508 = vpack.c.bf16 %v3502, %v3501
  %v3509 = vpack.c.bf16 %v3504, %v3503
  %v3510 = vpack.c.bf16 %v3506, %v3505
  %3511 = vrot.lane.b32.xlu0 %v2392, 40
  %v3512 = vpop.permute.xlu0 %3511
  %3513 = vrot.lane.b32.xlu0 %v2393, 40
  %v3514 = vpop.permute.xlu0 %3513
  %3515 = vrot.lane.b32.xlu0 %v2394, 40
  %v3516 = vpop.permute.xlu0 %3515
  %3517 = vrot.lane.b32.xlu0 %v2395, 40
  %v3518 = vpop.permute.xlu0 %3517
  %v3524 = vsel %vm414, %v3507, 0
  %v3527 = vsel %vm414, %v3508, 0
  %v3530 = vsel %vm414, %v3509, 0
  %v3533 = vsel %vm414, %v3510, 0
  %3535 = vmatprep.subr.bf16.mxu0 0
  %3536 = vmatpush1.bf16.msra.mxu0 0
  %3537 = vmatprep.subr.bf16.mxu0 0
  %3538 = vmatpush1.bf16.msra.mxu0 0
  %3539 = vmatprep.subr.bf16.mxu0 0
  %3540 = vmatpush1.bf16.msra.mxu0 0
  %3541 = vmatprep.subr.bf16.mxu0 0
  %3542 = vmatpush1.bf16.msra.mxu0 0
  %3543 = vmatprep.subr.bf16.mxu0 0
  %3544 = vmatpush1.bf16.msra.mxu0 %v3518
  %3545 = vmatprep.subr.bf16.mxu0 0
  %3546 = vmatpush1.bf16.msra.mxu0 %v3516
  %3547 = vmatprep.subr.bf16.mxu0 0
  %3548 = vmatpush1.bf16.msra.mxu0 %v3514
  %3549 = vmatprep.subr.bf16.mxu0 0
  %3550 = vmatpush1.bf16.msra.mxu0 %v3512
  %3551 = vmatprep.subr.bf16.mxu0 0
  %3552 = vmatpush2.bf16.msra.mxu0 0
  %3553 = vmatprep.subr.bf16.mxu0 0
  %3554 = vmatpush2.bf16.msra.mxu0 0
  %3555 = vmatprep.subr.bf16.mxu0 0
  %3556 = vmatpush2.bf16.msra.mxu0 0
  %3557 = vmatprep.subr.bf16.mxu0 0
  %3558 = vmatpush2.bf16.msra.mxu0 0
  %3559 = vmatprep.subr.bf16.mxu0 0
  %3560 = vmatpush2.bf16.msra.mxu0 0
  %3561 = vmatprep.subr.bf16.mxu0 0
  %3562 = vmatpush2.bf16.msra.mxu0 0
  %3563 = vmatprep.subr.bf16.mxu0 0
  %3564 = vmatpush2.bf16.msra.mxu0 0
  %3565 = vmatprep.subr.bf16.mxu0 0
  %3566 = vmatpush2.bf16.msra.mxu0 0
  %3567 = vmatprep.mubr.bf16.mxu0 0
  %3568 = vmatmul.mubr.bf16.gmra.mxu0 %v3524
  %v3569 = vpop.f32.mrf.mxu0
  %v3570 = vadd.f32 0.0, %v3569
  %v3571 = vpop.f32.mrf.mxu0
  %v3572 = vpop.f32.mrf.mxu0
  %v3573 = vadd.f32 0.0, %v3572
  %v3574 = vpop.f32.mrf.mxu0
  %3575 = vmatprep.mubr.bf16.mxu0 0
  %3576 = vmatmul.mubr.bf16.gmra.mxu0 %v3527
  %v3577 = vpop.f32.mrf.mxu0
  %v3578 = vadd.f32 0.0, %v3577
  %v3579 = vpop.f32.mrf.mxu0
  %v3580 = vpop.f32.mrf.mxu0
  %v3581 = vadd.f32 0.0, %v3580
  %v3582 = vpop.f32.mrf.mxu0
  %3583 = vmatprep.mubr.bf16.mxu0 0
  %3584 = vmatmul.mubr.bf16.gmra.mxu0 %v3530
  %v3585 = vpop.f32.mrf.mxu0
  %v3586 = vadd.f32 0.0, %v3585
  %v3587 = vpop.f32.mrf.mxu0
  %v3588 = vpop.f32.mrf.mxu0
  %v3589 = vadd.f32 0.0, %v3588
  %v3590 = vpop.f32.mrf.mxu0
  %3591 = vmatprep.mubr.bf16.mxu0 0
  %3592 = vmatmul.mubr.bf16.gmra.mxu0 %v3533
  %v3593 = vpop.f32.mrf.mxu0
  %v3594 = vadd.f32 0.0, %v3593
  %v3595 = vpop.f32.mrf.mxu0
  %v3596 = vpop.f32.mrf.mxu0
  %v3597 = vadd.f32 0.0, %v3596
  %v3598 = vpop.f32.mrf.mxu0
  %3599 = vdwg.mxu0
  %3608 = vrot.lane.b32.xlu0 %v2966, 8
  %v3609 = vpop.permute.xlu0 %3608
  %3610 = vrot.lane.b32.xlu0 %v2969, 8
  %v3611 = vpop.permute.xlu0 %3610
  %3612 = vrot.lane.b32.xlu0 %v2974, 8
  %v3613 = vpop.permute.xlu0 %3612
  %3614 = vrot.lane.b32.xlu0 %v2977, 8
  %v3615 = vpop.permute.xlu0 %3614
  %3616 = vrot.lane.b32.xlu0 %v2982, 8
  %v3617 = vpop.permute.xlu0 %3616
  %3618 = vrot.lane.b32.xlu0 %v2985, 8
  %v3619 = vpop.permute.xlu0 %3618
  %3620 = vrot.lane.b32.xlu0 %v2990, 8
  %v3621 = vpop.permute.xlu0 %3620
  %3622 = vrot.lane.b32.xlu0 %v2993, 8
  %v3623 = vpop.permute.xlu0 %3622
  %3640 = vrot.lane.b32.xlu0 %v3268, 16
  %v3641 = vpop.permute.xlu0 %3640
  %3642 = vrot.lane.b32.xlu0 %v3271, 16
  %v3643 = vpop.permute.xlu0 %3642
  %3644 = vrot.lane.b32.xlu0 %v3276, 16
  %v3645 = vpop.permute.xlu0 %3644
  %3646 = vrot.lane.b32.xlu0 %v3279, 16
  %v3647 = vpop.permute.xlu0 %3646
  %3648 = vrot.lane.b32.xlu0 %v3284, 16
  %v3649 = vpop.permute.xlu0 %3648
  %3650 = vrot.lane.b32.xlu0 %v3287, 16
  %v3651 = vpop.permute.xlu0 %3650
  %3652 = vrot.lane.b32.xlu0 %v3292, 16
  %v3653 = vpop.permute.xlu0 %3652
  %3654 = vrot.lane.b32.xlu0 %v3295, 16
  %v3655 = vpop.permute.xlu0 %3654
  %3672 = vrot.lane.b32.xlu0 %v3570, 24
  %v3673 = vpop.permute.xlu0 %3672
  %3674 = vrot.lane.b32.xlu0 %v3573, 24
  %v3675 = vpop.permute.xlu0 %3674
  %3676 = vrot.lane.b32.xlu0 %v3578, 24
  %v3677 = vpop.permute.xlu0 %3676
  %3678 = vrot.lane.b32.xlu0 %v3581, 24
  %v3679 = vpop.permute.xlu0 %3678
  %3680 = vrot.lane.b32.xlu0 %v3586, 24
  %v3681 = vpop.permute.xlu0 %3680
  %3682 = vrot.lane.b32.xlu0 %v3589, 24
  %v3683 = vpop.permute.xlu0 %3682
  %3684 = vrot.lane.b32.xlu0 %v3594, 24
  %v3685 = vpop.permute.xlu0 %3684
  %3686 = vrot.lane.b32.xlu0 %v3597, 24
  %v3687 = vpop.permute.xlu0 %3686
  %v3696 = vsel %vm308, %v2664, %v3609
  %v3697 = vsel %vm308, %v2667, %v3611
  %v3698 = vsel %vm308, %v2672, %v3613
  %v3699 = vsel %vm308, %v2675, %v3615
  %v3700 = vsel %vm308, %v2680, %v3617
  %v3701 = vsel %vm308, %v2683, %v3619
  %v3702 = vsel %vm308, %v2688, %v3621
  %v3703 = vsel %vm308, %v2691, %v3623
  %v3704 = vsel %vm1606, %v3696, %v3641
  %v3705 = vsel %vm1606, %v3697, %v3643
  %v3706 = vsel %vm1606, %v3698, %v3645
  %v3707 = vsel %vm1606, %v3699, %v3647
  %v3708 = vsel %vm1606, %v3700, %v3649
  %v3709 = vsel %vm1606, %v3701, %v3651
  %v3710 = vsel %vm1606, %v3702, %v3653
  %v3711 = vsel %vm1606, %v3703, %v3655
  %v3712 = vsel %vm1615, %v3704, %v3673
  %v3713 = vsel %vm1615, %v3705, %v3675
  %v3714 = vsel %vm1615, %v3706, %v3677
  %v3715 = vsel %vm1615, %v3707, %v3679
  %v3716 = vsel %vm1615, %v3708, %v3681
  %v3717 = vsel %vm1615, %v3709, %v3683
  %v3718 = vsel %vm1615, %v3710, %v3685
  %v3719 = vsel %vm1615, %v3711, %v3687
  %v3720 = vpack.c.bf16 %v3713, %v3712
  %v3721 = vpack.c.bf16 %v3715, %v3714
  %v3722 = vpack.c.bf16 %v3717, %v3716
  %v3723 = vpack.c.bf16 %v3719, %v3718
  %s3724 = scalar_lea.vmem %s4, 16
  %v3725 = vld [vmem:[%s3724] sm:$0xf]
  %v3726 = vld [vmem:[%s3724 + $0x4] sm:$0xf]
  %v3727 = vld [vmem:[%s3724 + $0x8] sm:$0xf]
  %v3728 = vld [vmem:[%s3724 + $0xc] sm:$0xf]
  %v3729 = vlaneseq
  %v3730 = vshrl.u32 %v3729, 7
  %v3731 = vsub.s32 1, %v3730
  %v3732 = vrot.slane %v2289, %v3731
  %v3737 = vunpack.c.l.b16 %v3725
  %v3738 = vunpack.c.l.b16 %v3726
  %v3739 = vunpack.c.l.b16 %v3727
  %v3740 = vunpack.c.l.b16 %v3728
  %v3741 = vpack.c.b16 %v3738, %v3737
  %v3742 = vpack.c.b16 %v3740, %v3739
  %v3746 = vsel %vm112, %v3720, 0
  %v3749 = vsel %vm112, %v3721, 0
  %v3752 = vsel %vm112, %v3722, 0
  %v3755 = vsel %vm112, %v3723, 0
  %3757 = vmatprep.subr.bf16.mxu0 0
  %3758 = vmatpush1.bf16.msra.mxu0 0
  %3759 = vmatprep.subr.bf16.mxu0 0
  %3760 = vmatpush1.bf16.msra.mxu0 0
  %3761 = vmatprep.subr.bf16.mxu0 0
  %3762 = vmatpush1.bf16.msra.mxu0 0
  %3763 = vmatprep.subr.bf16.mxu0 0
  %3764 = vmatpush1.bf16.msra.mxu0 0
  %3765 = vmatprep.subr.bf16.mxu0 0
  %3766 = vmatpush1.bf16.msra.mxu0 0
  %3767 = vmatprep.subr.bf16.mxu0 0
  %3768 = vmatpush1.bf16.msra.mxu0 0
  %3769 = vmatprep.subr.bf16.mxu0 0
  %3770 = vmatpush1.bf16.msra.mxu0 %v3742
  %3771 = vmatprep.subr.bf16.mxu0 0
  %3772 = vmatpush1.bf16.msra.mxu0 %v3741
  %3773 = vmatprep.subr.bf16.mxu0 0
  %3774 = vmatpush2.bf16.msra.mxu0 0
  %3775 = vmatprep.subr.bf16.mxu0 0
  %3776 = vmatpush2.bf16.msra.mxu0 0
  %3777 = vmatprep.subr.bf16.mxu0 0
  %3778 = vmatpush2.bf16.msra.mxu0 0
  %3779 = vmatprep.subr.bf16.mxu0 0
  %3780 = vmatpush2.bf16.msra.mxu0 0
  %3781 = vmatprep.subr.bf16.mxu0 0
  %3782 = vmatpush2.bf16.msra.mxu0 0
  %3783 = vmatprep.subr.bf16.mxu0 0
  %3784 = vmatpush2.bf16.msra.mxu0 0
  %3785 = vmatprep.subr.bf16.mxu0 0
  %3786 = vmatpush2.bf16.msra.mxu0 0
  %3787 = vmatprep.subr.bf16.mxu0 0
  %3788 = vmatpush2.bf16.msra.mxu0 0
  %3789 = vmatprep.mubr.bf16.mxu0 0
  %3790 = vmatmul.mubr.bf16.gmra.mxu0 %v3746
  %v3791 = vpop.f32.mrf.mxu0
  %v3792 = vadd.f32 %v3732, %v3791
  %v3793 = vpop.f32.mrf.mxu0
  %v3794 = vpop.f32.mrf.mxu0
  %v3795 = vadd.f32 %v3732, %v3794
  %v3796 = vpop.f32.mrf.mxu0
  %3797 = vmatprep.mubr.bf16.mxu0 0
  %3798 = vmatmul.mubr.bf16.gmra.mxu0 %v3749
  %v3799 = vpop.f32.mrf.mxu0
  %v3800 = vadd.f32 %v3732, %v3799
  %v3801 = vpop.f32.mrf.mxu0
  %v3802 = vpop.f32.mrf.mxu0
  %v3803 = vadd.f32 %v3732, %v3802
  %v3804 = vpop.f32.mrf.mxu0
  %3805 = vmatprep.mubr.bf16.mxu0 0
  %3806 = vmatmul.mubr.bf16.gmra.mxu0 %v3752
  %v3807 = vpop.f32.mrf.mxu0
  %v3808 = vadd.f32 %v3732, %v3807
  %v3809 = vpop.f32.mrf.mxu0
  %v3810 = vpop.f32.mrf.mxu0
  %v3811 = vadd.f32 %v3732, %v3810
  %v3812 = vpop.f32.mrf.mxu0
  %3813 = vmatprep.mubr.bf16.mxu0 0
  %3814 = vmatmul.mubr.bf16.gmra.mxu0 %v3755
  %v3815 = vpop.f32.mrf.mxu0
  %v3816 = vadd.f32 %v3732, %v3815
  %v3817 = vpop.f32.mrf.mxu0
  %v3818 = vpop.f32.mrf.mxu0
  %v3819 = vadd.f32 %v3732, %v3818
  %v3820 = vpop.f32.mrf.mxu0
  %3821 = vdwg.mxu0
  %v3822 = vadd.f32 %v2280, %v3792
  %v3823 = vadd.f32 %v2281, %v3795
  %v3824 = vadd.f32 %v2282, %v3800
  %v3825 = vadd.f32 %v2283, %v3803
  %v3826 = vadd.f32 %v2284, %v3808
  %v3827 = vadd.f32 %v2285, %v3811
  %v3828 = vadd.f32 %v2286, %v3816
  %v3829 = vadd.f32 %v2287, %v3819
  %v3830 = vsel %vm112, %v3822, 0.0
  %3831 = vadd.xlane.f32.xlu0 %v3830
  %v3832 = vpop.xlane.xlu0 %3831
  %v3833 = vsel %vm112, %v3823, 0.0
  %3834 = vadd.xlane.f32.xlu0 %v3833
  %v3835 = vpop.xlane.xlu0 %3834
  %v3836 = vsel %vm112, %v3824, 0.0
  %3837 = vadd.xlane.f32.xlu0 %v3836
  %v3838 = vpop.xlane.xlu0 %3837
  %v3839 = vsel %vm112, %v3825, 0.0
  %3840 = vadd.xlane.f32.xlu0 %v3839
  %v3841 = vpop.xlane.xlu0 %3840
  %v3842 = vsel %vm112, %v3826, 0.0
  %3843 = vadd.xlane.f32.xlu0 %v3842
  %v3844 = vpop.xlane.xlu0 %3843
  %v3845 = vsel %vm112, %v3827, 0.0
  %3846 = vadd.xlane.f32.xlu0 %v3845
  %v3847 = vpop.xlane.xlu0 %3846
  %v3848 = vsel %vm112, %v3828, 0.0
  %3849 = vadd.xlane.f32.xlu0 %v3848
  %v3850 = vpop.xlane.xlu0 %3849
  %v3851 = vsel %vm112, %v3829, 0.0
  %3852 = vadd.xlane.f32.xlu0 %v3851
  %v3853 = vpop.xlane.xlu0 %3852
  %v3854 = vmul.f32 %v3832, %v1757
  %v3855 = vmul.f32 %v3835, %v1757
  %v3856 = vmul.f32 %v3838, %v1757
  %v3857 = vmul.f32 %v3841, %v1757
  %v3858 = vmul.f32 %v3844, %v1757
  %v3859 = vmul.f32 %v3847, %v1757
  %v3860 = vmul.f32 %v3850, %v1757
  %v3861 = vmul.f32 %v3853, %v1757
  %v3862 = vsub.f32 %v3822, %v3854
  %v3863 = vsub.f32 %v3823, %v3855
  %v3864 = vsub.f32 %v3824, %v3856
  %v3865 = vsub.f32 %v3825, %v3857
  %v3866 = vsub.f32 %v3826, %v3858
  %v3867 = vsub.f32 %v3827, %v3859
  %v3868 = vsub.f32 %v3828, %v3860
  %v3869 = vsub.f32 %v3829, %v3861
  %v3870 = vmul.f32 %v3862, %v3862
  %v3871 = vmul.f32 %v3863, %v3863
  %v3872 = vmul.f32 %v3864, %v3864
  %v3873 = vmul.f32 %v3865, %v3865
  %v3874 = vmul.f32 %v3866, %v3866
  %v3875 = vmul.f32 %v3867, %v3867
  %v3876 = vmul.f32 %v3868, %v3868
  %v3877 = vmul.f32 %v3869, %v3869
  %v3878 = vsel %vm112, %v3870, 0.0
  %3879 = vadd.xlane.f32.xlu0 %v3878
  %v3880 = vpop.xlane.xlu0 %3879
  %v3881 = vsel %vm112, %v3871, 0.0
  %3882 = vadd.xlane.f32.xlu0 %v3881
  %v3883 = vpop.xlane.xlu0 %3882
  %v3884 = vsel %vm112, %v3872, 0.0
  %3885 = vadd.xlane.f32.xlu0 %v3884
  %v3886 = vpop.xlane.xlu0 %3885
  %v3887 = vsel %vm112, %v3873, 0.0
  %3888 = vadd.xlane.f32.xlu0 %v3887
  %v3889 = vpop.xlane.xlu0 %3888
  %v3890 = vsel %vm112, %v3874, 0.0
  %3891 = vadd.xlane.f32.xlu0 %v3890
  %v3892 = vpop.xlane.xlu0 %3891
  %v3893 = vsel %vm112, %v3875, 0.0
  %3894 = vadd.xlane.f32.xlu0 %v3893
  %v3895 = vpop.xlane.xlu0 %3894
  %v3896 = vsel %vm112, %v3876, 0.0
  %3897 = vadd.xlane.f32.xlu0 %v3896
  %v3898 = vpop.xlane.xlu0 %3897
  %v3899 = vsel %vm112, %v3877, 0.0
  %3900 = vadd.xlane.f32.xlu0 %v3899
  %v3901 = vpop.xlane.xlu0 %3900
  %v3902 = vmul.f32 %v3880, %v1757
  %v3903 = vmul.f32 %v3883, %v1757
  %v3904 = vmul.f32 %v3886, %v1757
  %v3905 = vmul.f32 %v3889, %v1757
  %v3906 = vmul.f32 %v3892, %v1757
  %v3907 = vmul.f32 %v3895, %v1757
  %v3908 = vmul.f32 %v3898, %v1757
  %v3909 = vmul.f32 %v3901, %v1757
  %v3910 = vadd.f32 %v3902, 1e-05
  %v3911 = vadd.f32 %v3903, 1e-05
  %v3912 = vadd.f32 %v3904, 1e-05
  %v3913 = vadd.f32 %v3905, 1e-05
  %v3914 = vadd.f32 %v3906, 1e-05
  %v3915 = vadd.f32 %v3907, 1e-05
  %v3916 = vadd.f32 %v3908, 1e-05
  %v3917 = vadd.f32 %v3909, 1e-05
  %v3918 = vrsqrt.pop %v3910
  %v3919 = vrsqrt.pop %v3911
  %v3920 = vrsqrt.pop %v3912
  %v3921 = vrsqrt.pop %v3913
  %v3922 = vrsqrt.pop %v3914
  %v3923 = vrsqrt.pop %v3915
  %v3924 = vrsqrt.pop %v3916
  %v3925 = vrsqrt.pop %v3917
  %v3926 = vmul.f32 %v3862, %v3918
  %v3927 = vmul.f32 %v3863, %v3919
  %v3928 = vmul.f32 %v3864, %v3920
  %v3929 = vmul.f32 %v3865, %v3921
  %v3930 = vmul.f32 %v3866, %v3922
  %v3931 = vmul.f32 %v3867, %v3923
  %v3932 = vmul.f32 %v3868, %v3924
  %v3933 = vmul.f32 %v3869, %v3925
  %v3934 = vlaneseq
  %v3935 = vshrl.u32 %v3934, 7
  %v3936 = vsub.s32 2, %v3935
  %v3937 = vrot.slane %v2289, %v3936
  %v3938 = vmul.f32 %v3926, %v3937
  %v3939 = vmul.f32 %v3927, %v3937
  %v3940 = vmul.f32 %v3928, %v3937
  %v3941 = vmul.f32 %v3929, %v3937
  %v3942 = vmul.f32 %v3930, %v3937
  %v3943 = vmul.f32 %v3931, %v3937
  %v3944 = vmul.f32 %v3932, %v3937
  %v3945 = vmul.f32 %v3933, %v3937
  %v3946 = vlaneseq
  %v3947 = vshrl.u32 %v3946, 7
  %v3948 = vsub.s32 3, %v3947
  %v3949 = vrot.slane %v2289, %v3948
  %v3950 = vadd.f32 %v3938, %v3949
  %v3951 = vadd.f32 %v3939, %v3949
  %v3952 = vadd.f32 %v3940, %v3949
  %v3953 = vadd.f32 %v3941, %v3949
  %v3954 = vadd.f32 %v3942, %v3949
  %v3955 = vadd.f32 %v3943, %v3949
  %v3956 = vadd.f32 %v3944, %v3949
  %v3957 = vadd.f32 %v3945, %v3949
  %v3958 = vpack.c.bf16 %v3951, %v3950
  %v3959 = vpack.c.bf16 %v3953, %v3952
  %v3960 = vpack.c.bf16 %v3955, %v3954
  %v3961 = vpack.c.bf16 %v3957, %v3956
  %s3962 = scalar_lea.vmem %s5, 16
  %v3963 = vld [vmem:[%s3962] sm:$0xf]
  %v3964 = vld [vmem:[%s3962 + $0x4] sm:$0xf]
  %v3965 = vld [vmem:[%s3962 + $0x8] sm:$0xf]
  %v3966 = vld [vmem:[%s3962 + $0xc] sm:$0xf]
  %v3967 = vlaneseq
  %v3968 = vshrl.u32 %v3967, 7
  %v3969 = vsub.s32 4, %v3968
  %v3970 = vrot.slane %v2289, %v3969
  %v3975 = vunpack.c.l.b16 %v3963
  %v3976 = vunpack.c.l.b16 %v3964
  %v3977 = vunpack.c.l.b16 %v3965
  %v3978 = vunpack.c.l.b16 %v3966
  %v3979 = vpack.c.b16 %v3976, %v3975
  %v3980 = vpack.c.b16 %v3978, %v3977
  %v3984 = vsel %vm112, %v3958, 0
  %v3987 = vsel %vm112, %v3959, 0
  %v3990 = vsel %vm112, %v3960, 0
  %v3993 = vsel %vm112, %v3961, 0
  %3995 = vmatprep.subr.bf16.mxu0 0
  %3996 = vmatpush1.bf16.msra.mxu0 0
  %3997 = vmatprep.subr.bf16.mxu0 0
  %3998 = vmatpush1.bf16.msra.mxu0 0
  %3999 = vmatprep.subr.bf16.mxu0 0
  %4000 = vmatpush1.bf16.msra.mxu0 0
  %4001 = vmatprep.subr.bf16.mxu0 0
  %4002 = vmatpush1.bf16.msra.mxu0 0
  %4003 = vmatprep.subr.bf16.mxu0 0
  %4004 = vmatpush1.bf16.msra.mxu0 0
  %4005 = vmatprep.subr.bf16.mxu0 0
  %4006 = vmatpush1.bf16.msra.mxu0 0
  %4007 = vmatprep.subr.bf16.mxu0 0
  %4008 = vmatpush1.bf16.msra.mxu0 %v3980
  %4009 = vmatprep.subr.bf16.mxu0 0
  %4010 = vmatpush1.bf16.msra.mxu0 %v3979
  %4011 = vmatprep.subr.bf16.mxu0 0
  %4012 = vmatpush2.bf16.msra.mxu0 0
  %4013 = vmatprep.subr.bf16.mxu0 0
  %4014 = vmatpush2.bf16.msra.mxu0 0
  %4015 = vmatprep.subr.bf16.mxu0 0
  %4016 = vmatpush2.bf16.msra.mxu0 0
  %4017 = vmatprep.subr.bf16.mxu0 0
  %4018 = vmatpush2.bf16.msra.mxu0 0
  %4019 = vmatprep.subr.bf16.mxu0 0
  %4020 = vmatpush2.bf16.msra.mxu0 0
  %4021 = vmatprep.subr.bf16.mxu0 0
  %4022 = vmatpush2.bf16.msra.mxu0 0
  %4023 = vmatprep.subr.bf16.mxu0 0
  %4024 = vmatpush2.bf16.msra.mxu0 0
  %4025 = vmatprep.subr.bf16.mxu0 0
  %4026 = vmatpush2.bf16.msra.mxu0 0
  %4027 = vmatprep.mubr.bf16.mxu0 0
  %4028 = vmatmul.mubr.bf16.gmra.mxu0 %v3984
  %v4029 = vpop.f32.mrf.mxu0
  %v4030 = vadd.f32 %v3970, %v4029
  %v4031 = vpop.f32.mrf.mxu0
  %v4032 = vpop.f32.mrf.mxu0
  %v4033 = vadd.f32 %v3970, %v4032
  %v4034 = vpop.f32.mrf.mxu0
  %4035 = vmatprep.mubr.bf16.mxu0 0
  %4036 = vmatmul.mubr.bf16.gmra.mxu0 %v3987
  %v4037 = vpop.f32.mrf.mxu0
  %v4038 = vadd.f32 %v3970, %v4037
  %v4039 = vpop.f32.mrf.mxu0
  %v4040 = vpop.f32.mrf.mxu0
  %v4041 = vadd.f32 %v3970, %v4040
  %v4042 = vpop.f32.mrf.mxu0
  %4043 = vmatprep.mubr.bf16.mxu0 0
  %4044 = vmatmul.mubr.bf16.gmra.mxu0 %v3990
  %v4045 = vpop.f32.mrf.mxu0
  %v4046 = vadd.f32 %v3970, %v4045
  %v4047 = vpop.f32.mrf.mxu0
  %v4048 = vpop.f32.mrf.mxu0
  %v4049 = vadd.f32 %v3970, %v4048
  %v4050 = vpop.f32.mrf.mxu0
  %4051 = vmatprep.mubr.bf16.mxu0 0
  %4052 = vmatmul.mubr.bf16.gmra.mxu0 %v3993
  %v4053 = vpop.f32.mrf.mxu0
  %v4054 = vadd.f32 %v3970, %v4053
  %v4055 = vpop.f32.mrf.mxu0
  %v4056 = vpop.f32.mrf.mxu0
  %v4057 = vadd.f32 %v3970, %v4056
  %v4058 = vpop.f32.mrf.mxu0
  %4059 = vdwg.mxu0
  %v4060 = vmul.f32 %v4030, 0.5
  %v4061 = vmul.f32 %v4033, 0.5
  %v4062 = vmul.f32 %v4038, 0.5
  %v4063 = vmul.f32 %v4041, 0.5
  %v4064 = vmul.f32 %v4046, 0.5
  %v4065 = vmul.f32 %v4049, 0.5
  %v4066 = vmul.f32 %v4054, 0.5
  %v4067 = vmul.f32 %v4057, 0.5
  %v4068 = vmul.f32 %v4030, 0.044715
  %v4069 = vmul.f32 %v4033, 0.044715
  %v4070 = vmul.f32 %v4038, 0.044715
  %v4071 = vmul.f32 %v4041, 0.044715
  %v4072 = vmul.f32 %v4046, 0.044715
  %v4073 = vmul.f32 %v4049, 0.044715
  %v4074 = vmul.f32 %v4054, 0.044715
  %v4075 = vmul.f32 %v4057, 0.044715
  %v4076 = vmul.f32 %v4068, %v4030
  %v4077 = vmul.f32 %v4069, %v4033
  %v4078 = vmul.f32 %v4070, %v4038
  %v4079 = vmul.f32 %v4071, %v4041
  %v4080 = vmul.f32 %v4072, %v4046
  %v4081 = vmul.f32 %v4073, %v4049
  %v4082 = vmul.f32 %v4074, %v4054
  %v4083 = vmul.f32 %v4075, %v4057
  %v4084 = vmul.f32 %v4076, %v4030
  %v4085 = vmul.f32 %v4077, %v4033
  %v4086 = vmul.f32 %v4078, %v4038
  %v4087 = vmul.f32 %v4079, %v4041
  %v4088 = vmul.f32 %v4080, %v4046
  %v4089 = vmul.f32 %v4081, %v4049
  %v4090 = vmul.f32 %v4082, %v4054
  %v4091 = vmul.f32 %v4083, %v4057
  %v4092 = vadd.f32 %v4030, %v4084
  %v4093 = vadd.f32 %v4033, %v4085
  %v4094 = vadd.f32 %v4038, %v4086
  %v4095 = vadd.f32 %v4041, %v4087
  %v4096 = vadd.f32 %v4046, %v4088
  %v4097 = vadd.f32 %v4049, %v4089
  %v4098 = vadd.f32 %v4054, %v4090
  %v4099 = vadd.f32 %v4057, %v4091
  %v4100 = vmul.f32 %v4092, 0.7978846
  %v4101 = vmul.f32 %v4093, 0.7978846
  %v4102 = vmul.f32 %v4094, 0.7978846
  %v4103 = vmul.f32 %v4095, 0.7978846
  %v4104 = vmul.f32 %v4096, 0.7978846
  %v4105 = vmul.f32 %v4097, 0.7978846
  %v4106 = vmul.f32 %v4098, 0.7978846
  %v4107 = vmul.f32 %v4099, 0.7978846
  %v4108 = vtanh.pop %v4100
  %v4109 = vtanh.pop %v4101
  %v4110 = vtanh.pop %v4102
  %v4111 = vtanh.pop %v4103
  %v4112 = vtanh.pop %v4104
  %v4113 = vtanh.pop %v4105
  %v4114 = vtanh.pop %v4106
  %v4115 = vtanh.pop %v4107
  %v4116 = vadd.f32 %v4108, 1.0
  %v4117 = vadd.f32 %v4109, 1.0
  %v4118 = vadd.f32 %v4110, 1.0
  %v4119 = vadd.f32 %v4111, 1.0
  %v4120 = vadd.f32 %v4112, 1.0
  %v4121 = vadd.f32 %v4113, 1.0
  %v4122 = vadd.f32 %v4114, 1.0
  %v4123 = vadd.f32 %v4115, 1.0
  %v4124 = vmul.f32 %v4060, %v4116
  %v4125 = vmul.f32 %v4061, %v4117
  %v4126 = vmul.f32 %v4062, %v4118
  %v4127 = vmul.f32 %v4063, %v4119
  %v4128 = vmul.f32 %v4064, %v4120
  %v4129 = vmul.f32 %v4065, %v4121
  %v4130 = vmul.f32 %v4066, %v4122
  %v4131 = vmul.f32 %v4067, %v4123
  %v4132 = vpack.c.bf16 %v4125, %v4124
  %v4133 = vpack.c.bf16 %v4127, %v4126
  %v4134 = vpack.c.bf16 %v4129, %v4128
  %v4135 = vpack.c.bf16 %v4131, %v4130
  %s4136 = scalar_lea.vmem %s6, 32
  %v4137 = vld [vmem:[%s4136] sm:$0xf]
  %v4138 = vld [vmem:[%s4136 + $0x4] sm:$0xf]
  %v4139 = vld [vmem:[%s4136 + $0x8] sm:$0xf]
  %v4140 = vld [vmem:[%s4136 + $0xc] sm:$0xf]
  %v4141 = vld [vmem:[%s4136 + $0x10] sm:$0xf]
  %v4142 = vld [vmem:[%s4136 + $0x14] sm:$0xf]
  %v4143 = vld [vmem:[%s4136 + $0x18] sm:$0xf]
  %v4144 = vld [vmem:[%s4136 + $0x1c] sm:$0xf]
  %v4145 = vlaneseq
  %v4146 = vshrl.u32 %v4145, 7
  %v4147 = vsub.s32 5, %v4146
  %v4148 = vrot.slane %v2289, %v4147
  %v4157 = vunpack.c.l.b16 %v4137
  %v4158 = vunpack.c.l.b16 %v4138
  %v4159 = vunpack.c.l.b16 %v4139
  %v4160 = vunpack.c.l.b16 %v4140
  %v4161 = vunpack.c.l.b16 %v4141
  %v4162 = vunpack.c.l.b16 %v4142
  %v4163 = vunpack.c.l.b16 %v4143
  %v4164 = vunpack.c.l.b16 %v4144
  %v4165 = vpack.c.b16 %v4158, %v4157
  %v4166 = vpack.c.b16 %v4160, %v4159
  %v4167 = vpack.c.b16 %v4162, %v4161
  %v4168 = vpack.c.b16 %v4164, %v4163
  %v4174 = vsel %vm414, %v4132, 0
  %v4177 = vsel %vm414, %v4133, 0
  %v4180 = vsel %vm414, %v4134, 0
  %v4183 = vsel %vm414, %v4135, 0
  %4185 = vmatprep.subr.bf16.mxu0 0
  %4186 = vmatpush1.bf16.msra.mxu0 0
  %4187 = vmatprep.subr.bf16.mxu0 0
  %4188 = vmatpush1.bf16.msra.mxu0 0
  %4189 = vmatprep.subr.bf16.mxu0 0
  %4190 = vmatpush1.bf16.msra.mxu0 0
  %4191 = vmatprep.subr.bf16.mxu0 0
  %4192 = vmatpush1.bf16.msra.mxu0 0
  %4193 = vmatprep.subr.bf16.mxu0 0
  %4194 = vmatpush1.bf16.msra.mxu0 %v4168
  %4195 = vmatprep.subr.bf16.mxu0 0
  %4196 = vmatpush1.bf16.msra.mxu0 %v4167
  %4197 = vmatprep.subr.bf16.mxu0 0
  %4198 = vmatpush1.bf16.msra.mxu0 %v4166
  %4199 = vmatprep.subr.bf16.mxu0 0
  %4200 = vmatpush1.bf16.msra.mxu0 %v4165
  %4201 = vmatprep.subr.bf16.mxu0 0
  %4202 = vmatpush2.bf16.msra.mxu0 0
  %4203 = vmatprep.subr.bf16.mxu0 0
  %4204 = vmatpush2.bf16.msra.mxu0 0
  %4205 = vmatprep.subr.bf16.mxu0 0
  %4206 = vmatpush2.bf16.msra.mxu0 0
  %4207 = vmatprep.subr.bf16.mxu0 0
  %4208 = vmatpush2.bf16.msra.mxu0 0
  %4209 = vmatprep.subr.bf16.mxu0 0
  %4210 = vmatpush2.bf16.msra.mxu0 0
  %4211 = vmatprep.subr.bf16.mxu0 0
  %4212 = vmatpush2.bf16.msra.mxu0 0
  %4213 = vmatprep.subr.bf16.mxu0 0
  %4214 = vmatpush2.bf16.msra.mxu0 0
  %4215 = vmatprep.subr.bf16.mxu0 0
  %4216 = vmatpush2.bf16.msra.mxu0 0
  %4217 = vmatprep.mubr.bf16.mxu0 0
  %4218 = vmatmul.mubr.bf16.gmra.mxu0 %v4174
  %v4219 = vpop.f32.mrf.mxu0
  %v4220 = vadd.f32 %v4148, %v4219
  %v4221 = vpop.f32.mrf.mxu0
  %v4222 = vpop.f32.mrf.mxu0
  %v4223 = vadd.f32 %v4148, %v4222
  %v4224 = vpop.f32.mrf.mxu0
  %4225 = vmatprep.mubr.bf16.mxu0 0
  %4226 = vmatmul.mubr.bf16.gmra.mxu0 %v4177
  %v4227 = vpop.f32.mrf.mxu0
  %v4228 = vadd.f32 %v4148, %v4227
  %v4229 = vpop.f32.mrf.mxu0
  %v4230 = vpop.f32.mrf.mxu0
  %v4231 = vadd.f32 %v4148, %v4230
  %v4232 = vpop.f32.mrf.mxu0
  %4233 = vmatprep.mubr.bf16.mxu0 0
  %4234 = vmatmul.mubr.bf16.gmra.mxu0 %v4180
  %v4235 = vpop.f32.mrf.mxu0
  %v4236 = vadd.f32 %v4148, %v4235
  %v4237 = vpop.f32.mrf.mxu0
  %v4238 = vpop.f32.mrf.mxu0
  %v4239 = vadd.f32 %v4148, %v4238
  %v4240 = vpop.f32.mrf.mxu0
  %4241 = vmatprep.mubr.bf16.mxu0 0
  %4242 = vmatmul.mubr.bf16.gmra.mxu0 %v4183
  %v4243 = vpop.f32.mrf.mxu0
  %v4244 = vadd.f32 %v4148, %v4243
  %v4245 = vpop.f32.mrf.mxu0
  %v4246 = vpop.f32.mrf.mxu0
  %v4247 = vadd.f32 %v4148, %v4246
  %v4248 = vpop.f32.mrf.mxu0
  %4249 = vdwg.mxu0
  %v4250 = vadd.f32 %v3950, %v4220
  %v4251 = vadd.f32 %v3951, %v4223
  %v4252 = vadd.f32 %v3952, %v4228
  %v4253 = vadd.f32 %v3953, %v4231
  %v4254 = vadd.f32 %v3954, %v4236
  %v4255 = vadd.f32 %v3955, %v4239
  %v4256 = vadd.f32 %v3956, %v4244
  %v4257 = vadd.f32 %v3957, %v4247
  %v4258 = vsel %vm112, %v4250, 0.0
  %4259 = vadd.xlane.f32.xlu0 %v4258
  %v4260 = vpop.xlane.xlu0 %4259
  %v4261 = vsel %vm112, %v4251, 0.0
  %4262 = vadd.xlane.f32.xlu0 %v4261
  %v4263 = vpop.xlane.xlu0 %4262
  %v4264 = vsel %vm112, %v4252, 0.0
  %4265 = vadd.xlane.f32.xlu0 %v4264
  %v4266 = vpop.xlane.xlu0 %4265
  %v4267 = vsel %vm112, %v4253, 0.0
  %4268 = vadd.xlane.f32.xlu0 %v4267
  %v4269 = vpop.xlane.xlu0 %4268
  %v4270 = vsel %vm112, %v4254, 0.0
  %4271 = vadd.xlane.f32.xlu0 %v4270
  %v4272 = vpop.xlane.xlu0 %4271
  %v4273 = vsel %vm112, %v4255, 0.0
  %4274 = vadd.xlane.f32.xlu0 %v4273
  %v4275 = vpop.xlane.xlu0 %4274
  %v4276 = vsel %vm112, %v4256, 0.0
  %4277 = vadd.xlane.f32.xlu0 %v4276
  %v4278 = vpop.xlane.xlu0 %4277
  %v4279 = vsel %vm112, %v4257, 0.0
  %4280 = vadd.xlane.f32.xlu0 %v4279
  %v4281 = vpop.xlane.xlu0 %4280
  %v4282 = vmul.f32 %v4260, %v1757
  %v4283 = vmul.f32 %v4263, %v1757
  %v4284 = vmul.f32 %v4266, %v1757
  %v4285 = vmul.f32 %v4269, %v1757
  %v4286 = vmul.f32 %v4272, %v1757
  %v4287 = vmul.f32 %v4275, %v1757
  %v4288 = vmul.f32 %v4278, %v1757
  %v4289 = vmul.f32 %v4281, %v1757
  %v4290 = vsub.f32 %v4250, %v4282
  %v4291 = vsub.f32 %v4251, %v4283
  %v4292 = vsub.f32 %v4252, %v4284
  %v4293 = vsub.f32 %v4253, %v4285
  %v4294 = vsub.f32 %v4254, %v4286
  %v4295 = vsub.f32 %v4255, %v4287
  %v4296 = vsub.f32 %v4256, %v4288
  %v4297 = vsub.f32 %v4257, %v4289
  %v4298 = vmul.f32 %v4290, %v4290
  %v4299 = vmul.f32 %v4291, %v4291
  %v4300 = vmul.f32 %v4292, %v4292
  %v4301 = vmul.f32 %v4293, %v4293
  %v4302 = vmul.f32 %v4294, %v4294
  %v4303 = vmul.f32 %v4295, %v4295
  %v4304 = vmul.f32 %v4296, %v4296
  %v4305 = vmul.f32 %v4297, %v4297
  %v4306 = vsel %vm112, %v4298, 0.0
  %4307 = vadd.xlane.f32.xlu0 %v4306
  %v4308 = vpop.xlane.xlu0 %4307
  %v4309 = vsel %vm112, %v4299, 0.0
  %4310 = vadd.xlane.f32.xlu0 %v4309
  %v4311 = vpop.xlane.xlu0 %4310
  %v4312 = vsel %vm112, %v4300, 0.0
  %4313 = vadd.xlane.f32.xlu0 %v4312
  %v4314 = vpop.xlane.xlu0 %4313
  %v4315 = vsel %vm112, %v4301, 0.0
  %4316 = vadd.xlane.f32.xlu0 %v4315
  %v4317 = vpop.xlane.xlu0 %4316
  %v4318 = vsel %vm112, %v4302, 0.0
  %4319 = vadd.xlane.f32.xlu0 %v4318
  %v4320 = vpop.xlane.xlu0 %4319
  %v4321 = vsel %vm112, %v4303, 0.0
  %4322 = vadd.xlane.f32.xlu0 %v4321
  %v4323 = vpop.xlane.xlu0 %4322
  %v4324 = vsel %vm112, %v4304, 0.0
  %4325 = vadd.xlane.f32.xlu0 %v4324
  %v4326 = vpop.xlane.xlu0 %4325
  %v4327 = vsel %vm112, %v4305, 0.0
  %4328 = vadd.xlane.f32.xlu0 %v4327
  %v4329 = vpop.xlane.xlu0 %4328
  %v4330 = vmul.f32 %v4308, %v1757
  %v4331 = vmul.f32 %v4311, %v1757
  %v4332 = vmul.f32 %v4314, %v1757
  %v4333 = vmul.f32 %v4317, %v1757
  %v4334 = vmul.f32 %v4320, %v1757
  %v4335 = vmul.f32 %v4323, %v1757
  %v4336 = vmul.f32 %v4326, %v1757
  %v4337 = vmul.f32 %v4329, %v1757
  %v4338 = vadd.f32 %v4330, 1e-05
  %v4339 = vadd.f32 %v4331, 1e-05
  %v4340 = vadd.f32 %v4332, 1e-05
  %v4341 = vadd.f32 %v4333, 1e-05
  %v4342 = vadd.f32 %v4334, 1e-05
  %v4343 = vadd.f32 %v4335, 1e-05
  %v4344 = vadd.f32 %v4336, 1e-05
  %v4345 = vadd.f32 %v4337, 1e-05
  %v4346 = vrsqrt.pop %v4338
  %v4347 = vrsqrt.pop %v4339
  %v4348 = vrsqrt.pop %v4340
  %v4349 = vrsqrt.pop %v4341
  %v4350 = vrsqrt.pop %v4342
  %v4351 = vrsqrt.pop %v4343
  %v4352 = vrsqrt.pop %v4344
  %v4353 = vrsqrt.pop %v4345
  %v4354 = vmul.f32 %v4290, %v4346
  %v4355 = vmul.f32 %v4291, %v4347
  %v4356 = vmul.f32 %v4292, %v4348
  %v4357 = vmul.f32 %v4293, %v4349
  %v4358 = vmul.f32 %v4294, %v4350
  %v4359 = vmul.f32 %v4295, %v4351
  %v4360 = vmul.f32 %v4296, %v4352
  %v4361 = vmul.f32 %v4297, %v4353
  %v4362 = vlaneseq
  %v4363 = vshrl.u32 %v4362, 7
  %v4364 = vsub.s32 6, %v4363
  %v4365 = vrot.slane %v2289, %v4364
  %v4366 = vmul.f32 %v4354, %v4365
  %v4367 = vmul.f32 %v4355, %v4365
  %v4368 = vmul.f32 %v4356, %v4365
  %v4369 = vmul.f32 %v4357, %v4365
  %v4370 = vmul.f32 %v4358, %v4365
  %v4371 = vmul.f32 %v4359, %v4365
  %v4372 = vmul.f32 %v4360, %v4365
  %v4373 = vmul.f32 %v4361, %v4365
  %v4374 = vlaneseq
  %v4375 = vshrl.u32 %v4374, 7
  %v4376 = vsub.s32 7, %v4375
  %v4377 = vrot.slane %v2289, %v4376
  %v4378 = vadd.f32 %v4366, %v4377
  %v4379 = vadd.f32 %v4367, %v4377
  %v4380 = vadd.f32 %v4368, %v4377
  %v4381 = vadd.f32 %v4369, %v4377
  %v4382 = vadd.f32 %v4370, %v4377
  %v4383 = vadd.f32 %v4371, %v4377
  %v4384 = vadd.f32 %v4372, %v4377
  %v4385 = vadd.f32 %v4373, %v4377
  %s4386 = scalar_lea.vmem %s7, 16
  %v4387 = vld [vmem:[%s4386] sm:$0xff]
  %v4388 = vpack.c.bf16 %v4379, %v4378
  %v4389 = vpack.c.bf16 %v4381, %v4380
  %v4390 = vpack.c.bf16 %v4383, %v4382
  %v4391 = vpack.c.bf16 %v4385, %v4384
  %s4392 = scalar_lea.vmem %s3, 32
  %v4393 = vld [vmem:[%s4392] sm:$0xf]
  %v4394 = vld [vmem:[%s4392 + $0x4] sm:$0xf]
  %v4395 = vld [vmem:[%s4392 + $0x8] sm:$0xf]
  %v4396 = vld [vmem:[%s4392 + $0xc] sm:$0xf]
  %v4397 = vlaneseq
  %v4398 = vshrl.u32 %v4397, 7
  %v4399 = vsub.s32 0, %v4398
  %v4400 = vrot.slane %v4387, %v4399
  %v4405 = vunpack.c.l.b16 %v4393
  %v4406 = vunpack.c.l.b16 %v4394
  %v4407 = vunpack.c.l.b16 %v4395
  %v4408 = vunpack.c.l.b16 %v4396
  %v4409 = vpack.c.b16 %v4406, %v4405
  %v4410 = vpack.c.b16 %v4408, %v4407
  %v4414 = vsel %vm112, %v4388, 0
  %v4417 = vsel %vm112, %v4389, 0
  %v4420 = vsel %vm112, %v4390, 0
  %v4423 = vsel %vm112, %v4391, 0
  %4425 = vmatprep.subr.bf16.mxu0 0
  %4426 = vmatpush1.bf16.msra.mxu0 0
  %4427 = vmatprep.subr.bf16.mxu0 0
  %4428 = vmatpush1.bf16.msra.mxu0 0
  %4429 = vmatprep.subr.bf16.mxu0 0
  %4430 = vmatpush1.bf16.msra.mxu0 0
  %4431 = vmatprep.subr.bf16.mxu0 0
  %4432 = vmatpush1.bf16.msra.mxu0 0
  %4433 = vmatprep.subr.bf16.mxu0 0
  %4434 = vmatpush1.bf16.msra.mxu0 0
  %4435 = vmatprep.subr.bf16.mxu0 0
  %4436 = vmatpush1.bf16.msra.mxu0 0
  %4437 = vmatprep.subr.bf16.mxu0 0
  %4438 = vmatpush1.bf16.msra.mxu0 %v4410
  %4439 = vmatprep.subr.bf16.mxu0 0
  %4440 = vmatpush1.bf16.msra.mxu0 %v4409
  %4441 = vmatprep.subr.bf16.mxu0 0
  %4442 = vmatpush2.bf16.msra.mxu0 0
  %4443 = vmatprep.subr.bf16.mxu0 0
  %4444 = vmatpush2.bf16.msra.mxu0 0
  %4445 = vmatprep.subr.bf16.mxu0 0
  %4446 = vmatpush2.bf16.msra.mxu0 0
  %4447 = vmatprep.subr.bf16.mxu0 0
  %4448 = vmatpush2.bf16.msra.mxu0 0
  %4449 = vmatprep.subr.bf16.mxu0 0
  %4450 = vmatpush2.bf16.msra.mxu0 0
  %4451 = vmatprep.subr.bf16.mxu0 0
  %4452 = vmatpush2.bf16.msra.mxu0 0
  %4453 = vmatprep.subr.bf16.mxu0 0
  %4454 = vmatpush2.bf16.msra.mxu0 0
  %4455 = vmatprep.subr.bf16.mxu0 0
  %4456 = vmatpush2.bf16.msra.mxu0 0
  %4457 = vmatprep.mubr.bf16.mxu0 0
  %4458 = vmatmul.mubr.bf16.gmra.mxu0 %v4414
  %v4459 = vpop.f32.mrf.mxu0
  %v4460 = vadd.f32 %v4400, %v4459
  %v4461 = vpop.f32.mrf.mxu0
  %v4462 = vpop.f32.mrf.mxu0
  %v4463 = vadd.f32 %v4400, %v4462
  %v4464 = vpop.f32.mrf.mxu0
  %4465 = vmatprep.mubr.bf16.mxu0 0
  %4466 = vmatmul.mubr.bf16.gmra.mxu0 %v4417
  %v4467 = vpop.f32.mrf.mxu0
  %v4468 = vadd.f32 %v4400, %v4467
  %v4469 = vpop.f32.mrf.mxu0
  %v4470 = vpop.f32.mrf.mxu0
  %v4471 = vadd.f32 %v4400, %v4470
  %v4472 = vpop.f32.mrf.mxu0
  %4473 = vmatprep.mubr.bf16.mxu0 0
  %4474 = vmatmul.mubr.bf16.gmra.mxu0 %v4420
  %v4475 = vpop.f32.mrf.mxu0
  %v4476 = vadd.f32 %v4400, %v4475
  %v4477 = vpop.f32.mrf.mxu0
  %v4478 = vpop.f32.mrf.mxu0
  %v4479 = vadd.f32 %v4400, %v4478
  %v4480 = vpop.f32.mrf.mxu0
  %4481 = vmatprep.mubr.bf16.mxu0 0
  %4482 = vmatmul.mubr.bf16.gmra.mxu0 %v4423
  %v4483 = vpop.f32.mrf.mxu0
  %v4484 = vadd.f32 %v4400, %v4483
  %v4485 = vpop.f32.mrf.mxu0
  %v4486 = vpop.f32.mrf.mxu0
  %v4487 = vadd.f32 %v4400, %v4486
  %v4488 = vpop.f32.mrf.mxu0
  %4489 = vdwg.mxu0
  %v4490 = vpack.c.bf16 %v4463, %v4460
  %v4491 = vpack.c.bf16 %v4471, %v4468
  %v4492 = vpack.c.bf16 %v4479, %v4476
  %v4493 = vpack.c.bf16 %v4487, %v4484
  %4498 = vrot.lane.b32.xlu0 %v4490, 96
  %v4499 = vpop.permute.xlu0 %4498
  %4500 = vrot.lane.b32.xlu0 %v4491, 96
  %v4501 = vpop.permute.xlu0 %4500
  %4502 = vrot.lane.b32.xlu0 %v4492, 96
  %v4503 = vpop.permute.xlu0 %4502
  %4504 = vrot.lane.b32.xlu0 %v4493, 96
  %v4505 = vpop.permute.xlu0 %4504
  %v4507 = vsel %vm308, %v4490, 0
  %v4510 = vsel %vm308, %v4491, 0
  %v4513 = vsel %vm308, %v4492, 0
  %v4516 = vsel %vm308, %v4493, 0
  %v4519 = vsel %vm308, %v4499, 0
  %v4522 = vsel %vm308, %v4501, 0
  %v4525 = vsel %vm308, %v4503, 0
  %v4528 = vsel %vm308, %v4505, 0
  %4530 = vmatprep.subr.bf16.mxu0 0
  %4531 = vmatpush1.bf16.xpose.msra.mxu0 0
  %4532 = vmatprep.subr.bf16.mxu0 0
  %4533 = vmatpush1.bf16.xpose.msra.mxu0 0
  %4534 = vmatprep.subr.bf16.mxu0 0
  %4535 = vmatpush1.bf16.xpose.msra.mxu0 0
  %4536 = vmatprep.subr.bf16.mxu0 0
  %4537 = vmatpush1.bf16.xpose.msra.mxu0 0
  %4538 = vmatprep.subr.bf16.mxu0 0
  %4539 = vmatpush1.bf16.xpose.msra.mxu0 %v4528
  %4540 = vmatprep.subr.bf16.mxu0 0
  %4541 = vmatpush1.bf16.xpose.msra.mxu0 %v4525
  %4542 = vmatprep.subr.bf16.mxu0 0
  %4543 = vmatpush1.bf16.xpose.msra.mxu0 %v4522
  %4544 = vmatprep.subr.bf16.mxu0 0
  %4545 = vmatpush1.bf16.xpose.msra.mxu0 %v4519
  %4546 = vmatprep.subr.bf16.mxu0 0
  %4547 = vmatpush2.bf16.xpose.msra.mxu0 0
  %4548 = vmatprep.subr.bf16.mxu0 0
  %4549 = vmatpush2.bf16.xpose.msra.mxu0 0
  %4550 = vmatprep.subr.bf16.mxu0 0
  %4551 = vmatpush2.bf16.xpose.msra.mxu0 0
  %4552 = vmatprep.subr.bf16.mxu0 0
  %4553 = vmatpush2.bf16.xpose.msra.mxu0 0
  %4554 = vmatprep.subr.bf16.mxu0 0
  %4555 = vmatpush2.bf16.xpose.msra.mxu0 0
  %4556 = vmatprep.subr.bf16.mxu0 0
  %4557 = vmatpush2.bf16.xpose.msra.mxu0 0
  %4558 = vmatprep.subr.bf16.mxu0 0
  %4559 = vmatpush2.bf16.xpose.msra.mxu0 0
  %4560 = vmatprep.subr.bf16.mxu0 0
  %4561 = vmatpush2.bf16.xpose.msra.mxu0 0
  %4562 = vmatprep.mubr.bf16.mxu0 0
  %4563 = vmatmul.mubr.bf16.gmra.mxu0 %v4507
  %v4564 = vpop.f32.mrf.mxu0
  %v4565 = vadd.f32 0.0, %v4564
  %v4566 = vpop.f32.mrf.mxu0
  %v4567 = vpop.f32.mrf.mxu0
  %v4568 = vadd.f32 0.0, %v4567
  %v4569 = vpop.f32.mrf.mxu0
  %4570 = vmatprep.mubr.bf16.mxu0 0
  %4571 = vmatmul.mubr.bf16.gmra.mxu0 %v4510
  %v4572 = vpop.f32.mrf.mxu0
  %v4573 = vadd.f32 0.0, %v4572
  %v4574 = vpop.f32.mrf.mxu0
  %v4575 = vpop.f32.mrf.mxu0
  %v4576 = vadd.f32 0.0, %v4575
  %v4577 = vpop.f32.mrf.mxu0
  %4578 = vmatprep.mubr.bf16.mxu0 0
  %4579 = vmatmul.mubr.bf16.gmra.mxu0 %v4513
  %v4580 = vpop.f32.mrf.mxu0
  %v4581 = vadd.f32 0.0, %v4580
  %v4582 = vpop.f32.mrf.mxu0
  %v4583 = vpop.f32.mrf.mxu0
  %v4584 = vadd.f32 0.0, %v4583
  %v4585 = vpop.f32.mrf.mxu0
  %4586 = vmatprep.mubr.bf16.mxu0 0
  %4587 = vmatmul.mubr.bf16.gmra.mxu0 %v4516
  %v4588 = vpop.f32.mrf.mxu0
  %v4589 = vadd.f32 0.0, %v4588
  %v4590 = vpop.f32.mrf.mxu0
  %v4591 = vpop.f32.mrf.mxu0
  %v4592 = vadd.f32 0.0, %v4591
  %v4593 = vpop.f32.mrf.mxu0
  %4594 = vdwg.mxu0
  %v4595 = vmul.f32 %v4565, 0.35355338
  %v4596 = vmul.f32 %v4568, 0.35355338
  %v4597 = vmul.f32 %v4573, 0.35355338
  %v4598 = vmul.f32 %v4576, 0.35355338
  %v4599 = vmul.f32 %v4581, 0.35355338
  %v4600 = vmul.f32 %v4584, 0.35355338
  %v4601 = vmul.f32 %v4589, 0.35355338
  %v4602 = vmul.f32 %v4592, 0.35355338
  %v4603 = vadd.f32 %v4595, %v60
  %v4604 = vadd.f32 %v4596, %v61
  %v4605 = vadd.f32 %v4597, %v62
  %v4606 = vadd.f32 %v4598, %v63
  %v4607 = vadd.f32 %v4599, %v64
  %v4608 = vadd.f32 %v4600, %v65
  %v4609 = vadd.f32 %v4601, %v66
  %v4610 = vadd.f32 %v4602, %v67
  %v4611 = vsel %vm414, %v4603, -inf
  %4612 = vmax.xlane.f32.xlu0 %v4611
  %v4613 = vpop.xlane.xlu0 %4612
  %v4614 = vsel %vm414, %v4604, -inf
  %4615 = vmax.xlane.f32.xlu0 %v4614
  %v4616 = vpop.xlane.xlu0 %4615
  %v4617 = vsel %vm414, %v4605, -inf
  %4618 = vmax.xlane.f32.xlu0 %v4617
  %v4619 = vpop.xlane.xlu0 %4618
  %v4620 = vsel %vm414, %v4606, -inf
  %4621 = vmax.xlane.f32.xlu0 %v4620
  %v4622 = vpop.xlane.xlu0 %4621
  %v4623 = vsel %vm414, %v4607, -inf
  %4624 = vmax.xlane.f32.xlu0 %v4623
  %v4625 = vpop.xlane.xlu0 %4624
  %v4626 = vsel %vm414, %v4608, -inf
  %4627 = vmax.xlane.f32.xlu0 %v4626
  %v4628 = vpop.xlane.xlu0 %4627
  %v4629 = vsel %vm414, %v4609, -inf
  %4630 = vmax.xlane.f32.xlu0 %v4629
  %v4631 = vpop.xlane.xlu0 %4630
  %v4632 = vsel %vm414, %v4610, -inf
  %4633 = vmax.xlane.f32.xlu0 %v4632
  %v4634 = vpop.xlane.xlu0 %4633
  %v4635 = vsub.f32 %v4603, %v4613
  %v4636 = vsub.f32 %v4604, %v4616
  %v4637 = vsub.f32 %v4605, %v4619
  %v4638 = vsub.f32 %v4606, %v4622
  %v4639 = vsub.f32 %v4607, %v4625
  %v4640 = vsub.f32 %v4608, %v4628
  %v4641 = vsub.f32 %v4609, %v4631
  %v4642 = vsub.f32 %v4610, %v4634
  %v4643 = vmul.f32 %v4635, 1.442695
  %v4644 = vpow.pop %v4643
  %v4645 = vmul.f32 %v4636, 1.442695
  %v4646 = vpow.pop %v4645
  %v4647 = vmul.f32 %v4637, 1.442695
  %v4648 = vpow.pop %v4647
  %v4649 = vmul.f32 %v4638, 1.442695
  %v4650 = vpow.pop %v4649
  %v4651 = vmul.f32 %v4639, 1.442695
  %v4652 = vpow.pop %v4651
  %v4653 = vmul.f32 %v4640, 1.442695
  %v4654 = vpow.pop %v4653
  %v4655 = vmul.f32 %v4641, 1.442695
  %v4656 = vpow.pop %v4655
  %v4657 = vmul.f32 %v4642, 1.442695
  %v4658 = vpow.pop %v4657
  %v4659 = vsel %vm414, %v4644, 0.0
  %4660 = vadd.xlane.f32.xlu0 %v4659
  %v4661 = vpop.xlane.xlu0 %4660
  %v4662 = vsel %vm414, %v4646, 0.0
  %4663 = vadd.xlane.f32.xlu0 %v4662
  %v4664 = vpop.xlane.xlu0 %4663
  %v4665 = vsel %vm414, %v4648, 0.0
  %4666 = vadd.xlane.f32.xlu0 %v4665
  %v4667 = vpop.xlane.xlu0 %4666
  %v4668 = vsel %vm414, %v4650, 0.0
  %4669 = vadd.xlane.f32.xlu0 %v4668
  %v4670 = vpop.xlane.xlu0 %4669
  %v4671 = vsel %vm414, %v4652, 0.0
  %4672 = vadd.xlane.f32.xlu0 %v4671
  %v4673 = vpop.xlane.xlu0 %4672
  %v4674 = vsel %vm414, %v4654, 0.0
  %4675 = vadd.xlane.f32.xlu0 %v4674
  %v4676 = vpop.xlane.xlu0 %4675
  %v4677 = vsel %vm414, %v4656, 0.0
  %4678 = vadd.xlane.f32.xlu0 %v4677
  %v4679 = vpop.xlane.xlu0 %4678
  %v4680 = vsel %vm414, %v4658, 0.0
  %4681 = vadd.xlane.f32.xlu0 %v4680
  %v4682 = vpop.xlane.xlu0 %4681
  %v4683 = vrcp.pop %v4661
  %v4684 = vrcp.pop %v4664
  %v4685 = vrcp.pop %v4667
  %v4686 = vrcp.pop %v4670
  %v4687 = vrcp.pop %v4673
  %v4688 = vrcp.pop %v4676
  %v4689 = vrcp.pop %v4679
  %v4690 = vrcp.pop %v4682
  %v4691 = vmul.f32 %v4644, %v4683
  %v4692 = vmul.f32 %v4646, %v4684
  %v4693 = vmul.f32 %v4648, %v4685
  %v4694 = vmul.f32 %v4650, %v4686
  %v4695 = vmul.f32 %v4652, %v4687
  %v4696 = vmul.f32 %v4654, %v4688
  %v4697 = vmul.f32 %v4656, %v4689
  %v4698 = vmul.f32 %v4658, %v4690
  %v4699 = vpack.c.bf16 %v4692, %v4691
  %v4700 = vpack.c.bf16 %v4694, %v4693
  %v4701 = vpack.c.bf16 %v4696, %v4695
  %v4702 = vpack.c.bf16 %v4698, %v4697
  %4703 = vrot.lane.b32.xlu0 %v4490, 64
  %v4704 = vpop.permute.xlu0 %4703
  %4705 = vrot.lane.b32.xlu0 %v4491, 64
  %v4706 = vpop.permute.xlu0 %4705
  %4707 = vrot.lane.b32.xlu0 %v4492, 64
  %v4708 = vpop.permute.xlu0 %4707
  %4709 = vrot.lane.b32.xlu0 %v4493, 64
  %v4710 = vpop.permute.xlu0 %4709
  %v4716 = vsel %vm414, %v4699, 0
  %v4719 = vsel %vm414, %v4700, 0
  %v4722 = vsel %vm414, %v4701, 0
  %v4725 = vsel %vm414, %v4702, 0
  %4727 = vmatprep.subr.bf16.mxu0 0
  %4728 = vmatpush1.bf16.msra.mxu0 0
  %4729 = vmatprep.subr.bf16.mxu0 0
  %4730 = vmatpush1.bf16.msra.mxu0 0
  %4731 = vmatprep.subr.bf16.mxu0 0
  %4732 = vmatpush1.bf16.msra.mxu0 0
  %4733 = vmatprep.subr.bf16.mxu0 0
  %4734 = vmatpush1.bf16.msra.mxu0 0
  %4735 = vmatprep.subr.bf16.mxu0 0
  %4736 = vmatpush1.bf16.msra.mxu0 %v4710
  %4737 = vmatprep.subr.bf16.mxu0 0
  %4738 = vmatpush1.bf16.msra.mxu0 %v4708
  %4739 = vmatprep.subr.bf16.mxu0 0
  %4740 = vmatpush1.bf16.msra.mxu0 %v4706
  %4741 = vmatprep.subr.bf16.mxu0 0
  %4742 = vmatpush1.bf16.msra.mxu0 %v4704
  %4743 = vmatprep.subr.bf16.mxu0 0
  %4744 = vmatpush2.bf16.msra.mxu0 0
  %4745 = vmatprep.subr.bf16.mxu0 0
  %4746 = vmatpush2.bf16.msra.mxu0 0
  %4747 = vmatprep.subr.bf16.mxu0 0
  %4748 = vmatpush2.bf16.msra.mxu0 0
  %4749 = vmatprep.subr.bf16.mxu0 0
  %4750 = vmatpush2.bf16.msra.mxu0 0
  %4751 = vmatprep.subr.bf16.mxu0 0
  %4752 = vmatpush2.bf16.msra.mxu0 0
  %4753 = vmatprep.subr.bf16.mxu0 0
  %4754 = vmatpush2.bf16.msra.mxu0 0
  %4755 = vmatprep.subr.bf16.mxu0 0
  %4756 = vmatpush2.bf16.msra.mxu0 0
  %4757 = vmatprep.subr.bf16.mxu0 0
  %4758 = vmatpush2.bf16.msra.mxu0 0
  %4759 = vmatprep.mubr.bf16.mxu0 0
  %4760 = vmatmul.mubr.bf16.gmra.mxu0 %v4716
  %v4761 = vpop.f32.mrf.mxu0
  %v4762 = vadd.f32 0.0, %v4761
  %v4763 = vpop.f32.mrf.mxu0
  %v4764 = vpop.f32.mrf.mxu0
  %v4765 = vadd.f32 0.0, %v4764
  %v4766 = vpop.f32.mrf.mxu0
  %4767 = vmatprep.mubr.bf16.mxu0 0
  %4768 = vmatmul.mubr.bf16.gmra.mxu0 %v4719
  %v4769 = vpop.f32.mrf.mxu0
  %v4770 = vadd.f32 0.0, %v4769
  %v4771 = vpop.f32.mrf.mxu0
  %v4772 = vpop.f32.mrf.mxu0
  %v4773 = vadd.f32 0.0, %v4772
  %v4774 = vpop.f32.mrf.mxu0
  %4775 = vmatprep.mubr.bf16.mxu0 0
  %4776 = vmatmul.mubr.bf16.gmra.mxu0 %v4722
  %v4777 = vpop.f32.mrf.mxu0
  %v4778 = vadd.f32 0.0, %v4777
  %v4779 = vpop.f32.mrf.mxu0
  %v4780 = vpop.f32.mrf.mxu0
  %v4781 = vadd.f32 0.0, %v4780
  %v4782 = vpop.f32.mrf.mxu0
  %4783 = vmatprep.mubr.bf16.mxu0 0
  %4784 = vmatmul.mubr.bf16.gmra.mxu0 %v4725
  %v4785 = vpop.f32.mrf.mxu0
  %v4786 = vadd.f32 0.0, %v4785
  %v4787 = vpop.f32.mrf.mxu0
  %v4788 = vpop.f32.mrf.mxu0
  %v4789 = vadd.f32 0.0, %v4788
  %v4790 = vpop.f32.mrf.mxu0
  %4791 = vdwg.mxu0
  %4792 = vrot.lane.b32.xlu0 %v4490, 120
  %v4793 = vpop.permute.xlu0 %4792
  %4794 = vrot.lane.b32.xlu0 %v4491, 120
  %v4795 = vpop.permute.xlu0 %4794
  %4796 = vrot.lane.b32.xlu0 %v4492, 120
  %v4797 = vpop.permute.xlu0 %4796
  %4798 = vrot.lane.b32.xlu0 %v4493, 120
  %v4799 = vpop.permute.xlu0 %4798
  %4800 = vrot.lane.b32.xlu0 %v4490, 88
  %v4801 = vpop.permute.xlu0 %4800
  %4802 = vrot.lane.b32.xlu0 %v4491, 88
  %v4803 = vpop.permute.xlu0 %4802
  %4804 = vrot.lane.b32.xlu0 %v4492, 88
  %v4805 = vpop.permute.xlu0 %4804
  %4806 = vrot.lane.b32.xlu0 %v4493, 88
  %v4807 = vpop.permute.xlu0 %4806
  %v4809 = vsel %vm308, %v4793, 0
  %v4812 = vsel %vm308, %v4795, 0
  %v4815 = vsel %vm308, %v4797, 0
  %v4818 = vsel %vm308, %v4799, 0
  %v4821 = vsel %vm308, %v4801, 0
  %v4824 = vsel %vm308, %v4803, 0
  %v4827 = vsel %vm308, %v4805, 0
  %v4830 = vsel %vm308, %v4807, 0
  %4832 = vmatprep.subr.bf16.mxu0 0
  %4833 = vmatpush1.bf16.xpose.msra.mxu0 0
  %4834 = vmatprep.subr.bf16.mxu0 0
  %4835 = vmatpush1.bf16.xpose.msra.mxu0 0
  %4836 = vmatprep.subr.bf16.mxu0 0
  %4837 = vmatpush1.bf16.xpose.msra.mxu0 0
  %4838 = vmatprep.subr.bf16.mxu0 0
  %4839 = vmatpush1.bf16.xpose.msra.mxu0 0
  %4840 = vmatprep.subr.bf16.mxu0 0
  %4841 = vmatpush1.bf16.xpose.msra.mxu0 %v4830
  %4842 = vmatprep.subr.bf16.mxu0 0
  %4843 = vmatpush1.bf16.xpose.msra.mxu0 %v4827
  %4844 = vmatprep.subr.bf16.mxu0 0
  %4845 = vmatpush1.bf16.xpose.msra.mxu0 %v4824
  %4846 = vmatprep.subr.bf16.mxu0 0
  %4847 = vmatpush1.bf16.xpose.msra.mxu0 %v4821
  %4848 = vmatprep.subr.bf16.mxu0 0
  %4849 = vmatpush2.bf16.xpose.msra.mxu0 0
  %4850 = vmatprep.subr.bf16.mxu0 0
  %4851 = vmatpush2.bf16.xpose.msra.mxu0 0
  %4852 = vmatprep.subr.bf16.mxu0 0
  %4853 = vmatpush2.bf16.xpose.msra.mxu0 0
  %4854 = vmatprep.subr.bf16.mxu0 0
  %4855 = vmatpush2.bf16.xpose.msra.mxu0 0
  %4856 = vmatprep.subr.bf16.mxu0 0
  %4857 = vmatpush2.bf16.xpose.msra.mxu0 0
  %4858 = vmatprep.subr.bf16.mxu0 0
  %4859 = vmatpush2.bf16.xpose.msra.mxu0 0
  %4860 = vmatprep.subr.bf16.mxu0 0
  %4861 = vmatpush2.bf16.xpose.msra.mxu0 0
  %4862 = vmatprep.subr.bf16.mxu0 0
  %4863 = vmatpush2.bf16.xpose.msra.mxu0 0
  %4864 = vmatprep.mubr.bf16.mxu0 0
  %4865 = vmatmul.mubr.bf16.gmra.mxu0 %v4809
  %v4866 = vpop.f32.mrf.mxu0
  %v4867 = vadd.f32 0.0, %v4866
  %v4868 = vpop.f32.mrf.mxu0
  %v4869 = vpop.f32.mrf.mxu0
  %v4870 = vadd.f32 0.0, %v4869
  %v4871 = vpop.f32.mrf.mxu0
  %4872 = vmatprep.mubr.bf16.mxu0 0
  %4873 = vmatmul.mubr.bf16.gmra.mxu0 %v4812
  %v4874 = vpop.f32.mrf.mxu0
  %v4875 = vadd.f32 0.0, %v4874
  %v4876 = vpop.f32.mrf.mxu0
  %v4877 = vpop.f32.mrf.mxu0
  %v4878 = vadd.f32 0.0, %v4877
  %v4879 = vpop.f32.mrf.mxu0
  %4880 = vmatprep.mubr.bf16.mxu0 0
  %4881 = vmatmul.mubr.bf16.gmra.mxu0 %v4815
  %v4882 = vpop.f32.mrf.mxu0
  %v4883 = vadd.f32 0.0, %v4882
  %v4884 = vpop.f32.mrf.mxu0
  %v4885 = vpop.f32.mrf.mxu0
  %v4886 = vadd.f32 0.0, %v4885
  %v4887 = vpop.f32.mrf.mxu0
  %4888 = vmatprep.mubr.bf16.mxu0 0
  %4889 = vmatmul.mubr.bf16.gmra.mxu0 %v4818
  %v4890 = vpop.f32.mrf.mxu0
  %v4891 = vadd.f32 0.0, %v4890
  %v4892 = vpop.f32.mrf.mxu0
  %v4893 = vpop.f32.mrf.mxu0
  %v4894 = vadd.f32 0.0, %v4893
  %v4895 = vpop.f32.mrf.mxu0
  %4896 = vdwg.mxu0
  %v4897 = vmul.f32 %v4867, 0.35355338
  %v4898 = vmul.f32 %v4870, 0.35355338
  %v4899 = vmul.f32 %v4875, 0.35355338
  %v4900 = vmul.f32 %v4878, 0.35355338
  %v4901 = vmul.f32 %v4883, 0.35355338
  %v4902 = vmul.f32 %v4886, 0.35355338
  %v4903 = vmul.f32 %v4891, 0.35355338
  %v4904 = vmul.f32 %v4894, 0.35355338
  %v4905 = vadd.f32 %v4897, %v60
  %v4906 = vadd.f32 %v4898, %v61
  %v4907 = vadd.f32 %v4899, %v62
  %v4908 = vadd.f32 %v4900, %v63
  %v4909 = vadd.f32 %v4901, %v64
  %v4910 = vadd.f32 %v4902, %v65
  %v4911 = vadd.f32 %v4903, %v66
  %v4912 = vadd.f32 %v4904, %v67
  %v4913 = vsel %vm414, %v4905, -inf
  %4914 = vmax.xlane.f32.xlu0 %v4913
  %v4915 = vpop.xlane.xlu0 %4914
  %v4916 = vsel %vm414, %v4906, -inf
  %4917 = vmax.xlane.f32.xlu0 %v4916
  %v4918 = vpop.xlane.xlu0 %4917
  %v4919 = vsel %vm414, %v4907, -inf
  %4920 = vmax.xlane.f32.xlu0 %v4919
  %v4921 = vpop.xlane.xlu0 %4920
  %v4922 = vsel %vm414, %v4908, -inf
  %4923 = vmax.xlane.f32.xlu0 %v4922
  %v4924 = vpop.xlane.xlu0 %4923
  %v4925 = vsel %vm414, %v4909, -inf
  %4926 = vmax.xlane.f32.xlu0 %v4925
  %v4927 = vpop.xlane.xlu0 %4926
  %v4928 = vsel %vm414, %v4910, -inf
  %4929 = vmax.xlane.f32.xlu0 %v4928
  %v4930 = vpop.xlane.xlu0 %4929
  %v4931 = vsel %vm414, %v4911, -inf
  %4932 = vmax.xlane.f32.xlu0 %v4931
  %v4933 = vpop.xlane.xlu0 %4932
  %v4934 = vsel %vm414, %v4912, -inf
  %4935 = vmax.xlane.f32.xlu0 %v4934
  %v4936 = vpop.xlane.xlu0 %4935
  %v4937 = vsub.f32 %v4905, %v4915
  %v4938 = vsub.f32 %v4906, %v4918
  %v4939 = vsub.f32 %v4907, %v4921
  %v4940 = vsub.f32 %v4908, %v4924
  %v4941 = vsub.f32 %v4909, %v4927
  %v4942 = vsub.f32 %v4910, %v4930
  %v4943 = vsub.f32 %v4911, %v4933
  %v4944 = vsub.f32 %v4912, %v4936
  %v4945 = vmul.f32 %v4937, 1.442695
  %v4946 = vpow.pop %v4945
  %v4947 = vmul.f32 %v4938, 1.442695
  %v4948 = vpow.pop %v4947
  %v4949 = vmul.f32 %v4939, 1.442695
  %v4950 = vpow.pop %v4949
  %v4951 = vmul.f32 %v4940, 1.442695
  %v4952 = vpow.pop %v4951
  %v4953 = vmul.f32 %v4941, 1.442695
  %v4954 = vpow.pop %v4953
  %v4955 = vmul.f32 %v4942, 1.442695
  %v4956 = vpow.pop %v4955
  %v4957 = vmul.f32 %v4943, 1.442695
  %v4958 = vpow.pop %v4957
  %v4959 = vmul.f32 %v4944, 1.442695
  %v4960 = vpow.pop %v4959
  %v4961 = vsel %vm414, %v4946, 0.0
  %4962 = vadd.xlane.f32.xlu0 %v4961
  %v4963 = vpop.xlane.xlu0 %4962
  %v4964 = vsel %vm414, %v4948, 0.0
  %4965 = vadd.xlane.f32.xlu0 %v4964
  %v4966 = vpop.xlane.xlu0 %4965
  %v4967 = vsel %vm414, %v4950, 0.0
  %4968 = vadd.xlane.f32.xlu0 %v4967
  %v4969 = vpop.xlane.xlu0 %4968
  %v4970 = vsel %vm414, %v4952, 0.0
  %4971 = vadd.xlane.f32.xlu0 %v4970
  %v4972 = vpop.xlane.xlu0 %4971
  %v4973 = vsel %vm414, %v4954, 0.0
  %4974 = vadd.xlane.f32.xlu0 %v4973
  %v4975 = vpop.xlane.xlu0 %4974
  %v4976 = vsel %vm414, %v4956, 0.0
  %4977 = vadd.xlane.f32.xlu0 %v4976
  %v4978 = vpop.xlane.xlu0 %4977
  %v4979 = vsel %vm414, %v4958, 0.0
  %4980 = vadd.xlane.f32.xlu0 %v4979
  %v4981 = vpop.xlane.xlu0 %4980
  %v4982 = vsel %vm414, %v4960, 0.0
  %4983 = vadd.xlane.f32.xlu0 %v4982
  %v4984 = vpop.xlane.xlu0 %4983
  %v4985 = vrcp.pop %v4963
  %v4986 = vrcp.pop %v4966
  %v4987 = vrcp.pop %v4969
  %v4988 = vrcp.pop %v4972
  %v4989 = vrcp.pop %v4975
  %v4990 = vrcp.pop %v4978
  %v4991 = vrcp.pop %v4981
  %v4992 = vrcp.pop %v4984
  %v4993 = vmul.f32 %v4946, %v4985
  %v4994 = vmul.f32 %v4948, %v4986
  %v4995 = vmul.f32 %v4950, %v4987
  %v4996 = vmul.f32 %v4952, %v4988
  %v4997 = vmul.f32 %v4954, %v4989
  %v4998 = vmul.f32 %v4956, %v4990
  %v4999 = vmul.f32 %v4958, %v4991
  %v5000 = vmul.f32 %v4960, %v4992
  %v5001 = vpack.c.bf16 %v4994, %v4993
  %v5002 = vpack.c.bf16 %v4996, %v4995
  %v5003 = vpack.c.bf16 %v4998, %v4997
  %v5004 = vpack.c.bf16 %v5000, %v4999
  %5005 = vrot.lane.b32.xlu0 %v4490, 56
  %v5006 = vpop.permute.xlu0 %5005
  %5007 = vrot.lane.b32.xlu0 %v4491, 56
  %v5008 = vpop.permute.xlu0 %5007
  %5009 = vrot.lane.b32.xlu0 %v4492, 56
  %v5010 = vpop.permute.xlu0 %5009
  %5011 = vrot.lane.b32.xlu0 %v4493, 56
  %v5012 = vpop.permute.xlu0 %5011
  %v5018 = vsel %vm414, %v5001, 0
  %v5021 = vsel %vm414, %v5002, 0
  %v5024 = vsel %vm414, %v5003, 0
  %v5027 = vsel %vm414, %v5004, 0
  %5029 = vmatprep.subr.bf16.mxu0 0
  %5030 = vmatpush1.bf16.msra.mxu0 0
  %5031 = vmatprep.subr.bf16.mxu0 0
  %5032 = vmatpush1.bf16.msra.mxu0 0
  %5033 = vmatprep.subr.bf16.mxu0 0
  %5034 = vmatpush1.bf16.msra.mxu0 0
  %5035 = vmatprep.subr.bf16.mxu0 0
  %5036 = vmatpush1.bf16.msra.mxu0 0
  %5037 = vmatprep.subr.bf16.mxu0 0
  %5038 = vmatpush1.bf16.msra.mxu0 %v5012
  %5039 = vmatprep.subr.bf16.mxu0 0
  %5040 = vmatpush1.bf16.msra.mxu0 %v5010
  %5041 = vmatprep.subr.bf16.mxu0 0
  %5042 = vmatpush1.bf16.msra.mxu0 %v5008
  %5043 = vmatprep.subr.bf16.mxu0 0
  %5044 = vmatpush1.bf16.msra.mxu0 %v5006
  %5045 = vmatprep.subr.bf16.mxu0 0
  %5046 = vmatpush2.bf16.msra.mxu0 0
  %5047 = vmatprep.subr.bf16.mxu0 0
  %5048 = vmatpush2.bf16.msra.mxu0 0
  %5049 = vmatprep.subr.bf16.mxu0 0
  %5050 = vmatpush2.bf16.msra.mxu0 0
  %5051 = vmatprep.subr.bf16.mxu0 0
  %5052 = vmatpush2.bf16.msra.mxu0 0
  %5053 = vmatprep.subr.bf16.mxu0 0
  %5054 = vmatpush2.bf16.msra.mxu0 0
  %5055 = vmatprep.subr.bf16.mxu0 0
  %5056 = vmatpush2.bf16.msra.mxu0 0
  %5057 = vmatprep.subr.bf16.mxu0 0
  %5058 = vmatpush2.bf16.msra.mxu0 0
  %5059 = vmatprep.subr.bf16.mxu0 0
  %5060 = vmatpush2.bf16.msra.mxu0 0
  %5061 = vmatprep.mubr.bf16.mxu0 0
  %5062 = vmatmul.mubr.bf16.gmra.mxu0 %v5018
  %v5063 = vpop.f32.mrf.mxu0
  %v5064 = vadd.f32 0.0, %v5063
  %v5065 = vpop.f32.mrf.mxu0
  %v5066 = vpop.f32.mrf.mxu0
  %v5067 = vadd.f32 0.0, %v5066
  %v5068 = vpop.f32.mrf.mxu0
  %5069 = vmatprep.mubr.bf16.mxu0 0
  %5070 = vmatmul.mubr.bf16.gmra.mxu0 %v5021
  %v5071 = vpop.f32.mrf.mxu0
  %v5072 = vadd.f32 0.0, %v5071
  %v5073 = vpop.f32.mrf.mxu0
  %v5074 = vpop.f32.mrf.mxu0
  %v5075 = vadd.f32 0.0, %v5074
  %v5076 = vpop.f32.mrf.mxu0
  %5077 = vmatprep.mubr.bf16.mxu0 0
  %5078 = vmatmul.mubr.bf16.gmra.mxu0 %v5024
  %v5079 = vpop.f32.mrf.mxu0
  %v5080 = vadd.f32 0.0, %v5079
  %v5081 = vpop.f32.mrf.mxu0
  %v5082 = vpop.f32.mrf.mxu0
  %v5083 = vadd.f32 0.0, %v5082
  %v5084 = vpop.f32.mrf.mxu0
  %5085 = vmatprep.mubr.bf16.mxu0 0
  %5086 = vmatmul.mubr.bf16.gmra.mxu0 %v5027
  %v5087 = vpop.f32.mrf.mxu0
  %v5088 = vadd.f32 0.0, %v5087
  %v5089 = vpop.f32.mrf.mxu0
  %v5090 = vpop.f32.mrf.mxu0
  %v5091 = vadd.f32 0.0, %v5090
  %v5092 = vpop.f32.mrf.mxu0
  %5093 = vdwg.mxu0
  %5094 = vrot.lane.b32.xlu0 %v4490, 112
  %v5095 = vpop.permute.xlu0 %5094
  %5096 = vrot.lane.b32.xlu0 %v4491, 112
  %v5097 = vpop.permute.xlu0 %5096
  %5098 = vrot.lane.b32.xlu0 %v4492, 112
  %v5099 = vpop.permute.xlu0 %5098
  %5100 = vrot.lane.b32.xlu0 %v4493, 112
  %v5101 = vpop.permute.xlu0 %5100
  %5102 = vrot.lane.b32.xlu0 %v4490, 80
  %v5103 = vpop.permute.xlu0 %5102
  %5104 = vrot.lane.b32.xlu0 %v4491, 80
  %v5105 = vpop.permute.xlu0 %5104
  %5106 = vrot.lane.b32.xlu0 %v4492, 80
  %v5107 = vpop.permute.xlu0 %5106
  %5108 = vrot.lane.b32.xlu0 %v4493, 80
  %v5109 = vpop.permute.xlu0 %5108
  %v5111 = vsel %vm308, %v5095, 0
  %v5114 = vsel %vm308, %v5097, 0
  %v5117 = vsel %vm308, %v5099, 0
  %v5120 = vsel %vm308, %v5101, 0
  %v5123 = vsel %vm308, %v5103, 0
  %v5126 = vsel %vm308, %v5105, 0
  %v5129 = vsel %vm308, %v5107, 0
  %v5132 = vsel %vm308, %v5109, 0
  %5134 = vmatprep.subr.bf16.mxu0 0
  %5135 = vmatpush1.bf16.xpose.msra.mxu0 0
  %5136 = vmatprep.subr.bf16.mxu0 0
  %5137 = vmatpush1.bf16.xpose.msra.mxu0 0
  %5138 = vmatprep.subr.bf16.mxu0 0
  %5139 = vmatpush1.bf16.xpose.msra.mxu0 0
  %5140 = vmatprep.subr.bf16.mxu0 0
  %5141 = vmatpush1.bf16.xpose.msra.mxu0 0
  %5142 = vmatprep.subr.bf16.mxu0 0
  %5143 = vmatpush1.bf16.xpose.msra.mxu0 %v5132
  %5144 = vmatprep.subr.bf16.mxu0 0
  %5145 = vmatpush1.bf16.xpose.msra.mxu0 %v5129
  %5146 = vmatprep.subr.bf16.mxu0 0
  %5147 = vmatpush1.bf16.xpose.msra.mxu0 %v5126
  %5148 = vmatprep.subr.bf16.mxu0 0
  %5149 = vmatpush1.bf16.xpose.msra.mxu0 %v5123
  %5150 = vmatprep.subr.bf16.mxu0 0
  %5151 = vmatpush2.bf16.xpose.msra.mxu0 0
  %5152 = vmatprep.subr.bf16.mxu0 0
  %5153 = vmatpush2.bf16.xpose.msra.mxu0 0
  %5154 = vmatprep.subr.bf16.mxu0 0
  %5155 = vmatpush2.bf16.xpose.msra.mxu0 0
  %5156 = vmatprep.subr.bf16.mxu0 0
  %5157 = vmatpush2.bf16.xpose.msra.mxu0 0
  %5158 = vmatprep.subr.bf16.mxu0 0
  %5159 = vmatpush2.bf16.xpose.msra.mxu0 0
  %5160 = vmatprep.subr.bf16.mxu0 0
  %5161 = vmatpush2.bf16.xpose.msra.mxu0 0
  %5162 = vmatprep.subr.bf16.mxu0 0
  %5163 = vmatpush2.bf16.xpose.msra.mxu0 0
  %5164 = vmatprep.subr.bf16.mxu0 0
  %5165 = vmatpush2.bf16.xpose.msra.mxu0 0
  %5166 = vmatprep.mubr.bf16.mxu0 0
  %5167 = vmatmul.mubr.bf16.gmra.mxu0 %v5111
  %v5168 = vpop.f32.mrf.mxu0
  %v5169 = vadd.f32 0.0, %v5168
  %v5170 = vpop.f32.mrf.mxu0
  %v5171 = vpop.f32.mrf.mxu0
  %v5172 = vadd.f32 0.0, %v5171
  %v5173 = vpop.f32.mrf.mxu0
  %5174 = vmatprep.mubr.bf16.mxu0 0
  %5175 = vmatmul.mubr.bf16.gmra.mxu0 %v5114
  %v5176 = vpop.f32.mrf.mxu0
  %v5177 = vadd.f32 0.0, %v5176
  %v5178 = vpop.f32.mrf.mxu0
  %v5179 = vpop.f32.mrf.mxu0
  %v5180 = vadd.f32 0.0, %v5179
  %v5181 = vpop.f32.mrf.mxu0
  %5182 = vmatprep.mubr.bf16.mxu0 0
  %5183 = vmatmul.mubr.bf16.gmra.mxu0 %v5117
  %v5184 = vpop.f32.mrf.mxu0
  %v5185 = vadd.f32 0.0, %v5184
  %v5186 = vpop.f32.mrf.mxu0
  %v5187 = vpop.f32.mrf.mxu0
  %v5188 = vadd.f32 0.0, %v5187
  %v5189 = vpop.f32.mrf.mxu0
  %5190 = vmatprep.mubr.bf16.mxu0 0
  %5191 = vmatmul.mubr.bf16.gmra.mxu0 %v5120
  %v5192 = vpop.f32.mrf.mxu0
  %v5193 = vadd.f32 0.0, %v5192
  %v5194 = vpop.f32.mrf.mxu0
  %v5195 = vpop.f32.mrf.mxu0
  %v5196 = vadd.f32 0.0, %v5195
  %v5197 = vpop.f32.mrf.mxu0
  %5198 = vdwg.mxu0
  %v5199 = vmul.f32 %v5169, 0.35355338
  %v5200 = vmul.f32 %v5172, 0.35355338
  %v5201 = vmul.f32 %v5177, 0.35355338
  %v5202 = vmul.f32 %v5180, 0.35355338
  %v5203 = vmul.f32 %v5185, 0.35355338
  %v5204 = vmul.f32 %v5188, 0.35355338
  %v5205 = vmul.f32 %v5193, 0.35355338
  %v5206 = vmul.f32 %v5196, 0.35355338
  %v5207 = vadd.f32 %v5199, %v60
  %v5208 = vadd.f32 %v5200, %v61
  %v5209 = vadd.f32 %v5201, %v62
  %v5210 = vadd.f32 %v5202, %v63
  %v5211 = vadd.f32 %v5203, %v64
  %v5212 = vadd.f32 %v5204, %v65
  %v5213 = vadd.f32 %v5205, %v66
  %v5214 = vadd.f32 %v5206, %v67
  %v5215 = vsel %vm414, %v5207, -inf
  %5216 = vmax.xlane.f32.xlu0 %v5215
  %v5217 = vpop.xlane.xlu0 %5216
  %v5218 = vsel %vm414, %v5208, -inf
  %5219 = vmax.xlane.f32.xlu0 %v5218
  %v5220 = vpop.xlane.xlu0 %5219
  %v5221 = vsel %vm414, %v5209, -inf
  %5222 = vmax.xlane.f32.xlu0 %v5221
  %v5223 = vpop.xlane.xlu0 %5222
  %v5224 = vsel %vm414, %v5210, -inf
  %5225 = vmax.xlane.f32.xlu0 %v5224
  %v5226 = vpop.xlane.xlu0 %5225
  %v5227 = vsel %vm414, %v5211, -inf
  %5228 = vmax.xlane.f32.xlu0 %v5227
  %v5229 = vpop.xlane.xlu0 %5228
  %v5230 = vsel %vm414, %v5212, -inf
  %5231 = vmax.xlane.f32.xlu0 %v5230
  %v5232 = vpop.xlane.xlu0 %5231
  %v5233 = vsel %vm414, %v5213, -inf
  %5234 = vmax.xlane.f32.xlu0 %v5233
  %v5235 = vpop.xlane.xlu0 %5234
  %v5236 = vsel %vm414, %v5214, -inf
  %5237 = vmax.xlane.f32.xlu0 %v5236
  %v5238 = vpop.xlane.xlu0 %5237
  %v5239 = vsub.f32 %v5207, %v5217
  %v5240 = vsub.f32 %v5208, %v5220
  %v5241 = vsub.f32 %v5209, %v5223
  %v5242 = vsub.f32 %v5210, %v5226
  %v5243 = vsub.f32 %v5211, %v5229
  %v5244 = vsub.f32 %v5212, %v5232
  %v5245 = vsub.f32 %v5213, %v5235
  %v5246 = vsub.f32 %v5214, %v5238
  %v5247 = vmul.f32 %v5239, 1.442695
  %v5248 = vpow.pop %v5247
  %v5249 = vmul.f32 %v5240, 1.442695
  %v5250 = vpow.pop %v5249
  %v5251 = vmul.f32 %v5241, 1.442695
  %v5252 = vpow.pop %v5251
  %v5253 = vmul.f32 %v5242, 1.442695
  %v5254 = vpow.pop %v5253
  %v5255 = vmul.f32 %v5243, 1.442695
  %v5256 = vpow.pop %v5255
  %v5257 = vmul.f32 %v5244, 1.442695
  %v5258 = vpow.pop %v5257
  %v5259 = vmul.f32 %v5245, 1.442695
  %v5260 = vpow.pop %v5259
  %v5261 = vmul.f32 %v5246, 1.442695
  %v5262 = vpow.pop %v5261
  %v5263 = vsel %vm414, %v5248, 0.0
  %5264 = vadd.xlane.f32.xlu0 %v5263
  %v5265 = vpop.xlane.xlu0 %5264
  %v5266 = vsel %vm414, %v5250, 0.0
  %5267 = vadd.xlane.f32.xlu0 %v5266
  %v5268 = vpop.xlane.xlu0 %5267
  %v5269 = vsel %vm414, %v5252, 0.0
  %5270 = vadd.xlane.f32.xlu0 %v5269
  %v5271 = vpop.xlane.xlu0 %5270
  %v5272 = vsel %vm414, %v5254, 0.0
  %5273 = vadd.xlane.f32.xlu0 %v5272
  %v5274 = vpop.xlane.xlu0 %5273
  %v5275 = vsel %vm414, %v5256, 0.0
  %5276 = vadd.xlane.f32.xlu0 %v5275
  %v5277 = vpop.xlane.xlu0 %5276
  %v5278 = vsel %vm414, %v5258, 0.0
  %5279 = vadd.xlane.f32.xlu0 %v5278
  %v5280 = vpop.xlane.xlu0 %5279
  %v5281 = vsel %vm414, %v5260, 0.0
  %5282 = vadd.xlane.f32.xlu0 %v5281
  %v5283 = vpop.xlane.xlu0 %5282
  %v5284 = vsel %vm414, %v5262, 0.0
  %5285 = vadd.xlane.f32.xlu0 %v5284
  %v5286 = vpop.xlane.xlu0 %5285
  %v5287 = vrcp.pop %v5265
  %v5288 = vrcp.pop %v5268
  %v5289 = vrcp.pop %v5271
  %v5290 = vrcp.pop %v5274
  %v5291 = vrcp.pop %v5277
  %v5292 = vrcp.pop %v5280
  %v5293 = vrcp.pop %v5283
  %v5294 = vrcp.pop %v5286
  %v5295 = vmul.f32 %v5248, %v5287
  %v5296 = vmul.f32 %v5250, %v5288
  %v5297 = vmul.f32 %v5252, %v5289
  %v5298 = vmul.f32 %v5254, %v5290
  %v5299 = vmul.f32 %v5256, %v5291
  %v5300 = vmul.f32 %v5258, %v5292
  %v5301 = vmul.f32 %v5260, %v5293
  %v5302 = vmul.f32 %v5262, %v5294
  %v5303 = vpack.c.bf16 %v5296, %v5295
  %v5304 = vpack.c.bf16 %v5298, %v5297
  %v5305 = vpack.c.bf16 %v5300, %v5299
  %v5306 = vpack.c.bf16 %v5302, %v5301
  %5307 = vrot.lane.b32.xlu0 %v4490, 48
  %v5308 = vpop.permute.xlu0 %5307
  %5309 = vrot.lane.b32.xlu0 %v4491, 48
  %v5310 = vpop.permute.xlu0 %5309
  %5311 = vrot.lane.b32.xlu0 %v4492, 48
  %v5312 = vpop.permute.xlu0 %5311
  %5313 = vrot.lane.b32.xlu0 %v4493, 48
  %v5314 = vpop.permute.xlu0 %5313
  %v5320 = vsel %vm414, %v5303, 0
  %v5323 = vsel %vm414, %v5304, 0
  %v5326 = vsel %vm414, %v5305, 0
  %v5329 = vsel %vm414, %v5306, 0
  %5331 = vmatprep.subr.bf16.mxu0 0
  %5332 = vmatpush1.bf16.msra.mxu0 0
  %5333 = vmatprep.subr.bf16.mxu0 0
  %5334 = vmatpush1.bf16.msra.mxu0 0
  %5335 = vmatprep.subr.bf16.mxu0 0
  %5336 = vmatpush1.bf16.msra.mxu0 0
  %5337 = vmatprep.subr.bf16.mxu0 0
  %5338 = vmatpush1.bf16.msra.mxu0 0
  %5339 = vmatprep.subr.bf16.mxu0 0
  %5340 = vmatpush1.bf16.msra.mxu0 %v5314
  %5341 = vmatprep.subr.bf16.mxu0 0
  %5342 = vmatpush1.bf16.msra.mxu0 %v5312
  %5343 = vmatprep.subr.bf16.mxu0 0
  %5344 = vmatpush1.bf16.msra.mxu0 %v5310
  %5345 = vmatprep.subr.bf16.mxu0 0
  %5346 = vmatpush1.bf16.msra.mxu0 %v5308
  %5347 = vmatprep.subr.bf16.mxu0 0
  %5348 = vmatpush2.bf16.msra.mxu0 0
  %5349 = vmatprep.subr.bf16.mxu0 0
  %5350 = vmatpush2.bf16.msra.mxu0 0
  %5351 = vmatprep.subr.bf16.mxu0 0
  %5352 = vmatpush2.bf16.msra.mxu0 0
  %5353 = vmatprep.subr.bf16.mxu0 0
  %5354 = vmatpush2.bf16.msra.mxu0 0
  %5355 = vmatprep.subr.bf16.mxu0 0
  %5356 = vmatpush2.bf16.msra.mxu0 0
  %5357 = vmatprep.subr.bf16.mxu0 0
  %5358 = vmatpush2.bf16.msra.mxu0 0
  %5359 = vmatprep.subr.bf16.mxu0 0
  %5360 = vmatpush2.bf16.msra.mxu0 0
  %5361 = vmatprep.subr.bf16.mxu0 0
  %5362 = vmatpush2.bf16.msra.mxu0 0
  %5363 = vmatprep.mubr.bf16.mxu0 0
  %5364 = vmatmul.mubr.bf16.gmra.mxu0 %v5320
  %v5365 = vpop.f32.mrf.mxu0
  %v5366 = vadd.f32 0.0, %v5365
  %v5367 = vpop.f32.mrf.mxu0
  %v5368 = vpop.f32.mrf.mxu0
  %v5369 = vadd.f32 0.0, %v5368
  %v5370 = vpop.f32.mrf.mxu0
  %5371 = vmatprep.mubr.bf16.mxu0 0
  %5372 = vmatmul.mubr.bf16.gmra.mxu0 %v5323
  %v5373 = vpop.f32.mrf.mxu0
  %v5374 = vadd.f32 0.0, %v5373
  %v5375 = vpop.f32.mrf.mxu0
  %v5376 = vpop.f32.mrf.mxu0
  %v5377 = vadd.f32 0.0, %v5376
  %v5378 = vpop.f32.mrf.mxu0
  %5379 = vmatprep.mubr.bf16.mxu0 0
  %5380 = vmatmul.mubr.bf16.gmra.mxu0 %v5326
  %v5381 = vpop.f32.mrf.mxu0
  %v5382 = vadd.f32 0.0, %v5381
  %v5383 = vpop.f32.mrf.mxu0
  %v5384 = vpop.f32.mrf.mxu0
  %v5385 = vadd.f32 0.0, %v5384
  %v5386 = vpop.f32.mrf.mxu0
  %5387 = vmatprep.mubr.bf16.mxu0 0
  %5388 = vmatmul.mubr.bf16.gmra.mxu0 %v5329
  %v5389 = vpop.f32.mrf.mxu0
  %v5390 = vadd.f32 0.0, %v5389
  %v5391 = vpop.f32.mrf.mxu0
  %v5392 = vpop.f32.mrf.mxu0
  %v5393 = vadd.f32 0.0, %v5392
  %v5394 = vpop.f32.mrf.mxu0
  %5395 = vdwg.mxu0
  %5396 = vrot.lane.b32.xlu0 %v4490, 104
  %v5397 = vpop.permute.xlu0 %5396
  %5398 = vrot.lane.b32.xlu0 %v4491, 104
  %v5399 = vpop.permute.xlu0 %5398
  %5400 = vrot.lane.b32.xlu0 %v4492, 104
  %v5401 = vpop.permute.xlu0 %5400
  %5402 = vrot.lane.b32.xlu0 %v4493, 104
  %v5403 = vpop.permute.xlu0 %5402
  %5404 = vrot.lane.b32.xlu0 %v4490, 72
  %v5405 = vpop.permute.xlu0 %5404
  %5406 = vrot.lane.b32.xlu0 %v4491, 72
  %v5407 = vpop.permute.xlu0 %5406
  %5408 = vrot.lane.b32.xlu0 %v4492, 72
  %v5409 = vpop.permute.xlu0 %5408
  %5410 = vrot.lane.b32.xlu0 %v4493, 72
  %v5411 = vpop.permute.xlu0 %5410
  %v5413 = vsel %vm308, %v5397, 0
  %v5416 = vsel %vm308, %v5399, 0
  %v5419 = vsel %vm308, %v5401, 0
  %v5422 = vsel %vm308, %v5403, 0
  %v5425 = vsel %vm308, %v5405, 0
  %v5428 = vsel %vm308, %v5407, 0
  %v5431 = vsel %vm308, %v5409, 0
  %v5434 = vsel %vm308, %v5411, 0
  %5436 = vmatprep.subr.bf16.mxu0 0
  %5437 = vmatpush1.bf16.xpose.msra.mxu0 0
  %5438 = vmatprep.subr.bf16.mxu0 0
  %5439 = vmatpush1.bf16.xpose.msra.mxu0 0
  %5440 = vmatprep.subr.bf16.mxu0 0
  %5441 = vmatpush1.bf16.xpose.msra.mxu0 0
  %5442 = vmatprep.subr.bf16.mxu0 0
  %5443 = vmatpush1.bf16.xpose.msra.mxu0 0
  %5444 = vmatprep.subr.bf16.mxu0 0
  %5445 = vmatpush1.bf16.xpose.msra.mxu0 %v5434
  %5446 = vmatprep.subr.bf16.mxu0 0
  %5447 = vmatpush1.bf16.xpose.msra.mxu0 %v5431
  %5448 = vmatprep.subr.bf16.mxu0 0
  %5449 = vmatpush1.bf16.xpose.msra.mxu0 %v5428
  %5450 = vmatprep.subr.bf16.mxu0 0
  %5451 = vmatpush1.bf16.xpose.msra.mxu0 %v5425
  %5452 = vmatprep.subr.bf16.mxu0 0
  %5453 = vmatpush2.bf16.xpose.msra.mxu0 0
  %5454 = vmatprep.subr.bf16.mxu0 0
  %5455 = vmatpush2.bf16.xpose.msra.mxu0 0
  %5456 = vmatprep.subr.bf16.mxu0 0
  %5457 = vmatpush2.bf16.xpose.msra.mxu0 0
  %5458 = vmatprep.subr.bf16.mxu0 0
  %5459 = vmatpush2.bf16.xpose.msra.mxu0 0
  %5460 = vmatprep.subr.bf16.mxu0 0
  %5461 = vmatpush2.bf16.xpose.msra.mxu0 0
  %5462 = vmatprep.subr.bf16.mxu0 0
  %5463 = vmatpush2.bf16.xpose.msra.mxu0 0
  %5464 = vmatprep.subr.bf16.mxu0 0
  %5465 = vmatpush2.bf16.xpose.msra.mxu0 0
  %5466 = vmatprep.subr.bf16.mxu0 0
  %5467 = vmatpush2.bf16.xpose.msra.mxu0 0
  %5468 = vmatprep.mubr.bf16.mxu0 0
  %5469 = vmatmul.mubr.bf16.gmra.mxu0 %v5413
  %v5470 = vpop.f32.mrf.mxu0
  %v5471 = vadd.f32 0.0, %v5470
  %v5472 = vpop.f32.mrf.mxu0
  %v5473 = vpop.f32.mrf.mxu0
  %v5474 = vadd.f32 0.0, %v5473
  %v5475 = vpop.f32.mrf.mxu0
  %5476 = vmatprep.mubr.bf16.mxu0 0
  %5477 = vmatmul.mubr.bf16.gmra.mxu0 %v5416
  %v5478 = vpop.f32.mrf.mxu0
  %v5479 = vadd.f32 0.0, %v5478
  %v5480 = vpop.f32.mrf.mxu0
  %v5481 = vpop.f32.mrf.mxu0
  %v5482 = vadd.f32 0.0, %v5481
  %v5483 = vpop.f32.mrf.mxu0
  %5484 = vmatprep.mubr.bf16.mxu0 0
  %5485 = vmatmul.mubr.bf16.gmra.mxu0 %v5419
  %v5486 = vpop.f32.mrf.mxu0
  %v5487 = vadd.f32 0.0, %v5486
  %v5488 = vpop.f32.mrf.mxu0
  %v5489 = vpop.f32.mrf.mxu0
  %v5490 = vadd.f32 0.0, %v5489
  %v5491 = vpop.f32.mrf.mxu0
  %5492 = vmatprep.mubr.bf16.mxu0 0
  %5493 = vmatmul.mubr.bf16.gmra.mxu0 %v5422
  %v5494 = vpop.f32.mrf.mxu0
  %v5495 = vadd.f32 0.0, %v5494
  %v5496 = vpop.f32.mrf.mxu0
  %v5497 = vpop.f32.mrf.mxu0
  %v5498 = vadd.f32 0.0, %v5497
  %v5499 = vpop.f32.mrf.mxu0
  %5500 = vdwg.mxu0
  %v5501 = vmul.f32 %v5471, 0.35355338
  %v5502 = vmul.f32 %v5474, 0.35355338
  %v5503 = vmul.f32 %v5479, 0.35355338
  %v5504 = vmul.f32 %v5482, 0.35355338
  %v5505 = vmul.f32 %v5487, 0.35355338
  %v5506 = vmul.f32 %v5490, 0.35355338
  %v5507 = vmul.f32 %v5495, 0.35355338
  %v5508 = vmul.f32 %v5498, 0.35355338
  %v5509 = vadd.f32 %v5501, %v60
  %v5510 = vadd.f32 %v5502, %v61
  %v5511 = vadd.f32 %v5503, %v62
  %v5512 = vadd.f32 %v5504, %v63
  %v5513 = vadd.f32 %v5505, %v64
  %v5514 = vadd.f32 %v5506, %v65
  %v5515 = vadd.f32 %v5507, %v66
  %v5516 = vadd.f32 %v5508, %v67
  %v5517 = vsel %vm414, %v5509, -inf
  %5518 = vmax.xlane.f32.xlu0 %v5517
  %v5519 = vpop.xlane.xlu0 %5518
  %v5520 = vsel %vm414, %v5510, -inf
  %5521 = vmax.xlane.f32.xlu0 %v5520
  %v5522 = vpop.xlane.xlu0 %5521
  %v5523 = vsel %vm414, %v5511, -inf
  %5524 = vmax.xlane.f32.xlu0 %v5523
  %v5525 = vpop.xlane.xlu0 %5524
  %v5526 = vsel %vm414, %v5512, -inf
  %5527 = vmax.xlane.f32.xlu0 %v5526
  %v5528 = vpop.xlane.xlu0 %5527
  %v5529 = vsel %vm414, %v5513, -inf
  %5530 = vmax.xlane.f32.xlu0 %v5529
  %v5531 = vpop.xlane.xlu0 %5530
  %v5532 = vsel %vm414, %v5514, -inf
  %5533 = vmax.xlane.f32.xlu0 %v5532
  %v5534 = vpop.xlane.xlu0 %5533
  %v5535 = vsel %vm414, %v5515, -inf
  %5536 = vmax.xlane.f32.xlu0 %v5535
  %v5537 = vpop.xlane.xlu0 %5536
  %v5538 = vsel %vm414, %v5516, -inf
  %5539 = vmax.xlane.f32.xlu0 %v5538
  %v5540 = vpop.xlane.xlu0 %5539
  %v5541 = vsub.f32 %v5509, %v5519
  %v5542 = vsub.f32 %v5510, %v5522
  %v5543 = vsub.f32 %v5511, %v5525
  %v5544 = vsub.f32 %v5512, %v5528
  %v5545 = vsub.f32 %v5513, %v5531
  %v5546 = vsub.f32 %v5514, %v5534
  %v5547 = vsub.f32 %v5515, %v5537
  %v5548 = vsub.f32 %v5516, %v5540
  %v5549 = vmul.f32 %v5541, 1.442695
  %v5550 = vpow.pop %v5549
  %v5551 = vmul.f32 %v5542, 1.442695
  %v5552 = vpow.pop %v5551
  %v5553 = vmul.f32 %v5543, 1.442695
  %v5554 = vpow.pop %v5553
  %v5555 = vmul.f32 %v5544, 1.442695
  %v5556 = vpow.pop %v5555
  %v5557 = vmul.f32 %v5545, 1.442695
  %v5558 = vpow.pop %v5557
  %v5559 = vmul.f32 %v5546, 1.442695
  %v5560 = vpow.pop %v5559
  %v5561 = vmul.f32 %v5547, 1.442695
  %v5562 = vpow.pop %v5561
  %v5563 = vmul.f32 %v5548, 1.442695
  %v5564 = vpow.pop %v5563
  %v5565 = vsel %vm414, %v5550, 0.0
  %5566 = vadd.xlane.f32.xlu0 %v5565
  %v5567 = vpop.xlane.xlu0 %5566
  %v5568 = vsel %vm414, %v5552, 0.0
  %5569 = vadd.xlane.f32.xlu0 %v5568
  %v5570 = vpop.xlane.xlu0 %5569
  %v5571 = vsel %vm414, %v5554, 0.0
  %5572 = vadd.xlane.f32.xlu0 %v5571
  %v5573 = vpop.xlane.xlu0 %5572
  %v5574 = vsel %vm414, %v5556, 0.0
  %5575 = vadd.xlane.f32.xlu0 %v5574
  %v5576 = vpop.xlane.xlu0 %5575
  %v5577 = vsel %vm414, %v5558, 0.0
  %5578 = vadd.xlane.f32.xlu0 %v5577
  %v5579 = vpop.xlane.xlu0 %5578
  %v5580 = vsel %vm414, %v5560, 0.0
  %5581 = vadd.xlane.f32.xlu0 %v5580
  %v5582 = vpop.xlane.xlu0 %5581
  %v5583 = vsel %vm414, %v5562, 0.0
  %5584 = vadd.xlane.f32.xlu0 %v5583
  %v5585 = vpop.xlane.xlu0 %5584
  %v5586 = vsel %vm414, %v5564, 0.0
  %5587 = vadd.xlane.f32.xlu0 %v5586
  %v5588 = vpop.xlane.xlu0 %5587
  %v5589 = vrcp.pop %v5567
  %v5590 = vrcp.pop %v5570
  %v5591 = vrcp.pop %v5573
  %v5592 = vrcp.pop %v5576
  %v5593 = vrcp.pop %v5579
  %v5594 = vrcp.pop %v5582
  %v5595 = vrcp.pop %v5585
  %v5596 = vrcp.pop %v5588
  %v5597 = vmul.f32 %v5550, %v5589
  %v5598 = vmul.f32 %v5552, %v5590
  %v5599 = vmul.f32 %v5554, %v5591
  %v5600 = vmul.f32 %v5556, %v5592
  %v5601 = vmul.f32 %v5558, %v5593
  %v5602 = vmul.f32 %v5560, %v5594
  %v5603 = vmul.f32 %v5562, %v5595
  %v5604 = vmul.f32 %v5564, %v5596
  %v5605 = vpack.c.bf16 %v5598, %v5597
  %v5606 = vpack.c.bf16 %v5600, %v5599
  %v5607 = vpack.c.bf16 %v5602, %v5601
  %v5608 = vpack.c.bf16 %v5604, %v5603
  %5609 = vrot.lane.b32.xlu0 %v4490, 40
  %v5610 = vpop.permute.xlu0 %5609
  %5611 = vrot.lane.b32.xlu0 %v4491, 40
  %v5612 = vpop.permute.xlu0 %5611
  %5613 = vrot.lane.b32.xlu0 %v4492, 40
  %v5614 = vpop.permute.xlu0 %5613
  %5615 = vrot.lane.b32.xlu0 %v4493, 40
  %v5616 = vpop.permute.xlu0 %5615
  %v5622 = vsel %vm414, %v5605, 0
  %v5625 = vsel %vm414, %v5606, 0
  %v5628 = vsel %vm414, %v5607, 0
  %v5631 = vsel %vm414, %v5608, 0
  %5633 = vmatprep.subr.bf16.mxu0 0
  %5634 = vmatpush1.bf16.msra.mxu0 0
  %5635 = vmatprep.subr.bf16.mxu0 0
  %5636 = vmatpush1.bf16.msra.mxu0 0
  %5637 = vmatprep.subr.bf16.mxu0 0
  %5638 = vmatpush1.bf16.msra.mxu0 0
  %5639 = vmatprep.subr.bf16.mxu0 0
  %5640 = vmatpush1.bf16.msra.mxu0 0
  %5641 = vmatprep.subr.bf16.mxu0 0
  %5642 = vmatpush1.bf16.msra.mxu0 %v5616
  %5643 = vmatprep.subr.bf16.mxu0 0
  %5644 = vmatpush1.bf16.msra.mxu0 %v5614
  %5645 = vmatprep.subr.bf16.mxu0 0
  %5646 = vmatpush1.bf16.msra.mxu0 %v5612
  %5647 = vmatprep.subr.bf16.mxu0 0
  %5648 = vmatpush1.bf16.msra.mxu0 %v5610
  %5649 = vmatprep.subr.bf16.mxu0 0
  %5650 = vmatpush2.bf16.msra.mxu0 0
  %5651 = vmatprep.subr.bf16.mxu0 0
  %5652 = vmatpush2.bf16.msra.mxu0 0
  %5653 = vmatprep.subr.bf16.mxu0 0
  %5654 = vmatpush2.bf16.msra.mxu0 0
  %5655 = vmatprep.subr.bf16.mxu0 0
  %5656 = vmatpush2.bf16.msra.mxu0 0
  %5657 = vmatprep.subr.bf16.mxu0 0
  %5658 = vmatpush2.bf16.msra.mxu0 0
  %5659 = vmatprep.subr.bf16.mxu0 0
  %5660 = vmatpush2.bf16.msra.mxu0 0
  %5661 = vmatprep.subr.bf16.mxu0 0
  %5662 = vmatpush2.bf16.msra.mxu0 0
  %5663 = vmatprep.subr.bf16.mxu0 0
  %5664 = vmatpush2.bf16.msra.mxu0 0
  %5665 = vmatprep.mubr.bf16.mxu0 0
  %5666 = vmatmul.mubr.bf16.gmra.mxu0 %v5622
  %v5667 = vpop.f32.mrf.mxu0
  %v5668 = vadd.f32 0.0, %v5667
  %v5669 = vpop.f32.mrf.mxu0
  %v5670 = vpop.f32.mrf.mxu0
  %v5671 = vadd.f32 0.0, %v5670
  %v5672 = vpop.f32.mrf.mxu0
  %5673 = vmatprep.mubr.bf16.mxu0 0
  %5674 = vmatmul.mubr.bf16.gmra.mxu0 %v5625
  %v5675 = vpop.f32.mrf.mxu0
  %v5676 = vadd.f32 0.0, %v5675
  %v5677 = vpop.f32.mrf.mxu0
  %v5678 = vpop.f32.mrf.mxu0
  %v5679 = vadd.f32 0.0, %v5678
  %v5680 = vpop.f32.mrf.mxu0
  %5681 = vmatprep.mubr.bf16.mxu0 0
  %5682 = vmatmul.mubr.bf16.gmra.mxu0 %v5628
  %v5683 = vpop.f32.mrf.mxu0
  %v5684 = vadd.f32 0.0, %v5683
  %v5685 = vpop.f32.mrf.mxu0
  %v5686 = vpop.f32.mrf.mxu0
  %v5687 = vadd.f32 0.0, %v5686
  %v5688 = vpop.f32.mrf.mxu0
  %5689 = vmatprep.mubr.bf16.mxu0 0
  %5690 = vmatmul.mubr.bf16.gmra.mxu0 %v5631
  %v5691 = vpop.f32.mrf.mxu0
  %v5692 = vadd.f32 0.0, %v5691
  %v5693 = vpop.f32.mrf.mxu0
  %v5694 = vpop.f32.mrf.mxu0
  %v5695 = vadd.f32 0.0, %v5694
  %v5696 = vpop.f32.mrf.mxu0
  %5697 = vdwg.mxu0
  %5706 = vrot.lane.b32.xlu0 %v5064, 8
  %v5707 = vpop.permute.xlu0 %5706
  %5708 = vrot.lane.b32.xlu0 %v5067, 8
  %v5709 = vpop.permute.xlu0 %5708
  %5710 = vrot.lane.b32.xlu0 %v5072, 8
  %v5711 = vpop.permute.xlu0 %5710
  %5712 = vrot.lane.b32.xlu0 %v5075, 8
  %v5713 = vpop.permute.xlu0 %5712
  %5714 = vrot.lane.b32.xlu0 %v5080, 8
  %v5715 = vpop.permute.xlu0 %5714
  %5716 = vrot.lane.b32.xlu0 %v5083, 8
  %v5717 = vpop.permute.xlu0 %5716
  %5718 = vrot.lane.b32.xlu0 %v5088, 8
  %v5719 = vpop.permute.xlu0 %5718
  %5720 = vrot.lane.b32.xlu0 %v5091, 8
  %v5721 = vpop.permute.xlu0 %5720
  %5738 = vrot.lane.b32.xlu0 %v5366, 16
  %v5739 = vpop.permute.xlu0 %5738
  %5740 = vrot.lane.b32.xlu0 %v5369, 16
  %v5741 = vpop.permute.xlu0 %5740
  %5742 = vrot.lane.b32.xlu0 %v5374, 16
  %v5743 = vpop.permute.xlu0 %5742
  %5744 = vrot.lane.b32.xlu0 %v5377, 16
  %v5745 = vpop.permute.xlu0 %5744
  %5746 = vrot.lane.b32.xlu0 %v5382, 16
  %v5747 = vpop.permute.xlu0 %5746
  %5748 = vrot.lane.b32.xlu0 %v5385, 16
  %v5749 = vpop.permute.xlu0 %5748
  %5750 = vrot.lane.b32.xlu0 %v5390, 16
  %v5751 = vpop.permute.xlu0 %5750
  %5752 = vrot.lane.b32.xlu0 %v5393, 16
  %v5753 = vpop.permute.xlu0 %5752
  %5770 = vrot.lane.b32.xlu0 %v5668, 24
  %v5771 = vpop.permute.xlu0 %5770
  %5772 = vrot.lane.b32.xlu0 %v5671, 24
  %v5773 = vpop.permute.xlu0 %5772
  %5774 = vrot.lane.b32.xlu0 %v5676, 24
  %v5775 = vpop.permute.xlu0 %5774
  %5776 = vrot.lane.b32.xlu0 %v5679, 24
  %v5777 = vpop.permute.xlu0 %5776
  %5778 = vrot.lane.b32.xlu0 %v5684, 24
  %v5779 = vpop.permute.xlu0 %5778
  %5780 = vrot.lane.b32.xlu0 %v5687, 24
  %v5781 = vpop.permute.xlu0 %5780
  %5782 = vrot.lane.b32.xlu0 %v5692, 24
  %v5783 = vpop.permute.xlu0 %5782
  %5784 = vrot.lane.b32.xlu0 %v5695, 24
  %v5785 = vpop.permute.xlu0 %5784
  %v5794 = vsel %vm308, %v4762, %v5707
  %v5795 = vsel %vm308, %v4765, %v5709
  %v5796 = vsel %vm308, %v4770, %v5711
  %v5797 = vsel %vm308, %v4773, %v5713
  %v5798 = vsel %vm308, %v4778, %v5715
  %v5799 = vsel %vm308, %v4781, %v5717
  %v5800 = vsel %vm308, %v4786, %v5719
  %v5801 = vsel %vm308, %v4789, %v5721
  %v5802 = vsel %vm1606, %v5794, %v5739
  %v5803 = vsel %vm1606, %v5795, %v5741
  %v5804 = vsel %vm1606, %v5796, %v5743
  %v5805 = vsel %vm1606, %v5797, %v5745
  %v5806 = vsel %vm1606, %v5798, %v5747
  %v5807 = vsel %vm1606, %v5799, %v5749
  %v5808 = vsel %vm1606, %v5800, %v5751
  %v5809 = vsel %vm1606, %v5801, %v5753
  %v5810 = vsel %vm1615, %v5802, %v5771
  %v5811 = vsel %vm1615, %v5803, %v5773
  %v5812 = vsel %vm1615, %v5804, %v5775
  %v5813 = vsel %vm1615, %v5805, %v5777
  %v5814 = vsel %vm1615, %v5806, %v5779
  %v5815 = vsel %vm1615, %v5807, %v5781
  %v5816 = vsel %vm1615, %v5808, %v5783
  %v5817 = vsel %vm1615, %v5809, %v5785
  %v5818 = vpack.c.bf16 %v5811, %v5810
  %v5819 = vpack.c.bf16 %v5813, %v5812
  %v5820 = vpack.c.bf16 %v5815, %v5814
  %v5821 = vpack.c.bf16 %v5817, %v5816
  %s5822 = scalar_lea.vmem %s4, 32
  %v5823 = vld [vmem:[%s5822] sm:$0xf]
  %v5824 = vld [vmem:[%s5822 + $0x4] sm:$0xf]
  %v5825 = vld [vmem:[%s5822 + $0x8] sm:$0xf]
  %v5826 = vld [vmem:[%s5822 + $0xc] sm:$0xf]
  %v5827 = vlaneseq
  %v5828 = vshrl.u32 %v5827, 7
  %v5829 = vsub.s32 1, %v5828
  %v5830 = vrot.slane %v4387, %v5829
  %v5835 = vunpack.c.l.b16 %v5823
  %v5836 = vunpack.c.l.b16 %v5824
  %v5837 = vunpack.c.l.b16 %v5825
  %v5838 = vunpack.c.l.b16 %v5826
  %v5839 = vpack.c.b16 %v5836, %v5835
  %v5840 = vpack.c.b16 %v5838, %v5837
  %v5844 = vsel %vm112, %v5818, 0
  %v5847 = vsel %vm112, %v5819, 0
  %v5850 = vsel %vm112, %v5820, 0
  %v5853 = vsel %vm112, %v5821, 0
  %5855 = vmatprep.subr.bf16.mxu0 0
  %5856 = vmatpush1.bf16.msra.mxu0 0
  %5857 = vmatprep.subr.bf16.mxu0 0
  %5858 = vmatpush1.bf16.msra.mxu0 0
  %5859 = vmatprep.subr.bf16.mxu0 0
  %5860 = vmatpush1.bf16.msra.mxu0 0
  %5861 = vmatprep.subr.bf16.mxu0 0
  %5862 = vmatpush1.bf16.msra.mxu0 0
  %5863 = vmatprep.subr.bf16.mxu0 0
  %5864 = vmatpush1.bf16.msra.mxu0 0
  %5865 = vmatprep.subr.bf16.mxu0 0
  %5866 = vmatpush1.bf16.msra.mxu0 0
  %5867 = vmatprep.subr.bf16.mxu0 0
  %5868 = vmatpush1.bf16.msra.mxu0 %v5840
  %5869 = vmatprep.subr.bf16.mxu0 0
  %5870 = vmatpush1.bf16.msra.mxu0 %v5839
  %5871 = vmatprep.subr.bf16.mxu0 0
  %5872 = vmatpush2.bf16.msra.mxu0 0
  %5873 = vmatprep.subr.bf16.mxu0 0
  %5874 = vmatpush2.bf16.msra.mxu0 0
  %5875 = vmatprep.subr.bf16.mxu0 0
  %5876 = vmatpush2.bf16.msra.mxu0 0
  %5877 = vmatprep.subr.bf16.mxu0 0
  %5878 = vmatpush2.bf16.msra.mxu0 0
  %5879 = vmatprep.subr.bf16.mxu0 0
  %5880 = vmatpush2.bf16.msra.mxu0 0
  %5881 = vmatprep.subr.bf16.mxu0 0
  %5882 = vmatpush2.bf16.msra.mxu0 0
  %5883 = vmatprep.subr.bf16.mxu0 0
  %5884 = vmatpush2.bf16.msra.mxu0 0
  %5885 = vmatprep.subr.bf16.mxu0 0
  %5886 = vmatpush2.bf16.msra.mxu0 0
  %5887 = vmatprep.mubr.bf16.mxu0 0
  %5888 = vmatmul.mubr.bf16.gmra.mxu0 %v5844
  %v5889 = vpop.f32.mrf.mxu0
  %v5890 = vadd.f32 %v5830, %v5889
  %v5891 = vpop.f32.mrf.mxu0
  %v5892 = vpop.f32.mrf.mxu0
  %v5893 = vadd.f32 %v5830, %v5892
  %v5894 = vpop.f32.mrf.mxu0
  %5895 = vmatprep.mubr.bf16.mxu0 0
  %5896 = vmatmul.mubr.bf16.gmra.mxu0 %v5847
  %v5897 = vpop.f32.mrf.mxu0
  %v5898 = vadd.f32 %v5830, %v5897
  %v5899 = vpop.f32.mrf.mxu0
  %v5900 = vpop.f32.mrf.mxu0
  %v5901 = vadd.f32 %v5830, %v5900
  %v5902 = vpop.f32.mrf.mxu0
  %5903 = vmatprep.mubr.bf16.mxu0 0
  %5904 = vmatmul.mubr.bf16.gmra.mxu0 %v5850
  %v5905 = vpop.f32.mrf.mxu0
  %v5906 = vadd.f32 %v5830, %v5905
  %v5907 = vpop.f32.mrf.mxu0
  %v5908 = vpop.f32.mrf.mxu0
  %v5909 = vadd.f32 %v5830, %v5908
  %v5910 = vpop.f32.mrf.mxu0
  %5911 = vmatprep.mubr.bf16.mxu0 0
  %5912 = vmatmul.mubr.bf16.gmra.mxu0 %v5853
  %v5913 = vpop.f32.mrf.mxu0
  %v5914 = vadd.f32 %v5830, %v5913
  %v5915 = vpop.f32.mrf.mxu0
  %v5916 = vpop.f32.mrf.mxu0
  %v5917 = vadd.f32 %v5830, %v5916
  %v5918 = vpop.f32.mrf.mxu0
  %5919 = vdwg.mxu0
  %v5920 = vadd.f32 %v4378, %v5890
  %v5921 = vadd.f32 %v4379, %v5893
  %v5922 = vadd.f32 %v4380, %v5898
  %v5923 = vadd.f32 %v4381, %v5901
  %v5924 = vadd.f32 %v4382, %v5906
  %v5925 = vadd.f32 %v4383, %v5909
  %v5926 = vadd.f32 %v4384, %v5914
  %v5927 = vadd.f32 %v4385, %v5917
  %v5928 = vsel %vm112, %v5920, 0.0
  %5929 = vadd.xlane.f32.xlu0 %v5928
  %v5930 = vpop.xlane.xlu0 %5929
  %v5931 = vsel %vm112, %v5921, 0.0
  %5932 = vadd.xlane.f32.xlu0 %v5931
  %v5933 = vpop.xlane.xlu0 %5932
  %v5934 = vsel %vm112, %v5922, 0.0
  %5935 = vadd.xlane.f32.xlu0 %v5934
  %v5936 = vpop.xlane.xlu0 %5935
  %v5937 = vsel %vm112, %v5923, 0.0
  %5938 = vadd.xlane.f32.xlu0 %v5937
  %v5939 = vpop.xlane.xlu0 %5938
  %v5940 = vsel %vm112, %v5924, 0.0
  %5941 = vadd.xlane.f32.xlu0 %v5940
  %v5942 = vpop.xlane.xlu0 %5941
  %v5943 = vsel %vm112, %v5925, 0.0
  %5944 = vadd.xlane.f32.xlu0 %v5943
  %v5945 = vpop.xlane.xlu0 %5944
  %v5946 = vsel %vm112, %v5926, 0.0
  %5947 = vadd.xlane.f32.xlu0 %v5946
  %v5948 = vpop.xlane.xlu0 %5947
  %v5949 = vsel %vm112, %v5927, 0.0
  %5950 = vadd.xlane.f32.xlu0 %v5949
  %v5951 = vpop.xlane.xlu0 %5950
  %v5952 = vmul.f32 %v5930, %v1757
  %v5953 = vmul.f32 %v5933, %v1757
  %v5954 = vmul.f32 %v5936, %v1757
  %v5955 = vmul.f32 %v5939, %v1757
  %v5956 = vmul.f32 %v5942, %v1757
  %v5957 = vmul.f32 %v5945, %v1757
  %v5958 = vmul.f32 %v5948, %v1757
  %v5959 = vmul.f32 %v5951, %v1757
  %v5960 = vsub.f32 %v5920, %v5952
  %v5961 = vsub.f32 %v5921, %v5953
  %v5962 = vsub.f32 %v5922, %v5954
  %v5963 = vsub.f32 %v5923, %v5955
  %v5964 = vsub.f32 %v5924, %v5956
  %v5965 = vsub.f32 %v5925, %v5957
  %v5966 = vsub.f32 %v5926, %v5958
  %v5967 = vsub.f32 %v5927, %v5959
  %v5968 = vmul.f32 %v5960, %v5960
  %v5969 = vmul.f32 %v5961, %v5961
  %v5970 = vmul.f32 %v5962, %v5962
  %v5971 = vmul.f32 %v5963, %v5963
  %v5972 = vmul.f32 %v5964, %v5964
  %v5973 = vmul.f32 %v5965, %v5965
  %v5974 = vmul.f32 %v5966, %v5966
  %v5975 = vmul.f32 %v5967, %v5967
  %v5976 = vsel %vm112, %v5968, 0.0
  %5977 = vadd.xlane.f32.xlu0 %v5976
  %v5978 = vpop.xlane.xlu0 %5977
  %v5979 = vsel %vm112, %v5969, 0.0
  %5980 = vadd.xlane.f32.xlu0 %v5979
  %v5981 = vpop.xlane.xlu0 %5980
  %v5982 = vsel %vm112, %v5970, 0.0
  %5983 = vadd.xlane.f32.xlu0 %v5982
  %v5984 = vpop.xlane.xlu0 %5983
  %v5985 = vsel %vm112, %v5971, 0.0
  %5986 = vadd.xlane.f32.xlu0 %v5985
  %v5987 = vpop.xlane.xlu0 %5986
  %v5988 = vsel %vm112, %v5972, 0.0
  %5989 = vadd.xlane.f32.xlu0 %v5988
  %v5990 = vpop.xlane.xlu0 %5989
  %v5991 = vsel %vm112, %v5973, 0.0
  %5992 = vadd.xlane.f32.xlu0 %v5991
  %v5993 = vpop.xlane.xlu0 %5992
  %v5994 = vsel %vm112, %v5974, 0.0
  %5995 = vadd.xlane.f32.xlu0 %v5994
  %v5996 = vpop.xlane.xlu0 %5995
  %v5997 = vsel %vm112, %v5975, 0.0
  %5998 = vadd.xlane.f32.xlu0 %v5997
  %v5999 = vpop.xlane.xlu0 %5998
  %v6000 = vmul.f32 %v5978, %v1757
  %v6001 = vmul.f32 %v5981, %v1757
  %v6002 = vmul.f32 %v5984, %v1757
  %v6003 = vmul.f32 %v5987, %v1757
  %v6004 = vmul.f32 %v5990, %v1757
  %v6005 = vmul.f32 %v5993, %v1757
  %v6006 = vmul.f32 %v5996, %v1757
  %v6007 = vmul.f32 %v5999, %v1757
  %v6008 = vadd.f32 %v6000, 1e-05
  %v6009 = vadd.f32 %v6001, 1e-05
  %v6010 = vadd.f32 %v6002, 1e-05
  %v6011 = vadd.f32 %v6003, 1e-05
  %v6012 = vadd.f32 %v6004, 1e-05
  %v6013 = vadd.f32 %v6005, 1e-05
  %v6014 = vadd.f32 %v6006, 1e-05
  %v6015 = vadd.f32 %v6007, 1e-05
  %v6016 = vrsqrt.pop %v6008
  %v6017 = vrsqrt.pop %v6009
  %v6018 = vrsqrt.pop %v6010
  %v6019 = vrsqrt.pop %v6011
  %v6020 = vrsqrt.pop %v6012
  %v6021 = vrsqrt.pop %v6013
  %v6022 = vrsqrt.pop %v6014
  %v6023 = vrsqrt.pop %v6015
  %v6024 = vmul.f32 %v5960, %v6016
  %v6025 = vmul.f32 %v5961, %v6017
  %v6026 = vmul.f32 %v5962, %v6018
  %v6027 = vmul.f32 %v5963, %v6019
  %v6028 = vmul.f32 %v5964, %v6020
  %v6029 = vmul.f32 %v5965, %v6021
  %v6030 = vmul.f32 %v5966, %v6022
  %v6031 = vmul.f32 %v5967, %v6023
  %v6032 = vlaneseq
  %v6033 = vshrl.u32 %v6032, 7
  %v6034 = vsub.s32 2, %v6033
  %v6035 = vrot.slane %v4387, %v6034
  %v6036 = vmul.f32 %v6024, %v6035
  %v6037 = vmul.f32 %v6025, %v6035
  %v6038 = vmul.f32 %v6026, %v6035
  %v6039 = vmul.f32 %v6027, %v6035
  %v6040 = vmul.f32 %v6028, %v6035
  %v6041 = vmul.f32 %v6029, %v6035
  %v6042 = vmul.f32 %v6030, %v6035
  %v6043 = vmul.f32 %v6031, %v6035
  %v6044 = vlaneseq
  %v6045 = vshrl.u32 %v6044, 7
  %v6046 = vsub.s32 3, %v6045
  %v6047 = vrot.slane %v4387, %v6046
  %v6048 = vadd.f32 %v6036, %v6047
  %v6049 = vadd.f32 %v6037, %v6047
  %v6050 = vadd.f32 %v6038, %v6047
  %v6051 = vadd.f32 %v6039, %v6047
  %v6052 = vadd.f32 %v6040, %v6047
  %v6053 = vadd.f32 %v6041, %v6047
  %v6054 = vadd.f32 %v6042, %v6047
  %v6055 = vadd.f32 %v6043, %v6047
  %v6056 = vpack.c.bf16 %v6049, %v6048
  %v6057 = vpack.c.bf16 %v6051, %v6050
  %v6058 = vpack.c.bf16 %v6053, %v6052
  %v6059 = vpack.c.bf16 %v6055, %v6054
  %s6060 = scalar_lea.vmem %s5, 32
  %v6061 = vld [vmem:[%s6060] sm:$0xf]
  %v6062 = vld [vmem:[%s6060 + $0x4] sm:$0xf]
  %v6063 = vld [vmem:[%s6060 + $0x8] sm:$0xf]
  %v6064 = vld [vmem:[%s6060 + $0xc] sm:$0xf]
  %v6065 = vlaneseq
  %v6066 = vshrl.u32 %v6065, 7
  %v6067 = vsub.s32 4, %v6066
  %v6068 = vrot.slane %v4387, %v6067
  %v6073 = vunpack.c.l.b16 %v6061
  %v6074 = vunpack.c.l.b16 %v6062
  %v6075 = vunpack.c.l.b16 %v6063
  %v6076 = vunpack.c.l.b16 %v6064
  %v6077 = vpack.c.b16 %v6074, %v6073
  %v6078 = vpack.c.b16 %v6076, %v6075
  %v6082 = vsel %vm112, %v6056, 0
  %v6085 = vsel %vm112, %v6057, 0
  %v6088 = vsel %vm112, %v6058, 0
  %v6091 = vsel %vm112, %v6059, 0
  %6093 = vmatprep.subr.bf16.mxu0 0
  %6094 = vmatpush1.bf16.msra.mxu0 0
  %6095 = vmatprep.subr.bf16.mxu0 0
  %6096 = vmatpush1.bf16.msra.mxu0 0
  %6097 = vmatprep.subr.bf16.mxu0 0
  %6098 = vmatpush1.bf16.msra.mxu0 0
  %6099 = vmatprep.subr.bf16.mxu0 0
  %6100 = vmatpush1.bf16.msra.mxu0 0
  %6101 = vmatprep.subr.bf16.mxu0 0
  %6102 = vmatpush1.bf16.msra.mxu0 0
  %6103 = vmatprep.subr.bf16.mxu0 0
  %6104 = vmatpush1.bf16.msra.mxu0 0
  %6105 = vmatprep.subr.bf16.mxu0 0
  %6106 = vmatpush1.bf16.msra.mxu0 %v6078
  %6107 = vmatprep.subr.bf16.mxu0 0
  %6108 = vmatpush1.bf16.msra.mxu0 %v6077
  %6109 = vmatprep.subr.bf16.mxu0 0
  %6110 = vmatpush2.bf16.msra.mxu0 0
  %6111 = vmatprep.subr.bf16.mxu0 0
  %6112 = vmatpush2.bf16.msra.mxu0 0
  %6113 = vmatprep.subr.bf16.mxu0 0
  %6114 = vmatpush2.bf16.msra.mxu0 0
  %6115 = vmatprep.subr.bf16.mxu0 0
  %6116 = vmatpush2.bf16.msra.mxu0 0
  %6117 = vmatprep.subr.bf16.mxu0 0
  %6118 = vmatpush2.bf16.msra.mxu0 0
  %6119 = vmatprep.subr.bf16.mxu0 0
  %6120 = vmatpush2.bf16.msra.mxu0 0
  %6121 = vmatprep.subr.bf16.mxu0 0
  %6122 = vmatpush2.bf16.msra.mxu0 0
  %6123 = vmatprep.subr.bf16.mxu0 0
  %6124 = vmatpush2.bf16.msra.mxu0 0
  %6125 = vmatprep.mubr.bf16.mxu0 0
  %6126 = vmatmul.mubr.bf16.gmra.mxu0 %v6082
  %v6127 = vpop.f32.mrf.mxu0
  %v6128 = vadd.f32 %v6068, %v6127
  %v6129 = vpop.f32.mrf.mxu0
  %v6130 = vpop.f32.mrf.mxu0
  %v6131 = vadd.f32 %v6068, %v6130
  %v6132 = vpop.f32.mrf.mxu0
  %6133 = vmatprep.mubr.bf16.mxu0 0
  %6134 = vmatmul.mubr.bf16.gmra.mxu0 %v6085
  %v6135 = vpop.f32.mrf.mxu0
  %v6136 = vadd.f32 %v6068, %v6135
  %v6137 = vpop.f32.mrf.mxu0
  %v6138 = vpop.f32.mrf.mxu0
  %v6139 = vadd.f32 %v6068, %v6138
  %v6140 = vpop.f32.mrf.mxu0
  %6141 = vmatprep.mubr.bf16.mxu0 0
  %6142 = vmatmul.mubr.bf16.gmra.mxu0 %v6088
  %v6143 = vpop.f32.mrf.mxu0
  %v6144 = vadd.f32 %v6068, %v6143
  %v6145 = vpop.f32.mrf.mxu0
  %v6146 = vpop.f32.mrf.mxu0
  %v6147 = vadd.f32 %v6068, %v6146
  %v6148 = vpop.f32.mrf.mxu0
  %6149 = vmatprep.mubr.bf16.mxu0 0
  %6150 = vmatmul.mubr.bf16.gmra.mxu0 %v6091
  %v6151 = vpop.f32.mrf.mxu0
  %v6152 = vadd.f32 %v6068, %v6151
  %v6153 = vpop.f32.mrf.mxu0
  %v6154 = vpop.f32.mrf.mxu0
  %v6155 = vadd.f32 %v6068, %v6154
  %v6156 = vpop.f32.mrf.mxu0
  %6157 = vdwg.mxu0
  %v6158 = vmul.f32 %v6128, 0.5
  %v6159 = vmul.f32 %v6131, 0.5
  %v6160 = vmul.f32 %v6136, 0.5
  %v6161 = vmul.f32 %v6139, 0.5
  %v6162 = vmul.f32 %v6144, 0.5
  %v6163 = vmul.f32 %v6147, 0.5
  %v6164 = vmul.f32 %v6152, 0.5
  %v6165 = vmul.f32 %v6155, 0.5
  %v6166 = vmul.f32 %v6128, 0.044715
  %v6167 = vmul.f32 %v6131, 0.044715
  %v6168 = vmul.f32 %v6136, 0.044715
  %v6169 = vmul.f32 %v6139, 0.044715
  %v6170 = vmul.f32 %v6144, 0.044715
  %v6171 = vmul.f32 %v6147, 0.044715
  %v6172 = vmul.f32 %v6152, 0.044715
  %v6173 = vmul.f32 %v6155, 0.044715
  %v6174 = vmul.f32 %v6166, %v6128
  %v6175 = vmul.f32 %v6167, %v6131
  %v6176 = vmul.f32 %v6168, %v6136
  %v6177 = vmul.f32 %v6169, %v6139
  %v6178 = vmul.f32 %v6170, %v6144
  %v6179 = vmul.f32 %v6171, %v6147
  %v6180 = vmul.f32 %v6172, %v6152
  %v6181 = vmul.f32 %v6173, %v6155
  %v6182 = vmul.f32 %v6174, %v6128
  %v6183 = vmul.f32 %v6175, %v6131
  %v6184 = vmul.f32 %v6176, %v6136
  %v6185 = vmul.f32 %v6177, %v6139
  %v6186 = vmul.f32 %v6178, %v6144
  %v6187 = vmul.f32 %v6179, %v6147
  %v6188 = vmul.f32 %v6180, %v6152
  %v6189 = vmul.f32 %v6181, %v6155
  %v6190 = vadd.f32 %v6128, %v6182
  %v6191 = vadd.f32 %v6131, %v6183
  %v6192 = vadd.f32 %v6136, %v6184
  %v6193 = vadd.f32 %v6139, %v6185
  %v6194 = vadd.f32 %v6144, %v6186
  %v6195 = vadd.f32 %v6147, %v6187
  %v6196 = vadd.f32 %v6152, %v6188
  %v6197 = vadd.f32 %v6155, %v6189
  %v6198 = vmul.f32 %v6190, 0.7978846
  %v6199 = vmul.f32 %v6191, 0.7978846
  %v6200 = vmul.f32 %v6192, 0.7978846
  %v6201 = vmul.f32 %v6193, 0.7978846
  %v6202 = vmul.f32 %v6194, 0.7978846
  %v6203 = vmul.f32 %v6195, 0.7978846
  %v6204 = vmul.f32 %v6196, 0.7978846
  %v6205 = vmul.f32 %v6197, 0.7978846
  %v6206 = vtanh.pop %v6198
  %v6207 = vtanh.pop %v6199
  %v6208 = vtanh.pop %v6200
  %v6209 = vtanh.pop %v6201
  %v6210 = vtanh.pop %v6202
  %v6211 = vtanh.pop %v6203
  %v6212 = vtanh.pop %v6204
  %v6213 = vtanh.pop %v6205
  %v6214 = vadd.f32 %v6206, 1.0
  %v6215 = vadd.f32 %v6207, 1.0
  %v6216 = vadd.f32 %v6208, 1.0
  %v6217 = vadd.f32 %v6209, 1.0
  %v6218 = vadd.f32 %v6210, 1.0
  %v6219 = vadd.f32 %v6211, 1.0
  %v6220 = vadd.f32 %v6212, 1.0
  %v6221 = vadd.f32 %v6213, 1.0
  %v6222 = vmul.f32 %v6158, %v6214
  %v6223 = vmul.f32 %v6159, %v6215
  %v6224 = vmul.f32 %v6160, %v6216
  %v6225 = vmul.f32 %v6161, %v6217
  %v6226 = vmul.f32 %v6162, %v6218
  %v6227 = vmul.f32 %v6163, %v6219
  %v6228 = vmul.f32 %v6164, %v6220
  %v6229 = vmul.f32 %v6165, %v6221
  %v6230 = vpack.c.bf16 %v6223, %v6222
  %v6231 = vpack.c.bf16 %v6225, %v6224
  %v6232 = vpack.c.bf16 %v6227, %v6226
  %v6233 = vpack.c.bf16 %v6229, %v6228
  %s6234 = scalar_lea.vmem %s6, 64
  %v6235 = vld [vmem:[%s6234] sm:$0xf]
  %v6236 = vld [vmem:[%s6234 + $0x4] sm:$0xf]
  %v6237 = vld [vmem:[%s6234 + $0x8] sm:$0xf]
  %v6238 = vld [vmem:[%s6234 + $0xc] sm:$0xf]
  %v6239 = vld [vmem:[%s6234 + $0x10] sm:$0xf]
  %v6240 = vld [vmem:[%s6234 + $0x14] sm:$0xf]
  %v6241 = vld [vmem:[%s6234 + $0x18] sm:$0xf]
  %v6242 = vld [vmem:[%s6234 + $0x1c] sm:$0xf]
  %v6243 = vlaneseq
  %v6244 = vshrl.u32 %v6243, 7
  %v6245 = vsub.s32 5, %v6244
  %v6246 = vrot.slane %v4387, %v6245
  %v6255 = vunpack.c.l.b16 %v6235
  %v6256 = vunpack.c.l.b16 %v6236
  %v6257 = vunpack.c.l.b16 %v6237
  %v6258 = vunpack.c.l.b16 %v6238
  %v6259 = vunpack.c.l.b16 %v6239
  %v6260 = vunpack.c.l.b16 %v6240
  %v6261 = vunpack.c.l.b16 %v6241
  %v6262 = vunpack.c.l.b16 %v6242
  %v6263 = vpack.c.b16 %v6256, %v6255
  %v6264 = vpack.c.b16 %v6258, %v6257
  %v6265 = vpack.c.b16 %v6260, %v6259
  %v6266 = vpack.c.b16 %v6262, %v6261
  %v6272 = vsel %vm414, %v6230, 0
  %v6275 = vsel %vm414, %v6231, 0
  %v6278 = vsel %vm414, %v6232, 0
  %v6281 = vsel %vm414, %v6233, 0
  %6283 = vmatprep.subr.bf16.mxu0 0
  %6284 = vmatpush1.bf16.msra.mxu0 0
  %6285 = vmatprep.subr.bf16.mxu0 0
  %6286 = vmatpush1.bf16.msra.mxu0 0
  %6287 = vmatprep.subr.bf16.mxu0 0
  %6288 = vmatpush1.bf16.msra.mxu0 0
  %6289 = vmatprep.subr.bf16.mxu0 0
  %6290 = vmatpush1.bf16.msra.mxu0 0
  %6291 = vmatprep.subr.bf16.mxu0 0
  %6292 = vmatpush1.bf16.msra.mxu0 %v6266
  %6293 = vmatprep.subr.bf16.mxu0 0
  %6294 = vmatpush1.bf16.msra.mxu0 %v6265
  %6295 = vmatprep.subr.bf16.mxu0 0
  %6296 = vmatpush1.bf16.msra.mxu0 %v6264
  %6297 = vmatprep.subr.bf16.mxu0 0
  %6298 = vmatpush1.bf16.msra.mxu0 %v6263
  %6299 = vmatprep.subr.bf16.mxu0 0
  %6300 = vmatpush2.bf16.msra.mxu0 0
  %6301 = vmatprep.subr.bf16.mxu0 0
  %6302 = vmatpush2.bf16.msra.mxu0 0
  %6303 = vmatprep.subr.bf16.mxu0 0
  %6304 = vmatpush2.bf16.msra.mxu0 0
  %6305 = vmatprep.subr.bf16.mxu0 0
  %6306 = vmatpush2.bf16.msra.mxu0 0
  %6307 = vmatprep.subr.bf16.mxu0 0
  %6308 = vmatpush2.bf16.msra.mxu0 0
  %6309 = vmatprep.subr.bf16.mxu0 0
  %6310 = vmatpush2.bf16.msra.mxu0 0
  %6311 = vmatprep.subr.bf16.mxu0 0
  %6312 = vmatpush2.bf16.msra.mxu0 0
  %6313 = vmatprep.subr.bf16.mxu0 0
  %6314 = vmatpush2.bf16.msra.mxu0 0
  %6315 = vmatprep.mubr.bf16.mxu0 0
  %6316 = vmatmul.mubr.bf16.gmra.mxu0 %v6272
  %v6317 = vpop.f32.mrf.mxu0
  %v6318 = vadd.f32 %v6246, %v6317
  %v6319 = vpop.f32.mrf.mxu0
  %v6320 = vpop.f32.mrf.mxu0
  %v6321 = vadd.f32 %v6246, %v6320
  %v6322 = vpop.f32.mrf.mxu0
  %6323 = vmatprep.mubr.bf16.mxu0 0
  %6324 = vmatmul.mubr.bf16.gmra.mxu0 %v6275
  %v6325 = vpop.f32.mrf.mxu0
  %v6326 = vadd.f32 %v6246, %v6325
  %v6327 = vpop.f32.mrf.mxu0
  %v6328 = vpop.f32.mrf.mxu0
  %v6329 = vadd.f32 %v6246, %v6328
  %v6330 = vpop.f32.mrf.mxu0
  %6331 = vmatprep.mubr.bf16.mxu0 0
  %6332 = vmatmul.mubr.bf16.gmra.mxu0 %v6278
  %v6333 = vpop.f32.mrf.mxu0
  %v6334 = vadd.f32 %v6246, %v6333
  %v6335 = vpop.f32.mrf.mxu0
  %v6336 = vpop.f32.mrf.mxu0
  %v6337 = vadd.f32 %v6246, %v6336
  %v6338 = vpop.f32.mrf.mxu0
  %6339 = vmatprep.mubr.bf16.mxu0 0
  %6340 = vmatmul.mubr.bf16.gmra.mxu0 %v6281
  %v6341 = vpop.f32.mrf.mxu0
  %v6342 = vadd.f32 %v6246, %v6341
  %v6343 = vpop.f32.mrf.mxu0
  %v6344 = vpop.f32.mrf.mxu0
  %v6345 = vadd.f32 %v6246, %v6344
  %v6346 = vpop.f32.mrf.mxu0
  %6347 = vdwg.mxu0
  %v6348 = vadd.f32 %v6048, %v6318
  %v6349 = vadd.f32 %v6049, %v6321
  %v6350 = vadd.f32 %v6050, %v6326
  %v6351 = vadd.f32 %v6051, %v6329
  %v6352 = vadd.f32 %v6052, %v6334
  %v6353 = vadd.f32 %v6053, %v6337
  %v6354 = vadd.f32 %v6054, %v6342
  %v6355 = vadd.f32 %v6055, %v6345
  %v6356 = vsel %vm112, %v6348, 0.0
  %6357 = vadd.xlane.f32.xlu0 %v6356
  %v6358 = vpop.xlane.xlu0 %6357
  %v6359 = vsel %vm112, %v6349, 0.0
  %6360 = vadd.xlane.f32.xlu0 %v6359
  %v6361 = vpop.xlane.xlu0 %6360
  %v6362 = vsel %vm112, %v6350, 0.0
  %6363 = vadd.xlane.f32.xlu0 %v6362
  %v6364 = vpop.xlane.xlu0 %6363
  %v6365 = vsel %vm112, %v6351, 0.0
  %6366 = vadd.xlane.f32.xlu0 %v6365
  %v6367 = vpop.xlane.xlu0 %6366
  %v6368 = vsel %vm112, %v6352, 0.0
  %6369 = vadd.xlane.f32.xlu0 %v6368
  %v6370 = vpop.xlane.xlu0 %6369
  %v6371 = vsel %vm112, %v6353, 0.0
  %6372 = vadd.xlane.f32.xlu0 %v6371
  %v6373 = vpop.xlane.xlu0 %6372
  %v6374 = vsel %vm112, %v6354, 0.0
  %6375 = vadd.xlane.f32.xlu0 %v6374
  %v6376 = vpop.xlane.xlu0 %6375
  %v6377 = vsel %vm112, %v6355, 0.0
  %6378 = vadd.xlane.f32.xlu0 %v6377
  %v6379 = vpop.xlane.xlu0 %6378
  %v6380 = vmul.f32 %v6358, %v1757
  %v6381 = vmul.f32 %v6361, %v1757
  %v6382 = vmul.f32 %v6364, %v1757
  %v6383 = vmul.f32 %v6367, %v1757
  %v6384 = vmul.f32 %v6370, %v1757
  %v6385 = vmul.f32 %v6373, %v1757
  %v6386 = vmul.f32 %v6376, %v1757
  %v6387 = vmul.f32 %v6379, %v1757
  %v6388 = vsub.f32 %v6348, %v6380
  %v6389 = vsub.f32 %v6349, %v6381
  %v6390 = vsub.f32 %v6350, %v6382
  %v6391 = vsub.f32 %v6351, %v6383
  %v6392 = vsub.f32 %v6352, %v6384
  %v6393 = vsub.f32 %v6353, %v6385
  %v6394 = vsub.f32 %v6354, %v6386
  %v6395 = vsub.f32 %v6355, %v6387
  %v6396 = vmul.f32 %v6388, %v6388
  %v6397 = vmul.f32 %v6389, %v6389
  %v6398 = vmul.f32 %v6390, %v6390
  %v6399 = vmul.f32 %v6391, %v6391
  %v6400 = vmul.f32 %v6392, %v6392
  %v6401 = vmul.f32 %v6393, %v6393
  %v6402 = vmul.f32 %v6394, %v6394
  %v6403 = vmul.f32 %v6395, %v6395
  %v6404 = vsel %vm112, %v6396, 0.0
  %6405 = vadd.xlane.f32.xlu0 %v6404
  %v6406 = vpop.xlane.xlu0 %6405
  %v6407 = vsel %vm112, %v6397, 0.0
  %6408 = vadd.xlane.f32.xlu0 %v6407
  %v6409 = vpop.xlane.xlu0 %6408
  %v6410 = vsel %vm112, %v6398, 0.0
  %6411 = vadd.xlane.f32.xlu0 %v6410
  %v6412 = vpop.xlane.xlu0 %6411
  %v6413 = vsel %vm112, %v6399, 0.0
  %6414 = vadd.xlane.f32.xlu0 %v6413
  %v6415 = vpop.xlane.xlu0 %6414
  %v6416 = vsel %vm112, %v6400, 0.0
  %6417 = vadd.xlane.f32.xlu0 %v6416
  %v6418 = vpop.xlane.xlu0 %6417
  %v6419 = vsel %vm112, %v6401, 0.0
  %6420 = vadd.xlane.f32.xlu0 %v6419
  %v6421 = vpop.xlane.xlu0 %6420
  %v6422 = vsel %vm112, %v6402, 0.0
  %6423 = vadd.xlane.f32.xlu0 %v6422
  %v6424 = vpop.xlane.xlu0 %6423
  %v6425 = vsel %vm112, %v6403, 0.0
  %6426 = vadd.xlane.f32.xlu0 %v6425
  %v6427 = vpop.xlane.xlu0 %6426
  %v6428 = vmul.f32 %v6406, %v1757
  %v6429 = vmul.f32 %v6409, %v1757
  %v6430 = vmul.f32 %v6412, %v1757
  %v6431 = vmul.f32 %v6415, %v1757
  %v6432 = vmul.f32 %v6418, %v1757
  %v6433 = vmul.f32 %v6421, %v1757
  %v6434 = vmul.f32 %v6424, %v1757
  %v6435 = vmul.f32 %v6427, %v1757
  %v6436 = vadd.f32 %v6428, 1e-05
  %v6437 = vadd.f32 %v6429, 1e-05
  %v6438 = vadd.f32 %v6430, 1e-05
  %v6439 = vadd.f32 %v6431, 1e-05
  %v6440 = vadd.f32 %v6432, 1e-05
  %v6441 = vadd.f32 %v6433, 1e-05
  %v6442 = vadd.f32 %v6434, 1e-05
  %v6443 = vadd.f32 %v6435, 1e-05
  %v6444 = vrsqrt.pop %v6436
  %v6445 = vrsqrt.pop %v6437
  %v6446 = vrsqrt.pop %v6438
  %v6447 = vrsqrt.pop %v6439
  %v6448 = vrsqrt.pop %v6440
  %v6449 = vrsqrt.pop %v6441
  %v6450 = vrsqrt.pop %v6442
  %v6451 = vrsqrt.pop %v6443
  %v6452 = vmul.f32 %v6388, %v6444
  %v6453 = vmul.f32 %v6389, %v6445
  %v6454 = vmul.f32 %v6390, %v6446
  %v6455 = vmul.f32 %v6391, %v6447
  %v6456 = vmul.f32 %v6392, %v6448
  %v6457 = vmul.f32 %v6393, %v6449
  %v6458 = vmul.f32 %v6394, %v6450
  %v6459 = vmul.f32 %v6395, %v6451
  %v6460 = vlaneseq
  %v6461 = vshrl.u32 %v6460, 7
  %v6462 = vsub.s32 6, %v6461
  %v6463 = vrot.slane %v4387, %v6462
  %v6464 = vmul.f32 %v6452, %v6463
  %v6465 = vmul.f32 %v6453, %v6463
  %v6466 = vmul.f32 %v6454, %v6463
  %v6467 = vmul.f32 %v6455, %v6463
  %v6468 = vmul.f32 %v6456, %v6463
  %v6469 = vmul.f32 %v6457, %v6463
  %v6470 = vmul.f32 %v6458, %v6463
  %v6471 = vmul.f32 %v6459, %v6463
  %v6472 = vlaneseq
  %v6473 = vshrl.u32 %v6472, 7
  %v6474 = vsub.s32 7, %v6473
  %v6475 = vrot.slane %v4387, %v6474
  %v6476 = vadd.f32 %v6464, %v6475
  %v6477 = vadd.f32 %v6465, %v6475
  %v6478 = vadd.f32 %v6466, %v6475
  %v6479 = vadd.f32 %v6467, %v6475
  %v6480 = vadd.f32 %v6468, %v6475
  %v6481 = vadd.f32 %v6469, %v6475
  %v6482 = vadd.f32 %v6470, %v6475
  %v6483 = vadd.f32 %v6471, %v6475
  %s6484 = scalar_lea.vmem %s7, 24
  %v6485 = vld [vmem:[%s6484] sm:$0xff]
  %v6486 = vpack.c.bf16 %v6477, %v6476
  %v6487 = vpack.c.bf16 %v6479, %v6478
  %v6488 = vpack.c.bf16 %v6481, %v6480
  %v6489 = vpack.c.bf16 %v6483, %v6482
  %s6490 = scalar_lea.vmem %s3, 48
  %v6491 = vld [vmem:[%s6490] sm:$0xf]
  %v6492 = vld [vmem:[%s6490 + $0x4] sm:$0xf]
  %v6493 = vld [vmem:[%s6490 + $0x8] sm:$0xf]
  %v6494 = vld [vmem:[%s6490 + $0xc] sm:$0xf]
  %v6495 = vlaneseq
  %v6496 = vshrl.u32 %v6495, 7
  %v6497 = vsub.s32 0, %v6496
  %v6498 = vrot.slane %v6485, %v6497
  %v6503 = vunpack.c.l.b16 %v6491
  %v6504 = vunpack.c.l.b16 %v6492
  %v6505 = vunpack.c.l.b16 %v6493
  %v6506 = vunpack.c.l.b16 %v6494
  %v6507 = vpack.c.b16 %v6504, %v6503
  %v6508 = vpack.c.b16 %v6506, %v6505
  %v6512 = vsel %vm112, %v6486, 0
  %v6515 = vsel %vm112, %v6487, 0
  %v6518 = vsel %vm112, %v6488, 0
  %v6521 = vsel %vm112, %v6489, 0
  %6523 = vmatprep.subr.bf16.mxu0 0
  %6524 = vmatpush1.bf16.msra.mxu0 0
  %6525 = vmatprep.subr.bf16.mxu0 0
  %6526 = vmatpush1.bf16.msra.mxu0 0
  %6527 = vmatprep.subr.bf16.mxu0 0
  %6528 = vmatpush1.bf16.msra.mxu0 0
  %6529 = vmatprep.subr.bf16.mxu0 0
  %6530 = vmatpush1.bf16.msra.mxu0 0
  %6531 = vmatprep.subr.bf16.mxu0 0
  %6532 = vmatpush1.bf16.msra.mxu0 0
  %6533 = vmatprep.subr.bf16.mxu0 0
  %6534 = vmatpush1.bf16.msra.mxu0 0
  %6535 = vmatprep.subr.bf16.mxu0 0
  %6536 = vmatpush1.bf16.msra.mxu0 %v6508
  %6537 = vmatprep.subr.bf16.mxu0 0
  %6538 = vmatpush1.bf16.msra.mxu0 %v6507
  %6539 = vmatprep.subr.bf16.mxu0 0
  %6540 = vmatpush2.bf16.msra.mxu0 0
  %6541 = vmatprep.subr.bf16.mxu0 0
  %6542 = vmatpush2.bf16.msra.mxu0 0
  %6543 = vmatprep.subr.bf16.mxu0 0
  %6544 = vmatpush2.bf16.msra.mxu0 0
  %6545 = vmatprep.subr.bf16.mxu0 0
  %6546 = vmatpush2.bf16.msra.mxu0 0
  %6547 = vmatprep.subr.bf16.mxu0 0
  %6548 = vmatpush2.bf16.msra.mxu0 0
  %6549 = vmatprep.subr.bf16.mxu0 0
  %6550 = vmatpush2.bf16.msra.mxu0 0
  %6551 = vmatprep.subr.bf16.mxu0 0
  %6552 = vmatpush2.bf16.msra.mxu0 0
  %6553 = vmatprep.subr.bf16.mxu0 0
  %6554 = vmatpush2.bf16.msra.mxu0 0
  %6555 = vmatprep.mubr.bf16.mxu0 0
  %6556 = vmatmul.mubr.bf16.gmra.mxu0 %v6512
  %v6557 = vpop.f32.mrf.mxu0
  %v6558 = vadd.f32 %v6498, %v6557
  %v6559 = vpop.f32.mrf.mxu0
  %v6560 = vpop.f32.mrf.mxu0
  %v6561 = vadd.f32 %v6498, %v6560
  %v6562 = vpop.f32.mrf.mxu0
  %6563 = vmatprep.mubr.bf16.mxu0 0
  %6564 = vmatmul.mubr.bf16.gmra.mxu0 %v6515
  %v6565 = vpop.f32.mrf.mxu0
  %v6566 = vadd.f32 %v6498, %v6565
  %v6567 = vpop.f32.mrf.mxu0
  %v6568 = vpop.f32.mrf.mxu0
  %v6569 = vadd.f32 %v6498, %v6568
  %v6570 = vpop.f32.mrf.mxu0
  %6571 = vmatprep.mubr.bf16.mxu0 0
  %6572 = vmatmul.mubr.bf16.gmra.mxu0 %v6518
  %v6573 = vpop.f32.mrf.mxu0
  %v6574 = vadd.f32 %v6498, %v6573
  %v6575 = vpop.f32.mrf.mxu0
  %v6576 = vpop.f32.mrf.mxu0
  %v6577 = vadd.f32 %v6498, %v6576
  %v6578 = vpop.f32.mrf.mxu0
  %6579 = vmatprep.mubr.bf16.mxu0 0
  %6580 = vmatmul.mubr.bf16.gmra.mxu0 %v6521
  %v6581 = vpop.f32.mrf.mxu0
  %v6582 = vadd.f32 %v6498, %v6581
  %v6583 = vpop.f32.mrf.mxu0
  %v6584 = vpop.f32.mrf.mxu0
  %v6585 = vadd.f32 %v6498, %v6584
  %v6586 = vpop.f32.mrf.mxu0
  %6587 = vdwg.mxu0
  %v6588 = vpack.c.bf16 %v6561, %v6558
  %v6589 = vpack.c.bf16 %v6569, %v6566
  %v6590 = vpack.c.bf16 %v6577, %v6574
  %v6591 = vpack.c.bf16 %v6585, %v6582
  %6596 = vrot.lane.b32.xlu0 %v6588, 96
  %v6597 = vpop.permute.xlu0 %6596
  %6598 = vrot.lane.b32.xlu0 %v6589, 96
  %v6599 = vpop.permute.xlu0 %6598
  %6600 = vrot.lane.b32.xlu0 %v6590, 96
  %v6601 = vpop.permute.xlu0 %6600
  %6602 = vrot.lane.b32.xlu0 %v6591, 96
  %v6603 = vpop.permute.xlu0 %6602
  %v6605 = vsel %vm308, %v6588, 0
  %v6608 = vsel %vm308, %v6589, 0
  %v6611 = vsel %vm308, %v6590, 0
  %v6614 = vsel %vm308, %v6591, 0
  %v6617 = vsel %vm308, %v6597, 0
  %v6620 = vsel %vm308, %v6599, 0
  %v6623 = vsel %vm308, %v6601, 0
  %v6626 = vsel %vm308, %v6603, 0
  %6628 = vmatprep.subr.bf16.mxu0 0
  %6629 = vmatpush1.bf16.xpose.msra.mxu0 0
  %6630 = vmatprep.subr.bf16.mxu0 0
  %6631 = vmatpush1.bf16.xpose.msra.mxu0 0
  %6632 = vmatprep.subr.bf16.mxu0 0
  %6633 = vmatpush1.bf16.xpose.msra.mxu0 0
  %6634 = vmatprep.subr.bf16.mxu0 0
  %6635 = vmatpush1.bf16.xpose.msra.mxu0 0
  %6636 = vmatprep.subr.bf16.mxu0 0
  %6637 = vmatpush1.bf16.xpose.msra.mxu0 %v6626
  %6638 = vmatprep.subr.bf16.mxu0 0
  %6639 = vmatpush1.bf16.xpose.msra.mxu0 %v6623
  %6640 = vmatprep.subr.bf16.mxu0 0
  %6641 = vmatpush1.bf16.xpose.msra.mxu0 %v6620
  %6642 = vmatprep.subr.bf16.mxu0 0
  %6643 = vmatpush1.bf16.xpose.msra.mxu0 %v6617
  %6644 = vmatprep.subr.bf16.mxu0 0
  %6645 = vmatpush2.bf16.xpose.msra.mxu0 0
  %6646 = vmatprep.subr.bf16.mxu0 0
  %6647 = vmatpush2.bf16.xpose.msra.mxu0 0
  %6648 = vmatprep.subr.bf16.mxu0 0
  %6649 = vmatpush2.bf16.xpose.msra.mxu0 0
  %6650 = vmatprep.subr.bf16.mxu0 0
  %6651 = vmatpush2.bf16.xpose.msra.mxu0 0
  %6652 = vmatprep.subr.bf16.mxu0 0
  %6653 = vmatpush2.bf16.xpose.msra.mxu0 0
  %6654 = vmatprep.subr.bf16.mxu0 0
  %6655 = vmatpush2.bf16.xpose.msra.mxu0 0
  %6656 = vmatprep.subr.bf16.mxu0 0
  %6657 = vmatpush2.bf16.xpose.msra.mxu0 0
  %6658 = vmatprep.subr.bf16.mxu0 0
  %6659 = vmatpush2.bf16.xpose.msra.mxu0 0
  %6660 = vmatprep.mubr.bf16.mxu0 0
  %6661 = vmatmul.mubr.bf16.gmra.mxu0 %v6605
  %v6662 = vpop.f32.mrf.mxu0
  %v6663 = vadd.f32 0.0, %v6662
  %v6664 = vpop.f32.mrf.mxu0
  %v6665 = vpop.f32.mrf.mxu0
  %v6666 = vadd.f32 0.0, %v6665
  %v6667 = vpop.f32.mrf.mxu0
  %6668 = vmatprep.mubr.bf16.mxu0 0
  %6669 = vmatmul.mubr.bf16.gmra.mxu0 %v6608
  %v6670 = vpop.f32.mrf.mxu0
  %v6671 = vadd.f32 0.0, %v6670
  %v6672 = vpop.f32.mrf.mxu0
  %v6673 = vpop.f32.mrf.mxu0
  %v6674 = vadd.f32 0.0, %v6673
  %v6675 = vpop.f32.mrf.mxu0
  %6676 = vmatprep.mubr.bf16.mxu0 0
  %6677 = vmatmul.mubr.bf16.gmra.mxu0 %v6611
  %v6678 = vpop.f32.mrf.mxu0
  %v6679 = vadd.f32 0.0, %v6678
  %v6680 = vpop.f32.mrf.mxu0
  %v6681 = vpop.f32.mrf.mxu0
  %v6682 = vadd.f32 0.0, %v6681
  %v6683 = vpop.f32.mrf.mxu0
  %6684 = vmatprep.mubr.bf16.mxu0 0
  %6685 = vmatmul.mubr.bf16.gmra.mxu0 %v6614
  %v6686 = vpop.f32.mrf.mxu0
  %v6687 = vadd.f32 0.0, %v6686
  %v6688 = vpop.f32.mrf.mxu0
  %v6689 = vpop.f32.mrf.mxu0
  %v6690 = vadd.f32 0.0, %v6689
  %v6691 = vpop.f32.mrf.mxu0
  %6692 = vdwg.mxu0
  %v6693 = vmul.f32 %v6663, 0.35355338
  %v6694 = vmul.f32 %v6666, 0.35355338
  %v6695 = vmul.f32 %v6671, 0.35355338
  %v6696 = vmul.f32 %v6674, 0.35355338
  %v6697 = vmul.f32 %v6679, 0.35355338
  %v6698 = vmul.f32 %v6682, 0.35355338
  %v6699 = vmul.f32 %v6687, 0.35355338
  %v6700 = vmul.f32 %v6690, 0.35355338
  %v6701 = vadd.f32 %v6693, %v60
  %v6702 = vadd.f32 %v6694, %v61
  %v6703 = vadd.f32 %v6695, %v62
  %v6704 = vadd.f32 %v6696, %v63
  %v6705 = vadd.f32 %v6697, %v64
  %v6706 = vadd.f32 %v6698, %v65
  %v6707 = vadd.f32 %v6699, %v66
  %v6708 = vadd.f32 %v6700, %v67
  %v6709 = vsel %vm414, %v6701, -inf
  %6710 = vmax.xlane.f32.xlu0 %v6709
  %v6711 = vpop.xlane.xlu0 %6710
  %v6712 = vsel %vm414, %v6702, -inf
  %6713 = vmax.xlane.f32.xlu0 %v6712
  %v6714 = vpop.xlane.xlu0 %6713
  %v6715 = vsel %vm414, %v6703, -inf
  %6716 = vmax.xlane.f32.xlu0 %v6715
  %v6717 = vpop.xlane.xlu0 %6716
  %v6718 = vsel %vm414, %v6704, -inf
  %6719 = vmax.xlane.f32.xlu0 %v6718
  %v6720 = vpop.xlane.xlu0 %6719
  %v6721 = vsel %vm414, %v6705, -inf
  %6722 = vmax.xlane.f32.xlu0 %v6721
  %v6723 = vpop.xlane.xlu0 %6722
  %v6724 = vsel %vm414, %v6706, -inf
  %6725 = vmax.xlane.f32.xlu0 %v6724
  %v6726 = vpop.xlane.xlu0 %6725
  %v6727 = vsel %vm414, %v6707, -inf
  %6728 = vmax.xlane.f32.xlu0 %v6727
  %v6729 = vpop.xlane.xlu0 %6728
  %v6730 = vsel %vm414, %v6708, -inf
  %6731 = vmax.xlane.f32.xlu0 %v6730
  %v6732 = vpop.xlane.xlu0 %6731
  %v6733 = vsub.f32 %v6701, %v6711
  %v6734 = vsub.f32 %v6702, %v6714
  %v6735 = vsub.f32 %v6703, %v6717
  %v6736 = vsub.f32 %v6704, %v6720
  %v6737 = vsub.f32 %v6705, %v6723
  %v6738 = vsub.f32 %v6706, %v6726
  %v6739 = vsub.f32 %v6707, %v6729
  %v6740 = vsub.f32 %v6708, %v6732
  %v6741 = vmul.f32 %v6733, 1.442695
  %v6742 = vpow.pop %v6741
  %v6743 = vmul.f32 %v6734, 1.442695
  %v6744 = vpow.pop %v6743
  %v6745 = vmul.f32 %v6735, 1.442695
  %v6746 = vpow.pop %v6745
  %v6747 = vmul.f32 %v6736, 1.442695
  %v6748 = vpow.pop %v6747
  %v6749 = vmul.f32 %v6737, 1.442695
  %v6750 = vpow.pop %v6749
  %v6751 = vmul.f32 %v6738, 1.442695
  %v6752 = vpow.pop %v6751
  %v6753 = vmul.f32 %v6739, 1.442695
  %v6754 = vpow.pop %v6753
  %v6755 = vmul.f32 %v6740, 1.442695
  %v6756 = vpow.pop %v6755
  %v6757 = vsel %vm414, %v6742, 0.0
  %6758 = vadd.xlane.f32.xlu0 %v6757
  %v6759 = vpop.xlane.xlu0 %6758
  %v6760 = vsel %vm414, %v6744, 0.0
  %6761 = vadd.xlane.f32.xlu0 %v6760
  %v6762 = vpop.xlane.xlu0 %6761
  %v6763 = vsel %vm414, %v6746, 0.0
  %6764 = vadd.xlane.f32.xlu0 %v6763
  %v6765 = vpop.xlane.xlu0 %6764
  %v6766 = vsel %vm414, %v6748, 0.0
  %6767 = vadd.xlane.f32.xlu0 %v6766
  %v6768 = vpop.xlane.xlu0 %6767
  %v6769 = vsel %vm414, %v6750, 0.0
  %6770 = vadd.xlane.f32.xlu0 %v6769
  %v6771 = vpop.xlane.xlu0 %6770
  %v6772 = vsel %vm414, %v6752, 0.0
  %6773 = vadd.xlane.f32.xlu0 %v6772
  %v6774 = vpop.xlane.xlu0 %6773
  %v6775 = vsel %vm414, %v6754, 0.0
  %6776 = vadd.xlane.f32.xlu0 %v6775
  %v6777 = vpop.xlane.xlu0 %6776
  %v6778 = vsel %vm414, %v6756, 0.0
  %6779 = vadd.xlane.f32.xlu0 %v6778
  %v6780 = vpop.xlane.xlu0 %6779
  %v6781 = vrcp.pop %v6759
  %v6782 = vrcp.pop %v6762
  %v6783 = vrcp.pop %v6765
  %v6784 = vrcp.pop %v6768
  %v6785 = vrcp.pop %v6771
  %v6786 = vrcp.pop %v6774
  %v6787 = vrcp.pop %v6777
  %v6788 = vrcp.pop %v6780
  %v6789 = vmul.f32 %v6742, %v6781
  %v6790 = vmul.f32 %v6744, %v6782
  %v6791 = vmul.f32 %v6746, %v6783
  %v6792 = vmul.f32 %v6748, %v6784
  %v6793 = vmul.f32 %v6750, %v6785
  %v6794 = vmul.f32 %v6752, %v6786
  %v6795 = vmul.f32 %v6754, %v6787
  %v6796 = vmul.f32 %v6756, %v6788
  %v6797 = vpack.c.bf16 %v6790, %v6789
  %v6798 = vpack.c.bf16 %v6792, %v6791
  %v6799 = vpack.c.bf16 %v6794, %v6793
  %v6800 = vpack.c.bf16 %v6796, %v6795
  %6801 = vrot.lane.b32.xlu0 %v6588, 64
  %v6802 = vpop.permute.xlu0 %6801
  %6803 = vrot.lane.b32.xlu0 %v6589, 64
  %v6804 = vpop.permute.xlu0 %6803
  %6805 = vrot.lane.b32.xlu0 %v6590, 64
  %v6806 = vpop.permute.xlu0 %6805
  %6807 = vrot.lane.b32.xlu0 %v6591, 64
  %v6808 = vpop.permute.xlu0 %6807
  %v6814 = vsel %vm414, %v6797, 0
  %v6817 = vsel %vm414, %v6798, 0
  %v6820 = vsel %vm414, %v6799, 0
  %v6823 = vsel %vm414, %v6800, 0
  %6825 = vmatprep.subr.bf16.mxu0 0
  %6826 = vmatpush1.bf16.msra.mxu0 0
  %6827 = vmatprep.subr.bf16.mxu0 0
  %6828 = vmatpush1.bf16.msra.mxu0 0
  %6829 = vmatprep.subr.bf16.mxu0 0
  %6830 = vmatpush1.bf16.msra.mxu0 0
  %6831 = vmatprep.subr.bf16.mxu0 0
  %6832 = vmatpush1.bf16.msra.mxu0 0
  %6833 = vmatprep.subr.bf16.mxu0 0
  %6834 = vmatpush1.bf16.msra.mxu0 %v6808
  %6835 = vmatprep.subr.bf16.mxu0 0
  %6836 = vmatpush1.bf16.msra.mxu0 %v6806
  %6837 = vmatprep.subr.bf16.mxu0 0
  %6838 = vmatpush1.bf16.msra.mxu0 %v6804
  %6839 = vmatprep.subr.bf16.mxu0 0
  %6840 = vmatpush1.bf16.msra.mxu0 %v6802
  %6841 = vmatprep.subr.bf16.mxu0 0
  %6842 = vmatpush2.bf16.msra.mxu0 0
  %6843 = vmatprep.subr.bf16.mxu0 0
  %6844 = vmatpush2.bf16.msra.mxu0 0
  %6845 = vmatprep.subr.bf16.mxu0 0
  %6846 = vmatpush2.bf16.msra.mxu0 0
  %6847 = vmatprep.subr.bf16.mxu0 0
  %6848 = vmatpush2.bf16.msra.mxu0 0
  %6849 = vmatprep.subr.bf16.mxu0 0
  %6850 = vmatpush2.bf16.msra.mxu0 0
  %6851 = vmatprep.subr.bf16.mxu0 0
  %6852 = vmatpush2.bf16.msra.mxu0 0
  %6853 = vmatprep.subr.bf16.mxu0 0
  %6854 = vmatpush2.bf16.msra.mxu0 0
  %6855 = vmatprep.subr.bf16.mxu0 0
  %6856 = vmatpush2.bf16.msra.mxu0 0
  %6857 = vmatprep.mubr.bf16.mxu0 0
  %6858 = vmatmul.mubr.bf16.gmra.mxu0 %v6814
  %v6859 = vpop.f32.mrf.mxu0
  %v6860 = vadd.f32 0.0, %v6859
  %v6861 = vpop.f32.mrf.mxu0
  %v6862 = vpop.f32.mrf.mxu0
  %v6863 = vadd.f32 0.0, %v6862
  %v6864 = vpop.f32.mrf.mxu0
  %6865 = vmatprep.mubr.bf16.mxu0 0
  %6866 = vmatmul.mubr.bf16.gmra.mxu0 %v6817
  %v6867 = vpop.f32.mrf.mxu0
  %v6868 = vadd.f32 0.0, %v6867
  %v6869 = vpop.f32.mrf.mxu0
  %v6870 = vpop.f32.mrf.mxu0
  %v6871 = vadd.f32 0.0, %v6870
  %v6872 = vpop.f32.mrf.mxu0
  %6873 = vmatprep.mubr.bf16.mxu0 0
  %6874 = vmatmul.mubr.bf16.gmra.mxu0 %v6820
  %v6875 = vpop.f32.mrf.mxu0
  %v6876 = vadd.f32 0.0, %v6875
  %v6877 = vpop.f32.mrf.mxu0
  %v6878 = vpop.f32.mrf.mxu0
  %v6879 = vadd.f32 0.0, %v6878
  %v6880 = vpop.f32.mrf.mxu0
  %6881 = vmatprep.mubr.bf16.mxu0 0
  %6882 = vmatmul.mubr.bf16.gmra.mxu0 %v6823
  %v6883 = vpop.f32.mrf.mxu0
  %v6884 = vadd.f32 0.0, %v6883
  %v6885 = vpop.f32.mrf.mxu0
  %v6886 = vpop.f32.mrf.mxu0
  %v6887 = vadd.f32 0.0, %v6886
  %v6888 = vpop.f32.mrf.mxu0
  %6889 = vdwg.mxu0
  %6890 = vrot.lane.b32.xlu0 %v6588, 120
  %v6891 = vpop.permute.xlu0 %6890
  %6892 = vrot.lane.b32.xlu0 %v6589, 120
  %v6893 = vpop.permute.xlu0 %6892
  %6894 = vrot.lane.b32.xlu0 %v6590, 120
  %v6895 = vpop.permute.xlu0 %6894
  %6896 = vrot.lane.b32.xlu0 %v6591, 120
  %v6897 = vpop.permute.xlu0 %6896
  %6898 = vrot.lane.b32.xlu0 %v6588, 88
  %v6899 = vpop.permute.xlu0 %6898
  %6900 = vrot.lane.b32.xlu0 %v6589, 88
  %v6901 = vpop.permute.xlu0 %6900
  %6902 = vrot.lane.b32.xlu0 %v6590, 88
  %v6903 = vpop.permute.xlu0 %6902
  %6904 = vrot.lane.b32.xlu0 %v6591, 88
  %v6905 = vpop.permute.xlu0 %6904
  %v6907 = vsel %vm308, %v6891, 0
  %v6910 = vsel %vm308, %v6893, 0
  %v6913 = vsel %vm308, %v6895, 0
  %v6916 = vsel %vm308, %v6897, 0
  %v6919 = vsel %vm308, %v6899, 0
  %v6922 = vsel %vm308, %v6901, 0
  %v6925 = vsel %vm308, %v6903, 0
  %v6928 = vsel %vm308, %v6905, 0
  %6930 = vmatprep.subr.bf16.mxu0 0
  %6931 = vmatpush1.bf16.xpose.msra.mxu0 0
  %6932 = vmatprep.subr.bf16.mxu0 0
  %6933 = vmatpush1.bf16.xpose.msra.mxu0 0
  %6934 = vmatprep.subr.bf16.mxu0 0
  %6935 = vmatpush1.bf16.xpose.msra.mxu0 0
  %6936 = vmatprep.subr.bf16.mxu0 0
  %6937 = vmatpush1.bf16.xpose.msra.mxu0 0
  %6938 = vmatprep.subr.bf16.mxu0 0
  %6939 = vmatpush1.bf16.xpose.msra.mxu0 %v6928
  %6940 = vmatprep.subr.bf16.mxu0 0
  %6941 = vmatpush1.bf16.xpose.msra.mxu0 %v6925
  %6942 = vmatprep.subr.bf16.mxu0 0
  %6943 = vmatpush1.bf16.xpose.msra.mxu0 %v6922
  %6944 = vmatprep.subr.bf16.mxu0 0
  %6945 = vmatpush1.bf16.xpose.msra.mxu0 %v6919
  %6946 = vmatprep.subr.bf16.mxu0 0
  %6947 = vmatpush2.bf16.xpose.msra.mxu0 0
  %6948 = vmatprep.subr.bf16.mxu0 0
  %6949 = vmatpush2.bf16.xpose.msra.mxu0 0
  %6950 = vmatprep.subr.bf16.mxu0 0
  %6951 = vmatpush2.bf16.xpose.msra.mxu0 0
  %6952 = vmatprep.subr.bf16.mxu0 0
  %6953 = vmatpush2.bf16.xpose.msra.mxu0 0
  %6954 = vmatprep.subr.bf16.mxu0 0
  %6955 = vmatpush2.bf16.xpose.msra.mxu0 0
  %6956 = vmatprep.subr.bf16.mxu0 0
  %6957 = vmatpush2.bf16.xpose.msra.mxu0 0
  %6958 = vmatprep.subr.bf16.mxu0 0
  %6959 = vmatpush2.bf16.xpose.msra.mxu0 0
  %6960 = vmatprep.subr.bf16.mxu0 0
  %6961 = vmatpush2.bf16.xpose.msra.mxu0 0
  %6962 = vmatprep.mubr.bf16.mxu0 0
  %6963 = vmatmul.mubr.bf16.gmra.mxu0 %v6907
  %v6964 = vpop.f32.mrf.mxu0
  %v6965 = vadd.f32 0.0, %v6964
  %v6966 = vpop.f32.mrf.mxu0
  %v6967 = vpop.f32.mrf.mxu0
  %v6968 = vadd.f32 0.0, %v6967
  %v6969 = vpop.f32.mrf.mxu0
  %6970 = vmatprep.mubr.bf16.mxu0 0
  %6971 = vmatmul.mubr.bf16.gmra.mxu0 %v6910
  %v6972 = vpop.f32.mrf.mxu0
  %v6973 = vadd.f32 0.0, %v6972
  %v6974 = vpop.f32.mrf.mxu0
  %v6975 = vpop.f32.mrf.mxu0
  %v6976 = vadd.f32 0.0, %v6975
  %v6977 = vpop.f32.mrf.mxu0
  %6978 = vmatprep.mubr.bf16.mxu0 0
  %6979 = vmatmul.mubr.bf16.gmra.mxu0 %v6913
  %v6980 = vpop.f32.mrf.mxu0
  %v6981 = vadd.f32 0.0, %v6980
  %v6982 = vpop.f32.mrf.mxu0
  %v6983 = vpop.f32.mrf.mxu0
  %v6984 = vadd.f32 0.0, %v6983
  %v6985 = vpop.f32.mrf.mxu0
  %6986 = vmatprep.mubr.bf16.mxu0 0
  %6987 = vmatmul.mubr.bf16.gmra.mxu0 %v6916
  %v6988 = vpop.f32.mrf.mxu0
  %v6989 = vadd.f32 0.0, %v6988
  %v6990 = vpop.f32.mrf.mxu0
  %v6991 = vpop.f32.mrf.mxu0
  %v6992 = vadd.f32 0.0, %v6991
  %v6993 = vpop.f32.mrf.mxu0
  %6994 = vdwg.mxu0
  %v6995 = vmul.f32 %v6965, 0.35355338
  %v6996 = vmul.f32 %v6968, 0.35355338
  %v6997 = vmul.f32 %v6973, 0.35355338
  %v6998 = vmul.f32 %v6976, 0.35355338
  %v6999 = vmul.f32 %v6981, 0.35355338
  %v7000 = vmul.f32 %v6984, 0.35355338
  %v7001 = vmul.f32 %v6989, 0.35355338
  %v7002 = vmul.f32 %v6992, 0.35355338
  %v7003 = vadd.f32 %v6995, %v60
  %v7004 = vadd.f32 %v6996, %v61
  %v7005 = vadd.f32 %v6997, %v62
  %v7006 = vadd.f32 %v6998, %v63
  %v7007 = vadd.f32 %v6999, %v64
  %v7008 = vadd.f32 %v7000, %v65
  %v7009 = vadd.f32 %v7001, %v66
  %v7010 = vadd.f32 %v7002, %v67
  %v7011 = vsel %vm414, %v7003, -inf
  %7012 = vmax.xlane.f32.xlu0 %v7011
  %v7013 = vpop.xlane.xlu0 %7012
  %v7014 = vsel %vm414, %v7004, -inf
  %7015 = vmax.xlane.f32.xlu0 %v7014
  %v7016 = vpop.xlane.xlu0 %7015
  %v7017 = vsel %vm414, %v7005, -inf
  %7018 = vmax.xlane.f32.xlu0 %v7017
  %v7019 = vpop.xlane.xlu0 %7018
  %v7020 = vsel %vm414, %v7006, -inf
  %7021 = vmax.xlane.f32.xlu0 %v7020
  %v7022 = vpop.xlane.xlu0 %7021
  %v7023 = vsel %vm414, %v7007, -inf
  %7024 = vmax.xlane.f32.xlu0 %v7023
  %v7025 = vpop.xlane.xlu0 %7024
  %v7026 = vsel %vm414, %v7008, -inf
  %7027 = vmax.xlane.f32.xlu0 %v7026
  %v7028 = vpop.xlane.xlu0 %7027
  %v7029 = vsel %vm414, %v7009, -inf
  %7030 = vmax.xlane.f32.xlu0 %v7029
  %v7031 = vpop.xlane.xlu0 %7030
  %v7032 = vsel %vm414, %v7010, -inf
  %7033 = vmax.xlane.f32.xlu0 %v7032
  %v7034 = vpop.xlane.xlu0 %7033
  %v7035 = vsub.f32 %v7003, %v7013
  %v7036 = vsub.f32 %v7004, %v7016
  %v7037 = vsub.f32 %v7005, %v7019
  %v7038 = vsub.f32 %v7006, %v7022
  %v7039 = vsub.f32 %v7007, %v7025
  %v7040 = vsub.f32 %v7008, %v7028
  %v7041 = vsub.f32 %v7009, %v7031
  %v7042 = vsub.f32 %v7010, %v7034
  %v7043 = vmul.f32 %v7035, 1.442695
  %v7044 = vpow.pop %v7043
  %v7045 = vmul.f32 %v7036, 1.442695
  %v7046 = vpow.pop %v7045
  %v7047 = vmul.f32 %v7037, 1.442695
  %v7048 = vpow.pop %v7047
  %v7049 = vmul.f32 %v7038, 1.442695
  %v7050 = vpow.pop %v7049
  %v7051 = vmul.f32 %v7039, 1.442695
  %v7052 = vpow.pop %v7051
  %v7053 = vmul.f32 %v7040, 1.442695
  %v7054 = vpow.pop %v7053
  %v7055 = vmul.f32 %v7041, 1.442695
  %v7056 = vpow.pop %v7055
  %v7057 = vmul.f32 %v7042, 1.442695
  %v7058 = vpow.pop %v7057
  %v7059 = vsel %vm414, %v7044, 0.0
  %7060 = vadd.xlane.f32.xlu0 %v7059
  %v7061 = vpop.xlane.xlu0 %7060
  %v7062 = vsel %vm414, %v7046, 0.0
  %7063 = vadd.xlane.f32.xlu0 %v7062
  %v7064 = vpop.xlane.xlu0 %7063
  %v7065 = vsel %vm414, %v7048, 0.0
  %7066 = vadd.xlane.f32.xlu0 %v7065
  %v7067 = vpop.xlane.xlu0 %7066
  %v7068 = vsel %vm414, %v7050, 0.0
  %7069 = vadd.xlane.f32.xlu0 %v7068
  %v7070 = vpop.xlane.xlu0 %7069
  %v7071 = vsel %vm414, %v7052, 0.0
  %7072 = vadd.xlane.f32.xlu0 %v7071
  %v7073 = vpop.xlane.xlu0 %7072
  %v7074 = vsel %vm414, %v7054, 0.0
  %7075 = vadd.xlane.f32.xlu0 %v7074
  %v7076 = vpop.xlane.xlu0 %7075
  %v7077 = vsel %vm414, %v7056, 0.0
  %7078 = vadd.xlane.f32.xlu0 %v7077
  %v7079 = vpop.xlane.xlu0 %7078
  %v7080 = vsel %vm414, %v7058, 0.0
  %7081 = vadd.xlane.f32.xlu0 %v7080
  %v7082 = vpop.xlane.xlu0 %7081
  %v7083 = vrcp.pop %v7061
  %v7084 = vrcp.pop %v7064
  %v7085 = vrcp.pop %v7067
  %v7086 = vrcp.pop %v7070
  %v7087 = vrcp.pop %v7073
  %v7088 = vrcp.pop %v7076
  %v7089 = vrcp.pop %v7079
  %v7090 = vrcp.pop %v7082
  %v7091 = vmul.f32 %v7044, %v7083
  %v7092 = vmul.f32 %v7046, %v7084
  %v7093 = vmul.f32 %v7048, %v7085
  %v7094 = vmul.f32 %v7050, %v7086
  %v7095 = vmul.f32 %v7052, %v7087
  %v7096 = vmul.f32 %v7054, %v7088
  %v7097 = vmul.f32 %v7056, %v7089
  %v7098 = vmul.f32 %v7058, %v7090
  %v7099 = vpack.c.bf16 %v7092, %v7091
  %v7100 = vpack.c.bf16 %v7094, %v7093
  %v7101 = vpack.c.bf16 %v7096, %v7095
  %v7102 = vpack.c.bf16 %v7098, %v7097
  %7103 = vrot.lane.b32.xlu0 %v6588, 56
  %v7104 = vpop.permute.xlu0 %7103
  %7105 = vrot.lane.b32.xlu0 %v6589, 56
  %v7106 = vpop.permute.xlu0 %7105
  %7107 = vrot.lane.b32.xlu0 %v6590, 56
  %v7108 = vpop.permute.xlu0 %7107
  %7109 = vrot.lane.b32.xlu0 %v6591, 56
  %v7110 = vpop.permute.xlu0 %7109
  %v7116 = vsel %vm414, %v7099, 0
  %v7119 = vsel %vm414, %v7100, 0
  %v7122 = vsel %vm414, %v7101, 0
  %v7125 = vsel %vm414, %v7102, 0
  %7127 = vmatprep.subr.bf16.mxu0 0
  %7128 = vmatpush1.bf16.msra.mxu0 0
  %7129 = vmatprep.subr.bf16.mxu0 0
  %7130 = vmatpush1.bf16.msra.mxu0 0
  %7131 = vmatprep.subr.bf16.mxu0 0
  %7132 = vmatpush1.bf16.msra.mxu0 0
  %7133 = vmatprep.subr.bf16.mxu0 0
  %7134 = vmatpush1.bf16.msra.mxu0 0
  %7135 = vmatprep.subr.bf16.mxu0 0
  %7136 = vmatpush1.bf16.msra.mxu0 %v7110
  %7137 = vmatprep.subr.bf16.mxu0 0
  %7138 = vmatpush1.bf16.msra.mxu0 %v7108
  %7139 = vmatprep.subr.bf16.mxu0 0
  %7140 = vmatpush1.bf16.msra.mxu0 %v7106
  %7141 = vmatprep.subr.bf16.mxu0 0
  %7142 = vmatpush1.bf16.msra.mxu0 %v7104
  %7143 = vmatprep.subr.bf16.mxu0 0
  %7144 = vmatpush2.bf16.msra.mxu0 0
  %7145 = vmatprep.subr.bf16.mxu0 0
  %7146 = vmatpush2.bf16.msra.mxu0 0
  %7147 = vmatprep.subr.bf16.mxu0 0
  %7148 = vmatpush2.bf16.msra.mxu0 0
  %7149 = vmatprep.subr.bf16.mxu0 0
  %7150 = vmatpush2.bf16.msra.mxu0 0
  %7151 = vmatprep.subr.bf16.mxu0 0
  %7152 = vmatpush2.bf16.msra.mxu0 0
  %7153 = vmatprep.subr.bf16.mxu0 0
  %7154 = vmatpush2.bf16.msra.mxu0 0
  %7155 = vmatprep.subr.bf16.mxu0 0
  %7156 = vmatpush2.bf16.msra.mxu0 0
  %7157 = vmatprep.subr.bf16.mxu0 0
  %7158 = vmatpush2.bf16.msra.mxu0 0
  %7159 = vmatprep.mubr.bf16.mxu0 0
  %7160 = vmatmul.mubr.bf16.gmra.mxu0 %v7116
  %v7161 = vpop.f32.mrf.mxu0
  %v7162 = vadd.f32 0.0, %v7161
  %v7163 = vpop.f32.mrf.mxu0
  %v7164 = vpop.f32.mrf.mxu0
  %v7165 = vadd.f32 0.0, %v7164
  %v7166 = vpop.f32.mrf.mxu0
  %7167 = vmatprep.mubr.bf16.mxu0 0
  %7168 = vmatmul.mubr.bf16.gmra.mxu0 %v7119
  %v7169 = vpop.f32.mrf.mxu0
  %v7170 = vadd.f32 0.0, %v7169
  %v7171 = vpop.f32.mrf.mxu0
  %v7172 = vpop.f32.mrf.mxu0
  %v7173 = vadd.f32 0.0, %v7172
  %v7174 = vpop.f32.mrf.mxu0
  %7175 = vmatprep.mubr.bf16.mxu0 0
  %7176 = vmatmul.mubr.bf16.gmra.mxu0 %v7122
  %v7177 = vpop.f32.mrf.mxu0
  %v7178 = vadd.f32 0.0, %v7177
  %v7179 = vpop.f32.mrf.mxu0
  %v7180 = vpop.f32.mrf.mxu0
  %v7181 = vadd.f32 0.0, %v7180
  %v7182 = vpop.f32.mrf.mxu0
  %7183 = vmatprep.mubr.bf16.mxu0 0
  %7184 = vmatmul.mubr.bf16.gmra.mxu0 %v7125
  %v7185 = vpop.f32.mrf.mxu0
  %v7186 = vadd.f32 0.0, %v7185
  %v7187 = vpop.f32.mrf.mxu0
  %v7188 = vpop.f32.mrf.mxu0
  %v7189 = vadd.f32 0.0, %v7188
  %v7190 = vpop.f32.mrf.mxu0
  %7191 = vdwg.mxu0
  %7192 = vrot.lane.b32.xlu0 %v6588, 112
  %v7193 = vpop.permute.xlu0 %7192
  %7194 = vrot.lane.b32.xlu0 %v6589, 112
  %v7195 = vpop.permute.xlu0 %7194
  %7196 = vrot.lane.b32.xlu0 %v6590, 112
  %v7197 = vpop.permute.xlu0 %7196
  %7198 = vrot.lane.b32.xlu0 %v6591, 112
  %v7199 = vpop.permute.xlu0 %7198
  %7200 = vrot.lane.b32.xlu0 %v6588, 80
  %v7201 = vpop.permute.xlu0 %7200
  %7202 = vrot.lane.b32.xlu0 %v6589, 80
  %v7203 = vpop.permute.xlu0 %7202
  %7204 = vrot.lane.b32.xlu0 %v6590, 80
  %v7205 = vpop.permute.xlu0 %7204
  %7206 = vrot.lane.b32.xlu0 %v6591, 80
  %v7207 = vpop.permute.xlu0 %7206
  %v7209 = vsel %vm308, %v7193, 0
  %v7212 = vsel %vm308, %v7195, 0
  %v7215 = vsel %vm308, %v7197, 0
  %v7218 = vsel %vm308, %v7199, 0
  %v7221 = vsel %vm308, %v7201, 0
  %v7224 = vsel %vm308, %v7203, 0
  %v7227 = vsel %vm308, %v7205, 0
  %v7230 = vsel %vm308, %v7207, 0
  %7232 = vmatprep.subr.bf16.mxu0 0
  %7233 = vmatpush1.bf16.xpose.msra.mxu0 0
  %7234 = vmatprep.subr.bf16.mxu0 0
  %7235 = vmatpush1.bf16.xpose.msra.mxu0 0
  %7236 = vmatprep.subr.bf16.mxu0 0
  %7237 = vmatpush1.bf16.xpose.msra.mxu0 0
  %7238 = vmatprep.subr.bf16.mxu0 0
  %7239 = vmatpush1.bf16.xpose.msra.mxu0 0
  %7240 = vmatprep.subr.bf16.mxu0 0
  %7241 = vmatpush1.bf16.xpose.msra.mxu0 %v7230
  %7242 = vmatprep.subr.bf16.mxu0 0
  %7243 = vmatpush1.bf16.xpose.msra.mxu0 %v7227
  %7244 = vmatprep.subr.bf16.mxu0 0
  %7245 = vmatpush1.bf16.xpose.msra.mxu0 %v7224
  %7246 = vmatprep.subr.bf16.mxu0 0
  %7247 = vmatpush1.bf16.xpose.msra.mxu0 %v7221
  %7248 = vmatprep.subr.bf16.mxu0 0
  %7249 = vmatpush2.bf16.xpose.msra.mxu0 0
  %7250 = vmatprep.subr.bf16.mxu0 0
  %7251 = vmatpush2.bf16.xpose.msra.mxu0 0
  %7252 = vmatprep.subr.bf16.mxu0 0
  %7253 = vmatpush2.bf16.xpose.msra.mxu0 0
  %7254 = vmatprep.subr.bf16.mxu0 0
  %7255 = vmatpush2.bf16.xpose.msra.mxu0 0
  %7256 = vmatprep.subr.bf16.mxu0 0
  %7257 = vmatpush2.bf16.xpose.msra.mxu0 0
  %7258 = vmatprep.subr.bf16.mxu0 0
  %7259 = vmatpush2.bf16.xpose.msra.mxu0 0
  %7260 = vmatprep.subr.bf16.mxu0 0
  %7261 = vmatpush2.bf16.xpose.msra.mxu0 0
  %7262 = vmatprep.subr.bf16.mxu0 0
  %7263 = vmatpush2.bf16.xpose.msra.mxu0 0
  %7264 = vmatprep.mubr.bf16.mxu0 0
  %7265 = vmatmul.mubr.bf16.gmra.mxu0 %v7209
  %v7266 = vpop.f32.mrf.mxu0
  %v7267 = vadd.f32 0.0, %v7266
  %v7268 = vpop.f32.mrf.mxu0
  %v7269 = vpop.f32.mrf.mxu0
  %v7270 = vadd.f32 0.0, %v7269
  %v7271 = vpop.f32.mrf.mxu0
  %7272 = vmatprep.mubr.bf16.mxu0 0
  %7273 = vmatmul.mubr.bf16.gmra.mxu0 %v7212
  %v7274 = vpop.f32.mrf.mxu0
  %v7275 = vadd.f32 0.0, %v7274
  %v7276 = vpop.f32.mrf.mxu0
  %v7277 = vpop.f32.mrf.mxu0
  %v7278 = vadd.f32 0.0, %v7277
  %v7279 = vpop.f32.mrf.mxu0
  %7280 = vmatprep.mubr.bf16.mxu0 0
  %7281 = vmatmul.mubr.bf16.gmra.mxu0 %v7215
  %v7282 = vpop.f32.mrf.mxu0
  %v7283 = vadd.f32 0.0, %v7282
  %v7284 = vpop.f32.mrf.mxu0
  %v7285 = vpop.f32.mrf.mxu0
  %v7286 = vadd.f32 0.0, %v7285
  %v7287 = vpop.f32.mrf.mxu0
  %7288 = vmatprep.mubr.bf16.mxu0 0
  %7289 = vmatmul.mubr.bf16.gmra.mxu0 %v7218
  %v7290 = vpop.f32.mrf.mxu0
  %v7291 = vadd.f32 0.0, %v7290
  %v7292 = vpop.f32.mrf.mxu0
  %v7293 = vpop.f32.mrf.mxu0
  %v7294 = vadd.f32 0.0, %v7293
  %v7295 = vpop.f32.mrf.mxu0
  %7296 = vdwg.mxu0
  %v7297 = vmul.f32 %v7267, 0.35355338
  %v7298 = vmul.f32 %v7270, 0.35355338
  %v7299 = vmul.f32 %v7275, 0.35355338
  %v7300 = vmul.f32 %v7278, 0.35355338
  %v7301 = vmul.f32 %v7283, 0.35355338
  %v7302 = vmul.f32 %v7286, 0.35355338
  %v7303 = vmul.f32 %v7291, 0.35355338
  %v7304 = vmul.f32 %v7294, 0.35355338
  %v7305 = vadd.f32 %v7297, %v60
  %v7306 = vadd.f32 %v7298, %v61
  %v7307 = vadd.f32 %v7299, %v62
  %v7308 = vadd.f32 %v7300, %v63
  %v7309 = vadd.f32 %v7301, %v64
  %v7310 = vadd.f32 %v7302, %v65
  %v7311 = vadd.f32 %v7303, %v66
  %v7312 = vadd.f32 %v7304, %v67
  %v7313 = vsel %vm414, %v7305, -inf
  %7314 = vmax.xlane.f32.xlu0 %v7313
  %v7315 = vpop.xlane.xlu0 %7314
  %v7316 = vsel %vm414, %v7306, -inf
  %7317 = vmax.xlane.f32.xlu0 %v7316
  %v7318 = vpop.xlane.xlu0 %7317
  %v7319 = vsel %vm414, %v7307, -inf
  %7320 = vmax.xlane.f32.xlu0 %v7319
  %v7321 = vpop.xlane.xlu0 %7320
  %v7322 = vsel %vm414, %v7308, -inf
  %7323 = vmax.xlane.f32.xlu0 %v7322
  %v7324 = vpop.xlane.xlu0 %7323
  %v7325 = vsel %vm414, %v7309, -inf
  %7326 = vmax.xlane.f32.xlu0 %v7325
  %v7327 = vpop.xlane.xlu0 %7326
  %v7328 = vsel %vm414, %v7310, -inf
  %7329 = vmax.xlane.f32.xlu0 %v7328
  %v7330 = vpop.xlane.xlu0 %7329
  %v7331 = vsel %vm414, %v7311, -inf
  %7332 = vmax.xlane.f32.xlu0 %v7331
  %v7333 = vpop.xlane.xlu0 %7332
  %v7334 = vsel %vm414, %v7312, -inf
  %7335 = vmax.xlane.f32.xlu0 %v7334
  %v7336 = vpop.xlane.xlu0 %7335
  %v7337 = vsub.f32 %v7305, %v7315
  %v7338 = vsub.f32 %v7306, %v7318
  %v7339 = vsub.f32 %v7307, %v7321
  %v7340 = vsub.f32 %v7308, %v7324
  %v7341 = vsub.f32 %v7309, %v7327
  %v7342 = vsub.f32 %v7310, %v7330
  %v7343 = vsub.f32 %v7311, %v7333
  %v7344 = vsub.f32 %v7312, %v7336
  %v7345 = vmul.f32 %v7337, 1.442695
  %v7346 = vpow.pop %v7345
  %v7347 = vmul.f32 %v7338, 1.442695
  %v7348 = vpow.pop %v7347
  %v7349 = vmul.f32 %v7339, 1.442695
  %v7350 = vpow.pop %v7349
  %v7351 = vmul.f32 %v7340, 1.442695
  %v7352 = vpow.pop %v7351
  %v7353 = vmul.f32 %v7341, 1.442695
  %v7354 = vpow.pop %v7353
  %v7355 = vmul.f32 %v7342, 1.442695
  %v7356 = vpow.pop %v7355
  %v7357 = vmul.f32 %v7343, 1.442695
  %v7358 = vpow.pop %v7357
  %v7359 = vmul.f32 %v7344, 1.442695
  %v7360 = vpow.pop %v7359
  %v7361 = vsel %vm414, %v7346, 0.0
  %7362 = vadd.xlane.f32.xlu0 %v7361
  %v7363 = vpop.xlane.xlu0 %7362
  %v7364 = vsel %vm414, %v7348, 0.0
  %7365 = vadd.xlane.f32.xlu0 %v7364
  %v7366 = vpop.xlane.xlu0 %7365
  %v7367 = vsel %vm414, %v7350, 0.0
  %7368 = vadd.xlane.f32.xlu0 %v7367
  %v7369 = vpop.xlane.xlu0 %7368
  %v7370 = vsel %vm414, %v7352, 0.0
  %7371 = vadd.xlane.f32.xlu0 %v7370
  %v7372 = vpop.xlane.xlu0 %7371
  %v7373 = vsel %vm414, %v7354, 0.0
  %7374 = vadd.xlane.f32.xlu0 %v7373
  %v7375 = vpop.xlane.xlu0 %7374
  %v7376 = vsel %vm414, %v7356, 0.0
  %7377 = vadd.xlane.f32.xlu0 %v7376
  %v7378 = vpop.xlane.xlu0 %7377
  %v7379 = vsel %vm414, %v7358, 0.0
  %7380 = vadd.xlane.f32.xlu0 %v7379
  %v7381 = vpop.xlane.xlu0 %7380
  %v7382 = vsel %vm414, %v7360, 0.0
  %7383 = vadd.xlane.f32.xlu0 %v7382
  %v7384 = vpop.xlane.xlu0 %7383
  %v7385 = vrcp.pop %v7363
  %v7386 = vrcp.pop %v7366
  %v7387 = vrcp.pop %v7369
  %v7388 = vrcp.pop %v7372
  %v7389 = vrcp.pop %v7375
  %v7390 = vrcp.pop %v7378
  %v7391 = vrcp.pop %v7381
  %v7392 = vrcp.pop %v7384
  %v7393 = vmul.f32 %v7346, %v7385
  %v7394 = vmul.f32 %v7348, %v7386
  %v7395 = vmul.f32 %v7350, %v7387
  %v7396 = vmul.f32 %v7352, %v7388
  %v7397 = vmul.f32 %v7354, %v7389
  %v7398 = vmul.f32 %v7356, %v7390
  %v7399 = vmul.f32 %v7358, %v7391
  %v7400 = vmul.f32 %v7360, %v7392
  %v7401 = vpack.c.bf16 %v7394, %v7393
  %v7402 = vpack.c.bf16 %v7396, %v7395
  %v7403 = vpack.c.bf16 %v7398, %v7397
  %v7404 = vpack.c.bf16 %v7400, %v7399
  %7405 = vrot.lane.b32.xlu0 %v6588, 48
  %v7406 = vpop.permute.xlu0 %7405
  %7407 = vrot.lane.b32.xlu0 %v6589, 48
  %v7408 = vpop.permute.xlu0 %7407
  %7409 = vrot.lane.b32.xlu0 %v6590, 48
  %v7410 = vpop.permute.xlu0 %7409
  %7411 = vrot.lane.b32.xlu0 %v6591, 48
  %v7412 = vpop.permute.xlu0 %7411
  %v7418 = vsel %vm414, %v7401, 0
  %v7421 = vsel %vm414, %v7402, 0
  %v7424 = vsel %vm414, %v7403, 0
  %v7427 = vsel %vm414, %v7404, 0
  %7429 = vmatprep.subr.bf16.mxu0 0
  %7430 = vmatpush1.bf16.msra.mxu0 0
  %7431 = vmatprep.subr.bf16.mxu0 0
  %7432 = vmatpush1.bf16.msra.mxu0 0
  %7433 = vmatprep.subr.bf16.mxu0 0
  %7434 = vmatpush1.bf16.msra.mxu0 0
  %7435 = vmatprep.subr.bf16.mxu0 0
  %7436 = vmatpush1.bf16.msra.mxu0 0
  %7437 = vmatprep.subr.bf16.mxu0 0
  %7438 = vmatpush1.bf16.msra.mxu0 %v7412
  %7439 = vmatprep.subr.bf16.mxu0 0
  %7440 = vmatpush1.bf16.msra.mxu0 %v7410
  %7441 = vmatprep.subr.bf16.mxu0 0
  %7442 = vmatpush1.bf16.msra.mxu0 %v7408
  %7443 = vmatprep.subr.bf16.mxu0 0
  %7444 = vmatpush1.bf16.msra.mxu0 %v7406
  %7445 = vmatprep.subr.bf16.mxu0 0
  %7446 = vmatpush2.bf16.msra.mxu0 0
  %7447 = vmatprep.subr.bf16.mxu0 0
  %7448 = vmatpush2.bf16.msra.mxu0 0
  %7449 = vmatprep.subr.bf16.mxu0 0
  %7450 = vmatpush2.bf16.msra.mxu0 0
  %7451 = vmatprep.subr.bf16.mxu0 0
  %7452 = vmatpush2.bf16.msra.mxu0 0
  %7453 = vmatprep.subr.bf16.mxu0 0
  %7454 = vmatpush2.bf16.msra.mxu0 0
  %7455 = vmatprep.subr.bf16.mxu0 0
  %7456 = vmatpush2.bf16.msra.mxu0 0
  %7457 = vmatprep.subr.bf16.mxu0 0
  %7458 = vmatpush2.bf16.msra.mxu0 0
  %7459 = vmatprep.subr.bf16.mxu0 0
  %7460 = vmatpush2.bf16.msra.mxu0 0
  %7461 = vmatprep.mubr.bf16.mxu0 0
  %7462 = vmatmul.mubr.bf16.gmra.mxu0 %v7418
  %v7463 = vpop.f32.mrf.mxu0
  %v7464 = vadd.f32 0.0, %v7463
  %v7465 = vpop.f32.mrf.mxu0
  %v7466 = vpop.f32.mrf.mxu0
  %v7467 = vadd.f32 0.0, %v7466
  %v7468 = vpop.f32.mrf.mxu0
  %7469 = vmatprep.mubr.bf16.mxu0 0
  %7470 = vmatmul.mubr.bf16.gmra.mxu0 %v7421
  %v7471 = vpop.f32.mrf.mxu0
  %v7472 = vadd.f32 0.0, %v7471
  %v7473 = vpop.f32.mrf.mxu0
  %v7474 = vpop.f32.mrf.mxu0
  %v7475 = vadd.f32 0.0, %v7474
  %v7476 = vpop.f32.mrf.mxu0
  %7477 = vmatprep.mubr.bf16.mxu0 0
  %7478 = vmatmul.mubr.bf16.gmra.mxu0 %v7424
  %v7479 = vpop.f32.mrf.mxu0
  %v7480 = vadd.f32 0.0, %v7479
  %v7481 = vpop.f32.mrf.mxu0
  %v7482 = vpop.f32.mrf.mxu0
  %v7483 = vadd.f32 0.0, %v7482
  %v7484 = vpop.f32.mrf.mxu0
  %7485 = vmatprep.mubr.bf16.mxu0 0
  %7486 = vmatmul.mubr.bf16.gmra.mxu0 %v7427
  %v7487 = vpop.f32.mrf.mxu0
  %v7488 = vadd.f32 0.0, %v7487
  %v7489 = vpop.f32.mrf.mxu0
  %v7490 = vpop.f32.mrf.mxu0
  %v7491 = vadd.f32 0.0, %v7490
  %v7492 = vpop.f32.mrf.mxu0
  %7493 = vdwg.mxu0
  %7494 = vrot.lane.b32.xlu0 %v6588, 104
  %v7495 = vpop.permute.xlu0 %7494
  %7496 = vrot.lane.b32.xlu0 %v6589, 104
  %v7497 = vpop.permute.xlu0 %7496
  %7498 = vrot.lane.b32.xlu0 %v6590, 104
  %v7499 = vpop.permute.xlu0 %7498
  %7500 = vrot.lane.b32.xlu0 %v6591, 104
  %v7501 = vpop.permute.xlu0 %7500
  %7502 = vrot.lane.b32.xlu0 %v6588, 72
  %v7503 = vpop.permute.xlu0 %7502
  %7504 = vrot.lane.b32.xlu0 %v6589, 72
  %v7505 = vpop.permute.xlu0 %7504
  %7506 = vrot.lane.b32.xlu0 %v6590, 72
  %v7507 = vpop.permute.xlu0 %7506
  %7508 = vrot.lane.b32.xlu0 %v6591, 72
  %v7509 = vpop.permute.xlu0 %7508
  %v7511 = vsel %vm308, %v7495, 0
  %v7514 = vsel %vm308, %v7497, 0
  %v7517 = vsel %vm308, %v7499, 0
  %v7520 = vsel %vm308, %v7501, 0
  %v7523 = vsel %vm308, %v7503, 0
  %v7526 = vsel %vm308, %v7505, 0
  %v7529 = vsel %vm308, %v7507, 0
  %v7532 = vsel %vm308, %v7509, 0
  %7534 = vmatprep.subr.bf16.mxu0 0
  %7535 = vmatpush1.bf16.xpose.msra.mxu0 0
  %7536 = vmatprep.subr.bf16.mxu0 0
  %7537 = vmatpush1.bf16.xpose.msra.mxu0 0
  %7538 = vmatprep.subr.bf16.mxu0 0
  %7539 = vmatpush1.bf16.xpose.msra.mxu0 0
  %7540 = vmatprep.subr.bf16.mxu0 0
  %7541 = vmatpush1.bf16.xpose.msra.mxu0 0
  %7542 = vmatprep.subr.bf16.mxu0 0
  %7543 = vmatpush1.bf16.xpose.msra.mxu0 %v7532
  %7544 = vmatprep.subr.bf16.mxu0 0
  %7545 = vmatpush1.bf16.xpose.msra.mxu0 %v7529
  %7546 = vmatprep.subr.bf16.mxu0 0
  %7547 = vmatpush1.bf16.xpose.msra.mxu0 %v7526
  %7548 = vmatprep.subr.bf16.mxu0 0
  %7549 = vmatpush1.bf16.xpose.msra.mxu0 %v7523
  %7550 = vmatprep.subr.bf16.mxu0 0
  %7551 = vmatpush2.bf16.xpose.msra.mxu0 0
  %7552 = vmatprep.subr.bf16.mxu0 0
  %7553 = vmatpush2.bf16.xpose.msra.mxu0 0
  %7554 = vmatprep.subr.bf16.mxu0 0
  %7555 = vmatpush2.bf16.xpose.msra.mxu0 0
  %7556 = vmatprep.subr.bf16.mxu0 0
  %7557 = vmatpush2.bf16.xpose.msra.mxu0 0
  %7558 = vmatprep.subr.bf16.mxu0 0
  %7559 = vmatpush2.bf16.xpose.msra.mxu0 0
  %7560 = vmatprep.subr.bf16.mxu0 0
  %7561 = vmatpush2.bf16.xpose.msra.mxu0 0
  %7562 = vmatprep.subr.bf16.mxu0 0
  %7563 = vmatpush2.bf16.xpose.msra.mxu0 0
  %7564 = vmatprep.subr.bf16.mxu0 0
  %7565 = vmatpush2.bf16.xpose.msra.mxu0 0
  %7566 = vmatprep.mubr.bf16.mxu0 0
  %7567 = vmatmul.mubr.bf16.gmra.mxu0 %v7511
  %v7568 = vpop.f32.mrf.mxu0
  %v7569 = vadd.f32 0.0, %v7568
  %v7570 = vpop.f32.mrf.mxu0
  %v7571 = vpop.f32.mrf.mxu0
  %v7572 = vadd.f32 0.0, %v7571
  %v7573 = vpop.f32.mrf.mxu0
  %7574 = vmatprep.mubr.bf16.mxu0 0
  %7575 = vmatmul.mubr.bf16.gmra.mxu0 %v7514
  %v7576 = vpop.f32.mrf.mxu0
  %v7577 = vadd.f32 0.0, %v7576
  %v7578 = vpop.f32.mrf.mxu0
  %v7579 = vpop.f32.mrf.mxu0
  %v7580 = vadd.f32 0.0, %v7579
  %v7581 = vpop.f32.mrf.mxu0
  %7582 = vmatprep.mubr.bf16.mxu0 0
  %7583 = vmatmul.mubr.bf16.gmra.mxu0 %v7517
  %v7584 = vpop.f32.mrf.mxu0
  %v7585 = vadd.f32 0.0, %v7584
  %v7586 = vpop.f32.mrf.mxu0
  %v7587 = vpop.f32.mrf.mxu0
  %v7588 = vadd.f32 0.0, %v7587
  %v7589 = vpop.f32.mrf.mxu0
  %7590 = vmatprep.mubr.bf16.mxu0 0
  %7591 = vmatmul.mubr.bf16.gmra.mxu0 %v7520
  %v7592 = vpop.f32.mrf.mxu0
  %v7593 = vadd.f32 0.0, %v7592
  %v7594 = vpop.f32.mrf.mxu0
  %v7595 = vpop.f32.mrf.mxu0
  %v7596 = vadd.f32 0.0, %v7595
  %v7597 = vpop.f32.mrf.mxu0
  %7598 = vdwg.mxu0
  %v7599 = vmul.f32 %v7569, 0.35355338
  %v7600 = vmul.f32 %v7572, 0.35355338
  %v7601 = vmul.f32 %v7577, 0.35355338
  %v7602 = vmul.f32 %v7580, 0.35355338
  %v7603 = vmul.f32 %v7585, 0.35355338
  %v7604 = vmul.f32 %v7588, 0.35355338
  %v7605 = vmul.f32 %v7593, 0.35355338
  %v7606 = vmul.f32 %v7596, 0.35355338
  %v7607 = vadd.f32 %v7599, %v60
  %v7608 = vadd.f32 %v7600, %v61
  %v7609 = vadd.f32 %v7601, %v62
  %v7610 = vadd.f32 %v7602, %v63
  %v7611 = vadd.f32 %v7603, %v64
  %v7612 = vadd.f32 %v7604, %v65
  %v7613 = vadd.f32 %v7605, %v66
  %v7614 = vadd.f32 %v7606, %v67
  %v7615 = vsel %vm414, %v7607, -inf
  %7616 = vmax.xlane.f32.xlu0 %v7615
  %v7617 = vpop.xlane.xlu0 %7616
  %v7618 = vsel %vm414, %v7608, -inf
  %7619 = vmax.xlane.f32.xlu0 %v7618
  %v7620 = vpop.xlane.xlu0 %7619
  %v7621 = vsel %vm414, %v7609, -inf
  %7622 = vmax.xlane.f32.xlu0 %v7621
  %v7623 = vpop.xlane.xlu0 %7622
  %v7624 = vsel %vm414, %v7610, -inf
  %7625 = vmax.xlane.f32.xlu0 %v7624
  %v7626 = vpop.xlane.xlu0 %7625
  %v7627 = vsel %vm414, %v7611, -inf
  %7628 = vmax.xlane.f32.xlu0 %v7627
  %v7629 = vpop.xlane.xlu0 %7628
  %v7630 = vsel %vm414, %v7612, -inf
  %7631 = vmax.xlane.f32.xlu0 %v7630
  %v7632 = vpop.xlane.xlu0 %7631
  %v7633 = vsel %vm414, %v7613, -inf
  %7634 = vmax.xlane.f32.xlu0 %v7633
  %v7635 = vpop.xlane.xlu0 %7634
  %v7636 = vsel %vm414, %v7614, -inf
  %7637 = vmax.xlane.f32.xlu0 %v7636
  %v7638 = vpop.xlane.xlu0 %7637
  %v7639 = vsub.f32 %v7607, %v7617
  %v7640 = vsub.f32 %v7608, %v7620
  %v7641 = vsub.f32 %v7609, %v7623
  %v7642 = vsub.f32 %v7610, %v7626
  %v7643 = vsub.f32 %v7611, %v7629
  %v7644 = vsub.f32 %v7612, %v7632
  %v7645 = vsub.f32 %v7613, %v7635
  %v7646 = vsub.f32 %v7614, %v7638
  %v7647 = vmul.f32 %v7639, 1.442695
  %v7648 = vpow.pop %v7647
  %v7649 = vmul.f32 %v7640, 1.442695
  %v7650 = vpow.pop %v7649
  %v7651 = vmul.f32 %v7641, 1.442695
  %v7652 = vpow.pop %v7651
  %v7653 = vmul.f32 %v7642, 1.442695
  %v7654 = vpow.pop %v7653
  %v7655 = vmul.f32 %v7643, 1.442695
  %v7656 = vpow.pop %v7655
  %v7657 = vmul.f32 %v7644, 1.442695
  %v7658 = vpow.pop %v7657
  %v7659 = vmul.f32 %v7645, 1.442695
  %v7660 = vpow.pop %v7659
  %v7661 = vmul.f32 %v7646, 1.442695
  %v7662 = vpow.pop %v7661
  %v7663 = vsel %vm414, %v7648, 0.0
  %7664 = vadd.xlane.f32.xlu0 %v7663
  %v7665 = vpop.xlane.xlu0 %7664
  %v7666 = vsel %vm414, %v7650, 0.0
  %7667 = vadd.xlane.f32.xlu0 %v7666
  %v7668 = vpop.xlane.xlu0 %7667
  %v7669 = vsel %vm414, %v7652, 0.0
  %7670 = vadd.xlane.f32.xlu0 %v7669
  %v7671 = vpop.xlane.xlu0 %7670
  %v7672 = vsel %vm414, %v7654, 0.0
  %7673 = vadd.xlane.f32.xlu0 %v7672
  %v7674 = vpop.xlane.xlu0 %7673
  %v7675 = vsel %vm414, %v7656, 0.0
  %7676 = vadd.xlane.f32.xlu0 %v7675
  %v7677 = vpop.xlane.xlu0 %7676
  %v7678 = vsel %vm414, %v7658, 0.0
  %7679 = vadd.xlane.f32.xlu0 %v7678
  %v7680 = vpop.xlane.xlu0 %7679
  %v7681 = vsel %vm414, %v7660, 0.0
  %7682 = vadd.xlane.f32.xlu0 %v7681
  %v7683 = vpop.xlane.xlu0 %7682
  %v7684 = vsel %vm414, %v7662, 0.0
  %7685 = vadd.xlane.f32.xlu0 %v7684
  %v7686 = vpop.xlane.xlu0 %7685
  %v7687 = vrcp.pop %v7665
  %v7688 = vrcp.pop %v7668
  %v7689 = vrcp.pop %v7671
  %v7690 = vrcp.pop %v7674
  %v7691 = vrcp.pop %v7677
  %v7692 = vrcp.pop %v7680
  %v7693 = vrcp.pop %v7683
  %v7694 = vrcp.pop %v7686
  %v7695 = vmul.f32 %v7648, %v7687
  %v7696 = vmul.f32 %v7650, %v7688
  %v7697 = vmul.f32 %v7652, %v7689
  %v7698 = vmul.f32 %v7654, %v7690
  %v7699 = vmul.f32 %v7656, %v7691
  %v7700 = vmul.f32 %v7658, %v7692
  %v7701 = vmul.f32 %v7660, %v7693
  %v7702 = vmul.f32 %v7662, %v7694
  %v7703 = vpack.c.bf16 %v7696, %v7695
  %v7704 = vpack.c.bf16 %v7698, %v7697
  %v7705 = vpack.c.bf16 %v7700, %v7699
  %v7706 = vpack.c.bf16 %v7702, %v7701
  %7707 = vrot.lane.b32.xlu0 %v6588, 40
  %v7708 = vpop.permute.xlu0 %7707
  %7709 = vrot.lane.b32.xlu0 %v6589, 40
  %v7710 = vpop.permute.xlu0 %7709
  %7711 = vrot.lane.b32.xlu0 %v6590, 40
  %v7712 = vpop.permute.xlu0 %7711
  %7713 = vrot.lane.b32.xlu0 %v6591, 40
  %v7714 = vpop.permute.xlu0 %7713
  %v7720 = vsel %vm414, %v7703, 0
  %v7723 = vsel %vm414, %v7704, 0
  %v7726 = vsel %vm414, %v7705, 0
  %v7729 = vsel %vm414, %v7706, 0
  %7731 = vmatprep.subr.bf16.mxu0 0
  %7732 = vmatpush1.bf16.msra.mxu0 0
  %7733 = vmatprep.subr.bf16.mxu0 0
  %7734 = vmatpush1.bf16.msra.mxu0 0
  %7735 = vmatprep.subr.bf16.mxu0 0
  %7736 = vmatpush1.bf16.msra.mxu0 0
  %7737 = vmatprep.subr.bf16.mxu0 0
  %7738 = vmatpush1.bf16.msra.mxu0 0
  %7739 = vmatprep.subr.bf16.mxu0 0
  %7740 = vmatpush1.bf16.msra.mxu0 %v7714
  %7741 = vmatprep.subr.bf16.mxu0 0
  %7742 = vmatpush1.bf16.msra.mxu0 %v7712
  %7743 = vmatprep.subr.bf16.mxu0 0
  %7744 = vmatpush1.bf16.msra.mxu0 %v7710
  %7745 = vmatprep.subr.bf16.mxu0 0
  %7746 = vmatpush1.bf16.msra.mxu0 %v7708
  %7747 = vmatprep.subr.bf16.mxu0 0
  %7748 = vmatpush2.bf16.msra.mxu0 0
  %7749 = vmatprep.subr.bf16.mxu0 0
  %7750 = vmatpush2.bf16.msra.mxu0 0
  %7751 = vmatprep.subr.bf16.mxu0 0
  %7752 = vmatpush2.bf16.msra.mxu0 0
  %7753 = vmatprep.subr.bf16.mxu0 0
  %7754 = vmatpush2.bf16.msra.mxu0 0
  %7755 = vmatprep.subr.bf16.mxu0 0
  %7756 = vmatpush2.bf16.msra.mxu0 0
  %7757 = vmatprep.subr.bf16.mxu0 0
  %7758 = vmatpush2.bf16.msra.mxu0 0
  %7759 = vmatprep.subr.bf16.mxu0 0
  %7760 = vmatpush2.bf16.msra.mxu0 0
  %7761 = vmatprep.subr.bf16.mxu0 0
  %7762 = vmatpush2.bf16.msra.mxu0 0
  %7763 = vmatprep.mubr.bf16.mxu0 0
  %7764 = vmatmul.mubr.bf16.gmra.mxu0 %v7720
  %v7765 = vpop.f32.mrf.mxu0
  %v7766 = vadd.f32 0.0, %v7765
  %v7767 = vpop.f32.mrf.mxu0
  %v7768 = vpop.f32.mrf.mxu0
  %v7769 = vadd.f32 0.0, %v7768
  %v7770 = vpop.f32.mrf.mxu0
  %7771 = vmatprep.mubr.bf16.mxu0 0
  %7772 = vmatmul.mubr.bf16.gmra.mxu0 %v7723
  %v7773 = vpop.f32.mrf.mxu0
  %v7774 = vadd.f32 0.0, %v7773
  %v7775 = vpop.f32.mrf.mxu0
  %v7776 = vpop.f32.mrf.mxu0
  %v7777 = vadd.f32 0.0, %v7776
  %v7778 = vpop.f32.mrf.mxu0
  %7779 = vmatprep.mubr.bf16.mxu0 0
  %7780 = vmatmul.mubr.bf16.gmra.mxu0 %v7726
  %v7781 = vpop.f32.mrf.mxu0
  %v7782 = vadd.f32 0.0, %v7781
  %v7783 = vpop.f32.mrf.mxu0
  %v7784 = vpop.f32.mrf.mxu0
  %v7785 = vadd.f32 0.0, %v7784
  %v7786 = vpop.f32.mrf.mxu0
  %7787 = vmatprep.mubr.bf16.mxu0 0
  %7788 = vmatmul.mubr.bf16.gmra.mxu0 %v7729
  %v7789 = vpop.f32.mrf.mxu0
  %v7790 = vadd.f32 0.0, %v7789
  %v7791 = vpop.f32.mrf.mxu0
  %v7792 = vpop.f32.mrf.mxu0
  %v7793 = vadd.f32 0.0, %v7792
  %v7794 = vpop.f32.mrf.mxu0
  %7795 = vdwg.mxu0
  %7804 = vrot.lane.b32.xlu0 %v7162, 8
  %v7805 = vpop.permute.xlu0 %7804
  %7806 = vrot.lane.b32.xlu0 %v7165, 8
  %v7807 = vpop.permute.xlu0 %7806
  %7808 = vrot.lane.b32.xlu0 %v7170, 8
  %v7809 = vpop.permute.xlu0 %7808
  %7810 = vrot.lane.b32.xlu0 %v7173, 8
  %v7811 = vpop.permute.xlu0 %7810
  %7812 = vrot.lane.b32.xlu0 %v7178, 8
  %v7813 = vpop.permute.xlu0 %7812
  %7814 = vrot.lane.b32.xlu0 %v7181, 8
  %v7815 = vpop.permute.xlu0 %7814
  %7816 = vrot.lane.b32.xlu0 %v7186, 8
  %v7817 = vpop.permute.xlu0 %7816
  %7818 = vrot.lane.b32.xlu0 %v7189, 8
  %v7819 = vpop.permute.xlu0 %7818
  %7836 = vrot.lane.b32.xlu0 %v7464, 16
  %v7837 = vpop.permute.xlu0 %7836
  %7838 = vrot.lane.b32.xlu0 %v7467, 16
  %v7839 = vpop.permute.xlu0 %7838
  %7840 = vrot.lane.b32.xlu0 %v7472, 16
  %v7841 = vpop.permute.xlu0 %7840
  %7842 = vrot.lane.b32.xlu0 %v7475, 16
  %v7843 = vpop.permute.xlu0 %7842
  %7844 = vrot.lane.b32.xlu0 %v7480, 16
  %v7845 = vpop.permute.xlu0 %7844
  %7846 = vrot.lane.b32.xlu0 %v7483, 16
  %v7847 = vpop.permute.xlu0 %7846
  %7848 = vrot.lane.b32.xlu0 %v7488, 16
  %v7849 = vpop.permute.xlu0 %7848
  %7850 = vrot.lane.b32.xlu0 %v7491, 16
  %v7851 = vpop.permute.xlu0 %7850
  %7868 = vrot.lane.b32.xlu0 %v7766, 24
  %v7869 = vpop.permute.xlu0 %7868
  %7870 = vrot.lane.b32.xlu0 %v7769, 24
  %v7871 = vpop.permute.xlu0 %7870
  %7872 = vrot.lane.b32.xlu0 %v7774, 24
  %v7873 = vpop.permute.xlu0 %7872
  %7874 = vrot.lane.b32.xlu0 %v7777, 24
  %v7875 = vpop.permute.xlu0 %7874
  %7876 = vrot.lane.b32.xlu0 %v7782, 24
  %v7877 = vpop.permute.xlu0 %7876
  %7878 = vrot.lane.b32.xlu0 %v7785, 24
  %v7879 = vpop.permute.xlu0 %7878
  %7880 = vrot.lane.b32.xlu0 %v7790, 24
  %v7881 = vpop.permute.xlu0 %7880
  %7882 = vrot.lane.b32.xlu0 %v7793, 24
  %v7883 = vpop.permute.xlu0 %7882
  %v7892 = vsel %vm308, %v6860, %v7805
  %v7893 = vsel %vm308, %v6863, %v7807
  %v7894 = vsel %vm308, %v6868, %v7809
  %v7895 = vsel %vm308, %v6871, %v7811
  %v7896 = vsel %vm308, %v6876, %v7813
  %v7897 = vsel %vm308, %v6879, %v7815
  %v7898 = vsel %vm308, %v6884, %v7817
  %v7899 = vsel %vm308, %v6887, %v7819
  %v7900 = vsel %vm1606, %v7892, %v7837
  %v7901 = vsel %vm1606, %v7893, %v7839
  %v7902 = vsel %vm1606, %v7894, %v7841
  %v7903 = vsel %vm1606, %v7895, %v7843
  %v7904 = vsel %vm1606, %v7896, %v7845
  %v7905 = vsel %vm1606, %v7897, %v7847
  %v7906 = vsel %vm1606, %v7898, %v7849
  %v7907 = vsel %vm1606, %v7899, %v7851
  %v7908 = vsel %vm1615, %v7900, %v7869
  %v7909 = vsel %vm1615, %v7901, %v7871
  %v7910 = vsel %vm1615, %v7902, %v7873
  %v7911 = vsel %vm1615, %v7903, %v7875
  %v7912 = vsel %vm1615, %v7904, %v7877
  %v7913 = vsel %vm1615, %v7905, %v7879
  %v7914 = vsel %vm1615, %v7906, %v7881
  %v7915 = vsel %vm1615, %v7907, %v7883
  %v7916 = vpack.c.bf16 %v7909, %v7908
  %v7917 = vpack.c.bf16 %v7911, %v7910
  %v7918 = vpack.c.bf16 %v7913, %v7912
  %v7919 = vpack.c.bf16 %v7915, %v7914
  %s7920 = scalar_lea.vmem %s4, 48
  %v7921 = vld [vmem:[%s7920] sm:$0xf]
  %v7922 = vld [vmem:[%s7920 + $0x4] sm:$0xf]
  %v7923 = vld [vmem:[%s7920 + $0x8] sm:$0xf]
  %v7924 = vld [vmem:[%s7920 + $0xc] sm:$0xf]
  %v7925 = vlaneseq
  %v7926 = vshrl.u32 %v7925, 7
  %v7927 = vsub.s32 1, %v7926
  %v7928 = vrot.slane %v6485, %v7927
  %v7933 = vunpack.c.l.b16 %v7921
  %v7934 = vunpack.c.l.b16 %v7922
  %v7935 = vunpack.c.l.b16 %v7923
  %v7936 = vunpack.c.l.b16 %v7924
  %v7937 = vpack.c.b16 %v7934, %v7933
  %v7938 = vpack.c.b16 %v7936, %v7935
  %v7942 = vsel %vm112, %v7916, 0
  %v7945 = vsel %vm112, %v7917, 0
  %v7948 = vsel %vm112, %v7918, 0
  %v7951 = vsel %vm112, %v7919, 0
  %7953 = vmatprep.subr.bf16.mxu0 0
  %7954 = vmatpush1.bf16.msra.mxu0 0
  %7955 = vmatprep.subr.bf16.mxu0 0
  %7956 = vmatpush1.bf16.msra.mxu0 0
  %7957 = vmatprep.subr.bf16.mxu0 0
  %7958 = vmatpush1.bf16.msra.mxu0 0
  %7959 = vmatprep.subr.bf16.mxu0 0
  %7960 = vmatpush1.bf16.msra.mxu0 0
  %7961 = vmatprep.subr.bf16.mxu0 0
  %7962 = vmatpush1.bf16.msra.mxu0 0
  %7963 = vmatprep.subr.bf16.mxu0 0
  %7964 = vmatpush1.bf16.msra.mxu0 0
  %7965 = vmatprep.subr.bf16.mxu0 0
  %7966 = vmatpush1.bf16.msra.mxu0 %v7938
  %7967 = vmatprep.subr.bf16.mxu0 0
  %7968 = vmatpush1.bf16.msra.mxu0 %v7937
  %7969 = vmatprep.subr.bf16.mxu0 0
  %7970 = vmatpush2.bf16.msra.mxu0 0
  %7971 = vmatprep.subr.bf16.mxu0 0
  %7972 = vmatpush2.bf16.msra.mxu0 0
  %7973 = vmatprep.subr.bf16.mxu0 0
  %7974 = vmatpush2.bf16.msra.mxu0 0
  %7975 = vmatprep.subr.bf16.mxu0 0
  %7976 = vmatpush2.bf16.msra.mxu0 0
  %7977 = vmatprep.subr.bf16.mxu0 0
  %7978 = vmatpush2.bf16.msra.mxu0 0
  %7979 = vmatprep.subr.bf16.mxu0 0
  %7980 = vmatpush2.bf16.msra.mxu0 0
  %7981 = vmatprep.subr.bf16.mxu0 0
  %7982 = vmatpush2.bf16.msra.mxu0 0
  %7983 = vmatprep.subr.bf16.mxu0 0
  %7984 = vmatpush2.bf16.msra.mxu0 0
  %7985 = vmatprep.mubr.bf16.mxu0 0
  %7986 = vmatmul.mubr.bf16.gmra.mxu0 %v7942
  %v7987 = vpop.f32.mrf.mxu0
  %v7988 = vadd.f32 %v7928, %v7987
  %v7989 = vpop.f32.mrf.mxu0
  %v7990 = vpop.f32.mrf.mxu0
  %v7991 = vadd.f32 %v7928, %v7990
  %v7992 = vpop.f32.mrf.mxu0
  %7993 = vmatprep.mubr.bf16.mxu0 0
  %7994 = vmatmul.mubr.bf16.gmra.mxu0 %v7945
  %v7995 = vpop.f32.mrf.mxu0
  %v7996 = vadd.f32 %v7928, %v7995
  %v7997 = vpop.f32.mrf.mxu0
  %v7998 = vpop.f32.mrf.mxu0
  %v7999 = vadd.f32 %v7928, %v7998
  %v8000 = vpop.f32.mrf.mxu0
  %8001 = vmatprep.mubr.bf16.mxu0 0
  %8002 = vmatmul.mubr.bf16.gmra.mxu0 %v7948
  %v8003 = vpop.f32.mrf.mxu0
  %v8004 = vadd.f32 %v7928, %v8003
  %v8005 = vpop.f32.mrf.mxu0
  %v8006 = vpop.f32.mrf.mxu0
  %v8007 = vadd.f32 %v7928, %v8006
  %v8008 = vpop.f32.mrf.mxu0
  %8009 = vmatprep.mubr.bf16.mxu0 0
  %8010 = vmatmul.mubr.bf16.gmra.mxu0 %v7951
  %v8011 = vpop.f32.mrf.mxu0
  %v8012 = vadd.f32 %v7928, %v8011
  %v8013 = vpop.f32.mrf.mxu0
  %v8014 = vpop.f32.mrf.mxu0
  %v8015 = vadd.f32 %v7928, %v8014
  %v8016 = vpop.f32.mrf.mxu0
  %8017 = vdwg.mxu0
  %v8018 = vadd.f32 %v6476, %v7988
  %v8019 = vadd.f32 %v6477, %v7991
  %v8020 = vadd.f32 %v6478, %v7996
  %v8021 = vadd.f32 %v6479, %v7999
  %v8022 = vadd.f32 %v6480, %v8004
  %v8023 = vadd.f32 %v6481, %v8007
  %v8024 = vadd.f32 %v6482, %v8012
  %v8025 = vadd.f32 %v6483, %v8015
  %v8026 = vsel %vm112, %v8018, 0.0
  %8027 = vadd.xlane.f32.xlu0 %v8026
  %v8028 = vpop.xlane.xlu0 %8027
  %v8029 = vsel %vm112, %v8019, 0.0
  %8030 = vadd.xlane.f32.xlu0 %v8029
  %v8031 = vpop.xlane.xlu0 %8030
  %v8032 = vsel %vm112, %v8020, 0.0
  %8033 = vadd.xlane.f32.xlu0 %v8032
  %v8034 = vpop.xlane.xlu0 %8033
  %v8035 = vsel %vm112, %v8021, 0.0
  %8036 = vadd.xlane.f32.xlu0 %v8035
  %v8037 = vpop.xlane.xlu0 %8036
  %v8038 = vsel %vm112, %v8022, 0.0
  %8039 = vadd.xlane.f32.xlu0 %v8038
  %v8040 = vpop.xlane.xlu0 %8039
  %v8041 = vsel %vm112, %v8023, 0.0
  %8042 = vadd.xlane.f32.xlu0 %v8041
  %v8043 = vpop.xlane.xlu0 %8042
  %v8044 = vsel %vm112, %v8024, 0.0
  %8045 = vadd.xlane.f32.xlu0 %v8044
  %v8046 = vpop.xlane.xlu0 %8045
  %v8047 = vsel %vm112, %v8025, 0.0
  %8048 = vadd.xlane.f32.xlu0 %v8047
  %v8049 = vpop.xlane.xlu0 %8048
  %v8050 = vmul.f32 %v8028, %v1757
  %v8051 = vmul.f32 %v8031, %v1757
  %v8052 = vmul.f32 %v8034, %v1757
  %v8053 = vmul.f32 %v8037, %v1757
  %v8054 = vmul.f32 %v8040, %v1757
  %v8055 = vmul.f32 %v8043, %v1757
  %v8056 = vmul.f32 %v8046, %v1757
  %v8057 = vmul.f32 %v8049, %v1757
  %v8058 = vsub.f32 %v8018, %v8050
  %v8059 = vsub.f32 %v8019, %v8051
  %v8060 = vsub.f32 %v8020, %v8052
  %v8061 = vsub.f32 %v8021, %v8053
  %v8062 = vsub.f32 %v8022, %v8054
  %v8063 = vsub.f32 %v8023, %v8055
  %v8064 = vsub.f32 %v8024, %v8056
  %v8065 = vsub.f32 %v8025, %v8057
  %v8066 = vmul.f32 %v8058, %v8058
  %v8067 = vmul.f32 %v8059, %v8059
  %v8068 = vmul.f32 %v8060, %v8060
  %v8069 = vmul.f32 %v8061, %v8061
  %v8070 = vmul.f32 %v8062, %v8062
  %v8071 = vmul.f32 %v8063, %v8063
  %v8072 = vmul.f32 %v8064, %v8064
  %v8073 = vmul.f32 %v8065, %v8065
  %v8074 = vsel %vm112, %v8066, 0.0
  %8075 = vadd.xlane.f32.xlu0 %v8074
  %v8076 = vpop.xlane.xlu0 %8075
  %v8077 = vsel %vm112, %v8067, 0.0
  %8078 = vadd.xlane.f32.xlu0 %v8077
  %v8079 = vpop.xlane.xlu0 %8078
  %v8080 = vsel %vm112, %v8068, 0.0
  %8081 = vadd.xlane.f32.xlu0 %v8080
  %v8082 = vpop.xlane.xlu0 %8081
  %v8083 = vsel %vm112, %v8069, 0.0
  %8084 = vadd.xlane.f32.xlu0 %v8083
  %v8085 = vpop.xlane.xlu0 %8084
  %v8086 = vsel %vm112, %v8070, 0.0
  %8087 = vadd.xlane.f32.xlu0 %v8086
  %v8088 = vpop.xlane.xlu0 %8087
  %v8089 = vsel %vm112, %v8071, 0.0
  %8090 = vadd.xlane.f32.xlu0 %v8089
  %v8091 = vpop.xlane.xlu0 %8090
  %v8092 = vsel %vm112, %v8072, 0.0
  %8093 = vadd.xlane.f32.xlu0 %v8092
  %v8094 = vpop.xlane.xlu0 %8093
  %v8095 = vsel %vm112, %v8073, 0.0
  %8096 = vadd.xlane.f32.xlu0 %v8095
  %v8097 = vpop.xlane.xlu0 %8096
  %v8098 = vmul.f32 %v8076, %v1757
  %v8099 = vmul.f32 %v8079, %v1757
  %v8100 = vmul.f32 %v8082, %v1757
  %v8101 = vmul.f32 %v8085, %v1757
  %v8102 = vmul.f32 %v8088, %v1757
  %v8103 = vmul.f32 %v8091, %v1757
  %v8104 = vmul.f32 %v8094, %v1757
  %v8105 = vmul.f32 %v8097, %v1757
  %v8106 = vadd.f32 %v8098, 1e-05
  %v8107 = vadd.f32 %v8099, 1e-05
  %v8108 = vadd.f32 %v8100, 1e-05
  %v8109 = vadd.f32 %v8101, 1e-05
  %v8110 = vadd.f32 %v8102, 1e-05
  %v8111 = vadd.f32 %v8103, 1e-05
  %v8112 = vadd.f32 %v8104, 1e-05
  %v8113 = vadd.f32 %v8105, 1e-05
  %v8114 = vrsqrt.pop %v8106
  %v8115 = vrsqrt.pop %v8107
  %v8116 = vrsqrt.pop %v8108
  %v8117 = vrsqrt.pop %v8109
  %v8118 = vrsqrt.pop %v8110
  %v8119 = vrsqrt.pop %v8111
  %v8120 = vrsqrt.pop %v8112
  %v8121 = vrsqrt.pop %v8113
  %v8122 = vmul.f32 %v8058, %v8114
  %v8123 = vmul.f32 %v8059, %v8115
  %v8124 = vmul.f32 %v8060, %v8116
  %v8125 = vmul.f32 %v8061, %v8117
  %v8126 = vmul.f32 %v8062, %v8118
  %v8127 = vmul.f32 %v8063, %v8119
  %v8128 = vmul.f32 %v8064, %v8120
  %v8129 = vmul.f32 %v8065, %v8121
  %v8130 = vlaneseq
  %v8131 = vshrl.u32 %v8130, 7
  %v8132 = vsub.s32 2, %v8131
  %v8133 = vrot.slane %v6485, %v8132
  %v8134 = vmul.f32 %v8122, %v8133
  %v8135 = vmul.f32 %v8123, %v8133
  %v8136 = vmul.f32 %v8124, %v8133
  %v8137 = vmul.f32 %v8125, %v8133
  %v8138 = vmul.f32 %v8126, %v8133
  %v8139 = vmul.f32 %v8127, %v8133
  %v8140 = vmul.f32 %v8128, %v8133
  %v8141 = vmul.f32 %v8129, %v8133
  %v8142 = vlaneseq
  %v8143 = vshrl.u32 %v8142, 7
  %v8144 = vsub.s32 3, %v8143
  %v8145 = vrot.slane %v6485, %v8144
  %v8146 = vadd.f32 %v8134, %v8145
  %v8147 = vadd.f32 %v8135, %v8145
  %v8148 = vadd.f32 %v8136, %v8145
  %v8149 = vadd.f32 %v8137, %v8145
  %v8150 = vadd.f32 %v8138, %v8145
  %v8151 = vadd.f32 %v8139, %v8145
  %v8152 = vadd.f32 %v8140, %v8145
  %v8153 = vadd.f32 %v8141, %v8145
  %v8154 = vpack.c.bf16 %v8147, %v8146
  %v8155 = vpack.c.bf16 %v8149, %v8148
  %v8156 = vpack.c.bf16 %v8151, %v8150
  %v8157 = vpack.c.bf16 %v8153, %v8152
  %s8158 = scalar_lea.vmem %s5, 48
  %v8159 = vld [vmem:[%s8158] sm:$0xf]
  %v8160 = vld [vmem:[%s8158 + $0x4] sm:$0xf]
  %v8161 = vld [vmem:[%s8158 + $0x8] sm:$0xf]
  %v8162 = vld [vmem:[%s8158 + $0xc] sm:$0xf]
  %v8163 = vlaneseq
  %v8164 = vshrl.u32 %v8163, 7
  %v8165 = vsub.s32 4, %v8164
  %v8166 = vrot.slane %v6485, %v8165
  %v8171 = vunpack.c.l.b16 %v8159
  %v8172 = vunpack.c.l.b16 %v8160
  %v8173 = vunpack.c.l.b16 %v8161
  %v8174 = vunpack.c.l.b16 %v8162
  %v8175 = vpack.c.b16 %v8172, %v8171
  %v8176 = vpack.c.b16 %v8174, %v8173
  %v8180 = vsel %vm112, %v8154, 0
  %v8183 = vsel %vm112, %v8155, 0
  %v8186 = vsel %vm112, %v8156, 0
  %v8189 = vsel %vm112, %v8157, 0
  %8191 = vmatprep.subr.bf16.mxu0 0
  %8192 = vmatpush1.bf16.msra.mxu0 0
  %8193 = vmatprep.subr.bf16.mxu0 0
  %8194 = vmatpush1.bf16.msra.mxu0 0
  %8195 = vmatprep.subr.bf16.mxu0 0
  %8196 = vmatpush1.bf16.msra.mxu0 0
  %8197 = vmatprep.subr.bf16.mxu0 0
  %8198 = vmatpush1.bf16.msra.mxu0 0
  %8199 = vmatprep.subr.bf16.mxu0 0
  %8200 = vmatpush1.bf16.msra.mxu0 0
  %8201 = vmatprep.subr.bf16.mxu0 0
  %8202 = vmatpush1.bf16.msra.mxu0 0
  %8203 = vmatprep.subr.bf16.mxu0 0
  %8204 = vmatpush1.bf16.msra.mxu0 %v8176
  %8205 = vmatprep.subr.bf16.mxu0 0
  %8206 = vmatpush1.bf16.msra.mxu0 %v8175
  %8207 = vmatprep.subr.bf16.mxu0 0
  %8208 = vmatpush2.bf16.msra.mxu0 0
  %8209 = vmatprep.subr.bf16.mxu0 0
  %8210 = vmatpush2.bf16.msra.mxu0 0
  %8211 = vmatprep.subr.bf16.mxu0 0
  %8212 = vmatpush2.bf16.msra.mxu0 0
  %8213 = vmatprep.subr.bf16.mxu0 0
  %8214 = vmatpush2.bf16.msra.mxu0 0
  %8215 = vmatprep.subr.bf16.mxu0 0
  %8216 = vmatpush2.bf16.msra.mxu0 0
  %8217 = vmatprep.subr.bf16.mxu0 0
  %8218 = vmatpush2.bf16.msra.mxu0 0
  %8219 = vmatprep.subr.bf16.mxu0 0
  %8220 = vmatpush2.bf16.msra.mxu0 0
  %8221 = vmatprep.subr.bf16.mxu0 0
  %8222 = vmatpush2.bf16.msra.mxu0 0
  %8223 = vmatprep.mubr.bf16.mxu0 0
  %8224 = vmatmul.mubr.bf16.gmra.mxu0 %v8180
  %v8225 = vpop.f32.mrf.mxu0
  %v8226 = vadd.f32 %v8166, %v8225
  %v8227 = vpop.f32.mrf.mxu0
  %v8228 = vpop.f32.mrf.mxu0
  %v8229 = vadd.f32 %v8166, %v8228
  %v8230 = vpop.f32.mrf.mxu0
  %8231 = vmatprep.mubr.bf16.mxu0 0
  %8232 = vmatmul.mubr.bf16.gmra.mxu0 %v8183
  %v8233 = vpop.f32.mrf.mxu0
  %v8234 = vadd.f32 %v8166, %v8233
  %v8235 = vpop.f32.mrf.mxu0
  %v8236 = vpop.f32.mrf.mxu0
  %v8237 = vadd.f32 %v8166, %v8236
  %v8238 = vpop.f32.mrf.mxu0
  %8239 = vmatprep.mubr.bf16.mxu0 0
  %8240 = vmatmul.mubr.bf16.gmra.mxu0 %v8186
  %v8241 = vpop.f32.mrf.mxu0
  %v8242 = vadd.f32 %v8166, %v8241
  %v8243 = vpop.f32.mrf.mxu0
  %v8244 = vpop.f32.mrf.mxu0
  %v8245 = vadd.f32 %v8166, %v8244
  %v8246 = vpop.f32.mrf.mxu0
  %8247 = vmatprep.mubr.bf16.mxu0 0
  %8248 = vmatmul.mubr.bf16.gmra.mxu0 %v8189
  %v8249 = vpop.f32.mrf.mxu0
  %v8250 = vadd.f32 %v8166, %v8249
  %v8251 = vpop.f32.mrf.mxu0
  %v8252 = vpop.f32.mrf.mxu0
  %v8253 = vadd.f32 %v8166, %v8252
  %v8254 = vpop.f32.mrf.mxu0
  %8255 = vdwg.mxu0
  %v8256 = vmul.f32 %v8226, 0.5
  %v8257 = vmul.f32 %v8229, 0.5
  %v8258 = vmul.f32 %v8234, 0.5
  %v8259 = vmul.f32 %v8237, 0.5
  %v8260 = vmul.f32 %v8242, 0.5
  %v8261 = vmul.f32 %v8245, 0.5
  %v8262 = vmul.f32 %v8250, 0.5
  %v8263 = vmul.f32 %v8253, 0.5
  %v8264 = vmul.f32 %v8226, 0.044715
  %v8265 = vmul.f32 %v8229, 0.044715
  %v8266 = vmul.f32 %v8234, 0.044715
  %v8267 = vmul.f32 %v8237, 0.044715
  %v8268 = vmul.f32 %v8242, 0.044715
  %v8269 = vmul.f32 %v8245, 0.044715
  %v8270 = vmul.f32 %v8250, 0.044715
  %v8271 = vmul.f32 %v8253, 0.044715
  %v8272 = vmul.f32 %v8264, %v8226
  %v8273 = vmul.f32 %v8265, %v8229
  %v8274 = vmul.f32 %v8266, %v8234
  %v8275 = vmul.f32 %v8267, %v8237
  %v8276 = vmul.f32 %v8268, %v8242
  %v8277 = vmul.f32 %v8269, %v8245
  %v8278 = vmul.f32 %v8270, %v8250
  %v8279 = vmul.f32 %v8271, %v8253
  %v8280 = vmul.f32 %v8272, %v8226
  %v8281 = vmul.f32 %v8273, %v8229
  %v8282 = vmul.f32 %v8274, %v8234
  %v8283 = vmul.f32 %v8275, %v8237
  %v8284 = vmul.f32 %v8276, %v8242
  %v8285 = vmul.f32 %v8277, %v8245
  %v8286 = vmul.f32 %v8278, %v8250
  %v8287 = vmul.f32 %v8279, %v8253
  %v8288 = vadd.f32 %v8226, %v8280
  %v8289 = vadd.f32 %v8229, %v8281
  %v8290 = vadd.f32 %v8234, %v8282
  %v8291 = vadd.f32 %v8237, %v8283
  %v8292 = vadd.f32 %v8242, %v8284
  %v8293 = vadd.f32 %v8245, %v8285
  %v8294 = vadd.f32 %v8250, %v8286
  %v8295 = vadd.f32 %v8253, %v8287
  %v8296 = vmul.f32 %v8288, 0.7978846
  %v8297 = vmul.f32 %v8289, 0.7978846
  %v8298 = vmul.f32 %v8290, 0.7978846
  %v8299 = vmul.f32 %v8291, 0.7978846
  %v8300 = vmul.f32 %v8292, 0.7978846
  %v8301 = vmul.f32 %v8293, 0.7978846
  %v8302 = vmul.f32 %v8294, 0.7978846
  %v8303 = vmul.f32 %v8295, 0.7978846
  %v8304 = vtanh.pop %v8296
  %v8305 = vtanh.pop %v8297
  %v8306 = vtanh.pop %v8298
  %v8307 = vtanh.pop %v8299
  %v8308 = vtanh.pop %v8300
  %v8309 = vtanh.pop %v8301
  %v8310 = vtanh.pop %v8302
  %v8311 = vtanh.pop %v8303
  %v8312 = vadd.f32 %v8304, 1.0
  %v8313 = vadd.f32 %v8305, 1.0
  %v8314 = vadd.f32 %v8306, 1.0
  %v8315 = vadd.f32 %v8307, 1.0
  %v8316 = vadd.f32 %v8308, 1.0
  %v8317 = vadd.f32 %v8309, 1.0
  %v8318 = vadd.f32 %v8310, 1.0
  %v8319 = vadd.f32 %v8311, 1.0
  %v8320 = vmul.f32 %v8256, %v8312
  %v8321 = vmul.f32 %v8257, %v8313
  %v8322 = vmul.f32 %v8258, %v8314
  %v8323 = vmul.f32 %v8259, %v8315
  %v8324 = vmul.f32 %v8260, %v8316
  %v8325 = vmul.f32 %v8261, %v8317
  %v8326 = vmul.f32 %v8262, %v8318
  %v8327 = vmul.f32 %v8263, %v8319
  %v8328 = vpack.c.bf16 %v8321, %v8320
  %v8329 = vpack.c.bf16 %v8323, %v8322
  %v8330 = vpack.c.bf16 %v8325, %v8324
  %v8331 = vpack.c.bf16 %v8327, %v8326
  %s8332 = scalar_lea.vmem %s6, 96
  %v8333 = vld [vmem:[%s8332] sm:$0xf]
  %v8334 = vld [vmem:[%s8332 + $0x4] sm:$0xf]
  %v8335 = vld [vmem:[%s8332 + $0x8] sm:$0xf]
  %v8336 = vld [vmem:[%s8332 + $0xc] sm:$0xf]
  %v8337 = vld [vmem:[%s8332 + $0x10] sm:$0xf]
  %v8338 = vld [vmem:[%s8332 + $0x14] sm:$0xf]
  %v8339 = vld [vmem:[%s8332 + $0x18] sm:$0xf]
  %v8340 = vld [vmem:[%s8332 + $0x1c] sm:$0xf]
  %v8341 = vlaneseq
  %v8342 = vshrl.u32 %v8341, 7
  %v8343 = vsub.s32 5, %v8342
  %v8344 = vrot.slane %v6485, %v8343
  %v8353 = vunpack.c.l.b16 %v8333
  %v8354 = vunpack.c.l.b16 %v8334
  %v8355 = vunpack.c.l.b16 %v8335
  %v8356 = vunpack.c.l.b16 %v8336
  %v8357 = vunpack.c.l.b16 %v8337
  %v8358 = vunpack.c.l.b16 %v8338
  %v8359 = vunpack.c.l.b16 %v8339
  %v8360 = vunpack.c.l.b16 %v8340
  %v8361 = vpack.c.b16 %v8354, %v8353
  %v8362 = vpack.c.b16 %v8356, %v8355
  %v8363 = vpack.c.b16 %v8358, %v8357
  %v8364 = vpack.c.b16 %v8360, %v8359
  %v8370 = vsel %vm414, %v8328, 0
  %v8373 = vsel %vm414, %v8329, 0
  %v8376 = vsel %vm414, %v8330, 0
  %v8379 = vsel %vm414, %v8331, 0
  %8381 = vmatprep.subr.bf16.mxu0 0
  %8382 = vmatpush1.bf16.msra.mxu0 0
  %8383 = vmatprep.subr.bf16.mxu0 0
  %8384 = vmatpush1.bf16.msra.mxu0 0
  %8385 = vmatprep.subr.bf16.mxu0 0
  %8386 = vmatpush1.bf16.msra.mxu0 0
  %8387 = vmatprep.subr.bf16.mxu0 0
  %8388 = vmatpush1.bf16.msra.mxu0 0
  %8389 = vmatprep.subr.bf16.mxu0 0
  %8390 = vmatpush1.bf16.msra.mxu0 %v8364
  %8391 = vmatprep.subr.bf16.mxu0 0
  %8392 = vmatpush1.bf16.msra.mxu0 %v8363
  %8393 = vmatprep.subr.bf16.mxu0 0
  %8394 = vmatpush1.bf16.msra.mxu0 %v8362
  %8395 = vmatprep.subr.bf16.mxu0 0
  %8396 = vmatpush1.bf16.msra.mxu0 %v8361
  %8397 = vmatprep.subr.bf16.mxu0 0
  %8398 = vmatpush2.bf16.msra.mxu0 0
  %8399 = vmatprep.subr.bf16.mxu0 0
  %8400 = vmatpush2.bf16.msra.mxu0 0
  %8401 = vmatprep.subr.bf16.mxu0 0
  %8402 = vmatpush2.bf16.msra.mxu0 0
  %8403 = vmatprep.subr.bf16.mxu0 0
  %8404 = vmatpush2.bf16.msra.mxu0 0
  %8405 = vmatprep.subr.bf16.mxu0 0
  %8406 = vmatpush2.bf16.msra.mxu0 0
  %8407 = vmatprep.subr.bf16.mxu0 0
  %8408 = vmatpush2.bf16.msra.mxu0 0
  %8409 = vmatprep.subr.bf16.mxu0 0
  %8410 = vmatpush2.bf16.msra.mxu0 0
  %8411 = vmatprep.subr.bf16.mxu0 0
  %8412 = vmatpush2.bf16.msra.mxu0 0
  %8413 = vmatprep.mubr.bf16.mxu0 0
  %8414 = vmatmul.mubr.bf16.gmra.mxu0 %v8370
  %v8415 = vpop.f32.mrf.mxu0
  %v8416 = vadd.f32 %v8344, %v8415
  %v8417 = vpop.f32.mrf.mxu0
  %v8418 = vpop.f32.mrf.mxu0
  %v8419 = vadd.f32 %v8344, %v8418
  %v8420 = vpop.f32.mrf.mxu0
  %8421 = vmatprep.mubr.bf16.mxu0 0
  %8422 = vmatmul.mubr.bf16.gmra.mxu0 %v8373
  %v8423 = vpop.f32.mrf.mxu0
  %v8424 = vadd.f32 %v8344, %v8423
  %v8425 = vpop.f32.mrf.mxu0
  %v8426 = vpop.f32.mrf.mxu0
  %v8427 = vadd.f32 %v8344, %v8426
  %v8428 = vpop.f32.mrf.mxu0
  %8429 = vmatprep.mubr.bf16.mxu0 0
  %8430 = vmatmul.mubr.bf16.gmra.mxu0 %v8376
  %v8431 = vpop.f32.mrf.mxu0
  %v8432 = vadd.f32 %v8344, %v8431
  %v8433 = vpop.f32.mrf.mxu0
  %v8434 = vpop.f32.mrf.mxu0
  %v8435 = vadd.f32 %v8344, %v8434
  %v8436 = vpop.f32.mrf.mxu0
  %8437 = vmatprep.mubr.bf16.mxu0 0
  %8438 = vmatmul.mubr.bf16.gmra.mxu0 %v8379
  %v8439 = vpop.f32.mrf.mxu0
  %v8440 = vadd.f32 %v8344, %v8439
  %v8441 = vpop.f32.mrf.mxu0
  %v8442 = vpop.f32.mrf.mxu0
  %v8443 = vadd.f32 %v8344, %v8442
  %v8444 = vpop.f32.mrf.mxu0
  %8445 = vdwg.mxu0
  %v8446 = vadd.f32 %v8146, %v8416
  %v8447 = vadd.f32 %v8147, %v8419
  %v8448 = vadd.f32 %v8148, %v8424
  %v8449 = vadd.f32 %v8149, %v8427
  %v8450 = vadd.f32 %v8150, %v8432
  %v8451 = vadd.f32 %v8151, %v8435
  %v8452 = vadd.f32 %v8152, %v8440
  %v8453 = vadd.f32 %v8153, %v8443
  %v8454 = vsel %vm112, %v8446, 0.0
  %8455 = vadd.xlane.f32.xlu0 %v8454
  %v8456 = vpop.xlane.xlu0 %8455
  %v8457 = vsel %vm112, %v8447, 0.0
  %8458 = vadd.xlane.f32.xlu0 %v8457
  %v8459 = vpop.xlane.xlu0 %8458
  %v8460 = vsel %vm112, %v8448, 0.0
  %8461 = vadd.xlane.f32.xlu0 %v8460
  %v8462 = vpop.xlane.xlu0 %8461
  %v8463 = vsel %vm112, %v8449, 0.0
  %8464 = vadd.xlane.f32.xlu0 %v8463
  %v8465 = vpop.xlane.xlu0 %8464
  %v8466 = vsel %vm112, %v8450, 0.0
  %8467 = vadd.xlane.f32.xlu0 %v8466
  %v8468 = vpop.xlane.xlu0 %8467
  %v8469 = vsel %vm112, %v8451, 0.0
  %8470 = vadd.xlane.f32.xlu0 %v8469
  %v8471 = vpop.xlane.xlu0 %8470
  %v8472 = vsel %vm112, %v8452, 0.0
  %8473 = vadd.xlane.f32.xlu0 %v8472
  %v8474 = vpop.xlane.xlu0 %8473
  %v8475 = vsel %vm112, %v8453, 0.0
  %8476 = vadd.xlane.f32.xlu0 %v8475
  %v8477 = vpop.xlane.xlu0 %8476
  %v8478 = vmul.f32 %v8456, %v1757
  %v8479 = vmul.f32 %v8459, %v1757
  %v8480 = vmul.f32 %v8462, %v1757
  %v8481 = vmul.f32 %v8465, %v1757
  %v8482 = vmul.f32 %v8468, %v1757
  %v8483 = vmul.f32 %v8471, %v1757
  %v8484 = vmul.f32 %v8474, %v1757
  %v8485 = vmul.f32 %v8477, %v1757
  %v8486 = vsub.f32 %v8446, %v8478
  %v8487 = vsub.f32 %v8447, %v8479
  %v8488 = vsub.f32 %v8448, %v8480
  %v8489 = vsub.f32 %v8449, %v8481
  %v8490 = vsub.f32 %v8450, %v8482
  %v8491 = vsub.f32 %v8451, %v8483
  %v8492 = vsub.f32 %v8452, %v8484
  %v8493 = vsub.f32 %v8453, %v8485
  %v8494 = vmul.f32 %v8486, %v8486
  %v8495 = vmul.f32 %v8487, %v8487
  %v8496 = vmul.f32 %v8488, %v8488
  %v8497 = vmul.f32 %v8489, %v8489
  %v8498 = vmul.f32 %v8490, %v8490
  %v8499 = vmul.f32 %v8491, %v8491
  %v8500 = vmul.f32 %v8492, %v8492
  %v8501 = vmul.f32 %v8493, %v8493
  %v8502 = vsel %vm112, %v8494, 0.0
  %8503 = vadd.xlane.f32.xlu0 %v8502
  %v8504 = vpop.xlane.xlu0 %8503
  %v8505 = vsel %vm112, %v8495, 0.0
  %8506 = vadd.xlane.f32.xlu0 %v8505
  %v8507 = vpop.xlane.xlu0 %8506
  %v8508 = vsel %vm112, %v8496, 0.0
  %8509 = vadd.xlane.f32.xlu0 %v8508
  %v8510 = vpop.xlane.xlu0 %8509
  %v8511 = vsel %vm112, %v8497, 0.0
  %8512 = vadd.xlane.f32.xlu0 %v8511
  %v8513 = vpop.xlane.xlu0 %8512
  %v8514 = vsel %vm112, %v8498, 0.0
  %8515 = vadd.xlane.f32.xlu0 %v8514
  %v8516 = vpop.xlane.xlu0 %8515
  %v8517 = vsel %vm112, %v8499, 0.0
  %8518 = vadd.xlane.f32.xlu0 %v8517
  %v8519 = vpop.xlane.xlu0 %8518
  %v8520 = vsel %vm112, %v8500, 0.0
  %8521 = vadd.xlane.f32.xlu0 %v8520
  %v8522 = vpop.xlane.xlu0 %8521
  %v8523 = vsel %vm112, %v8501, 0.0
  %8524 = vadd.xlane.f32.xlu0 %v8523
  %v8525 = vpop.xlane.xlu0 %8524
  %v8526 = vmul.f32 %v8504, %v1757
  %v8527 = vmul.f32 %v8507, %v1757
  %v8528 = vmul.f32 %v8510, %v1757
  %v8529 = vmul.f32 %v8513, %v1757
  %v8530 = vmul.f32 %v8516, %v1757
  %v8531 = vmul.f32 %v8519, %v1757
  %v8532 = vmul.f32 %v8522, %v1757
  %v8533 = vmul.f32 %v8525, %v1757
  %v8534 = vadd.f32 %v8526, 1e-05
  %v8535 = vadd.f32 %v8527, 1e-05
  %v8536 = vadd.f32 %v8528, 1e-05
  %v8537 = vadd.f32 %v8529, 1e-05
  %v8538 = vadd.f32 %v8530, 1e-05
  %v8539 = vadd.f32 %v8531, 1e-05
  %v8540 = vadd.f32 %v8532, 1e-05
  %v8541 = vadd.f32 %v8533, 1e-05
  %v8542 = vrsqrt.pop %v8534
  %v8543 = vrsqrt.pop %v8535
  %v8544 = vrsqrt.pop %v8536
  %v8545 = vrsqrt.pop %v8537
  %v8546 = vrsqrt.pop %v8538
  %v8547 = vrsqrt.pop %v8539
  %v8548 = vrsqrt.pop %v8540
  %v8549 = vrsqrt.pop %v8541
  %v8550 = vmul.f32 %v8486, %v8542
  %v8551 = vmul.f32 %v8487, %v8543
  %v8552 = vmul.f32 %v8488, %v8544
  %v8553 = vmul.f32 %v8489, %v8545
  %v8554 = vmul.f32 %v8490, %v8546
  %v8555 = vmul.f32 %v8491, %v8547
  %v8556 = vmul.f32 %v8492, %v8548
  %v8557 = vmul.f32 %v8493, %v8549
  %v8558 = vlaneseq
  %v8559 = vshrl.u32 %v8558, 7
  %v8560 = vsub.s32 6, %v8559
  %v8561 = vrot.slane %v6485, %v8560
  %v8562 = vmul.f32 %v8550, %v8561
  %v8563 = vmul.f32 %v8551, %v8561
  %v8564 = vmul.f32 %v8552, %v8561
  %v8565 = vmul.f32 %v8553, %v8561
  %v8566 = vmul.f32 %v8554, %v8561
  %v8567 = vmul.f32 %v8555, %v8561
  %v8568 = vmul.f32 %v8556, %v8561
  %v8569 = vmul.f32 %v8557, %v8561
  %v8570 = vlaneseq
  %v8571 = vshrl.u32 %v8570, 7
  %v8572 = vsub.s32 7, %v8571
  %v8573 = vrot.slane %v6485, %v8572
  %v8574 = vadd.f32 %v8562, %v8573
  %v8575 = vadd.f32 %v8563, %v8573
  %v8576 = vadd.f32 %v8564, %v8573
  %v8577 = vadd.f32 %v8565, %v8573
  %v8578 = vadd.f32 %v8566, %v8573
  %v8579 = vadd.f32 %v8567, %v8573
  %v8580 = vadd.f32 %v8568, %v8573
  %v8581 = vadd.f32 %v8569, %v8573
  %v8582 = vpack.c.bf16 %v8575, %v8574
  %v8583 = vpack.c.bf16 %v8577, %v8576
  %v8584 = vpack.c.bf16 %v8579, %v8578
  %v8585 = vpack.c.bf16 %v8581, %v8580
  %v8586 = vld [vmem:[%s8] sm:$0xff]
  %v8587 = vld [vmem:[%s8 + $0x8] sm:$0xff]
  %v8588 = vld [vmem:[%s8 + $0x10] sm:$0xff]
  %v8589 = vld [vmem:[%s8 + $0x18] sm:$0xff]
  %v8590 = vld [vmem:[%s8 + $0x20] sm:$0xff]
  %v8591 = vld [vmem:[%s8 + $0x28] sm:$0xff]
  %v8592 = vld [vmem:[%s8 + $0x30] sm:$0xff]
  %v8593 = vld [vmem:[%s8 + $0x38] sm:$0xff]
  %v8594 = vld [vmem:[%s8 + $0x40] sm:$0xff]
  %v8595 = vld [vmem:[%s8 + $0x48] sm:$0xff]
  %v8596 = vld [vmem:[%s8 + $0x50] sm:$0xff]
  %v8597 = vld [vmem:[%s8 + $0x58] sm:$0xff]
  %v8598 = vld [vmem:[%s8 + $0x60] sm:$0xff]
  %v8599 = vld [vmem:[%s8 + $0x68] sm:$0xff]
  %v8600 = vld [vmem:[%s8 + $0x70] sm:$0xff]
  %v8601 = vld [vmem:[%s8 + $0x78] sm:$0xff]
  %v8618 = vunpack.c.l.b16 %v8586
  %v8619 = vunpack.c.h.b16 %v8586
  %v8620 = vunpack.c.l.b16 %v8587
  %v8621 = vunpack.c.h.b16 %v8587
  %v8622 = vunpack.c.l.b16 %v8588
  %v8623 = vunpack.c.h.b16 %v8588
  %v8624 = vunpack.c.l.b16 %v8589
  %v8625 = vunpack.c.h.b16 %v8589
  %v8626 = vunpack.c.l.b16 %v8590
  %v8627 = vunpack.c.h.b16 %v8590
  %v8628 = vunpack.c.l.b16 %v8591
  %v8629 = vunpack.c.h.b16 %v8591
  %v8630 = vunpack.c.l.b16 %v8592
  %v8631 = vunpack.c.h.b16 %v8592
  %v8632 = vunpack.c.l.b16 %v8593
  %v8633 = vunpack.c.h.b16 %v8593
  %v8634 = vunpack.c.l.b16 %v8594
  %v8635 = vunpack.c.h.b16 %v8594
  %v8636 = vunpack.c.l.b16 %v8595
  %v8637 = vunpack.c.h.b16 %v8595
  %v8638 = vunpack.c.l.b16 %v8596
  %v8639 = vunpack.c.h.b16 %v8596
  %v8640 = vunpack.c.l.b16 %v8597
  %v8641 = vunpack.c.h.b16 %v8597
  %v8642 = vunpack.c.l.b16 %v8598
  %v8643 = vunpack.c.h.b16 %v8598
  %v8644 = vunpack.c.l.b16 %v8599
  %v8645 = vunpack.c.h.b16 %v8599
  %v8646 = vunpack.c.l.b16 %v8600
  %v8647 = vunpack.c.h.b16 %v8600
  %v8648 = vunpack.c.l.b16 %v8601
  %v8649 = vunpack.c.h.b16 %v8601
  %v8650 = vpack.c.b16 %v8626, %v8618
  %v8651 = vpack.c.b16 %v8627, %v8619
  %v8652 = vpack.c.b16 %v8628, %v8620
  %v8653 = vpack.c.b16 %v8629, %v8621
  %v8654 = vpack.c.b16 %v8630, %v8622
  %v8655 = vpack.c.b16 %v8631, %v8623
  %v8656 = vpack.c.b16 %v8632, %v8624
  %v8657 = vpack.c.b16 %v8633, %v8625
  %v8658 = vpack.c.b16 %v8642, %v8634
  %v8659 = vpack.c.b16 %v8643, %v8635
  %v8660 = vpack.c.b16 %v8644, %v8636
  %v8661 = vpack.c.b16 %v8645, %v8637
  %v8662 = vpack.c.b16 %v8646, %v8638
  %v8663 = vpack.c.b16 %v8647, %v8639
  %v8664 = vpack.c.b16 %v8648, %v8640
  %v8665 = vpack.c.b16 %v8649, %v8641
  %v8683 = vsel %vm112, %v8582, 0
  %v8686 = vsel %vm112, %v8583, 0
  %v8689 = vsel %vm112, %v8584, 0
  %v8692 = vsel %vm112, %v8585, 0
  %8694 = vmatprep.subr.bf16.mxu0 0
  %8695 = vmatpush1.bf16.msra.mxu0 0
  %8696 = vmatprep.subr.bf16.mxu0 0
  %8697 = vmatpush1.bf16.msra.mxu0 0
  %8698 = vmatprep.subr.bf16.mxu0 0
  %8699 = vmatpush1.bf16.msra.mxu0 0
  %8700 = vmatprep.subr.bf16.mxu0 0
  %8701 = vmatpush1.bf16.msra.mxu0 0
  %8702 = vmatprep.subr.bf16.mxu0 0
  %8703 = vmatpush1.bf16.msra.mxu0 0
  %8704 = vmatprep.subr.bf16.mxu0 0
  %8705 = vmatpush1.bf16.msra.mxu0 0
  %8706 = vmatprep.subr.bf16.mxu0 %v8659
  %8707 = vmatpush1.bf16.msra.mxu0 %v8658
  %8708 = vmatprep.subr.bf16.mxu0 %v8651
  %8709 = vmatpush1.bf16.msra.mxu0 %v8650
  %8710 = vmatprep.subr.bf16.mxu0 0
  %8711 = vmatpush2.bf16.msra.mxu0 0
  %8712 = vmatprep.subr.bf16.mxu0 0
  %8713 = vmatpush2.bf16.msra.mxu0 0
  %8714 = vmatprep.subr.bf16.mxu0 0
  %8715 = vmatpush2.bf16.msra.mxu0 0
  %8716 = vmatprep.subr.bf16.mxu0 0
  %8717 = vmatpush2.bf16.msra.mxu0 0
  %8718 = vmatprep.subr.bf16.mxu0 0
  %8719 = vmatpush2.bf16.msra.mxu0 0
  %8720 = vmatprep.subr.bf16.mxu0 0
  %8721 = vmatpush2.bf16.msra.mxu0 0
  %8722 = vmatprep.subr.bf16.mxu0 0
  %8723 = vmatpush2.bf16.msra.mxu0 0
  %8724 = vmatprep.subr.bf16.mxu0 0
  %8725 = vmatpush2.bf16.msra.mxu0 0
  %8726 = vmatprep.mubr.bf16.mxu0 0
  %8727 = vmatmul.mubr.bf16.gmra.mxu0 %v8683
  %v8728 = vpop.f32.mrf.mxu0
  %v8729 = vadd.f32 0.0, %v8728
  %v8730 = vpop.f32.mrf.mxu0
  %v8731 = vadd.f32 0.0, %v8730
  %v8732 = vpop.f32.mrf.mxu0
  %v8733 = vadd.f32 0.0, %v8732
  %v8734 = vpop.f32.mrf.mxu0
  %v8735 = vadd.f32 0.0, %v8734
  %8736 = vmatprep.mubr.bf16.mxu0 0
  %8737 = vmatmul.mubr.bf16.gmra.mxu0 %v8686
  %v8738 = vpop.f32.mrf.mxu0
  %v8739 = vadd.f32 0.0, %v8738
  %v8740 = vpop.f32.mrf.mxu0
  %v8741 = vadd.f32 0.0, %v8740
  %v8742 = vpop.f32.mrf.mxu0
  %v8743 = vadd.f32 0.0, %v8742
  %v8744 = vpop.f32.mrf.mxu0
  %v8745 = vadd.f32 0.0, %v8744
  %8746 = vmatprep.mubr.bf16.mxu0 0
  %8747 = vmatmul.mubr.bf16.gmra.mxu0 %v8689
  %v8748 = vpop.f32.mrf.mxu0
  %v8749 = vadd.f32 0.0, %v8748
  %v8750 = vpop.f32.mrf.mxu0
  %v8751 = vadd.f32 0.0, %v8750
  %v8752 = vpop.f32.mrf.mxu0
  %v8753 = vadd.f32 0.0, %v8752
  %v8754 = vpop.f32.mrf.mxu0
  %v8755 = vadd.f32 0.0, %v8754
  %8756 = vmatprep.mubr.bf16.mxu0 0
  %8757 = vmatmul.mubr.bf16.gmra.mxu0 %v8692
  %v8758 = vpop.f32.mrf.mxu0
  %v8759 = vadd.f32 0.0, %v8758
  %v8760 = vpop.f32.mrf.mxu0
  %v8761 = vadd.f32 0.0, %v8760
  %v8762 = vpop.f32.mrf.mxu0
  %v8763 = vadd.f32 0.0, %v8762
  %v8764 = vpop.f32.mrf.mxu0
  %v8765 = vadd.f32 0.0, %v8764
  %8766 = vdwg.mxu0
  %8767 = vmatprep.subr.bf16.mxu0 0
  %8768 = vmatpush1.bf16.msra.mxu0 0
  %8769 = vmatprep.subr.bf16.mxu0 0
  %8770 = vmatpush1.bf16.msra.mxu0 0
  %8771 = vmatprep.subr.bf16.mxu0 0
  %8772 = vmatpush1.bf16.msra.mxu0 0
  %8773 = vmatprep.subr.bf16.mxu0 0
  %8774 = vmatpush1.bf16.msra.mxu0 0
  %8775 = vmatprep.subr.bf16.mxu0 0
  %8776 = vmatpush1.bf16.msra.mxu0 0
  %8777 = vmatprep.subr.bf16.mxu0 0
  %8778 = vmatpush1.bf16.msra.mxu0 0
  %8779 = vmatprep.subr.bf16.mxu0 %v8661
  %8780 = vmatpush1.bf16.msra.mxu0 %v8660
  %8781 = vmatprep.subr.bf16.mxu0 %v8653
  %8782 = vmatpush1.bf16.msra.mxu0 %v8652
  %8783 = vmatprep.subr.bf16.mxu0 0
  %8784 = vmatpush2.bf16.msra.mxu0 0
  %8785 = vmatprep.subr.bf16.mxu0 0
  %8786 = vmatpush2.bf16.msra.mxu0 0
  %8787 = vmatprep.subr.bf16.mxu0 0
  %8788 = vmatpush2.bf16.msra.mxu0 0
  %8789 = vmatprep.subr.bf16.mxu0 0
  %8790 = vmatpush2.bf16.msra.mxu0 0
  %8791 = vmatprep.subr.bf16.mxu0 0
  %8792 = vmatpush2.bf16.msra.mxu0 0
  %8793 = vmatprep.subr.bf16.mxu0 0
  %8794 = vmatpush2.bf16.msra.mxu0 0
  %8795 = vmatprep.subr.bf16.mxu0 0
  %8796 = vmatpush2.bf16.msra.mxu0 0
  %8797 = vmatprep.subr.bf16.mxu0 0
  %8798 = vmatpush2.bf16.msra.mxu0 0
  %8799 = vmatprep.mubr.bf16.mxu0 0
  %8800 = vmatmul.mubr.bf16.gmra.mxu0 %v8683
  %v8801 = vpop.f32.mrf.mxu0
  %v8802 = vadd.f32 0.0, %v8801
  %v8803 = vpop.f32.mrf.mxu0
  %v8804 = vadd.f32 0.0, %v8803
  %v8805 = vpop.f32.mrf.mxu0
  %v8806 = vadd.f32 0.0, %v8805
  %v8807 = vpop.f32.mrf.mxu0
  %v8808 = vadd.f32 0.0, %v8807
  %8809 = vmatprep.mubr.bf16.mxu0 0
  %8810 = vmatmul.mubr.bf16.gmra.mxu0 %v8686
  %v8811 = vpop.f32.mrf.mxu0
  %v8812 = vadd.f32 0.0, %v8811
  %v8813 = vpop.f32.mrf.mxu0
  %v8814 = vadd.f32 0.0, %v8813
  %v8815 = vpop.f32.mrf.mxu0
  %v8816 = vadd.f32 0.0, %v8815
  %v8817 = vpop.f32.mrf.mxu0
  %v8818 = vadd.f32 0.0, %v8817
  %8819 = vmatprep.mubr.bf16.mxu0 0
  %8820 = vmatmul.mubr.bf16.gmra.mxu0 %v8689
  %v8821 = vpop.f32.mrf.mxu0
  %v8822 = vadd.f32 0.0, %v8821
  %v8823 = vpop.f32.mrf.mxu0
  %v8824 = vadd.f32 0.0, %v8823
  %v8825 = vpop.f32.mrf.mxu0
  %v8826 = vadd.f32 0.0, %v8825
  %v8827 = vpop.f32.mrf.mxu0
  %v8828 = vadd.f32 0.0, %v8827
  %8829 = vmatprep.mubr.bf16.mxu0 0
  %8830 = vmatmul.mubr.bf16.gmra.mxu0 %v8692
  %v8831 = vpop.f32.mrf.mxu0
  %v8832 = vadd.f32 0.0, %v8831
  %v8833 = vpop.f32.mrf.mxu0
  %v8834 = vadd.f32 0.0, %v8833
  %v8835 = vpop.f32.mrf.mxu0
  %v8836 = vadd.f32 0.0, %v8835
  %v8837 = vpop.f32.mrf.mxu0
  %v8838 = vadd.f32 0.0, %v8837
  %8839 = vdwg.mxu0
  %8840 = vmatprep.subr.bf16.mxu0 0
  %8841 = vmatpush1.bf16.msra.mxu0 0
  %8842 = vmatprep.subr.bf16.mxu0 0
  %8843 = vmatpush1.bf16.msra.mxu0 0
  %8844 = vmatprep.subr.bf16.mxu0 0
  %8845 = vmatpush1.bf16.msra.mxu0 0
  %8846 = vmatprep.subr.bf16.mxu0 0
  %8847 = vmatpush1.bf16.msra.mxu0 0
  %8848 = vmatprep.subr.bf16.mxu0 0
  %8849 = vmatpush1.bf16.msra.mxu0 0
  %8850 = vmatprep.subr.bf16.mxu0 0
  %8851 = vmatpush1.bf16.msra.mxu0 0
  %8852 = vmatprep.subr.bf16.mxu0 %v8663
  %8853 = vmatpush1.bf16.msra.mxu0 %v8662
  %8854 = vmatprep.subr.bf16.mxu0 %v8655
  %8855 = vmatpush1.bf16.msra.mxu0 %v8654
  %8856 = vmatprep.subr.bf16.mxu0 0
  %8857 = vmatpush2.bf16.msra.mxu0 0
  %8858 = vmatprep.subr.bf16.mxu0 0
  %8859 = vmatpush2.bf16.msra.mxu0 0
  %8860 = vmatprep.subr.bf16.mxu0 0
  %8861 = vmatpush2.bf16.msra.mxu0 0
  %8862 = vmatprep.subr.bf16.mxu0 0
  %8863 = vmatpush2.bf16.msra.mxu0 0
  %8864 = vmatprep.subr.bf16.mxu0 0
  %8865 = vmatpush2.bf16.msra.mxu0 0
  %8866 = vmatprep.subr.bf16.mxu0 0
  %8867 = vmatpush2.bf16.msra.mxu0 0
  %8868 = vmatprep.subr.bf16.mxu0 0
  %8869 = vmatpush2.bf16.msra.mxu0 0
  %8870 = vmatprep.subr.bf16.mxu0 0
  %8871 = vmatpush2.bf16.msra.mxu0 0
  %8872 = vmatprep.mubr.bf16.mxu0 0
  %8873 = vmatmul.mubr.bf16.gmra.mxu0 %v8683
  %v8874 = vpop.f32.mrf.mxu0
  %v8875 = vadd.f32 0.0, %v8874
  %v8876 = vpop.f32.mrf.mxu0
  %v8877 = vadd.f32 0.0, %v8876
  %v8878 = vpop.f32.mrf.mxu0
  %v8879 = vadd.f32 0.0, %v8878
  %v8880 = vpop.f32.mrf.mxu0
  %v8881 = vadd.f32 0.0, %v8880
  %8882 = vmatprep.mubr.bf16.mxu0 0
  %8883 = vmatmul.mubr.bf16.gmra.mxu0 %v8686
  %v8884 = vpop.f32.mrf.mxu0
  %v8885 = vadd.f32 0.0, %v8884
  %v8886 = vpop.f32.mrf.mxu0
  %v8887 = vadd.f32 0.0, %v8886
  %v8888 = vpop.f32.mrf.mxu0
  %v8889 = vadd.f32 0.0, %v8888
  %v8890 = vpop.f32.mrf.mxu0
  %v8891 = vadd.f32 0.0, %v8890
  %8892 = vmatprep.mubr.bf16.mxu0 0
  %8893 = vmatmul.mubr.bf16.gmra.mxu0 %v8689
  %v8894 = vpop.f32.mrf.mxu0
  %v8895 = vadd.f32 0.0, %v8894
  %v8896 = vpop.f32.mrf.mxu0
  %v8897 = vadd.f32 0.0, %v8896
  %v8898 = vpop.f32.mrf.mxu0
  %v8899 = vadd.f32 0.0, %v8898
  %v8900 = vpop.f32.mrf.mxu0
  %v8901 = vadd.f32 0.0, %v8900
  %8902 = vmatprep.mubr.bf16.mxu0 0
  %8903 = vmatmul.mubr.bf16.gmra.mxu0 %v8692
  %v8904 = vpop.f32.mrf.mxu0
  %v8905 = vadd.f32 0.0, %v8904
  %v8906 = vpop.f32.mrf.mxu0
  %v8907 = vadd.f32 0.0, %v8906
  %v8908 = vpop.f32.mrf.mxu0
  %v8909 = vadd.f32 0.0, %v8908
  %v8910 = vpop.f32.mrf.mxu0
  %v8911 = vadd.f32 0.0, %v8910
  %8912 = vdwg.mxu0
  %8913 = vmatprep.subr.bf16.mxu0 0
  %8914 = vmatpush1.bf16.msra.mxu0 0
  %8915 = vmatprep.subr.bf16.mxu0 0
  %8916 = vmatpush1.bf16.msra.mxu0 0
  %8917 = vmatprep.subr.bf16.mxu0 0
  %8918 = vmatpush1.bf16.msra.mxu0 0
  %8919 = vmatprep.subr.bf16.mxu0 0
  %8920 = vmatpush1.bf16.msra.mxu0 0
  %8921 = vmatprep.subr.bf16.mxu0 0
  %8922 = vmatpush1.bf16.msra.mxu0 0
  %8923 = vmatprep.subr.bf16.mxu0 0
  %8924 = vmatpush1.bf16.msra.mxu0 0
  %8925 = vmatprep.subr.bf16.mxu0 %v8665
  %8926 = vmatpush1.bf16.msra.mxu0 %v8664
  %8927 = vmatprep.subr.bf16.mxu0 %v8657
  %8928 = vmatpush1.bf16.msra.mxu0 %v8656
  %8929 = vmatprep.subr.bf16.mxu0 0
  %8930 = vmatpush2.bf16.msra.mxu0 0
  %8931 = vmatprep.subr.bf16.mxu0 0
  %8932 = vmatpush2.bf16.msra.mxu0 0
  %8933 = vmatprep.subr.bf16.mxu0 0
  %8934 = vmatpush2.bf16.msra.mxu0 0
  %8935 = vmatprep.subr.bf16.mxu0 0
  %8936 = vmatpush2.bf16.msra.mxu0 0
  %8937 = vmatprep.subr.bf16.mxu0 0
  %8938 = vmatpush2.bf16.msra.mxu0 0
  %8939 = vmatprep.subr.bf16.mxu0 0
  %8940 = vmatpush2.bf16.msra.mxu0 0
  %8941 = vmatprep.subr.bf16.mxu0 0
  %8942 = vmatpush2.bf16.msra.mxu0 0
  %8943 = vmatprep.subr.bf16.mxu0 0
  %8944 = vmatpush2.bf16.msra.mxu0 0
  %8945 = vmatprep.mubr.bf16.mxu0 0
  %8946 = vmatmul.mubr.bf16.gmra.mxu0 %v8683
  %v8947 = vpop.f32.mrf.mxu0
  %v8948 = vadd.f32 0.0, %v8947
  %v8949 = vpop.f32.mrf.mxu0
  %v8950 = vadd.f32 0.0, %v8949
  %v8951 = vpop.f32.mrf.mxu0
  %v8952 = vadd.f32 0.0, %v8951
  %v8953 = vpop.f32.mrf.mxu0
  %v8954 = vadd.f32 0.0, %v8953
  %8955 = vmatprep.mubr.bf16.mxu0 0
  %8956 = vmatmul.mubr.bf16.gmra.mxu0 %v8686
  %v8957 = vpop.f32.mrf.mxu0
  %v8958 = vadd.f32 0.0, %v8957
  %v8959 = vpop.f32.mrf.mxu0
  %v8960 = vadd.f32 0.0, %v8959
  %v8961 = vpop.f32.mrf.mxu0
  %v8962 = vadd.f32 0.0, %v8961
  %v8963 = vpop.f32.mrf.mxu0
  %v8964 = vadd.f32 0.0, %v8963
  %8965 = vmatprep.mubr.bf16.mxu0 0
  %8966 = vmatmul.mubr.bf16.gmra.mxu0 %v8689
  %v8967 = vpop.f32.mrf.mxu0
  %v8968 = vadd.f32 0.0, %v8967
  %v8969 = vpop.f32.mrf.mxu0
  %v8970 = vadd.f32 0.0, %v8969
  %v8971 = vpop.f32.mrf.mxu0
  %v8972 = vadd.f32 0.0, %v8971
  %v8973 = vpop.f32.mrf.mxu0
  %v8974 = vadd.f32 0.0, %v8973
  %8975 = vmatprep.mubr.bf16.mxu0 0
  %8976 = vmatmul.mubr.bf16.gmra.mxu0 %v8692
  %v8977 = vpop.f32.mrf.mxu0
  %v8978 = vadd.f32 0.0, %v8977
  %v8979 = vpop.f32.mrf.mxu0
  %v8980 = vadd.f32 0.0, %v8979
  %v8981 = vpop.f32.mrf.mxu0
  %v8982 = vadd.f32 0.0, %v8981
  %v8983 = vpop.f32.mrf.mxu0
  %v8984 = vadd.f32 0.0, %v8983
  %8985 = vdwg.mxu0
  %v8986 = vld [vmem:[%s9] sm:$0xff]
  %v8987 = vld [vmem:[%s9 + $0x8] sm:$0xff]
  %v8988 = vld [vmem:[%s9 + $0x10] sm:$0xff]
  %v8989 = vld [vmem:[%s9 + $0x18] sm:$0xff]
  %v8990 = vld [vmem:[%s9 + $0x20] sm:$0xff]
  %v8991 = vld [vmem:[%s9 + $0x28] sm:$0xff]
  %v8992 = vld [vmem:[%s9 + $0x30] sm:$0xff]
  %v8993 = vld [vmem:[%s9 + $0x38] sm:$0xff]
  %v8994 = vld [vmem:[%s9 + $0x40] sm:$0xff]
  %v8995 = vld [vmem:[%s9 + $0x48] sm:$0xff]
  %v8996 = vld [vmem:[%s9 + $0x50] sm:$0xff]
  %v8997 = vld [vmem:[%s9 + $0x58] sm:$0xff]
  %v8998 = vld [vmem:[%s9 + $0x60] sm:$0xff]
  %v8999 = vld [vmem:[%s9 + $0x68] sm:$0xff]
  %v9000 = vld [vmem:[%s9 + $0x70] sm:$0xff]
  %v9001 = vld [vmem:[%s9 + $0x78] sm:$0xff]
  %v9002 = vld [vmem:[%s9 + $0x80] sm:$0xff]
  %v9003 = vld [vmem:[%s9 + $0x88] sm:$0xff]
  %v9004 = vld [vmem:[%s9 + $0x90] sm:$0xff]
  %v9005 = vld [vmem:[%s9 + $0x98] sm:$0xff]
  %v9006 = vld [vmem:[%s9 + $0xa0] sm:$0xff]
  %v9007 = vld [vmem:[%s9 + $0xa8] sm:$0xff]
  %v9008 = vld [vmem:[%s9 + $0xb0] sm:$0xff]
  %v9009 = vld [vmem:[%s9 + $0xb8] sm:$0xff]
  %v9010 = vld [vmem:[%s9 + $0xc0] sm:$0xff]
  %v9011 = vld [vmem:[%s9 + $0xc8] sm:$0xff]
  %v9012 = vld [vmem:[%s9 + $0xd0] sm:$0xff]
  %v9013 = vld [vmem:[%s9 + $0xd8] sm:$0xff]
  %v9014 = vld [vmem:[%s9 + $0xe0] sm:$0xff]
  %v9015 = vld [vmem:[%s9 + $0xe8] sm:$0xff]
  %v9016 = vld [vmem:[%s9 + $0xf0] sm:$0xff]
  %v9017 = vld [vmem:[%s9 + $0xf8] sm:$0xff]
  %v9018 = vunpack.c.l.bf16 %v8986
  %v9019 = vunpack.c.h.bf16 %v8986
  %v9020 = vunpack.c.l.bf16 %v8987
  %v9021 = vunpack.c.h.bf16 %v8987
  %v9022 = vunpack.c.l.bf16 %v8988
  %v9023 = vunpack.c.h.bf16 %v8988
  %v9024 = vunpack.c.l.bf16 %v8989
  %v9025 = vunpack.c.h.bf16 %v8989
  %v9026 = vunpack.c.l.bf16 %v8990
  %v9027 = vunpack.c.h.bf16 %v8990
  %v9028 = vunpack.c.l.bf16 %v8991
  %v9029 = vunpack.c.h.bf16 %v8991
  %v9030 = vunpack.c.l.bf16 %v8992
  %v9031 = vunpack.c.h.bf16 %v8992
  %v9032 = vunpack.c.l.bf16 %v8993
  %v9033 = vunpack.c.h.bf16 %v8993
  %v9034 = vunpack.c.l.bf16 %v8994
  %v9035 = vunpack.c.h.bf16 %v8994
  %v9036 = vunpack.c.l.bf16 %v8995
  %v9037 = vunpack.c.h.bf16 %v8995
  %v9038 = vunpack.c.l.bf16 %v8996
  %v9039 = vunpack.c.h.bf16 %v8996
  %v9040 = vunpack.c.l.bf16 %v8997
  %v9041 = vunpack.c.h.bf16 %v8997
  %v9042 = vunpack.c.l.bf16 %v8998
  %v9043 = vunpack.c.h.bf16 %v8998
  %v9044 = vunpack.c.l.bf16 %v8999
  %v9045 = vunpack.c.h.bf16 %v8999
  %v9046 = vunpack.c.l.bf16 %v9000
  %v9047 = vunpack.c.h.bf16 %v9000
  %v9048 = vunpack.c.l.bf16 %v9001
  %v9049 = vunpack.c.h.bf16 %v9001
  %v9050 = vunpack.c.l.bf16 %v9002
  %v9051 = vunpack.c.h.bf16 %v9002
  %v9052 = vunpack.c.l.bf16 %v9003
  %v9053 = vunpack.c.h.bf16 %v9003
  %v9054 = vunpack.c.l.bf16 %v9004
  %v9055 = vunpack.c.h.bf16 %v9004
  %v9056 = vunpack.c.l.bf16 %v9005
  %v9057 = vunpack.c.h.bf16 %v9005
  %v9058 = vunpack.c.l.bf16 %v9006
  %v9059 = vunpack.c.h.bf16 %v9006
  %v9060 = vunpack.c.l.bf16 %v9007
  %v9061 = vunpack.c.h.bf16 %v9007
  %v9062 = vunpack.c.l.bf16 %v9008
  %v9063 = vunpack.c.h.bf16 %v9008
  %v9064 = vunpack.c.l.bf16 %v9009
  %v9065 = vunpack.c.h.bf16 %v9009
  %v9066 = vunpack.c.l.bf16 %v9010
  %v9067 = vunpack.c.h.bf16 %v9010
  %v9068 = vunpack.c.l.bf16 %v9011
  %v9069 = vunpack.c.h.bf16 %v9011
  %v9070 = vunpack.c.l.bf16 %v9012
  %v9071 = vunpack.c.h.bf16 %v9012
  %v9072 = vunpack.c.l.bf16 %v9013
  %v9073 = vunpack.c.h.bf16 %v9013
  %v9074 = vunpack.c.l.bf16 %v9014
  %v9075 = vunpack.c.h.bf16 %v9014
  %v9076 = vunpack.c.l.bf16 %v9015
  %v9077 = vunpack.c.h.bf16 %v9015
  %v9078 = vunpack.c.l.bf16 %v9016
  %v9079 = vunpack.c.h.bf16 %v9016
  %v9080 = vunpack.c.l.bf16 %v9017
  %v9081 = vunpack.c.h.bf16 %v9017
  %v9082 = vmul.f32 %v8729, %v9018
  %v9083 = vmul.f32 %v8731, %v9019
  %v9084 = vmul.f32 %v8802, %v9020
  %v9085 = vmul.f32 %v8804, %v9021
  %v9086 = vmul.f32 %v8875, %v9022
  %v9087 = vmul.f32 %v8877, %v9023
  %v9088 = vmul.f32 %v8948, %v9024
  %v9089 = vmul.f32 %v8950, %v9025
  %v9090 = vmul.f32 %v8733, %v9026
  %v9091 = vmul.f32 %v8735, %v9027
  %v9092 = vmul.f32 %v8806, %v9028
  %v9093 = vmul.f32 %v8808, %v9029
  %v9094 = vmul.f32 %v8879, %v9030
  %v9095 = vmul.f32 %v8881, %v9031
  %v9096 = vmul.f32 %v8952, %v9032
  %v9097 = vmul.f32 %v8954, %v9033
  %v9098 = vmul.f32 %v8739, %v9034
  %v9099 = vmul.f32 %v8741, %v9035
  %v9100 = vmul.f32 %v8812, %v9036
  %v9101 = vmul.f32 %v8814, %v9037
  %v9102 = vmul.f32 %v8885, %v9038
  %v9103 = vmul.f32 %v8887, %v9039
  %v9104 = vmul.f32 %v8958, %v9040
  %v9105 = vmul.f32 %v8960, %v9041
  %v9106 = vmul.f32 %v8743, %v9042
  %v9107 = vmul.f32 %v8745, %v9043
  %v9108 = vmul.f32 %v8816, %v9044
  %v9109 = vmul.f32 %v8818, %v9045
  %v9110 = vmul.f32 %v8889, %v9046
  %v9111 = vmul.f32 %v8891, %v9047
  %v9112 = vmul.f32 %v8962, %v9048
  %v9113 = vmul.f32 %v8964, %v9049
  %v9114 = vmul.f32 %v8749, %v9050
  %v9115 = vmul.f32 %v8751, %v9051
  %v9116 = vmul.f32 %v8822, %v9052
  %v9117 = vmul.f32 %v8824, %v9053
  %v9118 = vmul.f32 %v8895, %v9054
  %v9119 = vmul.f32 %v8897, %v9055
  %v9120 = vmul.f32 %v8968, %v9056
  %v9121 = vmul.f32 %v8970, %v9057
  %v9122 = vmul.f32 %v8753, %v9058
  %v9123 = vmul.f32 %v8755, %v9059
  %v9124 = vmul.f32 %v8826, %v9060
  %v9125 = vmul.f32 %v8828, %v9061
  %v9126 = vmul.f32 %v8899, %v9062
  %v9127 = vmul.f32 %v8901, %v9063
  %v9128 = vmul.f32 %v8972, %v9064
  %v9129 = vmul.f32 %v8974, %v9065
  %v9130 = vmul.f32 %v8759, %v9066
  %v9131 = vmul.f32 %v8761, %v9067
  %v9132 = vmul.f32 %v8832, %v9068
  %v9133 = vmul.f32 %v8834, %v9069
  %v9134 = vmul.f32 %v8905, %v9070
  %v9135 = vmul.f32 %v8907, %v9071
  %v9136 = vmul.f32 %v8978, %v9072
  %v9137 = vmul.f32 %v8980, %v9073
  %v9138 = vmul.f32 %v8763, %v9074
  %v9139 = vmul.f32 %v8765, %v9075
  %v9140 = vmul.f32 %v8836, %v9076
  %v9141 = vmul.f32 %v8838, %v9077
  %v9142 = vmul.f32 %v8909, %v9078
  %v9143 = vmul.f32 %v8911, %v9079
  %v9144 = vmul.f32 %v8982, %v9080
  %v9145 = vmul.f32 %v8984, %v9081
  %v9146 = vpack.c.bf16 %v9090, %v9082
  %v9147 = vpack.c.bf16 %v9091, %v9083
  %v9148 = vpack.c.bf16 %v9092, %v9084
  %v9149 = vpack.c.bf16 %v9093, %v9085
  %v9150 = vpack.c.bf16 %v9094, %v9086
  %v9151 = vpack.c.bf16 %v9095, %v9087
  %v9152 = vpack.c.bf16 %v9096, %v9088
  %v9153 = vpack.c.bf16 %v9097, %v9089
  %v9154 = vpack.c.bf16 %v9106, %v9098
  %v9155 = vpack.c.bf16 %v9107, %v9099
  %v9156 = vpack.c.bf16 %v9108, %v9100
  %v9157 = vpack.c.bf16 %v9109, %v9101
  %v9158 = vpack.c.bf16 %v9110, %v9102
  %v9159 = vpack.c.bf16 %v9111, %v9103
  %v9160 = vpack.c.bf16 %v9112, %v9104
  %v9161 = vpack.c.bf16 %v9113, %v9105
  %v9162 = vpack.c.bf16 %v9122, %v9114
  %v9163 = vpack.c.bf16 %v9123, %v9115
  %v9164 = vpack.c.bf16 %v9124, %v9116
  %v9165 = vpack.c.bf16 %v9125, %v9117
  %v9166 = vpack.c.bf16 %v9126, %v9118
  %v9167 = vpack.c.bf16 %v9127, %v9119
  %v9168 = vpack.c.bf16 %v9128, %v9120
  %v9169 = vpack.c.bf16 %v9129, %v9121
  %v9170 = vpack.c.bf16 %v9138, %v9130
  %v9171 = vpack.c.bf16 %v9139, %v9131
  %v9172 = vpack.c.bf16 %v9140, %v9132
  %v9173 = vpack.c.bf16 %v9141, %v9133
  %v9174 = vpack.c.bf16 %v9142, %v9134
  %v9175 = vpack.c.bf16 %v9143, %v9135
  %v9176 = vpack.c.bf16 %v9144, %v9136
  %v9177 = vpack.c.bf16 %v9145, %v9137
  %v9178 = vld [vmem:[%s10] sm:$0xf]
  %v9179 = vld [vmem:[%s10 + $0x4] sm:$0xf]
  %v9180 = vld [vmem:[%s10 + $0x8] sm:$0xf]
  %v9181 = vld [vmem:[%s10 + $0xc] sm:$0xf]
  %v9182 = vld [vmem:[%s10 + $0x10] sm:$0xf]
  %v9183 = vld [vmem:[%s10 + $0x14] sm:$0xf]
  %v9184 = vld [vmem:[%s10 + $0x18] sm:$0xf]
  %v9185 = vld [vmem:[%s10 + $0x1c] sm:$0xf]
  %v9186 = vld [vmem:[%s10 + $0x20] sm:$0xf]
  %v9187 = vld [vmem:[%s10 + $0x24] sm:$0xf]
  %v9188 = vld [vmem:[%s10 + $0x28] sm:$0xf]
  %v9189 = vld [vmem:[%s10 + $0x2c] sm:$0xf]
  %v9190 = vld [vmem:[%s10 + $0x30] sm:$0xf]
  %v9191 = vld [vmem:[%s10 + $0x34] sm:$0xf]
  %v9192 = vld [vmem:[%s10 + $0x38] sm:$0xf]
  %v9193 = vld [vmem:[%s10 + $0x3c] sm:$0xf]
  %v9194 = vld [vmem:[%s10 + $0x40] sm:$0xf]
  %v9195 = vld [vmem:[%s10 + $0x44] sm:$0xf]
  %v9196 = vld [vmem:[%s10 + $0x48] sm:$0xf]
  %v9197 = vld [vmem:[%s10 + $0x4c] sm:$0xf]
  %v9198 = vld [vmem:[%s10 + $0x50] sm:$0xf]
  %v9199 = vld [vmem:[%s10 + $0x54] sm:$0xf]
  %v9200 = vld [vmem:[%s10 + $0x58] sm:$0xf]
  %v9201 = vld [vmem:[%s10 + $0x5c] sm:$0xf]
  %v9202 = vld [vmem:[%s10 + $0x60] sm:$0xf]
  %v9203 = vld [vmem:[%s10 + $0x64] sm:$0xf]
  %v9204 = vld [vmem:[%s10 + $0x68] sm:$0xf]
  %v9205 = vld [vmem:[%s10 + $0x6c] sm:$0xf]
  %v9206 = vld [vmem:[%s10 + $0x70] sm:$0xf]
  %v9207 = vld [vmem:[%s10 + $0x74] sm:$0xf]
  %v9208 = vld [vmem:[%s10 + $0x78] sm:$0xf]
  %v9209 = vld [vmem:[%s10 + $0x7c] sm:$0xf]
  %v9210 = vld [vmem:[%s10 + $0x80] sm:$0xf]
  %v9211 = vld [vmem:[%s10 + $0x84] sm:$0xf]
  %v9212 = vld [vmem:[%s10 + $0x88] sm:$0xf]
  %v9213 = vld [vmem:[%s10 + $0x8c] sm:$0xf]
  %v9214 = vld [vmem:[%s10 + $0x90] sm:$0xf]
  %v9215 = vld [vmem:[%s10 + $0x94] sm:$0xf]
  %v9216 = vld [vmem:[%s10 + $0x98] sm:$0xf]
  %v9217 = vld [vmem:[%s10 + $0x9c] sm:$0xf]
  %v9218 = vld [vmem:[%s10 + $0xa0] sm:$0xf]
  %v9219 = vld [vmem:[%s10 + $0xa4] sm:$0xf]
  %v9220 = vld [vmem:[%s10 + $0xa8] sm:$0xf]
  %v9221 = vld [vmem:[%s10 + $0xac] sm:$0xf]
  %v9222 = vld [vmem:[%s10 + $0xb0] sm:$0xf]
  %v9223 = vld [vmem:[%s10 + $0xb4] sm:$0xf]
  %v9224 = vld [vmem:[%s10 + $0xb8] sm:$0xf]
  %v9225 = vld [vmem:[%s10 + $0xbc] sm:$0xf]
  %v9226 = vld [vmem:[%s10 + $0xc0] sm:$0xf]
  %v9227 = vld [vmem:[%s10 + $0xc4] sm:$0xf]
  %v9228 = vld [vmem:[%s10 + $0xc8] sm:$0xf]
  %v9229 = vld [vmem:[%s10 + $0xcc] sm:$0xf]
  %v9230 = vld [vmem:[%s10 + $0xd0] sm:$0xf]
  %v9231 = vld [vmem:[%s10 + $0xd4] sm:$0xf]
  %v9232 = vld [vmem:[%s10 + $0xd8] sm:$0xf]
  %v9233 = vld [vmem:[%s10 + $0xdc] sm:$0xf]
  %v9234 = vld [vmem:[%s10 + $0xe0] sm:$0xf]
  %v9235 = vld [vmem:[%s10 + $0xe4] sm:$0xf]
  %v9236 = vld [vmem:[%s10 + $0xe8] sm:$0xf]
  %v9237 = vld [vmem:[%s10 + $0xec] sm:$0xf]
  %v9238 = vld [vmem:[%s10 + $0xf0] sm:$0xf]
  %v9239 = vld [vmem:[%s10 + $0xf4] sm:$0xf]
  %v9240 = vld [vmem:[%s10 + $0xf8] sm:$0xf]
  %v9241 = vld [vmem:[%s10 + $0xfc] sm:$0xf]
  %v9242 = vld [vmem:[%s10 + $0x100] sm:$0xf]
  %v9243 = vld [vmem:[%s10 + $0x104] sm:$0xf]
  %v9244 = vld [vmem:[%s10 + $0x108] sm:$0xf]
  %v9245 = vld [vmem:[%s10 + $0x10c] sm:$0xf]
  %v9246 = vld [vmem:[%s10 + $0x110] sm:$0xf]
  %v9247 = vld [vmem:[%s10 + $0x114] sm:$0xf]
  %v9248 = vld [vmem:[%s10 + $0x118] sm:$0xf]
  %v9249 = vld [vmem:[%s10 + $0x11c] sm:$0xf]
  %v9250 = vld [vmem:[%s10 + $0x120] sm:$0xf]
  %v9251 = vld [vmem:[%s10 + $0x124] sm:$0xf]
  %v9252 = vld [vmem:[%s10 + $0x128] sm:$0xf]
  %v9253 = vld [vmem:[%s10 + $0x12c] sm:$0xf]
  %v9254 = vld [vmem:[%s10 + $0x130] sm:$0xf]
  %v9255 = vld [vmem:[%s10 + $0x134] sm:$0xf]
  %v9256 = vld [vmem:[%s10 + $0x138] sm:$0xf]
  %v9257 = vld [vmem:[%s10 + $0x13c] sm:$0xf]
  %v9258 = vld [vmem:[%s10 + $0x140] sm:$0xf]
  %v9259 = vld [vmem:[%s10 + $0x144] sm:$0xf]
  %v9260 = vld [vmem:[%s10 + $0x148] sm:$0xf]
  %v9261 = vld [vmem:[%s10 + $0x14c] sm:$0xf]
  %v9262 = vld [vmem:[%s10 + $0x150] sm:$0xf]
  %v9263 = vld [vmem:[%s10 + $0x154] sm:$0xf]
  %v9264 = vld [vmem:[%s10 + $0x158] sm:$0xf]
  %v9265 = vld [vmem:[%s10 + $0x15c] sm:$0xf]
  %v9266 = vld [vmem:[%s10 + $0x160] sm:$0xf]
  %v9267 = vld [vmem:[%s10 + $0x164] sm:$0xf]
  %v9268 = vld [vmem:[%s10 + $0x168] sm:$0xf]
  %v9269 = vld [vmem:[%s10 + $0x16c] sm:$0xf]
  %v9270 = vld [vmem:[%s10 + $0x170] sm:$0xf]
  %v9271 = vld [vmem:[%s10 + $0x174] sm:$0xf]
  %v9272 = vld [vmem:[%s10 + $0x178] sm:$0xf]
  %v9273 = vld [vmem:[%s10 + $0x17c] sm:$0xf]
  %v9274 = vld [vmem:[%s10 + $0x180] sm:$0xf]
  %v9275 = vld [vmem:[%s10 + $0x184] sm:$0xf]
  %v9276 = vld [vmem:[%s10 + $0x188] sm:$0xf]
  %v9277 = vld [vmem:[%s10 + $0x18c] sm:$0xf]
  %v9278 = vld [vmem:[%s10 + $0x190] sm:$0xf]
  %v9279 = vld [vmem:[%s10 + $0x194] sm:$0xf]
  %v9280 = vld [vmem:[%s10 + $0x198] sm:$0xf]
  %v9281 = vld [vmem:[%s10 + $0x19c] sm:$0xf]
  %v9282 = vld [vmem:[%s10 + $0x1a0] sm:$0xf]
  %v9283 = vld [vmem:[%s10 + $0x1a4] sm:$0xf]
  %v9284 = vld [vmem:[%s10 + $0x1a8] sm:$0xf]
  %v9285 = vld [vmem:[%s10 + $0x1ac] sm:$0xf]
  %v9286 = vld [vmem:[%s10 + $0x1b0] sm:$0xf]
  %v9287 = vld [vmem:[%s10 + $0x1b4] sm:$0xf]
  %v9288 = vld [vmem:[%s10 + $0x1b8] sm:$0xf]
  %v9289 = vld [vmem:[%s10 + $0x1bc] sm:$0xf]
  %v9290 = vld [vmem:[%s10 + $0x1c0] sm:$0xf]
  %v9291 = vld [vmem:[%s10 + $0x1c4] sm:$0xf]
  %v9292 = vld [vmem:[%s10 + $0x1c8] sm:$0xf]
  %v9293 = vld [vmem:[%s10 + $0x1cc] sm:$0xf]
  %v9294 = vld [vmem:[%s10 + $0x1d0] sm:$0xf]
  %v9295 = vld [vmem:[%s10 + $0x1d4] sm:$0xf]
  %v9296 = vld [vmem:[%s10 + $0x1d8] sm:$0xf]
  %v9297 = vld [vmem:[%s10 + $0x1dc] sm:$0xf]
  %v9298 = vld [vmem:[%s10 + $0x1e0] sm:$0xf]
  %v9299 = vld [vmem:[%s10 + $0x1e4] sm:$0xf]
  %v9300 = vld [vmem:[%s10 + $0x1e8] sm:$0xf]
  %v9301 = vld [vmem:[%s10 + $0x1ec] sm:$0xf]
  %v9302 = vld [vmem:[%s10 + $0x1f0] sm:$0xf]
  %v9303 = vld [vmem:[%s10 + $0x1f4] sm:$0xf]
  %v9304 = vld [vmem:[%s10 + $0x1f8] sm:$0xf]
  %v9305 = vld [vmem:[%s10 + $0x1fc] sm:$0xf]
  %v9434 = vunpack.c.l.b16 %v9178
  %v9435 = vunpack.c.l.b16 %v9179
  %v9436 = vunpack.c.l.b16 %v9180
  %v9437 = vunpack.c.l.b16 %v9181
  %v9438 = vunpack.c.l.b16 %v9182
  %v9439 = vunpack.c.l.b16 %v9183
  %v9440 = vunpack.c.l.b16 %v9184
  %v9441 = vunpack.c.l.b16 %v9185
  %v9442 = vunpack.c.l.b16 %v9186
  %v9443 = vunpack.c.l.b16 %v9187
  %v9444 = vunpack.c.l.b16 %v9188
  %v9445 = vunpack.c.l.b16 %v9189
  %v9446 = vunpack.c.l.b16 %v9190
  %v9447 = vunpack.c.l.b16 %v9191
  %v9448 = vunpack.c.l.b16 %v9192
  %v9449 = vunpack.c.l.b16 %v9193
  %v9450 = vunpack.c.l.b16 %v9194
  %v9451 = vunpack.c.l.b16 %v9195
  %v9452 = vunpack.c.l.b16 %v9196
  %v9453 = vunpack.c.l.b16 %v9197
  %v9454 = vunpack.c.l.b16 %v9198
  %v9455 = vunpack.c.l.b16 %v9199
  %v9456 = vunpack.c.l.b16 %v9200
  %v9457 = vunpack.c.l.b16 %v9201
  %v9458 = vunpack.c.l.b16 %v9202
  %v9459 = vunpack.c.l.b16 %v9203
  %v9460 = vunpack.c.l.b16 %v9204
  %v9461 = vunpack.c.l.b16 %v9205
  %v9462 = vunpack.c.l.b16 %v9206
  %v9463 = vunpack.c.l.b16 %v9207
  %v9464 = vunpack.c.l.b16 %v9208
  %v9465 = vunpack.c.l.b16 %v9209
  %v9466 = vunpack.c.l.b16 %v9210
  %v9467 = vunpack.c.l.b16 %v9211
  %v9468 = vunpack.c.l.b16 %v9212
  %v9469 = vunpack.c.l.b16 %v9213
  %v9470 = vunpack.c.l.b16 %v9214
  %v9471 = vunpack.c.l.b16 %v9215
  %v9472 = vunpack.c.l.b16 %v9216
  %v9473 = vunpack.c.l.b16 %v9217
  %v9474 = vunpack.c.l.b16 %v9218
  %v9475 = vunpack.c.l.b16 %v9219
  %v9476 = vunpack.c.l.b16 %v9220
  %v9477 = vunpack.c.l.b16 %v9221
  %v9478 = vunpack.c.l.b16 %v9222
  %v9479 = vunpack.c.l.b16 %v9223
  %v9480 = vunpack.c.l.b16 %v9224
  %v9481 = vunpack.c.l.b16 %v9225
  %v9482 = vunpack.c.l.b16 %v9226
  %v9483 = vunpack.c.l.b16 %v9227
  %v9484 = vunpack.c.l.b16 %v9228
  %v9485 = vunpack.c.l.b16 %v9229
  %v9486 = vunpack.c.l.b16 %v9230
  %v9487 = vunpack.c.l.b16 %v9231
  %v9488 = vunpack.c.l.b16 %v9232
  %v9489 = vunpack.c.l.b16 %v9233
  %v9490 = vunpack.c.l.b16 %v9234
  %v9491 = vunpack.c.l.b16 %v9235
  %v9492 = vunpack.c.l.b16 %v9236
  %v9493 = vunpack.c.l.b16 %v9237
  %v9494 = vunpack.c.l.b16 %v9238
  %v9495 = vunpack.c.l.b16 %v9239
  %v9496 = vunpack.c.l.b16 %v9240
  %v9497 = vunpack.c.l.b16 %v9241
  %v9498 = vunpack.c.l.b16 %v9242
  %v9499 = vunpack.c.l.b16 %v9243
  %v9500 = vunpack.c.l.b16 %v9244
  %v9501 = vunpack.c.l.b16 %v9245
  %v9502 = vunpack.c.l.b16 %v9246
  %v9503 = vunpack.c.l.b16 %v9247
  %v9504 = vunpack.c.l.b16 %v9248
  %v9505 = vunpack.c.l.b16 %v9249
  %v9506 = vunpack.c.l.b16 %v9250
  %v9507 = vunpack.c.l.b16 %v9251
  %v9508 = vunpack.c.l.b16 %v9252
  %v9509 = vunpack.c.l.b16 %v9253
  %v9510 = vunpack.c.l.b16 %v9254
  %v9511 = vunpack.c.l.b16 %v9255
  %v9512 = vunpack.c.l.b16 %v9256
  %v9513 = vunpack.c.l.b16 %v9257
  %v9514 = vunpack.c.l.b16 %v9258
  %v9515 = vunpack.c.l.b16 %v9259
  %v9516 = vunpack.c.l.b16 %v9260
  %v9517 = vunpack.c.l.b16 %v9261
  %v9518 = vunpack.c.l.b16 %v9262
  %v9519 = vunpack.c.l.b16 %v9263
  %v9520 = vunpack.c.l.b16 %v9264
  %v9521 = vunpack.c.l.b16 %v9265
  %v9522 = vunpack.c.l.b16 %v9266
  %v9523 = vunpack.c.l.b16 %v9267
  %v9524 = vunpack.c.l.b16 %v9268
  %v9525 = vunpack.c.l.b16 %v9269
  %v9526 = vunpack.c.l.b16 %v9270
  %v9527 = vunpack.c.l.b16 %v9271
  %v9528 = vunpack.c.l.b16 %v9272
  %v9529 = vunpack.c.l.b16 %v9273
  %v9530 = vunpack.c.l.b16 %v9274
  %v9531 = vunpack.c.l.b16 %v9275
  %v9532 = vunpack.c.l.b16 %v9276
  %v9533 = vunpack.c.l.b16 %v9277
  %v9534 = vunpack.c.l.b16 %v9278
  %v9535 = vunpack.c.l.b16 %v9279
  %v9536 = vunpack.c.l.b16 %v9280
  %v9537 = vunpack.c.l.b16 %v9281
  %v9538 = vunpack.c.l.b16 %v9282
  %v9539 = vunpack.c.l.b16 %v9283
  %v9540 = vunpack.c.l.b16 %v9284
  %v9541 = vunpack.c.l.b16 %v9285
  %v9542 = vunpack.c.l.b16 %v9286
  %v9543 = vunpack.c.l.b16 %v9287
  %v9544 = vunpack.c.l.b16 %v9288
  %v9545 = vunpack.c.l.b16 %v9289
  %v9546 = vunpack.c.l.b16 %v9290
  %v9547 = vunpack.c.l.b16 %v9291
  %v9548 = vunpack.c.l.b16 %v9292
  %v9549 = vunpack.c.l.b16 %v9293
  %v9550 = vunpack.c.l.b16 %v9294
  %v9551 = vunpack.c.l.b16 %v9295
  %v9552 = vunpack.c.l.b16 %v9296
  %v9553 = vunpack.c.l.b16 %v9297
  %v9554 = vunpack.c.l.b16 %v9298
  %v9555 = vunpack.c.l.b16 %v9299
  %v9556 = vunpack.c.l.b16 %v9300
  %v9557 = vunpack.c.l.b16 %v9301
  %v9558 = vunpack.c.l.b16 %v9302
  %v9559 = vunpack.c.l.b16 %v9303
  %v9560 = vunpack.c.l.b16 %v9304
  %v9561 = vunpack.c.l.b16 %v9305
  %v9562 = vpack.c.b16 %v9435, %v9434
  %v9563 = vpack.c.b16 %v9437, %v9436
  %v9564 = vpack.c.b16 %v9439, %v9438
  %v9565 = vpack.c.b16 %v9441, %v9440
  %v9566 = vpack.c.b16 %v9443, %v9442
  %v9567 = vpack.c.b16 %v9445, %v9444
  %v9568 = vpack.c.b16 %v9447, %v9446
  %v9569 = vpack.c.b16 %v9449, %v9448
  %v9570 = vpack.c.b16 %v9451, %v9450
  %v9571 = vpack.c.b16 %v9453, %v9452
  %v9572 = vpack.c.b16 %v9455, %v9454
  %v9573 = vpack.c.b16 %v9457, %v9456
  %v9574 = vpack.c.b16 %v9459, %v9458
  %v9575 = vpack.c.b16 %v9461, %v9460
  %v9576 = vpack.c.b16 %v9463, %v9462
  %v9577 = vpack.c.b16 %v9465, %v9464
  %v9578 = vpack.c.b16 %v9467, %v9466
  %v9579 = vpack.c.b16 %v9469, %v9468
  %v9580 = vpack.c.b16 %v9471, %v9470
  %v9581 = vpack.c.b16 %v9473, %v9472
  %v9582 = vpack.c.b16 %v9475, %v9474
  %v9583 = vpack.c.b16 %v9477, %v9476
  %v9584 = vpack.c.b16 %v9479, %v9478
  %v9585 = vpack.c.b16 %v9481, %v9480
  %v9586 = vpack.c.b16 %v9483, %v9482
  %v9587 = vpack.c.b16 %v9485, %v9484
  %v9588 = vpack.c.b16 %v9487, %v9486
  %v9589 = vpack.c.b16 %v9489, %v9488
  %v9590 = vpack.c.b16 %v9491, %v9490
  %v9591 = vpack.c.b16 %v9493, %v9492
  %v9592 = vpack.c.b16 %v9495, %v9494
  %v9593 = vpack.c.b16 %v9497, %v9496
  %v9594 = vpack.c.b16 %v9499, %v9498
  %v9595 = vpack.c.b16 %v9501, %v9500
  %v9596 = vpack.c.b16 %v9503, %v9502
  %v9597 = vpack.c.b16 %v9505, %v9504
  %v9598 = vpack.c.b16 %v9507, %v9506
  %v9599 = vpack.c.b16 %v9509, %v9508
  %v9600 = vpack.c.b16 %v9511, %v9510
  %v9601 = vpack.c.b16 %v9513, %v9512
  %v9602 = vpack.c.b16 %v9515, %v9514
  %v9603 = vpack.c.b16 %v9517, %v9516
  %v9604 = vpack.c.b16 %v9519, %v9518
  %v9605 = vpack.c.b16 %v9521, %v9520
  %v9606 = vpack.c.b16 %v9523, %v9522
  %v9607 = vpack.c.b16 %v9525, %v9524
  %v9608 = vpack.c.b16 %v9527, %v9526
  %v9609 = vpack.c.b16 %v9529, %v9528
  %v9610 = vpack.c.b16 %v9531, %v9530
  %v9611 = vpack.c.b16 %v9533, %v9532
  %v9612 = vpack.c.b16 %v9535, %v9534
  %v9613 = vpack.c.b16 %v9537, %v9536
  %v9614 = vpack.c.b16 %v9539, %v9538
  %v9615 = vpack.c.b16 %v9541, %v9540
  %v9616 = vpack.c.b16 %v9543, %v9542
  %v9617 = vpack.c.b16 %v9545, %v9544
  %v9618 = vpack.c.b16 %v9547, %v9546
  %v9619 = vpack.c.b16 %v9549, %v9548
  %v9620 = vpack.c.b16 %v9551, %v9550
  %v9621 = vpack.c.b16 %v9553, %v9552
  %v9622 = vpack.c.b16 %v9555, %v9554
  %v9623 = vpack.c.b16 %v9557, %v9556
  %v9624 = vpack.c.b16 %v9559, %v9558
  %v9625 = vpack.c.b16 %v9561, %v9560
  %9690 = vmatprep.subr.bf16.mxu0 0
  %9691 = vmatpush1.bf16.msra.mxu0 %v9569
  %9692 = vmatprep.subr.bf16.mxu0 0
  %9693 = vmatpush1.bf16.msra.mxu0 %v9568
  %9694 = vmatprep.subr.bf16.mxu0 0
  %9695 = vmatpush1.bf16.msra.mxu0 %v9567
  %9696 = vmatprep.subr.bf16.mxu0 0
  %9697 = vmatpush1.bf16.msra.mxu0 %v9566
  %9698 = vmatprep.subr.bf16.mxu0 0
  %9699 = vmatpush1.bf16.msra.mxu0 %v9565
  %9700 = vmatprep.subr.bf16.mxu0 0
  %9701 = vmatpush1.bf16.msra.mxu0 %v9564
  %9702 = vmatprep.subr.bf16.mxu0 0
  %9703 = vmatpush1.bf16.msra.mxu0 %v9563
  %9704 = vmatprep.subr.bf16.mxu0 0
  %9705 = vmatpush1.bf16.msra.mxu0 %v9562
  %9706 = vmatprep.subr.bf16.mxu0 0
  %9707 = vmatpush2.bf16.msra.mxu0 %v9577
  %9708 = vmatprep.subr.bf16.mxu0 0
  %9709 = vmatpush2.bf16.msra.mxu0 %v9576
  %9710 = vmatprep.subr.bf16.mxu0 0
  %9711 = vmatpush2.bf16.msra.mxu0 %v9575
  %9712 = vmatprep.subr.bf16.mxu0 0
  %9713 = vmatpush2.bf16.msra.mxu0 %v9574
  %9714 = vmatprep.subr.bf16.mxu0 0
  %9715 = vmatpush2.bf16.msra.mxu0 %v9573
  %9716 = vmatprep.subr.bf16.mxu0 0
  %9717 = vmatpush2.bf16.msra.mxu0 %v9572
  %9718 = vmatprep.subr.bf16.mxu0 0
  %9719 = vmatpush2.bf16.msra.mxu0 %v9571
  %9720 = vmatprep.subr.bf16.mxu0 0
  %9721 = vmatpush2.bf16.msra.mxu0 %v9570
  %9722 = vmatprep.mubr.bf16.mxu0 %v9147
  %9723 = vmatmul.mubr.bf16.gmra.mxu0 %v9146
  %v9724 = vpop.f32.mrf.mxu0
  %v9725 = vadd.f32 0.0, %v9724
  %v9726 = vpop.f32.mrf.mxu0
  %v9727 = vpop.f32.mrf.mxu0
  %v9728 = vadd.f32 0.0, %v9727
  %v9729 = vpop.f32.mrf.mxu0
  %9730 = vmatprep.mubr.bf16.mxu0 %v9155
  %9731 = vmatmul.mubr.bf16.gmra.mxu0 %v9154
  %v9732 = vpop.f32.mrf.mxu0
  %v9733 = vadd.f32 0.0, %v9732
  %v9734 = vpop.f32.mrf.mxu0
  %v9735 = vpop.f32.mrf.mxu0
  %v9736 = vadd.f32 0.0, %v9735
  %v9737 = vpop.f32.mrf.mxu0
  %9738 = vmatprep.mubr.bf16.mxu0 %v9163
  %9739 = vmatmul.mubr.bf16.gmra.mxu0 %v9162
  %v9740 = vpop.f32.mrf.mxu0
  %v9741 = vadd.f32 0.0, %v9740
  %v9742 = vpop.f32.mrf.mxu0
  %v9743 = vpop.f32.mrf.mxu0
  %v9744 = vadd.f32 0.0, %v9743
  %v9745 = vpop.f32.mrf.mxu0
  %9746 = vmatprep.mubr.bf16.mxu0 %v9171
  %9747 = vmatmul.mubr.bf16.gmra.mxu0 %v9170
  %v9748 = vpop.f32.mrf.mxu0
  %v9749 = vadd.f32 0.0, %v9748
  %v9750 = vpop.f32.mrf.mxu0
  %v9751 = vpop.f32.mrf.mxu0
  %v9752 = vadd.f32 0.0, %v9751
  %v9753 = vpop.f32.mrf.mxu0
  %9754 = vdwg.mxu0
  %9755 = vmatprep.subr.bf16.mxu0 0
  %9756 = vmatpush1.bf16.msra.mxu0 %v9585
  %9757 = vmatprep.subr.bf16.mxu0 0
  %9758 = vmatpush1.bf16.msra.mxu0 %v9584
  %9759 = vmatprep.subr.bf16.mxu0 0
  %9760 = vmatpush1.bf16.msra.mxu0 %v9583
  %9761 = vmatprep.subr.bf16.mxu0 0
  %9762 = vmatpush1.bf16.msra.mxu0 %v9582
  %9763 = vmatprep.subr.bf16.mxu0 0
  %9764 = vmatpush1.bf16.msra.mxu0 %v9581
  %9765 = vmatprep.subr.bf16.mxu0 0
  %9766 = vmatpush1.bf16.msra.mxu0 %v9580
  %9767 = vmatprep.subr.bf16.mxu0 0
  %9768 = vmatpush1.bf16.msra.mxu0 %v9579
  %9769 = vmatprep.subr.bf16.mxu0 0
  %9770 = vmatpush1.bf16.msra.mxu0 %v9578
  %9771 = vmatprep.subr.bf16.mxu0 0
  %9772 = vmatpush2.bf16.msra.mxu0 %v9593
  %9773 = vmatprep.subr.bf16.mxu0 0
  %9774 = vmatpush2.bf16.msra.mxu0 %v9592
  %9775 = vmatprep.subr.bf16.mxu0 0
  %9776 = vmatpush2.bf16.msra.mxu0 %v9591
  %9777 = vmatprep.subr.bf16.mxu0 0
  %9778 = vmatpush2.bf16.msra.mxu0 %v9590
  %9779 = vmatprep.subr.bf16.mxu0 0
  %9780 = vmatpush2.bf16.msra.mxu0 %v9589
  %9781 = vmatprep.subr.bf16.mxu0 0
  %9782 = vmatpush2.bf16.msra.mxu0 %v9588
  %9783 = vmatprep.subr.bf16.mxu0 0
  %9784 = vmatpush2.bf16.msra.mxu0 %v9587
  %9785 = vmatprep.subr.bf16.mxu0 0
  %9786 = vmatpush2.bf16.msra.mxu0 %v9586
  %9787 = vmatprep.mubr.bf16.mxu0 %v9149
  %9788 = vmatmul.mubr.bf16.gmra.mxu0 %v9148
  %v9789 = vpop.f32.mrf.mxu0
  %v9790 = vadd.f32 %v9725, %v9789
  %v9791 = vpop.f32.mrf.mxu0
  %v9792 = vpop.f32.mrf.mxu0
  %v9793 = vadd.f32 %v9728, %v9792
  %v9794 = vpop.f32.mrf.mxu0
  %9795 = vmatprep.mubr.bf16.mxu0 %v9157
  %9796 = vmatmul.mubr.bf16.gmra.mxu0 %v9156
  %v9797 = vpop.f32.mrf.mxu0
  %v9798 = vadd.f32 %v9733, %v9797
  %v9799 = vpop.f32.mrf.mxu0
  %v9800 = vpop.f32.mrf.mxu0
  %v9801 = vadd.f32 %v9736, %v9800
  %v9802 = vpop.f32.mrf.mxu0
  %9803 = vmatprep.mubr.bf16.mxu0 %v9165
  %9804 = vmatmul.mubr.bf16.gmra.mxu0 %v9164
  %v9805 = vpop.f32.mrf.mxu0
  %v9806 = vadd.f32 %v9741, %v9805
  %v9807 = vpop.f32.mrf.mxu0
  %v9808 = vpop.f32.mrf.mxu0
  %v9809 = vadd.f32 %v9744, %v9808
  %v9810 = vpop.f32.mrf.mxu0
  %9811 = vmatprep.mubr.bf16.mxu0 %v9173
  %9812 = vmatmul.mubr.bf16.gmra.mxu0 %v9172
  %v9813 = vpop.f32.mrf.mxu0
  %v9814 = vadd.f32 %v9749, %v9813
  %v9815 = vpop.f32.mrf.mxu0
  %v9816 = vpop.f32.mrf.mxu0
  %v9817 = vadd.f32 %v9752, %v9816
  %v9818 = vpop.f32.mrf.mxu0
  %9819 = vdwg.mxu0
  %9820 = vmatprep.subr.bf16.mxu0 0
  %9821 = vmatpush1.bf16.msra.mxu0 %v9601
  %9822 = vmatprep.subr.bf16.mxu0 0
  %9823 = vmatpush1.bf16.msra.mxu0 %v9600
  %9824 = vmatprep.subr.bf16.mxu0 0
  %9825 = vmatpush1.bf16.msra.mxu0 %v9599
  %9826 = vmatprep.subr.bf16.mxu0 0
  %9827 = vmatpush1.bf16.msra.mxu0 %v9598
  %9828 = vmatprep.subr.bf16.mxu0 0
  %9829 = vmatpush1.bf16.msra.mxu0 %v9597
  %9830 = vmatprep.subr.bf16.mxu0 0
  %9831 = vmatpush1.bf16.msra.mxu0 %v9596
  %9832 = vmatprep.subr.bf16.mxu0 0
  %9833 = vmatpush1.bf16.msra.mxu0 %v9595
  %9834 = vmatprep.subr.bf16.mxu0 0
  %9835 = vmatpush1.bf16.msra.mxu0 %v9594
  %9836 = vmatprep.subr.bf16.mxu0 0
  %9837 = vmatpush2.bf16.msra.mxu0 %v9609
  %9838 = vmatprep.subr.bf16.mxu0 0
  %9839 = vmatpush2.bf16.msra.mxu0 %v9608
  %9840 = vmatprep.subr.bf16.mxu0 0
  %9841 = vmatpush2.bf16.msra.mxu0 %v9607
  %9842 = vmatprep.subr.bf16.mxu0 0
  %9843 = vmatpush2.bf16.msra.mxu0 %v9606
  %9844 = vmatprep.subr.bf16.mxu0 0
  %9845 = vmatpush2.bf16.msra.mxu0 %v9605
  %9846 = vmatprep.subr.bf16.mxu0 0
  %9847 = vmatpush2.bf16.msra.mxu0 %v9604
  %9848 = vmatprep.subr.bf16.mxu0 0
  %9849 = vmatpush2.bf16.msra.mxu0 %v9603
  %9850 = vmatprep.subr.bf16.mxu0 0
  %9851 = vmatpush2.bf16.msra.mxu0 %v9602
  %9852 = vmatprep.mubr.bf16.mxu0 %v9151
  %9853 = vmatmul.mubr.bf16.gmra.mxu0 %v9150
  %v9854 = vpop.f32.mrf.mxu0
  %v9855 = vadd.f32 %v9790, %v9854
  %v9856 = vpop.f32.mrf.mxu0
  %v9857 = vpop.f32.mrf.mxu0
  %v9858 = vadd.f32 %v9793, %v9857
  %v9859 = vpop.f32.mrf.mxu0
  %9860 = vmatprep.mubr.bf16.mxu0 %v9159
  %9861 = vmatmul.mubr.bf16.gmra.mxu0 %v9158
  %v9862 = vpop.f32.mrf.mxu0
  %v9863 = vadd.f32 %v9798, %v9862
  %v9864 = vpop.f32.mrf.mxu0
  %v9865 = vpop.f32.mrf.mxu0
  %v9866 = vadd.f32 %v9801, %v9865
  %v9867 = vpop.f32.mrf.mxu0
  %9868 = vmatprep.mubr.bf16.mxu0 %v9167
  %9869 = vmatmul.mubr.bf16.gmra.mxu0 %v9166
  %v9870 = vpop.f32.mrf.mxu0
  %v9871 = vadd.f32 %v9806, %v9870
  %v9872 = vpop.f32.mrf.mxu0
  %v9873 = vpop.f32.mrf.mxu0
  %v9874 = vadd.f32 %v9809, %v9873
  %v9875 = vpop.f32.mrf.mxu0
  %9876 = vmatprep.mubr.bf16.mxu0 %v9175
  %9877 = vmatmul.mubr.bf16.gmra.mxu0 %v9174
  %v9878 = vpop.f32.mrf.mxu0
  %v9879 = vadd.f32 %v9814, %v9878
  %v9880 = vpop.f32.mrf.mxu0
  %v9881 = vpop.f32.mrf.mxu0
  %v9882 = vadd.f32 %v9817, %v9881
  %v9883 = vpop.f32.mrf.mxu0
  %9884 = vdwg.mxu0
  %9885 = vmatprep.subr.bf16.mxu0 0
  %9886 = vmatpush1.bf16.msra.mxu0 %v9617
  %9887 = vmatprep.subr.bf16.mxu0 0
  %9888 = vmatpush1.bf16.msra.mxu0 %v9616
  %9889 = vmatprep.subr.bf16.mxu0 0
  %9890 = vmatpush1.bf16.msra.mxu0 %v9615
  %9891 = vmatprep.subr.bf16.mxu0 0
  %9892 = vmatpush1.bf16.msra.mxu0 %v9614
  %9893 = vmatprep.subr.bf16.mxu0 0
  %9894 = vmatpush1.bf16.msra.mxu0 %v9613
  %9895 = vmatprep.subr.bf16.mxu0 0
  %9896 = vmatpush1.bf16.msra.mxu0 %v9612
  %9897 = vmatprep.subr.bf16.mxu0 0
  %9898 = vmatpush1.bf16.msra.mxu0 %v9611
  %9899 = vmatprep.subr.bf16.mxu0 0
  %9900 = vmatpush1.bf16.msra.mxu0 %v9610
  %9901 = vmatprep.subr.bf16.mxu0 0
  %9902 = vmatpush2.bf16.msra.mxu0 %v9625
  %9903 = vmatprep.subr.bf16.mxu0 0
  %9904 = vmatpush2.bf16.msra.mxu0 %v9624
  %9905 = vmatprep.subr.bf16.mxu0 0
  %9906 = vmatpush2.bf16.msra.mxu0 %v9623
  %9907 = vmatprep.subr.bf16.mxu0 0
  %9908 = vmatpush2.bf16.msra.mxu0 %v9622
  %9909 = vmatprep.subr.bf16.mxu0 0
  %9910 = vmatpush2.bf16.msra.mxu0 %v9621
  %9911 = vmatprep.subr.bf16.mxu0 0
  %9912 = vmatpush2.bf16.msra.mxu0 %v9620
  %9913 = vmatprep.subr.bf16.mxu0 0
  %9914 = vmatpush2.bf16.msra.mxu0 %v9619
  %9915 = vmatprep.subr.bf16.mxu0 0
  %9916 = vmatpush2.bf16.msra.mxu0 %v9618
  %9917 = vmatprep.mubr.bf16.mxu0 %v9153
  %9918 = vmatmul.mubr.bf16.gmra.mxu0 %v9152
  %v9919 = vpop.f32.mrf.mxu0
  %v9920 = vadd.f32 %v9855, %v9919
  %v9921 = vpop.f32.mrf.mxu0
  %v9922 = vpop.f32.mrf.mxu0
  %v9923 = vadd.f32 %v9858, %v9922
  %v9924 = vpop.f32.mrf.mxu0
  %9925 = vmatprep.mubr.bf16.mxu0 %v9161
  %9926 = vmatmul.mubr.bf16.gmra.mxu0 %v9160
  %v9927 = vpop.f32.mrf.mxu0
  %v9928 = vadd.f32 %v9863, %v9927
  %v9929 = vpop.f32.mrf.mxu0
  %v9930 = vpop.f32.mrf.mxu0
  %v9931 = vadd.f32 %v9866, %v9930
  %v9932 = vpop.f32.mrf.mxu0
  %9933 = vmatprep.mubr.bf16.mxu0 %v9169
  %9934 = vmatmul.mubr.bf16.gmra.mxu0 %v9168
  %v9935 = vpop.f32.mrf.mxu0
  %v9936 = vadd.f32 %v9871, %v9935
  %v9937 = vpop.f32.mrf.mxu0
  %v9938 = vpop.f32.mrf.mxu0
  %v9939 = vadd.f32 %v9874, %v9938
  %v9940 = vpop.f32.mrf.mxu0
  %9941 = vmatprep.mubr.bf16.mxu0 %v9177
  %9942 = vmatmul.mubr.bf16.gmra.mxu0 %v9176
  %v9943 = vpop.f32.mrf.mxu0
  %v9944 = vadd.f32 %v9879, %v9943
  %v9945 = vpop.f32.mrf.mxu0
  %v9946 = vpop.f32.mrf.mxu0
  %v9947 = vadd.f32 %v9882, %v9946
  %v9948 = vpop.f32.mrf.mxu0
  %9949 = vdwg.mxu0
  %v9950 = vsel %vm112, %v9920, 0.0
  %v9951 = vsel %vm112, %v9923, 0.0
  %v9952 = vadd.f32 %v9950, %v9951
  %v9953 = vsel %vm112, %v9928, 0.0
  %v9954 = vadd.f32 %v9952, %v9953
  %v9955 = vsel %vm112, %v9931, 0.0
  %v9956 = vadd.f32 %v9954, %v9955
  %v9957 = vrot.slane %v9956, 4
  %v9958 = vadd.f32 %v9956, %v9957
  %v9959 = vrot.slane %v9958, 2
  %v9960 = vadd.f32 %v9958, %v9959
  %v9961 = vrot.slane %v9960, 1
  %v9962 = vadd.f32 %v9960, %v9961
  %v9963 = vsel %vm112, %v9936, 0.0
  %v9964 = vsel %vm112, %v9939, 0.0
  %v9965 = vadd.f32 %v9963, %v9964
  %v9966 = vsel %vm112, %v9944, 0.0
  %v9967 = vadd.f32 %v9965, %v9966
  %v9968 = vsel %vm112, %v9947, 0.0
  %v9969 = vadd.f32 %v9967, %v9968
  %v9970 = vrot.slane %v9969, 4
  %v9971 = vadd.f32 %v9969, %v9970
  %v9972 = vrot.slane %v9971, 2
  %v9973 = vadd.f32 %v9971, %v9972
  %v9974 = vrot.slane %v9973, 1
  %v9975 = vadd.f32 %v9973, %v9974
  %vm9976 = vcmask 1040384
  %v9977 = vsel %vm9976, %v9962, %v9975
  %v9978 = vld [vmem:[%s11] sm:$0x1]
  %v9979 = vlaneseq
  %v9980 = vshrl.u32 %v9979, 7
  %v9981 = vsub.s32 0, %v9980
  %v9982 = vrot.slane %v9978, %v9981
  %v9983 = vadd.f32 %v9977, %v9982
  %v9984 = vmul.f32 %v9983, 0.5
  %v9985 = vmul.f32 %v9983, 0.044715
  %v9986 = vmul.f32 %v9985, %v9983
  %v9987 = vmul.f32 %v9986, %v9983
  %v9988 = vadd.f32 %v9983, %v9987
  %v9989 = vmul.f32 %v9988, 0.7978846
  %v9990 = vtanh.pop %v9989
  %v9991 = vadd.f32 %v9990, 1.0
  %v9992 = vmul.f32 %v9984, %v9991
  %v9993 = vld [vmem:[%s11 + $0x8] sm:$0xff]
  %v9994 = vld [vmem:[%s11 + $0x10] sm:$0xff]
  %v9995 = vld [vmem:[%s11 + $0x18] sm:$0xff]
  %v9996 = vld [vmem:[%s11 + $0x20] sm:$0xff]
  %v9997 = vld [vmem:[%s11 + $0x1] sm:$0x1]
  %v9998 = vlaneseq
  %v9999 = vshrl.u32 %v9998, 7
  %v10000 = vsub.s32 0, %v9999
  %v10001 = vrot.slane %v9997, %v10000
  %v10003 = vsel %vm112, %v9992, 0
  %10005 = vmatprep.subr.mxu0 0.0
  %10006 = vmatpush1.msra.mxu0 0.0
  %10007 = vmatprep.subr.mxu0 0.0
  %10008 = vmatpush1.msra.mxu0 0.0
  %10009 = vmatprep.subr.mxu0 0.0
  %10010 = vmatpush1.msra.mxu0 0.0
  %10011 = vmatprep.subr.mxu0 0.0
  %10012 = vmatpush1.msra.mxu0 0.0
  %10013 = vmatprep.subr.mxu0 0.0
  %10014 = vmatpush1.msra.mxu0 0.0
  %10015 = vmatprep.subr.mxu0 0.0
  %10016 = vmatpush1.msra.mxu0 0.0
  %10017 = vmatprep.subr.mxu0 0.0
  %10018 = vmatpush1.msra.mxu0 0.0
  %10019 = vmatprep.subr.mxu0 0.0
  %10020 = vmatpush1.msra.mxu0 0.0
  %10021 = vmatprep.subr.mxu0 0.0
  %10022 = vmatpush1.msra.mxu0 0.0
  %10023 = vmatprep.subr.mxu0 0.0
  %10024 = vmatpush1.msra.mxu0 0.0
  %10025 = vmatprep.subr.mxu0 0.0
  %10026 = vmatpush1.msra.mxu0 0.0
  %10027 = vmatprep.subr.mxu0 0.0
  %10028 = vmatpush1.msra.mxu0 0.0
  %10029 = vmatprep.subr.mxu0 0.0
  %10030 = vmatpush1.msra.mxu0 %v9996
  %10031 = vmatprep.subr.mxu0 0.0
  %10032 = vmatpush1.msra.mxu0 %v9995
  %10033 = vmatprep.subr.mxu0 0.0
  %10034 = vmatpush1.msra.mxu0 %v9994
  %10035 = vmatprep.subr.mxu0 0.0
  %10036 = vmatpush1.msra.mxu0 %v9993
  %10037 = vmatprep.subr.mxu0 0.0
  %10038 = vmatpush2.msra.mxu0 0.0
  %10039 = vmatprep.subr.mxu0 0.0
  %10040 = vmatpush2.msra.mxu0 0.0
  %10041 = vmatprep.subr.mxu0 0.0
  %10042 = vmatpush2.msra.mxu0 0.0
  %10043 = vmatprep.subr.mxu0 0.0
  %10044 = vmatpush2.msra.mxu0 0.0
  %10045 = vmatprep.subr.mxu0 0.0
  %10046 = vmatpush2.msra.mxu0 0.0
  %10047 = vmatprep.subr.mxu0 0.0
  %10048 = vmatpush2.msra.mxu0 0.0
  %10049 = vmatprep.subr.mxu0 0.0
  %10050 = vmatpush2.msra.mxu0 0.0
  %10051 = vmatprep.subr.mxu0 0.0
  %10052 = vmatpush2.msra.mxu0 0.0
  %10053 = vmatprep.subr.mxu0 0.0
  %10054 = vmatpush2.msra.mxu0 0.0
  %10055 = vmatprep.subr.mxu0 0.0
  %10056 = vmatpush2.msra.mxu0 0.0
  %10057 = vmatprep.subr.mxu0 0.0
  %10058 = vmatpush2.msra.mxu0 0.0
  %10059 = vmatprep.subr.mxu0 0.0
  %10060 = vmatpush2.msra.mxu0 0.0
  %10061 = vmatprep.subr.mxu0 0.0
  %10062 = vmatpush2.msra.mxu0 0.0
  %10063 = vmatprep.subr.mxu0 0.0
  %10064 = vmatpush2.msra.mxu0 0.0
  %10065 = vmatprep.subr.mxu0 0.0
  %10066 = vmatpush2.msra.mxu0 0.0
  %10067 = vmatprep.subr.mxu0 0.0
  %10068 = vmatpush2.msra.mxu0 0.0
  %10069 = vmatprep.mubr.f32.mxu0 0.0
  %10070 = vmatmul.mubr.f32.gmra.mxu0 %v10003
  %v10071 = vpop.f32.mrf.mxu0
  %v10072 = vadd.f32 %v10001, %v10071
  %v10073 = vpop.f32.mrf.mxu0
  %10074 = vdwg.mxu0
  %vm10075 = vcmask 25600
  %10076 = vst.msk [vmem:[%s12] sm:$0x3] %vm10075, %v10072
  // Predicated region
  $region50: #{brant_cls_forward.1} parent=0 // pred_check
    _
  $region51: #{brant_cls_forward.1} parent=0 // pred_check_branch
    %10078 = sbr.rel (0) target = $region53
  $region52: #{brant_cls_forward.1} parent=0 // pred_region
    _
  $region53: #{brant_cls_forward.1} parent=0 // pred_fallthru
    _
  // Predicated region
  $region54: #{brant_cls_forward.1} parent=0 // pred_check
    _
  $region55: #{brant_cls_forward.1} parent=0 // pred_check_branch
    %10080 = sbr.rel (0) target = $region57
  $region56: #{brant_cls_forward.1} parent=0 // pred_region
    _
  $region57: #{brant_cls_forward.1} parent=0 // pred_fallthru
    _

</llo_original>
